<compile_context>
chip_gen: v7x
topology: tpu7x:2x2x1
jax: 0.10.0
libtpu: 0.0.40
codegen_flags: <defaults>
</compile_context>

<pallas_src>
import functools

import jax
import jax.numpy as jnp
import numpy as np
from jax.experimental import pallas as pl
from jax.experimental.pallas import tpu as pltpu


# ----------------------------- host-side selector build -------------------------


def _tap_selector_np(bb, lout, lin, k):
    """(bb*lout, bb*lin) 0/1 matrix S with S[b*lout+i, b*lin+2*i+k] = 1.

    Multiplying S @ act extracts conv tap k of a stride-2 VALID conv with a
    single contiguous matmul (exactly one 1.0 per row -> exact in bf16).
    NOTE: block-diagonal over the batch, i.e. O(bb^2) memory -- fine for the
    small batches used here; for large bb switch to per-batch selection.
    """
    sel = np.zeros((bb * lout, bb * lin), np.float32)
    r = np.arange(bb * lout)
    b = r // lout
    i = r % lout
    sel[r, b * lin + 2 * i + k] = 1.0
    return sel


def _const_map(ndim):
    return lambda i: (0,) * ndim


# ----------------------------- fused Pallas kernel ------------------------------


def _resnet_fused_kernel(x_ref, *refs, layer_dims, bb):
    """Whole conv stack + avgpool for all `bb` batch rows (single grid step).

    refs = (sel_0k0..sel_4k2, w_0..w_4, shift_0..shift_4, x1d_1..x1d_4, feat).
      sel_{l,k}: (bb*Lout_l, bb*Lin_l) bf16 constant 0/1 tap selectors
      w_l:       (3*Cin_l, Cout_l) bf16 for Cin%128==0, else (3, Cin_l, Cout_l)
      shift_l:   (1, Cout_l) f32 (conv bias, + folded BN shift for layer 0)
      outputs:   (bb, Lout_l, Cout_l) and (bb, Cout_4)
    """
    n = len(layer_dims)
    sel_refs = refs[:3 * n]
    w_refs = refs[3 * n:4 * n]
    s_refs = refs[4 * n:5 * n]
    out_refs = refs[5 * n:5 * n + (n - 1)]
    feat_ref = refs[-1]

    lin0, cin0 = layer_dims[0][0], layer_dims[0][1]
    # Flatten the batch into the matmul M dimension; operands in bf16.
    act = x_ref[...].reshape(bb * lin0, cin0).astype(jnp.bfloat16)

    y = None
    for idx, (lin, cin, lout, cout) in enumerate(layer_dims):
        # Stride-2 tap extraction via exact 0/1 selection matmuls (bf16 exact,
        # f32 accumulate -> cast back is lossless since each row has one 1.0).
        taps = [
            jnp.dot(sel_refs[3 * idx + k][...], act,
                    preferred_element_type=jnp.float32).astype(jnp.bfloat16)
            for k in range(3)
        ]
        if cin % 128 == 0:
            # Single deep-K im2col matmul against the pre-reshaped weight slab.
            xcol = jnp.concatenate(taps, axis=-1)          # (M, 3*Cin), lane-aligned
            y = jnp.dot(xcol, w_refs[idx][...], preferred_element_type=jnp.float32)
        else:
            # Tiny-channel layers (Cin = 4 / 64): three shallow matmuls to avoid
            # unaligned lane concatenation.
            y = jnp.dot(taps[0], w_refs[idx][0], preferred_element_type=jnp.float32)
            y = y + jnp.dot(taps[1], w_refs[idx][1], preferred_element_type=jnp.float32)
            y = y + jnp.dot(taps[2], w_refs[idx][2], preferred_element_type=jnp.float32)
        y = y + s_refs[idx][...]              # folded bias (+ BN shift for layer 0), f32
        if idx == 0:
            y = jnp.maximum(y, 0.0)           # first_conv ReLU
        if idx >= 1:                          # x1d_0 is never returned -> stays on-chip
            out_refs[idx - 1][...] = y.reshape(bb, lout, cout).astype(
                out_refs[idx - 1].dtype)
        act = y.astype(jnp.bfloat16)          # next layer's matmul operand

    # AdaptiveAvgPool1d(1): mean over the final length axis in f32.
    _, _, lout_f, cout_f = layer_dims[-1]
    feat = jnp.mean(y.reshape(bb, lout_f, cout_f), axis=1)
    feat_ref[...] = feat.astype(feat_ref.dtype)


# ------------------------------ model wrapper ------------------------------------


def init_params(key, in_channels):
    """Deterministic synthetic parameters matching the PyTorch module shapes."""
    dims = [(in_channels, 64), (64, 128), (128, 256), (256, 512), (512, 512)]
    params = []
    for cin, cout in dims:
        key, kw, kb = jax.random.split(key, 3)
        bound = 1.0 / np.sqrt(cin * 3)
        w = jax.random.uniform(kw, (cout, cin, 3), jnp.float32, -bound, bound)
        b = jax.random.uniform(kb, (cout,), jnp.float32, -bound, bound)
        params.append((w, b))
    # BatchNorm1d(64) params / running stats (PyTorch defaults).
    bn = dict(
        gamma=jnp.ones((64,), jnp.float32),
        beta=jnp.zeros((64,), jnp.float32),
        mean=jnp.zeros((64,), jnp.float32),
        var=jnp.ones((64,), jnp.float32),
        eps=1e-5,
    )
    return params, bn


def prepare_params(params, bn):
    """One-time param prep (hoisted out of the forward):
      * transpose to tap-major (3, Cin, Cout),
      * fold conv bias + inference-mode BatchNorm into w/shift,
      * pre-reshape deep-K weights to contiguous (3*Cin, Cout) bf16 slabs."""
    # TODO(synk): BatchNorm is folded with running stats (inference mode);
    # training-mode batch statistics are not implemented.
    scale = bn["gamma"] * jax.lax.rsqrt(bn["var"] + bn["eps"])
    bn_shift = bn["beta"] - bn["mean"] * scale
    weights, shifts = [], []
    for i, (w, b) in enumerate(params):
        cout, cin, _ = w.shape
        wt = jnp.transpose(w, (2, 1, 0))            # (Cout, Cin, 3) -> (3, Cin, Cout)
        if i == 0:
            wt = wt * scale[None, None, :]
            shift = b * scale + bn_shift
        else:
            shift = b
        if cin % 128 == 0:
            wt = wt.reshape(3 * cin, cout)          # contiguous deep-K slab
        weights.append(wt.astype(jnp.bfloat16))     # halve the dominant HBM bytes
        shifts.append(shift[None, :].astype(jnp.float32))
    return weights, shifts


def resnet_forward(x_ncw, weights, shifts):
    """x_ncw: (B, C_in, L) NCW like PyTorch.  Returns the module's 5-tuple."""
    B = x_ncw.shape[0]
    x = jnp.transpose(x_ncw, (0, 2, 1))             # NCW -> NLC for the kernel
    lin, cin = x.shape[1], x.shape[2]

    layer_dims = []
    for wt in weights:
        cout = wt.shape[-1]
        lout = (lin - 3) // 2 + 1
        layer_dims.append((lin, cin, lout, cout))
        lin, cin = lout, cout
    layer_dims = tuple(layer_dims)

    # Single grid step: weights DMA'd exactly once, full MXU M-occupancy
    # (no batch split -> no weight duplication across v7x cores, no serial
    # extra step on single-TC v5e/v6e).
    bb = B

    # Constant 0/1 tap selectors, built host-side (no in-kernel iota work).
    selectors = []
    for (lin_, _, lout_, _) in layer_dims:
        for k in range(3):
            selectors.append(
                jnp.asarray(_tap_selector_np(bb, lout_, lin_, k), jnp.bfloat16))

    out_shape = tuple(
        [jax.ShapeDtypeStruct((B, d[2], d[3]), x.dtype) for d in layer_dims[1:]]
        + [jax.ShapeDtypeStruct((B, layer_dims[-1][3]), x.dtype)]
    )
    in_specs = (
        [pl.BlockSpec((bb, x.shape[1], x.shape[2]), _const_map(3))]
        + [pl.BlockSpec(s.shape, _const_map(2)) for s in selectors]
        + [pl.BlockSpec(w.shape, _const_map(w.ndim)) for w in weights]
        + [pl.BlockSpec(s.shape, _const_map(2)) for s in shifts]
    )
    out_specs = tuple(
        [pl.BlockSpec((bb, d[2], d[3]), _const_map(3)) for d in layer_dims[1:]]
        + [pl.BlockSpec((bb, layer_dims[-1][3]), _const_map(2))]
    )

    # Advisory cost estimate so XLA schedules the tiny custom call sanely.
    flops = 0
    for (lin_, cin_, lout_, cout_) in layer_dims:
        flops += 2 * 3 * (bb * lout_) * (bb * lin_) * cin_      # selection matmuls
        flops += 2 * (bb * lout_) * (3 * cin_) * cout_          # conv matmul
    bytes_accessed = int(np.prod(x.shape)) * 4
    bytes_accessed += sum(int(np.prod(w.shape)) * 2 for w in weights)
    bytes_accessed += sum(int(np.prod(s.shape)) * 4 for s in shifts)
    bytes_accessed += sum(int(np.prod(s.shape)) * 2 for s in selectors)
    bytes_accessed += sum(B * d[2] * d[3] * 4 for d in layer_dims[1:])
    bytes_accessed += B * layer_dims[-1][3] * 4
    cost = pl.CostEstimate(flops=int(flops), transcendentals=0,
                           bytes_accessed=int(bytes_accessed))

    kernel = functools.partial(_resnet_fused_kernel, layer_dims=layer_dims, bb=bb)
    x1, x2, x3, x4, feat = pl.pallas_call(
        kernel,
        out_shape=out_shape,
        grid=(1,),
        in_specs=in_specs,
        out_specs=out_specs,
        compiler_params=pltpu.CompilerParams(
            dimension_semantics=("arbitrary",),
            vmem_limit_bytes=32 * 1024 * 1024,   # <<64 MiB: safe on v7x as well
        ),
        cost_estimate=cost,
    )(x, *selectors, *weights, *shifts)

    to_ncw = lambda t: jnp.transpose(t, (0, 2, 1))  # back to PyTorch NCW layout
    return to_ncw(x1), to_ncw(x2), to_ncw(x3), to_ncw(x4), feat


# Pure-JAX reference (lax.conv, f32) used only to sanity-check the fused kernel.
def ref_forward(x, params, bn):
    def conv(y, w, b):
        y = jax.lax.conv_general_dilated(
            y, w, (2,), "VALID", dimension_numbers=("NCH", "OIH", "NCH"))
        return y + b[None, :, None]

    (w0, b0), *rest = params
    y = conv(x, w0, b0)
    scale = bn["gamma"] / jnp.sqrt(bn["var"] + bn["eps"])
    shift = bn["beta"] - bn["mean"] * scale
    y = jnp.maximum(y * scale[None, :, None] + shift[None, :, None], 0.0)
    outs = []
    for w, b in rest:
        y = conv(y, w, b)
        outs.append(y)
    feat = jnp.mean(outs[-1], axis=-1)
    return (*outs, feat)


if __name__ == "__main__":
    B, C_IN, L = 2, 4, 64
    key = jax.random.PRNGKey(0)
    kx, kp = jax.random.split(key)
    x = jax.random.normal(kx, (B, C_IN, L), jnp.float32)
    params, bn = init_params(kp, C_IN)
    weights, shifts = prepare_params(params, bn)    # hoisted one-time param prep

    fwd = jax.jit(resnet_forward)
    outs = jax.block_until_ready(fwd(x, weights, shifts))

    refs = ref_forward(x, params, bn)
    # Tolerance covers the bf16 weight/operand casts vs. the f32 XLA reference.
    for o, r in zip(outs, refs):
        np.testing.assert_allclose(np.asarray(o), np.asarray(r), rtol=2e-2, atol=2e-2)

    print("KERNEL_OK")
</pallas_src>

<mosaic_0001>
module attributes {stable_mosaic.version = 11 : i64} {
  func.func @_resnet_fused_kernel(%arg0: i32, %arg1: memref<2x64x4xf32, #tpu.memory_space<vmem>>, %arg2: memref<62x128xbf16, #tpu.memory_space<vmem>>, %arg3: memref<62x128xbf16, #tpu.memory_space<vmem>>, %arg4: memref<62x128xbf16, #tpu.memory_space<vmem>>, %arg5: memref<30x62xbf16, #tpu.memory_space<vmem>>, %arg6: memref<30x62xbf16, #tpu.memory_space<vmem>>, %arg7: memref<30x62xbf16, #tpu.memory_space<vmem>>, %arg8: memref<14x30xbf16, #tpu.memory_space<vmem>>, %arg9: memref<14x30xbf16, #tpu.memory_space<vmem>>, %arg10: memref<14x30xbf16, #tpu.memory_space<vmem>>, %arg11: memref<6x14xbf16, #tpu.memory_space<vmem>>, %arg12: memref<6x14xbf16, #tpu.memory_space<vmem>>, %arg13: memref<6x14xbf16, #tpu.memory_space<vmem>>, %arg14: memref<2x6xbf16, #tpu.memory_space<vmem>>, %arg15: memref<2x6xbf16, #tpu.memory_space<vmem>>, %arg16: memref<2x6xbf16, #tpu.memory_space<vmem>>, %arg17: memref<3x4x64xbf16, #tpu.memory_space<vmem>>, %arg18: memref<3x64x128xbf16, #tpu.memory_space<vmem>>, %arg19: memref<384x256xbf16, #tpu.memory_space<vmem>>, %arg20: memref<768x512xbf16, #tpu.memory_space<vmem>>, %arg21: memref<1536x512xbf16, #tpu.memory_space<vmem>>, %arg22: memref<1x64xf32, #tpu.memory_space<vmem>>, %arg23: memref<1x128xf32, #tpu.memory_space<vmem>>, %arg24: memref<1x256xf32, #tpu.memory_space<vmem>>, %arg25: memref<1x512xf32, #tpu.memory_space<vmem>>, %arg26: memref<1x512xf32, #tpu.memory_space<vmem>>, %arg27: memref<2x15x128xf32, #tpu.memory_space<vmem>>, %arg28: memref<2x7x256xf32, #tpu.memory_space<vmem>>, %arg29: memref<2x3x512xf32, #tpu.memory_space<vmem>>, %arg30: memref<2x1x512xf32, #tpu.memory_space<vmem>>, %arg31: memref<2x512xf32, #tpu.memory_space<vmem>>) attributes {dimension_semantics = [#tpu.dimension_semantics<arbitrary>], iteration_bounds = array<i64: 1>, scalar_prefetch = 0 : i64, scratch_operands = 0 : i64, tpu.core_type = #tpu.core_type<tc>, window_params = [{pipeline_mode = #tpu.pipeline_mode<synchronous>, transform_indices = @transform_0, window_bounds = array<i64: 2, 64, 4>}, {pipeline_mode = #tpu.pipeline_mode<synchronous>, transform_indices = @transform_1, window_bounds = array<i64: 62, 128>}, {pipeline_mode = #tpu.pipeline_mode<synchronous>, transform_indices = @transform_2, window_bounds = array<i64: 62, 128>}, {pipeline_mode = #tpu.pipeline_mode<synchronous>, transform_indices = @transform_3, window_bounds = array<i64: 62, 128>}, {pipeline_mode = #tpu.pipeline_mode<synchronous>, transform_indices = @transform_4, window_bounds = array<i64: 30, 62>}, {pipeline_mode = #tpu.pipeline_mode<synchronous>, transform_indices = @transform_5, window_bounds = array<i64: 30, 62>}, {pipeline_mode = #tpu.pipeline_mode<synchronous>, transform_indices = @transform_6, window_bounds = array<i64: 30, 62>}, {pipeline_mode = #tpu.pipeline_mode<synchronous>, transform_indices = @transform_7, window_bounds = array<i64: 14, 30>}, {pipeline_mode = #tpu.pipeline_mode<synchronous>, transform_indices = @transform_8, window_bounds = array<i64: 14, 30>}, {pipeline_mode = #tpu.pipeline_mode<synchronous>, transform_indices = @transform_9, window_bounds = array<i64: 14, 30>}, {pipeline_mode = #tpu.pipeline_mode<synchronous>, transform_indices = @transform_10, window_bounds = array<i64: 6, 14>}, {pipeline_mode = #tpu.pipeline_mode<synchronous>, transform_indices = @transform_11, window_bounds = array<i64: 6, 14>}, {pipeline_mode = #tpu.pipeline_mode<synchronous>, transform_indices = @transform_12, window_bounds = array<i64: 6, 14>}, {pipeline_mode = #tpu.pipeline_mode<synchronous>, transform_indices = @transform_13, window_bounds = array<i64: 2, 6>}, {pipeline_mode = #tpu.pipeline_mode<synchronous>, transform_indices = @transform_14, window_bounds = array<i64: 2, 6>}, {pipeline_mode = #tpu.pipeline_mode<synchronous>, transform_indices = @transform_15, window_bounds = array<i64: 2, 6>}, {pipeline_mode = #tpu.pipeline_mode<synchronous>, transform_indices = @transform_16, window_bounds = array<i64: 3, 4, 64>}, {pipeline_mode = #tpu.pipeline_mode<synchronous>, transform_indices = @transform_17, window_bounds = array<i64: 3, 64, 128>}, {pipeline_mode = #tpu.pipeline_mode<synchronous>, transform_indices = @transform_18, window_bounds = array<i64: 384, 256>}, {pipeline_mode = #tpu.pipeline_mode<synchronous>, transform_indices = @transform_19, window_bounds = array<i64: 768, 512>}, {pipeline_mode = #tpu.pipeline_mode<synchronous>, transform_indices = @transform_20, window_bounds = array<i64: 1536, 512>}, {pipeline_mode = #tpu.pipeline_mode<synchronous>, transform_indices = @transform_21, window_bounds = array<i64: 1, 64>}, {pipeline_mode = #tpu.pipeline_mode<synchronous>, transform_indices = @transform_22, window_bounds = array<i64: 1, 128>}, {pipeline_mode = #tpu.pipeline_mode<synchronous>, transform_indices = @transform_23, window_bounds = array<i64: 1, 256>}, {pipeline_mode = #tpu.pipeline_mode<synchronous>, transform_indices = @transform_24, window_bounds = array<i64: 1, 512>}, {pipeline_mode = #tpu.pipeline_mode<synchronous>, transform_indices = @transform_25, window_bounds = array<i64: 1, 512>}, {pipeline_mode = #tpu.pipeline_mode<synchronous>, transform_indices = @transform_26, window_bounds = array<i64: 2, 15, 128>}, {pipeline_mode = #tpu.pipeline_mode<synchronous>, transform_indices = @transform_27, window_bounds = array<i64: 2, 7, 256>}, {pipeline_mode = #tpu.pipeline_mode<synchronous>, transform_indices = @transform_28, window_bounds = array<i64: 2, 3, 512>}, {pipeline_mode = #tpu.pipeline_mode<synchronous>, transform_indices = @transform_29, window_bounds = array<i64: 2, 1, 512>}, {pipeline_mode = #tpu.pipeline_mode<synchronous>, transform_indices = @transform_30, window_bounds = array<i64: 2, 512>}]} {
    %c0 = arith.constant 0 : index
    %c0_0 = arith.constant 0 : index
    %c0_1 = arith.constant 0 : index
    %0 = vector.load %arg1[%c0, %c0_0, %c0_1] : memref<2x64x4xf32, #tpu.memory_space<vmem>>, vector<2x64x4xf32>
    %1 = vector.shape_cast %0 : vector<2x64x4xf32> to vector<128x4xf32>
    %2 = arith.truncf %1 : vector<128x4xf32> to vector<128x4xbf16>
    %c0_2 = arith.constant 0 : index
    %c0_3 = arith.constant 0 : index
    %3 = vector.load %arg2[%c0_2, %c0_3] : memref<62x128xbf16, #tpu.memory_space<vmem>>, vector<62x128xbf16>
    %cst = arith.constant dense<0.000000e+00> : vector<62x4xf32>
    %4 = tpu.matmul %3, %2, %cst {dimension_numbers = #tpu.dot_dimension_numbers<[1], [0], [0], [1], [0, 0, 1, 1], [], []>} : vector<62x128xbf16>, vector<128x4xbf16>, vector<62x4xf32> -> vector<62x4xf32>
    %5 = arith.truncf %4 : vector<62x4xf32> to vector<62x4xbf16>
    %c0_4 = arith.constant 0 : index
    %c0_5 = arith.constant 0 : index
    %6 = vector.load %arg3[%c0_4, %c0_5] : memref<62x128xbf16, #tpu.memory_space<vmem>>, vector<62x128xbf16>
    %cst_6 = arith.constant dense<0.000000e+00> : vector<62x4xf32>
    %7 = tpu.matmul %6, %2, %cst_6 {dimension_numbers = #tpu.dot_dimension_numbers<[1], [0], [0], [1], [0, 0, 1, 1], [], []>} : vector<62x128xbf16>, vector<128x4xbf16>, vector<62x4xf32> -> vector<62x4xf32>
    %8 = arith.truncf %7 : vector<62x4xf32> to vector<62x4xbf16>
    %c0_7 = arith.constant 0 : index
    %c0_8 = arith.constant 0 : index
    %9 = vector.load %arg4[%c0_7, %c0_8] : memref<62x128xbf16, #tpu.memory_space<vmem>>, vector<62x128xbf16>
    %cst_9 = arith.constant dense<0.000000e+00> : vector<62x4xf32>
    %10 = tpu.matmul %9, %2, %cst_9 {dimension_numbers = #tpu.dot_dimension_numbers<[1], [0], [0], [1], [0, 0, 1, 1], [], []>} : vector<62x128xbf16>, vector<128x4xbf16>, vector<62x4xf32> -> vector<62x4xf32>
    %11 = arith.truncf %10 : vector<62x4xf32> to vector<62x4xbf16>
    %c0_10 = arith.constant 0 : index
    %c0_11 = arith.constant 0 : index
    %c0_12 = arith.constant 0 : index
    %12 = vector.load %arg17[%c0_10, %c0_11, %c0_12] : memref<3x4x64xbf16, #tpu.memory_space<vmem>>, vector<1x4x64xbf16>
    %13 = vector.shape_cast %12 : vector<1x4x64xbf16> to vector<4x64xbf16>
    %cst_13 = arith.constant dense<0.000000e+00> : vector<62x64xf32>
    %14 = tpu.matmul %5, %13, %cst_13 {dimension_numbers = #tpu.dot_dimension_numbers<[1], [0], [0], [1], [0, 0, 1, 1], [], []>} : vector<62x4xbf16>, vector<4x64xbf16>, vector<62x64xf32> -> vector<62x64xf32>
    %c1 = arith.constant 1 : index
    %c0_14 = arith.constant 0 : index
    %c0_15 = arith.constant 0 : index
    %15 = vector.load %arg17[%c1, %c0_14, %c0_15] : memref<3x4x64xbf16, #tpu.memory_space<vmem>>, vector<1x4x64xbf16>
    %16 = vector.shape_cast %15 : vector<1x4x64xbf16> to vector<4x64xbf16>
    %cst_16 = arith.constant dense<0.000000e+00> : vector<62x64xf32>
    %17 = tpu.matmul %8, %16, %cst_16 {dimension_numbers = #tpu.dot_dimension_numbers<[1], [0], [0], [1], [0, 0, 1, 1], [], []>} : vector<62x4xbf16>, vector<4x64xbf16>, vector<62x64xf32> -> vector<62x64xf32>
    %18 = arith.addf %14, %17 : vector<62x64xf32>
    %c2 = arith.constant 2 : index
    %c0_17 = arith.constant 0 : index
    %c0_18 = arith.constant 0 : index
    %19 = vector.load %arg17[%c2, %c0_17, %c0_18] : memref<3x4x64xbf16, #tpu.memory_space<vmem>>, vector<1x4x64xbf16>
    %20 = vector.shape_cast %19 : vector<1x4x64xbf16> to vector<4x64xbf16>
    %cst_19 = arith.constant dense<0.000000e+00> : vector<62x64xf32>
    %21 = tpu.matmul %11, %20, %cst_19 {dimension_numbers = #tpu.dot_dimension_numbers<[1], [0], [0], [1], [0, 0, 1, 1], [], []>} : vector<62x4xbf16>, vector<4x64xbf16>, vector<62x64xf32> -> vector<62x64xf32>
    %22 = arith.addf %18, %21 : vector<62x64xf32>
    %c0_20 = arith.constant 0 : index
    %c0_21 = arith.constant 0 : index
    %23 = vector.load %arg22[%c0_20, %c0_21] : memref<1x64xf32, #tpu.memory_space<vmem>>, vector<1x64xf32>
    %24 = vector.broadcast %23 : vector<1x64xf32> to vector<62x64xf32>
    %25 = arith.addf %22, %24 : vector<62x64xf32>
    %cst_22 = arith.constant 0.000000e+00 : f32
    %26 = vector.broadcast %cst_22 : f32 to vector<62x64xf32>
    %27 = arith.maximumf %25, %26 : vector<62x64xf32>
    %28 = arith.truncf %27 : vector<62x64xf32> to vector<62x64xbf16>
    %c0_23 = arith.constant 0 : index
    %c0_24 = arith.constant 0 : index
    %29 = vector.load %arg5[%c0_23, %c0_24] : memref<30x62xbf16, #tpu.memory_space<vmem>>, vector<30x62xbf16>
    %cst_25 = arith.constant dense<0.000000e+00> : vector<30x64xf32>
    %30 = tpu.matmul %29, %28, %cst_25 {dimension_numbers = #tpu.dot_dimension_numbers<[1], [0], [0], [1], [0, 0, 1, 1], [], []>} : vector<30x62xbf16>, vector<62x64xbf16>, vector<30x64xf32> -> vector<30x64xf32>
    %31 = arith.truncf %30 : vector<30x64xf32> to vector<30x64xbf16>
    %c0_26 = arith.constant 0 : index
    %c0_27 = arith.constant 0 : index
    %32 = vector.load %arg6[%c0_26, %c0_27] : memref<30x62xbf16, #tpu.memory_space<vmem>>, vector<30x62xbf16>
    %cst_28 = arith.constant dense<0.000000e+00> : vector<30x64xf32>
    %33 = tpu.matmul %32, %28, %cst_28 {dimension_numbers = #tpu.dot_dimension_numbers<[1], [0], [0], [1], [0, 0, 1, 1], [], []>} : vector<30x62xbf16>, vector<62x64xbf16>, vector<30x64xf32> -> vector<30x64xf32>
    %34 = arith.truncf %33 : vector<30x64xf32> to vector<30x64xbf16>
    %c0_29 = arith.constant 0 : index
    %c0_30 = arith.constant 0 : index
    %35 = vector.load %arg7[%c0_29, %c0_30] : memref<30x62xbf16, #tpu.memory_space<vmem>>, vector<30x62xbf16>
    %cst_31 = arith.constant dense<0.000000e+00> : vector<30x64xf32>
    %36 = tpu.matmul %35, %28, %cst_31 {dimension_numbers = #tpu.dot_dimension_numbers<[1], [0], [0], [1], [0, 0, 1, 1], [], []>} : vector<30x62xbf16>, vector<62x64xbf16>, vector<30x64xf32> -> vector<30x64xf32>
    %37 = arith.truncf %36 : vector<30x64xf32> to vector<30x64xbf16>
    %c0_32 = arith.constant 0 : index
    %c0_33 = arith.constant 0 : index
    %c0_34 = arith.constant 0 : index
    %38 = vector.load %arg18[%c0_32, %c0_33, %c0_34] : memref<3x64x128xbf16, #tpu.memory_space<vmem>>, vector<1x64x128xbf16>
    %39 = vector.shape_cast %38 : vector<1x64x128xbf16> to vector<64x128xbf16>
    %cst_35 = arith.constant dense<0.000000e+00> : vector<30x128xf32>
    %40 = tpu.matmul %31, %39, %cst_35 {dimension_numbers = #tpu.dot_dimension_numbers<[1], [0], [0], [1], [0, 0, 1, 1], [], []>} : vector<30x64xbf16>, vector<64x128xbf16>, vector<30x128xf32> -> vector<30x128xf32>
    %c1_36 = arith.constant 1 : index
    %c0_37 = arith.constant 0 : index
    %c0_38 = arith.constant 0 : index
    %41 = vector.load %arg18[%c1_36, %c0_37, %c0_38] : memref<3x64x128xbf16, #tpu.memory_space<vmem>>, vector<1x64x128xbf16>
    %42 = vector.shape_cast %41 : vector<1x64x128xbf16> to vector<64x128xbf16>
    %cst_39 = arith.constant dense<0.000000e+00> : vector<30x128xf32>
    %43 = tpu.matmul %34, %42, %cst_39 {dimension_numbers = #tpu.dot_dimension_numbers<[1], [0], [0], [1], [0, 0, 1, 1], [], []>} : vector<30x64xbf16>, vector<64x128xbf16>, vector<30x128xf32> -> vector<30x128xf32>
    %44 = arith.addf %40, %43 : vector<30x128xf32>
    %c2_40 = arith.constant 2 : index
    %c0_41 = arith.constant 0 : index
    %c0_42 = arith.constant 0 : index
    %45 = vector.load %arg18[%c2_40, %c0_41, %c0_42] : memref<3x64x128xbf16, #tpu.memory_space<vmem>>, vector<1x64x128xbf16>
    %46 = vector.shape_cast %45 : vector<1x64x128xbf16> to vector<64x128xbf16>
    %cst_43 = arith.constant dense<0.000000e+00> : vector<30x128xf32>
    %47 = tpu.matmul %37, %46, %cst_43 {dimension_numbers = #tpu.dot_dimension_numbers<[1], [0], [0], [1], [0, 0, 1, 1], [], []>} : vector<30x64xbf16>, vector<64x128xbf16>, vector<30x128xf32> -> vector<30x128xf32>
    %48 = arith.addf %44, %47 : vector<30x128xf32>
    %c0_44 = arith.constant 0 : index
    %c0_45 = arith.constant 0 : index
    %49 = vector.load %arg23[%c0_44, %c0_45] : memref<1x128xf32, #tpu.memory_space<vmem>>, vector<1x128xf32>
    %50 = vector.broadcast %49 : vector<1x128xf32> to vector<30x128xf32>
    %51 = arith.addf %48, %50 : vector<30x128xf32>
    %52 = vector.shape_cast %51 : vector<30x128xf32> to vector<2x15x128xf32>
    %c0_46 = arith.constant 0 : index
    %c0_47 = arith.constant 0 : index
    %c0_48 = arith.constant 0 : index
    %53 = vector.load %arg27[%c0_46, %c0_47, %c0_48] : memref<2x15x128xf32, #tpu.memory_space<vmem>>, vector<2x15x128xf32>
    tpu.vector_store %arg27[%c0_46, %c0_47, %c0_48], %52 {strides = array<i32>} : memref<2x15x128xf32, #tpu.memory_space<vmem>>, vector<2x15x128xf32>,
    %54 = arith.truncf %51 : vector<30x128xf32> to vector<30x128xbf16>
    %c0_49 = arith.constant 0 : index
    %c0_50 = arith.constant 0 : index
    %55 = vector.load %arg8[%c0_49, %c0_50] : memref<14x30xbf16, #tpu.memory_space<vmem>>, vector<14x30xbf16>
    %cst_51 = arith.constant dense<0.000000e+00> : vector<14x128xf32>
    %56 = tpu.matmul %55, %54, %cst_51 {dimension_numbers = #tpu.dot_dimension_numbers<[1], [0], [0], [1], [0, 0, 1, 1], [], []>} : vector<14x30xbf16>, vector<30x128xbf16>, vector<14x128xf32> -> vector<14x128xf32>
    %57 = arith.truncf %56 : vector<14x128xf32> to vector<14x128xbf16>
    %c0_52 = arith.constant 0 : index
    %c0_53 = arith.constant 0 : index
    %58 = vector.load %arg9[%c0_52, %c0_53] : memref<14x30xbf16, #tpu.memory_space<vmem>>, vector<14x30xbf16>
    %cst_54 = arith.constant dense<0.000000e+00> : vector<14x128xf32>
    %59 = tpu.matmul %58, %54, %cst_54 {dimension_numbers = #tpu.dot_dimension_numbers<[1], [0], [0], [1], [0, 0, 1, 1], [], []>} : vector<14x30xbf16>, vector<30x128xbf16>, vector<14x128xf32> -> vector<14x128xf32>
    %60 = arith.truncf %59 : vector<14x128xf32> to vector<14x128xbf16>
    %c0_55 = arith.constant 0 : index
    %c0_56 = arith.constant 0 : index
    %61 = vector.load %arg10[%c0_55, %c0_56] : memref<14x30xbf16, #tpu.memory_space<vmem>>, vector<14x30xbf16>
    %cst_57 = arith.constant dense<0.000000e+00> : vector<14x128xf32>
    %62 = tpu.matmul %61, %54, %cst_57 {dimension_numbers = #tpu.dot_dimension_numbers<[1], [0], [0], [1], [0, 0, 1, 1], [], []>} : vector<14x30xbf16>, vector<30x128xbf16>, vector<14x128xf32> -> vector<14x128xf32>
    %63 = arith.truncf %62 : vector<14x128xf32> to vector<14x128xbf16>
    %64 = tpu.concatenate %57, %60, %63 in 1 : vector<14x128xbf16>, vector<14x128xbf16>, vector<14x128xbf16> -> vector<14x384xbf16>
    %c0_58 = arith.constant 0 : index
    %c0_59 = arith.constant 0 : index
    %65 = vector.load %arg19[%c0_58, %c0_59] : memref<384x256xbf16, #tpu.memory_space<vmem>>, vector<384x256xbf16>
    %cst_60 = arith.constant dense<0.000000e+00> : vector<14x256xf32>
    %66 = tpu.matmul %64, %65, %cst_60 {dimension_numbers = #tpu.dot_dimension_numbers<[1], [0], [0], [1], [0, 0, 1, 1], [], []>} : vector<14x384xbf16>, vector<384x256xbf16>, vector<14x256xf32> -> vector<14x256xf32>
    %c0_61 = arith.constant 0 : index
    %c0_62 = arith.constant 0 : index
    %67 = vector.load %arg24[%c0_61, %c0_62] : memref<1x256xf32, #tpu.memory_space<vmem>>, vector<1x256xf32>
    %68 = vector.broadcast %67 : vector<1x256xf32> to vector<14x256xf32>
    %69 = arith.addf %66, %68 : vector<14x256xf32>
    %70 = vector.shape_cast %69 : vector<14x256xf32> to vector<2x7x256xf32>
    %c0_63 = arith.constant 0 : index
    %c0_64 = arith.constant 0 : index
    %c0_65 = arith.constant 0 : index
    %71 = vector.load %arg28[%c0_63, %c0_64, %c0_65] : memref<2x7x256xf32, #tpu.memory_space<vmem>>, vector<2x7x256xf32>
    tpu.vector_store %arg28[%c0_63, %c0_64, %c0_65], %70 {strides = array<i32>} : memref<2x7x256xf32, #tpu.memory_space<vmem>>, vector<2x7x256xf32>,
    %72 = arith.truncf %69 : vector<14x256xf32> to vector<14x256xbf16>
    %c0_66 = arith.constant 0 : index
    %c0_67 = arith.constant 0 : index
    %73 = vector.load %arg11[%c0_66, %c0_67] : memref<6x14xbf16, #tpu.memory_space<vmem>>, vector<6x14xbf16>
    %cst_68 = arith.constant dense<0.000000e+00> : vector<6x256xf32>
    %74 = tpu.matmul %73, %72, %cst_68 {dimension_numbers = #tpu.dot_dimension_numbers<[1], [0], [0], [1], [0, 0, 1, 1], [], []>} : vector<6x14xbf16>, vector<14x256xbf16>, vector<6x256xf32> -> vector<6x256xf32>
    %75 = arith.truncf %74 : vector<6x256xf32> to vector<6x256xbf16>
    %c0_69 = arith.constant 0 : index
    %c0_70 = arith.constant 0 : index
    %76 = vector.load %arg12[%c0_69, %c0_70] : memref<6x14xbf16, #tpu.memory_space<vmem>>, vector<6x14xbf16>
    %cst_71 = arith.constant dense<0.000000e+00> : vector<6x256xf32>
    %77 = tpu.matmul %76, %72, %cst_71 {dimension_numbers = #tpu.dot_dimension_numbers<[1], [0], [0], [1], [0, 0, 1, 1], [], []>} : vector<6x14xbf16>, vector<14x256xbf16>, vector<6x256xf32> -> vector<6x256xf32>
    %78 = arith.truncf %77 : vector<6x256xf32> to vector<6x256xbf16>
    %c0_72 = arith.constant 0 : index
    %c0_73 = arith.constant 0 : index
    %79 = vector.load %arg13[%c0_72, %c0_73] : memref<6x14xbf16, #tpu.memory_space<vmem>>, vector<6x14xbf16>
    %cst_74 = arith.constant dense<0.000000e+00> : vector<6x256xf32>
    %80 = tpu.matmul %79, %72, %cst_74 {dimension_numbers = #tpu.dot_dimension_numbers<[1], [0], [0], [1], [0, 0, 1, 1], [], []>} : vector<6x14xbf16>, vector<14x256xbf16>, vector<6x256xf32> -> vector<6x256xf32>
    %81 = arith.truncf %80 : vector<6x256xf32> to vector<6x256xbf16>
    %82 = tpu.concatenate %75, %78, %81 in 1 : vector<6x256xbf16>, vector<6x256xbf16>, vector<6x256xbf16> -> vector<6x768xbf16>
    %c0_75 = arith.constant 0 : index
    %c0_76 = arith.constant 0 : index
    %83 = vector.load %arg20[%c0_75, %c0_76] : memref<768x512xbf16, #tpu.memory_space<vmem>>, vector<768x512xbf16>
    %cst_77 = arith.constant dense<0.000000e+00> : vector<6x512xf32>
    %84 = tpu.matmul %82, %83, %cst_77 {dimension_numbers = #tpu.dot_dimension_numbers<[1], [0], [0], [1], [0, 0, 1, 1], [], []>} : vector<6x768xbf16>, vector<768x512xbf16>, vector<6x512xf32> -> vector<6x512xf32>
    %c0_78 = arith.constant 0 : index
    %c0_79 = arith.constant 0 : index
    %85 = vector.load %arg25[%c0_78, %c0_79] : memref<1x512xf32, #tpu.memory_space<vmem>>, vector<1x512xf32>
    %86 = vector.broadcast %85 : vector<1x512xf32> to vector<6x512xf32>
    %87 = arith.addf %84, %86 : vector<6x512xf32>
    %88 = vector.shape_cast %87 : vector<6x512xf32> to vector<2x3x512xf32>
    %c0_80 = arith.constant 0 : index
    %c0_81 = arith.constant 0 : index
    %c0_82 = arith.constant 0 : index
    %89 = vector.load %arg29[%c0_80, %c0_81, %c0_82] : memref<2x3x512xf32, #tpu.memory_space<vmem>>, vector<2x3x512xf32>
    tpu.vector_store %arg29[%c0_80, %c0_81, %c0_82], %88 {strides = array<i32>} : memref<2x3x512xf32, #tpu.memory_space<vmem>>, vector<2x3x512xf32>,
    %90 = arith.truncf %87 : vector<6x512xf32> to vector<6x512xbf16>
    %c0_83 = arith.constant 0 : index
    %c0_84 = arith.constant 0 : index
    %91 = vector.load %arg14[%c0_83, %c0_84] : memref<2x6xbf16, #tpu.memory_space<vmem>>, vector<2x6xbf16>
    %cst_85 = arith.constant dense<0.000000e+00> : vector<2x512xf32>
    %92 = tpu.matmul %91, %90, %cst_85 {dimension_numbers = #tpu.dot_dimension_numbers<[1], [0], [0], [1], [0, 0, 1, 1], [], []>} : vector<2x6xbf16>, vector<6x512xbf16>, vector<2x512xf32> -> vector<2x512xf32>
    %93 = arith.truncf %92 : vector<2x512xf32> to vector<2x512xbf16>
    %c0_86 = arith.constant 0 : index
    %c0_87 = arith.constant 0 : index
    %94 = vector.load %arg15[%c0_86, %c0_87] : memref<2x6xbf16, #tpu.memory_space<vmem>>, vector<2x6xbf16>
    %cst_88 = arith.constant dense<0.000000e+00> : vector<2x512xf32>
    %95 = tpu.matmul %94, %90, %cst_88 {dimension_numbers = #tpu.dot_dimension_numbers<[1], [0], [0], [1], [0, 0, 1, 1], [], []>} : vector<2x6xbf16>, vector<6x512xbf16>, vector<2x512xf32> -> vector<2x512xf32>
    %96 = arith.truncf %95 : vector<2x512xf32> to vector<2x512xbf16>
    %c0_89 = arith.constant 0 : index
    %c0_90 = arith.constant 0 : index
    %97 = vector.load %arg16[%c0_89, %c0_90] : memref<2x6xbf16, #tpu.memory_space<vmem>>, vector<2x6xbf16>
    %cst_91 = arith.constant dense<0.000000e+00> : vector<2x512xf32>
    %98 = tpu.matmul %97, %90, %cst_91 {dimension_numbers = #tpu.dot_dimension_numbers<[1], [0], [0], [1], [0, 0, 1, 1], [], []>} : vector<2x6xbf16>, vector<6x512xbf16>, vector<2x512xf32> -> vector<2x512xf32>
    %99 = arith.truncf %98 : vector<2x512xf32> to vector<2x512xbf16>
    %100 = tpu.concatenate %93, %96, %99 in 1 : vector<2x512xbf16>, vector<2x512xbf16>, vector<2x512xbf16> -> vector<2x1536xbf16>
    %c0_92 = arith.constant 0 : index
    %c0_93 = arith.constant 0 : index
    %101 = vector.load %arg21[%c0_92, %c0_93] : memref<1536x512xbf16, #tpu.memory_space<vmem>>, vector<1536x512xbf16>
    %cst_94 = arith.constant dense<0.000000e+00> : vector<2x512xf32>
    %102 = tpu.matmul %100, %101, %cst_94 {dimension_numbers = #tpu.dot_dimension_numbers<[1], [0], [0], [1], [0, 0, 1, 1], [], []>} : vector<2x1536xbf16>, vector<1536x512xbf16>, vector<2x512xf32> -> vector<2x512xf32>
    %c0_95 = arith.constant 0 : index
    %c0_96 = arith.constant 0 : index
    %103 = vector.load %arg26[%c0_95, %c0_96] : memref<1x512xf32, #tpu.memory_space<vmem>>, vector<1x512xf32>
    %104 = vector.broadcast %103 : vector<1x512xf32> to vector<2x512xf32>
    %105 = arith.addf %102, %104 : vector<2x512xf32>
    %106 = vector.shape_cast %105 : vector<2x512xf32> to vector<2x1x512xf32>
    %c0_97 = arith.constant 0 : index
    %c0_98 = arith.constant 0 : index
    %c0_99 = arith.constant 0 : index
    %107 = vector.load %arg30[%c0_97, %c0_98, %c0_99] : memref<2x1x512xf32, #tpu.memory_space<vmem>>, vector<2x1x512xf32>
    tpu.vector_store %arg30[%c0_97, %c0_98, %c0_99], %106 {strides = array<i32>} : memref<2x1x512xf32, #tpu.memory_space<vmem>>, vector<2x1x512xf32>,
    %108 = vector.shape_cast %105 : vector<2x512xf32> to vector<2x1x512xf32>
    %cst_100 = arith.constant dense<0.000000e+00> : vector<2x512xf32>
    %109 = vector.multi_reduction <add>, %108, %cst_100 [1] : vector<2x1x512xf32> to vector<2x512xf32>
    %cst_101 = arith.constant 1.000000e+00 : f32
    %110 = vector.broadcast %cst_101 : f32 to vector<2x512xf32>
    %111 = arith.divf %109, %110 : vector<2x512xf32>
    %c0_102 = arith.constant 0 : index
    %c0_103 = arith.constant 0 : index
    %112 = vector.load %arg31[%c0_102, %c0_103] : memref<2x512xf32, #tpu.memory_space<vmem>>, vector<2x512xf32>
    tpu.vector_store %arg31[%c0_102, %c0_103], %111 {strides = array<i32>} : memref<2x512xf32, #tpu.memory_space<vmem>>, vector<2x512xf32>,
    return
  }
  func.func @transform_0(%arg0: i32) -> (i32, i32, i32) {
    %c0_i32 = arith.constant 0 : i32
    %c0_i32_0 = arith.constant 0 : i32
    %c0_i32_1 = arith.constant 0 : i32
    %c0_i32_2 = arith.constant 0 : i32
    return %c0_i32, %c0_i32_0, %c0_i32_1 : i32, i32, i32
  }
  func.func @transform_1(%arg0: i32) -> (i32, i32) {
    %c0_i32 = arith.constant 0 : i32
    %c0_i32_0 = arith.constant 0 : i32
    %c0_i32_1 = arith.constant 0 : i32
    return %c0_i32, %c0_i32_0 : i32, i32
  }
  func.func @transform_2(%arg0: i32) -> (i32, i32) {
    %c0_i32 = arith.constant 0 : i32
    %c0_i32_0 = arith.constant 0 : i32
    %c0_i32_1 = arith.constant 0 : i32
    return %c0_i32, %c0_i32_0 : i32, i32
  }
  func.func @transform_3(%arg0: i32) -> (i32, i32) {
    %c0_i32 = arith.constant 0 : i32
    %c0_i32_0 = arith.constant 0 : i32
    %c0_i32_1 = arith.constant 0 : i32
    return %c0_i32, %c0_i32_0 : i32, i32
  }
  func.func @transform_4(%arg0: i32) -> (i32, i32) {
    %c0_i32 = arith.constant 0 : i32
    %c0_i32_0 = arith.constant 0 : i32
    %c0_i32_1 = arith.constant 0 : i32
    return %c0_i32, %c0_i32_0 : i32, i32
  }
  func.func @transform_5(%arg0: i32) -> (i32, i32) {
    %c0_i32 = arith.constant 0 : i32
    %c0_i32_0 = arith.constant 0 : i32
    %c0_i32_1 = arith.constant 0 : i32
    return %c0_i32, %c0_i32_0 : i32, i32
  }
  func.func @transform_6(%arg0: i32) -> (i32, i32) {
    %c0_i32 = arith.constant 0 : i32
    %c0_i32_0 = arith.constant 0 : i32
    %c0_i32_1 = arith.constant 0 : i32
    return %c0_i32, %c0_i32_0 : i32, i32
  }
  func.func @transform_7(%arg0: i32) -> (i32, i32) {
    %c0_i32 = arith.constant 0 : i32
    %c0_i32_0 = arith.constant 0 : i32
    %c0_i32_1 = arith.constant 0 : i32
    return %c0_i32, %c0_i32_0 : i32, i32
  }
  func.func @transform_8(%arg0: i32) -> (i32, i32) {
    %c0_i32 = arith.constant 0 : i32
    %c0_i32_0 = arith.constant 0 : i32
    %c0_i32_1 = arith.constant 0 : i32
    return %c0_i32, %c0_i32_0 : i32, i32
  }
  func.func @transform_9(%arg0: i32) -> (i32, i32) {
    %c0_i32 = arith.constant 0 : i32
    %c0_i32_0 = arith.constant 0 : i32
    %c0_i32_1 = arith.constant 0 : i32
    return %c0_i32, %c0_i32_0 : i32, i32
  }
  func.func @transform_10(%arg0: i32) -> (i32, i32) {
    %c0_i32 = arith.constant 0 : i32
    %c0_i32_0 = arith.constant 0 : i32
    %c0_i32_1 = arith.constant 0 : i32
    return %c0_i32, %c0_i32_0 : i32, i32
  }
  func.func @transform_11(%arg0: i32) -> (i32, i32) {
    %c0_i32 = arith.constant 0 : i32
    %c0_i32_0 = arith.constant 0 : i32
    %c0_i32_1 = arith.constant 0 : i32
    return %c0_i32, %c0_i32_0 : i32, i32
  }
  func.func @transform_12(%arg0: i32) -> (i32, i32) {
    %c0_i32 = arith.constant 0 : i32
    %c0_i32_0 = arith.constant 0 : i32
    %c0_i32_1 = arith.constant 0 : i32
    return %c0_i32, %c0_i32_0 : i32, i32
  }
  func.func @transform_13(%arg0: i32) -> (i32, i32) {
    %c0_i32 = arith.constant 0 : i32
    %c0_i32_0 = arith.constant 0 : i32
    %c0_i32_1 = arith.constant 0 : i32
    return %c0_i32, %c0_i32_0 : i32, i32
  }
  func.func @transform_14(%arg0: i32) -> (i32, i32) {
    %c0_i32 = arith.constant 0 : i32
    %c0_i32_0 = arith.constant 0 : i32
    %c0_i32_1 = arith.constant 0 : i32
    return %c0_i32, %c0_i32_0 : i32, i32
  }
  func.func @transform_15(%arg0: i32) -> (i32, i32) {
    %c0_i32 = arith.constant 0 : i32
    %c0_i32_0 = arith.constant 0 : i32
    %c0_i32_1 = arith.constant 0 : i32
    return %c0_i32, %c0_i32_0 : i32, i32
  }
  func.func @transform_16(%arg0: i32) -> (i32, i32, i32) {
    %c0_i32 = arith.constant 0 : i32
    %c0_i32_0 = arith.constant 0 : i32
    %c0_i32_1 = arith.constant 0 : i32
    %c0_i32_2 = arith.constant 0 : i32
    return %c0_i32, %c0_i32_0, %c0_i32_1 : i32, i32, i32
  }
  func.func @transform_17(%arg0: i32) -> (i32, i32, i32) {
    %c0_i32 = arith.constant 0 : i32
    %c0_i32_0 = arith.constant 0 : i32
    %c0_i32_1 = arith.constant 0 : i32
    %c0_i32_2 = arith.constant 0 : i32
    return %c0_i32, %c0_i32_0, %c0_i32_1 : i32, i32, i32
  }
  func.func @transform_18(%arg0: i32) -> (i32, i32) {
    %c0_i32 = arith.constant 0 : i32
    %c0_i32_0 = arith.constant 0 : i32
    %c0_i32_1 = arith.constant 0 : i32
    return %c0_i32, %c0_i32_0 : i32, i32
  }
  func.func @transform_19(%arg0: i32) -> (i32, i32) {
    %c0_i32 = arith.constant 0 : i32
    %c0_i32_0 = arith.constant 0 : i32
    %c0_i32_1 = arith.constant 0 : i32
    return %c0_i32, %c0_i32_0 : i32, i32
  }
  func.func @transform_20(%arg0: i32) -> (i32, i32) {
    %c0_i32 = arith.constant 0 : i32
    %c0_i32_0 = arith.constant 0 : i32
    %c0_i32_1 = arith.constant 0 : i32
    return %c0_i32, %c0_i32_0 : i32, i32
  }
  func.func @transform_21(%arg0: i32) -> (i32, i32) {
    %c0_i32 = arith.constant 0 : i32
    %c0_i32_0 = arith.constant 0 : i32
    %c0_i32_1 = arith.constant 0 : i32
    return %c0_i32, %c0_i32_0 : i32, i32
  }
  func.func @transform_22(%arg0: i32) -> (i32, i32) {
    %c0_i32 = arith.constant 0 : i32
    %c0_i32_0 = arith.constant 0 : i32
    %c0_i32_1 = arith.constant 0 : i32
    return %c0_i32, %c0_i32_0 : i32, i32
  }
  func.func @transform_23(%arg0: i32) -> (i32, i32) {
    %c0_i32 = arith.constant 0 : i32
    %c0_i32_0 = arith.constant 0 : i32
    %c0_i32_1 = arith.constant 0 : i32
    return %c0_i32, %c0_i32_0 : i32, i32
  }
  func.func @transform_24(%arg0: i32) -> (i32, i32) {
    %c0_i32 = arith.constant 0 : i32
    %c0_i32_0 = arith.constant 0 : i32
    %c0_i32_1 = arith.constant 0 : i32
    return %c0_i32, %c0_i32_0 : i32, i32
  }
  func.func @transform_25(%arg0: i32) -> (i32, i32) {
    %c0_i32 = arith.constant 0 : i32
    %c0_i32_0 = arith.constant 0 : i32
    %c0_i32_1 = arith.constant 0 : i32
    return %c0_i32, %c0_i32_0 : i32, i32
  }
  func.func @transform_26(%arg0: i32) -> (i32, i32, i32) {
    %c0_i32 = arith.constant 0 : i32
    %c0_i32_0 = arith.constant 0 : i32
    %c0_i32_1 = arith.constant 0 : i32
    %c0_i32_2 = arith.constant 0 : i32
    return %c0_i32, %c0_i32_0, %c0_i32_1 : i32, i32, i32
  }
  func.func @transform_27(%arg0: i32) -> (i32, i32, i32) {
    %c0_i32 = arith.constant 0 : i32
    %c0_i32_0 = arith.constant 0 : i32
    %c0_i32_1 = arith.constant 0 : i32
    %c0_i32_2 = arith.constant 0 : i32
    return %c0_i32, %c0_i32_0, %c0_i32_1 : i32, i32, i32
  }
  func.func @transform_28(%arg0: i32) -> (i32, i32, i32) {
    %c0_i32 = arith.constant 0 : i32
    %c0_i32_0 = arith.constant 0 : i32
    %c0_i32_1 = arith.constant 0 : i32
    %c0_i32_2 = arith.constant 0 : i32
    return %c0_i32, %c0_i32_0, %c0_i32_1 : i32, i32, i32
  }
  func.func @transform_29(%arg0: i32) -> (i32, i32, i32) {
    %c0_i32 = arith.constant 0 : i32
    %c0_i32_0 = arith.constant 0 : i32
    %c0_i32_1 = arith.constant 0 : i32
    %c0_i32_2 = arith.constant 0 : i32
    return %c0_i32, %c0_i32_0, %c0_i32_1 : i32, i32, i32
  }
  func.func @transform_30(%arg0: i32) -> (i32, i32) {
    %c0_i32 = arith.constant 0 : i32
    %c0_i32_0 = arith.constant 0 : i32
    %c0_i32_1 = arith.constant 0 : i32
    return %c0_i32, %c0_i32_0 : i32, i32
  }
}

</mosaic_0001>

<llo_original>
// kernel: resnet_forward.1
$region0: #{resnet_forward.1}
  #allocation0 [shape = 'u32[]', space=smem, size = 0x4, offset = 0x4, fixed_abs, tag = 'smem constant byte address 0x4 - core index']
  #allocation1 [shape = 'u32[144,128]{1,0:T(1,128)}', space=vmem, size = 0x12000, scoped, tag = 'internal scratch']
  %s0 = inlined_call_operand.smem [shape: u32[31], index: -1, kind: input, shape index: {}]
  %s1 = sld [smem:[%s0]]
  %s2 = scalar_lea.smem %s0, 1
  %s3 = sld [smem:[%s2]]
  %s4 = scalar_lea.smem %s0, 2
  %s5 = sld [smem:[%s4]]
  %s6 = scalar_lea.smem %s0, 3
  %s7 = sld [smem:[%s6]]
  %s8 = scalar_lea.smem %s0, 4
  %s9 = sld [smem:[%s8]]
  %s10 = scalar_lea.smem %s0, 5
  %s11 = sld [smem:[%s10]]
  %s12 = scalar_lea.smem %s0, 6
  %s13 = sld [smem:[%s12]]
  %s14 = scalar_lea.smem %s0, 7
  %s15 = sld [smem:[%s14]]
  %s16 = scalar_lea.smem %s0, 8
  %s17 = sld [smem:[%s16]]
  %s18 = scalar_lea.smem %s0, 9
  %s19 = sld [smem:[%s18]]
  %s20 = scalar_lea.smem %s0, 10
  %s21 = sld [smem:[%s20]]
  %s22 = scalar_lea.smem %s0, 11
  %s23 = sld [smem:[%s22]]
  %s24 = scalar_lea.smem %s0, 12
  %s25 = sld [smem:[%s24]]
  %s26 = scalar_lea.smem %s0, 13
  %s27 = sld [smem:[%s26]]
  %s28 = scalar_lea.smem %s0, 14
  %s29 = sld [smem:[%s28]]
  %s30 = scalar_lea.smem %s0, 15
  %s31 = sld [smem:[%s30]]
  %s32 = scalar_lea.smem %s0, 16
  %s33 = sld [smem:[%s32]]
  %s34 = scalar_lea.smem %s0, 17
  %s35 = sld [smem:[%s34]]
  %s36 = scalar_lea.smem %s0, 18
  %s37 = sld [smem:[%s36]]
  %s38 = scalar_lea.smem %s0, 19
  %s39 = sld [smem:[%s38]]
  %s40 = scalar_lea.smem %s0, 20
  %s41 = sld [smem:[%s40]]
  %s42 = scalar_lea.smem %s0, 21
  %s43 = sld [smem:[%s42]]
  %s44 = scalar_lea.smem %s0, 22
  %s45 = sld [smem:[%s44]]
  %s46 = scalar_lea.smem %s0, 23
  %s47 = sld [smem:[%s46]]
  %s48 = scalar_lea.smem %s0, 24
  %s49 = sld [smem:[%s48]]
  %s50 = scalar_lea.smem %s0, 25
  %s51 = sld [smem:[%s50]]
  %s52 = scalar_lea.smem %s0, 26
  %s53 = sld [smem:[%s52]]
  %s54 = scalar_lea.smem %s0, 27
  %s55 = sld [smem:[%s54]]
  %s56 = scalar_lea.smem %s0, 28
  %s57 = sld [smem:[%s56]]
  %s58 = scalar_lea.smem %s0, 29
  %s59 = sld [smem:[%s58]]
  %s60 = scalar_lea.smem %s0, 30
  %s61 = sld [smem:[%s60]]
  %62 = xla_tuple %s53, %s55, %s57, %s59, %s61
  %s63 = sld [smem:[#allocation0]]
  $region246: #{resnet_forward.1} parent=0
    _
  %s65 = ssub.s32 1, %s63
  %s66 = scalar_select 0, %s65, %s63
  $region1: #{resnet_forward.1} parent=0
    #allocation2 [shape = 'u8[16384]{0}', space=vmem, size = 0x4000, scoped, tag = 'input window, operand 1, single buffered']
    #allocation3 [shape = 's32[1]{0}', space=sflag, size = 0x4, scoped, tag = 'scoped memory for resnet_forward.1']
    #allocation4 [shape = 's32[1]{0}', space=sflag, size = 0x4, scoped, tag = 'scoped memory for resnet_forward.1']
    #allocation5 [shape = 'u8[16384]{0}', space=vmem, size = 0x4000, scoped, tag = 'input window, operand 2, single buffered']
    #allocation6 [shape = 's32[1]{0}', space=sflag, size = 0x4, scoped, tag = 'scoped memory for resnet_forward.1']
    #allocation7 [shape = 'u8[16384]{0}', space=vmem, size = 0x4000, scoped, tag = 'input window, operand 3, single buffered']
    #allocation8 [shape = 'u8[8192]{0}', space=vmem, size = 0x2000, scoped, tag = 'input window, operand 4, single buffered']
    #allocation9 [shape = 's32[1]{0}', space=sflag, size = 0x4, scoped, tag = 'scoped memory for resnet_forward.1']
    #allocation10 [shape = 'u8[8192]{0}', space=vmem, size = 0x2000, scoped, tag = 'input window, operand 5, single buffered']
    #allocation11 [shape = 'u8[8192]{0}', space=vmem, size = 0x2000, scoped, tag = 'input window, operand 6, single buffered']
    #allocation12 [shape = 's32[1]{0}', space=sflag, size = 0x4, scoped, tag = 'scoped memory for resnet_forward.1']
    #allocation13 [shape = 'u8[4096]{0}', space=vmem, size = 0x1000, scoped, tag = 'input window, operand 7, single buffered']
    #allocation14 [shape = 'u8[4096]{0}', space=vmem, size = 0x1000, scoped, tag = 'input window, operand 8, single buffered']
    #allocation15 [shape = 's32[1]{0}', space=sflag, size = 0x4, scoped, tag = 'scoped memory for resnet_forward.1']
    #allocation16 [shape = 'u8[4096]{0}', space=vmem, size = 0x1000, scoped, tag = 'input window, operand 9, single buffered']
    #allocation17 [shape = 'u8[2048]{0}', space=vmem, size = 0x800, scoped, tag = 'input window, operand 10, single buffered']
    #allocation18 [shape = 's32[1]{0}', space=sflag, size = 0x4, scoped, tag = 'scoped memory for resnet_forward.1']
    #allocation19 [shape = 'u8[2048]{0}', space=vmem, size = 0x800, scoped, tag = 'input window, operand 11, single buffered']
    #allocation20 [shape = 'u8[2048]{0}', space=vmem, size = 0x800, scoped, tag = 'input window, operand 12, single buffered']
    #allocation21 [shape = 's32[1]{0}', space=sflag, size = 0x4, scoped, tag = 'scoped memory for resnet_forward.1']
    #allocation22 [shape = 'u8[512]{0}', space=vmem, size = 0x400, scoped, tag = 'input window, operand 13, single buffered']
    #allocation23 [shape = 'u8[512]{0}', space=vmem, size = 0x400, scoped, tag = 'input window, operand 14, single buffered']
    #allocation24 [shape = 's32[1]{0}', space=sflag, size = 0x4, scoped, tag = 'scoped memory for resnet_forward.1']
    #allocation25 [shape = 'u8[512]{0}', space=vmem, size = 0x400, scoped, tag = 'input window, operand 15, single buffered']
    #allocation26 [shape = 'u8[3072]{0}', space=vmem, size = 0xc00, scoped, tag = 'input window, operand 16, single buffered']
    #allocation27 [shape = 's32[1]{0}', space=sflag, size = 0x4, scoped, tag = 'scoped memory for resnet_forward.1']
    #allocation28 [shape = 'u8[49152]{0}', space=vmem, size = 0xc000, scoped, tag = 'input window, operand 17, single buffered']
    #allocation29 [shape = 'u8[196608]{0}', space=vmem, size = 0x30000, scoped, tag = 'input window, operand 18, single buffered']
    #allocation30 [shape = 's32[1]{0}', space=sflag, size = 0x4, scoped, tag = 'scoped memory for resnet_forward.1']
    #allocation31 [shape = 'u8[786432]{0}', space=vmem, size = 0xc0000, scoped, tag = 'input window, operand 19, single buffered']
    #allocation32 [shape = 'u8[1572864]{0}', space=vmem, size = 0x180000, scoped, tag = 'input window, operand 20, single buffered']
    #allocation33 [shape = 's32[1]{0}', space=sflag, size = 0x4, scoped, tag = 'scoped memory for resnet_forward.1']
    #allocation34 [shape = 'u8[512]{0}', space=vmem, size = 0x400, scoped, tag = 'input window, operand 21, single buffered']
    #allocation35 [shape = 'u8[512]{0}', space=vmem, size = 0x400, scoped, tag = 'input window, operand 22, single buffered']
    #allocation36 [shape = 's32[1]{0}', space=sflag, size = 0x4, scoped, tag = 'scoped memory for resnet_forward.1']
    #allocation37 [shape = 'u8[1024]{0}', space=vmem, size = 0x400, scoped, tag = 'input window, operand 23, single buffered']
    #allocation38 [shape = 'u8[2048]{0}', space=vmem, size = 0x800, scoped, tag = 'input window, operand 24, single buffered']
    #allocation39 [shape = 's32[1]{0}', space=sflag, size = 0x4, scoped, tag = 'scoped memory for resnet_forward.1']
    #allocation40 [shape = 'u8[2048]{0}', space=vmem, size = 0x800, scoped, tag = 'input window, operand 25, single buffered']
    #allocation41 [shape = 'u8[4096]{0}', space=vmem, size = 0x1000, scoped, tag = 'output window, operand 3, single buffered']
    #allocation42 [shape = 'u8[4096]{0}', space=vmem, size = 0x1000, scoped, tag = 'output window, operand 4, single buffered']
    #allocation43 [shape = 's32[1]{0}', space=sflag, size = 0x4, scoped, tag = 'scoped memory for resnet_forward.1']
    %67 = vsyncpa [#allocation3], 0
    %68 = vsyncpa [#allocation6], 0
    %69 = vsyncpa [#allocation9], 0
    %70 = vsyncpa [#allocation12], 0
    %71 = vsyncpa [#allocation15], 0
    %72 = vsyncpa [#allocation18], 0
    %73 = vsyncpa [#allocation21], 0
    %74 = vsyncpa [#allocation24], 0
    %75 = vsyncpa [#allocation27], 0
    %76 = vsyncpa [#allocation30], 0
    %77 = vsyncpa [#allocation33], 0
    %78 = vsyncpa [#allocation36], 0
    %79 = vsyncpa [#allocation39], 0
    %80 = vsyncpa [#allocation4], 0
    %81 = vsyncpa [#allocation43], 0
    // Predicated region
    $region2: #{resnet_forward.1} parent=1 // pred_check
      _
    $region3: #{resnet_forward.1} parent=1 // pred_check_branch
      %83 = sbr.rel (0) target = $region5
    $region4: #{resnet_forward.1} parent=1 // pred_region
      _
    $region5: #{resnet_forward.1} parent=1 // pred_fallthru
      _
    // Predicated region
    $region6: #{resnet_forward.1} parent=1 // pred_check
      _
    $region7: #{resnet_forward.1} parent=1 // pred_check_branch
      %85 = sbr.rel (0) target = $region9
    $region8: #{resnet_forward.1} parent=1 // pred_region
      %s87 = ssub.s32 512, 512
      %88 = vsyncadd [#allocation3], %s87
      %s89 = sshll.u32 [#allocation2], 4
      %s90 = int_to_ptr.vmem [resolvable:$true] %s89
      %95 = dma.hbm_to_vmem [thread:$0]  %s3, 512, %s90, [#allocation3], 64, 64, 4
    $region9: #{resnet_forward.1} parent=1 // pred_fallthru
      _
    // Predicated region
    $region10: #{resnet_forward.1} parent=1 // pred_check
      _
    $region11: #{resnet_forward.1} parent=1 // pred_check_branch
      %97 = sbr.rel (0) target = $region13
    $region12: #{resnet_forward.1} parent=1 // pred_region
      %s99 = ssub.s32 512, 512
      %100 = vsyncadd [#allocation6], %s99
      %s101 = sshll.u32 [#allocation5], 4
      %s102 = int_to_ptr.vmem [resolvable:$true] %s101
      %107 = dma.hbm_to_vmem [thread:$0]  %s5, 512, %s102, [#allocation6], 64, 64, 4
    $region13: #{resnet_forward.1} parent=1 // pred_fallthru
      _
    // Predicated region
    $region14: #{resnet_forward.1} parent=1 // pred_check
      _
    $region15: #{resnet_forward.1} parent=1 // pred_check_branch
      %109 = sbr.rel (0) target = $region17
    $region16: #{resnet_forward.1} parent=1 // pred_region
      %s111 = ssub.s32 512, 512
      %112 = vsyncadd [#allocation6], %s111
      %s113 = sshll.u32 [#allocation7], 4
      %s114 = int_to_ptr.vmem [resolvable:$true] %s113
      %119 = dma.hbm_to_vmem [thread:$0]  %s7, 512, %s114, [#allocation6], 64, 64, 4
    $region17: #{resnet_forward.1} parent=1 // pred_fallthru
      _
    // Predicated region
    $region18: #{resnet_forward.1} parent=1 // pred_check
      _
    $region19: #{resnet_forward.1} parent=1 // pred_check_branch
      %121 = sbr.rel (0) target = $region21
    $region20: #{resnet_forward.1} parent=1 // pred_region
      %s123 = ssub.s32 256, 256
      %124 = vsyncadd [#allocation9], %s123
      %s125 = sshll.u32 [#allocation8], 4
      %s126 = int_to_ptr.vmem [resolvable:$true] %s125
      %131 = dma.hbm_to_vmem [thread:$0]  %s9, 256, %s126, [#allocation9], 64, 64, 4
    $region21: #{resnet_forward.1} parent=1 // pred_fallthru
      _
    // Predicated region
    $region22: #{resnet_forward.1} parent=1 // pred_check
      _
    $region23: #{resnet_forward.1} parent=1 // pred_check_branch
      %133 = sbr.rel (0) target = $region25
    $region24: #{resnet_forward.1} parent=1 // pred_region
      %s135 = ssub.s32 256, 256
      %136 = vsyncadd [#allocation9], %s135
      %s137 = sshll.u32 [#allocation10], 4
      %s138 = int_to_ptr.vmem [resolvable:$true] %s137
      %143 = dma.hbm_to_vmem [thread:$0]  %s11, 256, %s138, [#allocation9], 64, 64, 4
    $region25: #{resnet_forward.1} parent=1 // pred_fallthru
      _
    // Predicated region
    $region26: #{resnet_forward.1} parent=1 // pred_check
      _
    $region27: #{resnet_forward.1} parent=1 // pred_check_branch
      %145 = sbr.rel (0) target = $region29
    $region28: #{resnet_forward.1} parent=1 // pred_region
      %s147 = ssub.s32 256, 256
      %148 = vsyncadd [#allocation12], %s147
      %s149 = sshll.u32 [#allocation11], 4
      %s150 = int_to_ptr.vmem [resolvable:$true] %s149
      %155 = dma.hbm_to_vmem [thread:$0]  %s13, 256, %s150, [#allocation12], 64, 64, 4
    $region29: #{resnet_forward.1} parent=1 // pred_fallthru
      _
    // Predicated region
    $region30: #{resnet_forward.1} parent=1 // pred_check
      _
    $region31: #{resnet_forward.1} parent=1 // pred_check_branch
      %157 = sbr.rel (0) target = $region33
    $region32: #{resnet_forward.1} parent=1 // pred_region
      %s159 = ssub.s32 128, 128
      %160 = vsyncadd [#allocation12], %s159
      %s161 = sshll.u32 [#allocation13], 4
      %s162 = int_to_ptr.vmem [resolvable:$true] %s161
      %167 = dma.hbm_to_vmem [thread:$0]  %s15, 128, %s162, [#allocation12], 64, 64, 4
    $region33: #{resnet_forward.1} parent=1 // pred_fallthru
      _
    // Predicated region
    $region34: #{resnet_forward.1} parent=1 // pred_check
      _
    $region35: #{resnet_forward.1} parent=1 // pred_check_branch
      %169 = sbr.rel (0) target = $region37
    $region36: #{resnet_forward.1} parent=1 // pred_region
      %s171 = ssub.s32 128, 128
      %172 = vsyncadd [#allocation15], %s171
      %s173 = sshll.u32 [#allocation14], 4
      %s174 = int_to_ptr.vmem [resolvable:$true] %s173
      %179 = dma.hbm_to_vmem [thread:$0]  %s17, 128, %s174, [#allocation15], 64, 64, 4
    $region37: #{resnet_forward.1} parent=1 // pred_fallthru
      _
    // Predicated region
    $region38: #{resnet_forward.1} parent=1 // pred_check
      _
    $region39: #{resnet_forward.1} parent=1 // pred_check_branch
      %181 = sbr.rel (0) target = $region41
    $region40: #{resnet_forward.1} parent=1 // pred_region
      %s183 = ssub.s32 128, 128
      %184 = vsyncadd [#allocation15], %s183
      %s185 = sshll.u32 [#allocation16], 4
      %s186 = int_to_ptr.vmem [resolvable:$true] %s185
      %191 = dma.hbm_to_vmem [thread:$0]  %s19, 128, %s186, [#allocation15], 64, 64, 4
    $region41: #{resnet_forward.1} parent=1 // pred_fallthru
      _
    // Predicated region
    $region42: #{resnet_forward.1} parent=1 // pred_check
      _
    $region43: #{resnet_forward.1} parent=1 // pred_check_branch
      %193 = sbr.rel (0) target = $region45
    $region44: #{resnet_forward.1} parent=1 // pred_region
      %s195 = ssub.s32 64, 64
      %196 = vsyncadd [#allocation18], %s195
      %s198 = sshll.u32 [#allocation17], 4
      %s199 = int_to_ptr.vmem [resolvable:$true] %s198
      %201 = dma.hbm_to_vmem [thread:$0]  %s21, 64, %s199, [#allocation18]
    $region45: #{resnet_forward.1} parent=1 // pred_fallthru
      _
    // Predicated region
    $region46: #{resnet_forward.1} parent=1 // pred_check
      _
    $region47: #{resnet_forward.1} parent=1 // pred_check_branch
      %203 = sbr.rel (0) target = $region49
    $region48: #{resnet_forward.1} parent=1 // pred_region
      %s205 = ssub.s32 64, 64
      %206 = vsyncadd [#allocation18], %s205
      %s208 = sshll.u32 [#allocation19], 4
      %s209 = int_to_ptr.vmem [resolvable:$true] %s208
      %211 = dma.hbm_to_vmem [thread:$0]  %s23, 64, %s209, [#allocation18]
    $region49: #{resnet_forward.1} parent=1 // pred_fallthru
      _
    // Predicated region
    $region50: #{resnet_forward.1} parent=1 // pred_check
      _
    $region51: #{resnet_forward.1} parent=1 // pred_check_branch
      %213 = sbr.rel (0) target = $region53
    $region52: #{resnet_forward.1} parent=1 // pred_region
      %s215 = ssub.s32 64, 64
      %216 = vsyncadd [#allocation21], %s215
      %s218 = sshll.u32 [#allocation20], 4
      %s219 = int_to_ptr.vmem [resolvable:$true] %s218
      %221 = dma.hbm_to_vmem [thread:$0]  %s25, 64, %s219, [#allocation21]
    $region53: #{resnet_forward.1} parent=1 // pred_fallthru
      _
    // Predicated region
    $region54: #{resnet_forward.1} parent=1 // pred_check
      _
    $region55: #{resnet_forward.1} parent=1 // pred_check_branch
      %223 = sbr.rel (0) target = $region57
    $region56: #{resnet_forward.1} parent=1 // pred_region
      %s225 = ssub.s32 16, 16
      %226 = vsyncadd [#allocation21], %s225
      %s228 = sshll.u32 [#allocation22], 4
      %s229 = int_to_ptr.vmem [resolvable:$true] %s228
      %231 = dma.hbm_to_vmem [thread:$0]  %s27, 16, %s229, [#allocation21]
    $region57: #{resnet_forward.1} parent=1 // pred_fallthru
      _
    // Predicated region
    $region58: #{resnet_forward.1} parent=1 // pred_check
      _
    $region59: #{resnet_forward.1} parent=1 // pred_check_branch
      %233 = sbr.rel (0) target = $region61
    $region60: #{resnet_forward.1} parent=1 // pred_region
      %s235 = ssub.s32 16, 16
      %236 = vsyncadd [#allocation24], %s235
      %s238 = sshll.u32 [#allocation23], 4
      %s239 = int_to_ptr.vmem [resolvable:$true] %s238
      %241 = dma.hbm_to_vmem [thread:$0]  %s29, 16, %s239, [#allocation24]
    $region61: #{resnet_forward.1} parent=1 // pred_fallthru
      _
    // Predicated region
    $region62: #{resnet_forward.1} parent=1 // pred_check
      _
    $region63: #{resnet_forward.1} parent=1 // pred_check_branch
      %243 = sbr.rel (0) target = $region65
    $region64: #{resnet_forward.1} parent=1 // pred_region
      %s245 = ssub.s32 16, 16
      %246 = vsyncadd [#allocation24], %s245
      %s248 = sshll.u32 [#allocation25], 4
      %s249 = int_to_ptr.vmem [resolvable:$true] %s248
      %251 = dma.hbm_to_vmem [thread:$0]  %s31, 16, %s249, [#allocation24]
    $region65: #{resnet_forward.1} parent=1 // pred_fallthru
      _
    // Predicated region
    $region66: #{resnet_forward.1} parent=1 // pred_check
      _
    $region67: #{resnet_forward.1} parent=1 // pred_check_branch
      %253 = sbr.rel (0) target = $region69
    $region68: #{resnet_forward.1} parent=1 // pred_region
      %s255 = ssub.s32 96, 96
      %256 = vsyncadd [#allocation27], %s255
      %s257 = sshll.u32 [#allocation26], 4
      %s258 = int_to_ptr.vmem [resolvable:$true] %s257
      %263 = dma.hbm_to_vmem [thread:$0]  %s33, 96, %s258, [#allocation27], 32, 32, 2
    $region69: #{resnet_forward.1} parent=1 // pred_fallthru
      _
    // Predicated region
    $region70: #{resnet_forward.1} parent=1 // pred_check
      _
    $region71: #{resnet_forward.1} parent=1 // pred_check_branch
      %265 = sbr.rel (0) target = $region73
    $region72: #{resnet_forward.1} parent=1 // pred_region
      %s267 = ssub.s32 1536, 1536
      %268 = vsyncadd [#allocation27], %s267
      %s269 = sshll.u32 [#allocation28], 4
      %s270 = int_to_ptr.vmem [resolvable:$true] %s269
      %275 = dma.hbm_to_vmem [thread:$0]  %s35, 1536, %s270, [#allocation27], 64, 64, 4
    $region73: #{resnet_forward.1} parent=1 // pred_fallthru
      _
    // Predicated region
    $region74: #{resnet_forward.1} parent=1 // pred_check
      _
    $region75: #{resnet_forward.1} parent=1 // pred_check_branch
      %277 = sbr.rel (0) target = $region77
    $region76: #{resnet_forward.1} parent=1 // pred_region
      %s279 = ssub.s32 6144, 6144
      %280 = vsyncadd [#allocation30], %s279
      %s281 = sshll.u32 [#allocation29], 4
      %s282 = int_to_ptr.vmem [resolvable:$true] %s281
      %287 = dma.hbm_to_vmem [thread:$0]  %s37, 6144, %s282, [#allocation30], 128, 128, 8
    $region77: #{resnet_forward.1} parent=1 // pred_fallthru
      _
    // Predicated region
    $region78: #{resnet_forward.1} parent=1 // pred_check
      _
    $region79: #{resnet_forward.1} parent=1 // pred_check_branch
      %289 = sbr.rel (0) target = $region81
    $region80: #{resnet_forward.1} parent=1 // pred_region
      %s291 = ssub.s32 24576, 24576
      %292 = vsyncadd [#allocation30], %s291
      %s293 = sshll.u32 [#allocation31], 4
      %s294 = int_to_ptr.vmem [resolvable:$true] %s293
      %299 = dma.hbm_to_vmem [thread:$0]  %s39, 24576, %s294, [#allocation30], 256, 256, 16
    $region81: #{resnet_forward.1} parent=1 // pred_fallthru
      _
    // Predicated region
    $region82: #{resnet_forward.1} parent=1 // pred_check
      _
    $region83: #{resnet_forward.1} parent=1 // pred_check_branch
      %301 = sbr.rel (0) target = $region85
    $region84: #{resnet_forward.1} parent=1 // pred_region
      %s303 = ssub.s32 49152, 49152
      %304 = vsyncadd [#allocation33], %s303
      %s305 = sshll.u32 [#allocation32], 4
      %s306 = int_to_ptr.vmem [resolvable:$true] %s305
      %311 = dma.hbm_to_vmem [thread:$0]  %s41, 49152, %s306, [#allocation33], 256, 256, 16
    $region85: #{resnet_forward.1} parent=1 // pred_fallthru
      _
    // Predicated region
    $region86: #{resnet_forward.1} parent=1 // pred_check
      _
    $region87: #{resnet_forward.1} parent=1 // pred_check_branch
      %313 = sbr.rel (0) target = $region89
    $region88: #{resnet_forward.1} parent=1 // pred_region
      %s315 = ssub.s32 16, 16
      %316 = vsyncadd [#allocation33], %s315
      %s318 = sshll.u32 [#allocation34], 4
      %s319 = int_to_ptr.vmem [resolvable:$true] %s318
      %321 = dma.hbm_to_vmem [thread:$0]  %s43, 16, %s319, [#allocation33]
    $region89: #{resnet_forward.1} parent=1 // pred_fallthru
      _
    // Predicated region
    $region90: #{resnet_forward.1} parent=1 // pred_check
      _
    $region91: #{resnet_forward.1} parent=1 // pred_check_branch
      %323 = sbr.rel (0) target = $region93
    $region92: #{resnet_forward.1} parent=1 // pred_region
      %s325 = ssub.s32 16, 16
      %326 = vsyncadd [#allocation36], %s325
      %s328 = sshll.u32 [#allocation35], 4
      %s329 = int_to_ptr.vmem [resolvable:$true] %s328
      %331 = dma.hbm_to_vmem [thread:$0]  %s45, 16, %s329, [#allocation36]
    $region93: #{resnet_forward.1} parent=1 // pred_fallthru
      _
    // Predicated region
    $region94: #{resnet_forward.1} parent=1 // pred_check
      _
    $region95: #{resnet_forward.1} parent=1 // pred_check_branch
      %333 = sbr.rel (0) target = $region97
    $region96: #{resnet_forward.1} parent=1 // pred_region
      %s335 = ssub.s32 32, 32
      %336 = vsyncadd [#allocation36], %s335
      %s338 = sshll.u32 [#allocation37], 4
      %s339 = int_to_ptr.vmem [resolvable:$true] %s338
      %341 = dma.hbm_to_vmem [thread:$0]  %s47, 32, %s339, [#allocation36]
    $region97: #{resnet_forward.1} parent=1 // pred_fallthru
      _
    // Predicated region
    $region98: #{resnet_forward.1} parent=1 // pred_check
      _
    $region99: #{resnet_forward.1} parent=1 // pred_check_branch
      %343 = sbr.rel (0) target = $region101
    $region100: #{resnet_forward.1} parent=1 // pred_region
      %s345 = ssub.s32 64, 64
      %346 = vsyncadd [#allocation39], %s345
      %s348 = sshll.u32 [#allocation38], 4
      %s349 = int_to_ptr.vmem [resolvable:$true] %s348
      %351 = dma.hbm_to_vmem [thread:$0]  %s49, 64, %s349, [#allocation39]
    $region101: #{resnet_forward.1} parent=1 // pred_fallthru
      _
    // Predicated region
    $region102: #{resnet_forward.1} parent=1 // pred_check
      _
    $region103: #{resnet_forward.1} parent=1 // pred_check_branch
      %353 = sbr.rel (0) target = $region105
    $region104: #{resnet_forward.1} parent=1 // pred_region
      %s355 = ssub.s32 64, 64
      %356 = vsyncadd [#allocation39], %s355
      %s358 = sshll.u32 [#allocation40], 4
      %s359 = int_to_ptr.vmem [resolvable:$true] %s358
      %361 = dma.hbm_to_vmem [thread:$0]  %s51, 64, %s359, [#allocation39]
    $region105: #{resnet_forward.1} parent=1 // pred_fallthru
      _
    // Predicated region
    $region106: #{resnet_forward.1} parent=1 // pred_check
      _
    $region107: #{resnet_forward.1} parent=1 // pred_check_branch
      %363 = sbr.rel (0) target = $region109
    $region108: #{resnet_forward.1} parent=1 // pred_region
      %364 = dma.done [#allocation3], 512
    $region109: #{resnet_forward.1} parent=1 // pred_fallthru
      _
    // Predicated region
    $region110: #{resnet_forward.1} parent=1 // pred_check
      _
    $region111: #{resnet_forward.1} parent=1 // pred_check_branch
      %366 = sbr.rel (0) target = $region113
    $region112: #{resnet_forward.1} parent=1 // pred_region
      %367 = dma.done [#allocation6], 512
    $region113: #{resnet_forward.1} parent=1 // pred_fallthru
      _
    // Predicated region
    $region114: #{resnet_forward.1} parent=1 // pred_check
      _
    $region115: #{resnet_forward.1} parent=1 // pred_check_branch
      %369 = sbr.rel (0) target = $region117
    $region116: #{resnet_forward.1} parent=1 // pred_region
      %370 = dma.done [#allocation6], 512
    $region117: #{resnet_forward.1} parent=1 // pred_fallthru
      _
    // Predicated region
    $region118: #{resnet_forward.1} parent=1 // pred_check
      _
    $region119: #{resnet_forward.1} parent=1 // pred_check_branch
      %372 = sbr.rel (0) target = $region121
    $region120: #{resnet_forward.1} parent=1 // pred_region
      %373 = dma.done [#allocation9], 256
    $region121: #{resnet_forward.1} parent=1 // pred_fallthru
      _
    // Predicated region
    $region122: #{resnet_forward.1} parent=1 // pred_check
      _
    $region123: #{resnet_forward.1} parent=1 // pred_check_branch
      %375 = sbr.rel (0) target = $region125
    $region124: #{resnet_forward.1} parent=1 // pred_region
      %376 = dma.done [#allocation9], 256
    $region125: #{resnet_forward.1} parent=1 // pred_fallthru
      _
    // Predicated region
    $region126: #{resnet_forward.1} parent=1 // pred_check
      _
    $region127: #{resnet_forward.1} parent=1 // pred_check_branch
      %378 = sbr.rel (0) target = $region129
    $region128: #{resnet_forward.1} parent=1 // pred_region
      %379 = dma.done [#allocation12], 256
    $region129: #{resnet_forward.1} parent=1 // pred_fallthru
      _
    // Predicated region
    $region130: #{resnet_forward.1} parent=1 // pred_check
      _
    $region131: #{resnet_forward.1} parent=1 // pred_check_branch
      %381 = sbr.rel (0) target = $region133
    $region132: #{resnet_forward.1} parent=1 // pred_region
      %382 = dma.done [#allocation12], 128
    $region133: #{resnet_forward.1} parent=1 // pred_fallthru
      _
    // Predicated region
    $region134: #{resnet_forward.1} parent=1 // pred_check
      _
    $region135: #{resnet_forward.1} parent=1 // pred_check_branch
      %384 = sbr.rel (0) target = $region137
    $region136: #{resnet_forward.1} parent=1 // pred_region
      %385 = dma.done [#allocation15], 128
    $region137: #{resnet_forward.1} parent=1 // pred_fallthru
      _
    // Predicated region
    $region138: #{resnet_forward.1} parent=1 // pred_check
      _
    $region139: #{resnet_forward.1} parent=1 // pred_check_branch
      %387 = sbr.rel (0) target = $region141
    $region140: #{resnet_forward.1} parent=1 // pred_region
      %388 = dma.done [#allocation15], 128
    $region141: #{resnet_forward.1} parent=1 // pred_fallthru
      _
    // Predicated region
    $region142: #{resnet_forward.1} parent=1 // pred_check
      _
    $region143: #{resnet_forward.1} parent=1 // pred_check_branch
      %390 = sbr.rel (0) target = $region145
    $region144: #{resnet_forward.1} parent=1 // pred_region
      %391 = dma.done [#allocation18], 64
    $region145: #{resnet_forward.1} parent=1 // pred_fallthru
      _
    // Predicated region
    $region146: #{resnet_forward.1} parent=1 // pred_check
      _
    $region147: #{resnet_forward.1} parent=1 // pred_check_branch
      %393 = sbr.rel (0) target = $region149
    $region148: #{resnet_forward.1} parent=1 // pred_region
      %394 = dma.done [#allocation18], 64
    $region149: #{resnet_forward.1} parent=1 // pred_fallthru
      _
    // Predicated region
    $region150: #{resnet_forward.1} parent=1 // pred_check
      _
    $region151: #{resnet_forward.1} parent=1 // pred_check_branch
      %396 = sbr.rel (0) target = $region153
    $region152: #{resnet_forward.1} parent=1 // pred_region
      %397 = dma.done [#allocation21], 64
    $region153: #{resnet_forward.1} parent=1 // pred_fallthru
      _
    // Predicated region
    $region154: #{resnet_forward.1} parent=1 // pred_check
      _
    $region155: #{resnet_forward.1} parent=1 // pred_check_branch
      %399 = sbr.rel (0) target = $region157
    $region156: #{resnet_forward.1} parent=1 // pred_region
      %400 = dma.done [#allocation21], 16
    $region157: #{resnet_forward.1} parent=1 // pred_fallthru
      _
    // Predicated region
    $region158: #{resnet_forward.1} parent=1 // pred_check
      _
    $region159: #{resnet_forward.1} parent=1 // pred_check_branch
      %402 = sbr.rel (0) target = $region161
    $region160: #{resnet_forward.1} parent=1 // pred_region
      %403 = dma.done [#allocation24], 16
    $region161: #{resnet_forward.1} parent=1 // pred_fallthru
      _
    // Predicated region
    $region162: #{resnet_forward.1} parent=1 // pred_check
      _
    $region163: #{resnet_forward.1} parent=1 // pred_check_branch
      %405 = sbr.rel (0) target = $region165
    $region164: #{resnet_forward.1} parent=1 // pred_region
      %406 = dma.done [#allocation24], 16
    $region165: #{resnet_forward.1} parent=1 // pred_fallthru
      _
    // Predicated region
    $region166: #{resnet_forward.1} parent=1 // pred_check
      _
    $region167: #{resnet_forward.1} parent=1 // pred_check_branch
      %408 = sbr.rel (0) target = $region169
    $region168: #{resnet_forward.1} parent=1 // pred_region
      %409 = dma.done [#allocation27], 96
    $region169: #{resnet_forward.1} parent=1 // pred_fallthru
      _
    // Predicated region
    $region170: #{resnet_forward.1} parent=1 // pred_check
      _
    $region171: #{resnet_forward.1} parent=1 // pred_check_branch
      %411 = sbr.rel (0) target = $region173
    $region172: #{resnet_forward.1} parent=1 // pred_region
      %412 = dma.done [#allocation27], 1536
    $region173: #{resnet_forward.1} parent=1 // pred_fallthru
      _
    // Predicated region
    $region174: #{resnet_forward.1} parent=1 // pred_check
      _
    $region175: #{resnet_forward.1} parent=1 // pred_check_branch
      %414 = sbr.rel (0) target = $region177
    $region176: #{resnet_forward.1} parent=1 // pred_region
      %415 = dma.done [#allocation30], 6144
    $region177: #{resnet_forward.1} parent=1 // pred_fallthru
      _
    // Predicated region
    $region178: #{resnet_forward.1} parent=1 // pred_check
      _
    $region179: #{resnet_forward.1} parent=1 // pred_check_branch
      %417 = sbr.rel (0) target = $region181
    $region180: #{resnet_forward.1} parent=1 // pred_region
      %418 = dma.done [#allocation30], 24576
    $region181: #{resnet_forward.1} parent=1 // pred_fallthru
      _
    // Predicated region
    $region182: #{resnet_forward.1} parent=1 // pred_check
      _
    $region183: #{resnet_forward.1} parent=1 // pred_check_branch
      %420 = sbr.rel (0) target = $region185
    $region184: #{resnet_forward.1} parent=1 // pred_region
      %421 = dma.done [#allocation33], 49152
    $region185: #{resnet_forward.1} parent=1 // pred_fallthru
      _
    // Predicated region
    $region186: #{resnet_forward.1} parent=1 // pred_check
      _
    $region187: #{resnet_forward.1} parent=1 // pred_check_branch
      %423 = sbr.rel (0) target = $region189
    $region188: #{resnet_forward.1} parent=1 // pred_region
      %424 = dma.done [#allocation33], 16
    $region189: #{resnet_forward.1} parent=1 // pred_fallthru
      _
    // Predicated region
    $region190: #{resnet_forward.1} parent=1 // pred_check
      _
    $region191: #{resnet_forward.1} parent=1 // pred_check_branch
      %426 = sbr.rel (0) target = $region193
    $region192: #{resnet_forward.1} parent=1 // pred_region
      %427 = dma.done [#allocation36], 16
    $region193: #{resnet_forward.1} parent=1 // pred_fallthru
      _
    // Predicated region
    $region194: #{resnet_forward.1} parent=1 // pred_check
      _
    $region195: #{resnet_forward.1} parent=1 // pred_check_branch
      %429 = sbr.rel (0) target = $region197
    $region196: #{resnet_forward.1} parent=1 // pred_region
      %430 = dma.done [#allocation36], 32
    $region197: #{resnet_forward.1} parent=1 // pred_fallthru
      _
    // Predicated region
    $region198: #{resnet_forward.1} parent=1 // pred_check
      _
    $region199: #{resnet_forward.1} parent=1 // pred_check_branch
      %432 = sbr.rel (0) target = $region201
    $region200: #{resnet_forward.1} parent=1 // pred_region
      %433 = dma.done [#allocation39], 64
    $region201: #{resnet_forward.1} parent=1 // pred_fallthru
      _
    // Predicated region
    $region202: #{resnet_forward.1} parent=1 // pred_check
      _
    $region203: #{resnet_forward.1} parent=1 // pred_check_branch
      %435 = sbr.rel (0) target = $region205
    $region204: #{resnet_forward.1} parent=1 // pred_region
      %436 = dma.done [#allocation39], 64
    $region205: #{resnet_forward.1} parent=1 // pred_fallthru
      _
    %v438 = vld [vmem:[%s1] sm:$0xff]
    %v439 = vld [vmem:[%s1 + $0x8] sm:$0xff]
    %v440 = vld [vmem:[%s1 + $0x10] sm:$0xff]
    %v441 = vld [vmem:[%s1 + $0x18] sm:$0xff]
    %v442 = vld [vmem:[%s1 + $0x20] sm:$0xff]
    %v443 = vld [vmem:[%s1 + $0x28] sm:$0xff]
    %v444 = vld [vmem:[%s1 + $0x30] sm:$0xff]
    %v445 = vld [vmem:[%s1 + $0x38] sm:$0xff]
    %v446 = vld [vmem:[%s1 + $0x40] sm:$0xff]
    %v447 = vld [vmem:[%s1 + $0x48] sm:$0xff]
    %v448 = vld [vmem:[%s1 + $0x50] sm:$0xff]
    %v449 = vld [vmem:[%s1 + $0x58] sm:$0xff]
    %v450 = vld [vmem:[%s1 + $0x60] sm:$0xff]
    %v451 = vld [vmem:[%s1 + $0x68] sm:$0xff]
    %v452 = vld [vmem:[%s1 + $0x70] sm:$0xff]
    %v453 = vld [vmem:[%s1 + $0x78] sm:$0xff]
    %v454 = vpack.c.bf16 %v439, %v438
    %v455 = vpack.c.bf16 %v441, %v440
    %v456 = vpack.c.bf16 %v443, %v442
    %v457 = vpack.c.bf16 %v445, %v444
    %v458 = vpack.c.bf16 %v447, %v446
    %v459 = vpack.c.bf16 %v449, %v448
    %v460 = vpack.c.bf16 %v451, %v450
    %v461 = vpack.c.bf16 %v453, %v452
    %v462 = vld [vmem:[#allocation2] sm:$0xf]
    %v463 = vld [vmem:[#allocation2 + $0x4] sm:$0xf]
    %v464 = vld [vmem:[#allocation2 + $0x8] sm:$0xf]
    %v465 = vld [vmem:[#allocation2 + $0xc] sm:$0xf]
    %v466 = vld [vmem:[#allocation2 + $0x10] sm:$0xf]
    %v467 = vld [vmem:[#allocation2 + $0x14] sm:$0xf]
    %v468 = vld [vmem:[#allocation2 + $0x18] sm:$0xf]
    %v469 = vld [vmem:[#allocation2 + $0x1c] sm:$0x7]
    %v478 = vunpack.c.l.b16 %v462
    %v479 = vunpack.c.l.b16 %v463
    %v480 = vunpack.c.l.b16 %v464
    %v481 = vunpack.c.l.b16 %v465
    %v482 = vunpack.c.l.b16 %v466
    %v483 = vunpack.c.l.b16 %v467
    %v484 = vunpack.c.l.b16 %v468
    %v485 = vunpack.c.l.b16 %v469
    %v486 = vpack.c.b16 %v479, %v478
    %v487 = vpack.c.b16 %v481, %v480
    %v488 = vpack.c.b16 %v483, %v482
    %v489 = vpack.c.b16 %v485, %v484
    %494 = vmatprep.subr.bf16.mxu0 0
    %495 = vmatpush1.bf16.msra.mxu0 %v454
    %496 = vmatprep.subr.bf16.mxu0 0
    %497 = vmatpush1.bf16.msra.mxu0 %v455
    %498 = vmatprep.subr.bf16.mxu0 0
    %499 = vmatpush1.bf16.msra.mxu0 %v456
    %500 = vmatprep.subr.bf16.mxu0 0
    %501 = vmatpush1.bf16.msra.mxu0 %v457
    %502 = vmatprep.subr.bf16.mxu0 0
    %503 = vmatpush1.bf16.msra.mxu0 %v458
    %504 = vmatprep.subr.bf16.mxu0 0
    %505 = vmatpush1.bf16.msra.mxu0 %v459
    %506 = vmatprep.subr.bf16.mxu0 0
    %507 = vmatpush1.bf16.msra.mxu0 %v460
    %508 = vmatprep.subr.bf16.mxu0 0
    %509 = vmatpush1.bf16.msra.mxu0 %v461
    %510 = vmatprep.subr.bf16.mxu0 0
    %511 = vmatpush1.bf16.msra.mxu0 0
    %512 = vmatprep.subr.bf16.mxu0 0
    %513 = vmatpush1.bf16.msra.mxu0 0
    %514 = vmatprep.subr.bf16.mxu0 0
    %515 = vmatpush1.bf16.msra.mxu0 0
    %516 = vmatprep.subr.bf16.mxu0 0
    %517 = vmatpush1.bf16.msra.mxu0 0
    %518 = vmatprep.subr.bf16.mxu0 0
    %519 = vmatpush1.bf16.msra.mxu0 0
    %520 = vmatprep.subr.bf16.mxu0 0
    %521 = vmatpush1.bf16.msra.mxu0 0
    %522 = vmatprep.subr.bf16.mxu0 0
    %523 = vmatpush1.bf16.msra.mxu0 0
    %524 = vmatprep.subr.bf16.mxu0 0
    %525 = vmatpush1.bf16.msra.mxu0 0
    %526 = vmatprep.mubr.bf16.mxu0 0
    %527 = vmatmul.mubr.bf16.gmra.mrb[0].mxu0 %v486
    %v528 = vpop.f32.mrb[0].mxu0
    %v529 = vadd.f32 0.0, %v528
    %v530 = vpop.f32.mrb[0].mxu0
    %v531 = vpop.f32.mrb[0].mxu0
    %v532 = vadd.f32 0.0, %v531
    %v533 = vpop.f32.mrb[0].mxu0
    %534 = vmatprep.mubr.bf16.mxu0 0
    %535 = vmatmul.mubr.bf16.gmra.mrb[0].mxu0 %v487
    %v536 = vpop.f32.mrb[0].mxu0
    %v537 = vadd.f32 0.0, %v536
    %v538 = vpop.f32.mrb[0].mxu0
    %v539 = vpop.f32.mrb[0].mxu0
    %v540 = vadd.f32 0.0, %v539
    %v541 = vpop.f32.mrb[0].mxu0
    %542 = vmatprep.mubr.bf16.mxu0 0
    %543 = vmatmul.mubr.bf16.gmra.mrb[0].mxu0 %v488
    %v544 = vpop.f32.mrb[0].mxu0
    %v545 = vadd.f32 0.0, %v544
    %v546 = vpop.f32.mrb[0].mxu0
    %v547 = vpop.f32.mrb[0].mxu0
    %v548 = vadd.f32 0.0, %v547
    %v549 = vpop.f32.mrb[0].mxu0
    %550 = vmatprep.mubr.bf16.mxu0 0
    %551 = vmatmul.mubr.bf16.gmra.mrb[0].mxu0 %v489
    %v552 = vpop.f32.mrb[0].mxu0
    %v553 = vadd.f32 0.0, %v552
    %v554 = vpop.f32.mrb[0].mxu0
    %v555 = vpop.f32.mrb[0].mxu0
    %v556 = vadd.f32 0.0, %v555
    %v557 = vpop.f32.mrb[0].mxu0
    %558 = vdwg.mxu0
    %v559 = vpack.c.bf16 %v532, %v529
    %v560 = vpack.c.bf16 %v540, %v537
    %v561 = vpack.c.bf16 %v548, %v545
    %v562 = vpack.c.bf16 %v556, %v553
    %v563 = vld [vmem:[#allocation5] sm:$0xf]
    %v564 = vld [vmem:[#allocation5 + $0x4] sm:$0xf]
    %v565 = vld [vmem:[#allocation5 + $0x8] sm:$0xf]
    %v566 = vld [vmem:[#allocation5 + $0xc] sm:$0xf]
    %v567 = vld [vmem:[#allocation5 + $0x10] sm:$0xf]
    %v568 = vld [vmem:[#allocation5 + $0x14] sm:$0xf]
    %v569 = vld [vmem:[#allocation5 + $0x18] sm:$0xf]
    %v570 = vld [vmem:[#allocation5 + $0x1c] sm:$0x7]
    %v579 = vunpack.c.l.b16 %v563
    %v580 = vunpack.c.l.b16 %v564
    %v581 = vunpack.c.l.b16 %v565
    %v582 = vunpack.c.l.b16 %v566
    %v583 = vunpack.c.l.b16 %v567
    %v584 = vunpack.c.l.b16 %v568
    %v585 = vunpack.c.l.b16 %v569
    %v586 = vunpack.c.l.b16 %v570
    %v587 = vpack.c.b16 %v580, %v579
    %v588 = vpack.c.b16 %v582, %v581
    %v589 = vpack.c.b16 %v584, %v583
    %v590 = vpack.c.b16 %v586, %v585
    %595 = vmatprep.subr.bf16.mxu0 0
    %596 = vmatpush1.bf16.msra.mxu0 %v454
    %597 = vmatprep.subr.bf16.mxu0 0
    %598 = vmatpush1.bf16.msra.mxu0 %v455
    %599 = vmatprep.subr.bf16.mxu0 0
    %600 = vmatpush1.bf16.msra.mxu0 %v456
    %601 = vmatprep.subr.bf16.mxu0 0
    %602 = vmatpush1.bf16.msra.mxu0 %v457
    %603 = vmatprep.subr.bf16.mxu0 0
    %604 = vmatpush1.bf16.msra.mxu0 %v458
    %605 = vmatprep.subr.bf16.mxu0 0
    %606 = vmatpush1.bf16.msra.mxu0 %v459
    %607 = vmatprep.subr.bf16.mxu0 0
    %608 = vmatpush1.bf16.msra.mxu0 %v460
    %609 = vmatprep.subr.bf16.mxu0 0
    %610 = vmatpush1.bf16.msra.mxu0 %v461
    %611 = vmatprep.subr.bf16.mxu0 0
    %612 = vmatpush1.bf16.msra.mxu0 0
    %613 = vmatprep.subr.bf16.mxu0 0
    %614 = vmatpush1.bf16.msra.mxu0 0
    %615 = vmatprep.subr.bf16.mxu0 0
    %616 = vmatpush1.bf16.msra.mxu0 0
    %617 = vmatprep.subr.bf16.mxu0 0
    %618 = vmatpush1.bf16.msra.mxu0 0
    %619 = vmatprep.subr.bf16.mxu0 0
    %620 = vmatpush1.bf16.msra.mxu0 0
    %621 = vmatprep.subr.bf16.mxu0 0
    %622 = vmatpush1.bf16.msra.mxu0 0
    %623 = vmatprep.subr.bf16.mxu0 0
    %624 = vmatpush1.bf16.msra.mxu0 0
    %625 = vmatprep.subr.bf16.mxu0 0
    %626 = vmatpush1.bf16.msra.mxu0 0
    %627 = vmatprep.mubr.bf16.mxu0 0
    %628 = vmatmul.mubr.bf16.gmra.mrb[0].mxu0 %v587
    %v629 = vpop.f32.mrb[0].mxu0
    %v630 = vadd.f32 0.0, %v629
    %v631 = vpop.f32.mrb[0].mxu0
    %v632 = vpop.f32.mrb[0].mxu0
    %v633 = vadd.f32 0.0, %v632
    %v634 = vpop.f32.mrb[0].mxu0
    %635 = vmatprep.mubr.bf16.mxu0 0
    %636 = vmatmul.mubr.bf16.gmra.mrb[0].mxu0 %v588
    %v637 = vpop.f32.mrb[0].mxu0
    %v638 = vadd.f32 0.0, %v637
    %v639 = vpop.f32.mrb[0].mxu0
    %v640 = vpop.f32.mrb[0].mxu0
    %v641 = vadd.f32 0.0, %v640
    %v642 = vpop.f32.mrb[0].mxu0
    %643 = vmatprep.mubr.bf16.mxu0 0
    %644 = vmatmul.mubr.bf16.gmra.mrb[0].mxu0 %v589
    %v645 = vpop.f32.mrb[0].mxu0
    %v646 = vadd.f32 0.0, %v645
    %v647 = vpop.f32.mrb[0].mxu0
    %v648 = vpop.f32.mrb[0].mxu0
    %v649 = vadd.f32 0.0, %v648
    %v650 = vpop.f32.mrb[0].mxu0
    %651 = vmatprep.mubr.bf16.mxu0 0
    %652 = vmatmul.mubr.bf16.gmra.mrb[0].mxu0 %v590
    %v653 = vpop.f32.mrb[0].mxu0
    %v654 = vadd.f32 0.0, %v653
    %v655 = vpop.f32.mrb[0].mxu0
    %v656 = vpop.f32.mrb[0].mxu0
    %v657 = vadd.f32 0.0, %v656
    %v658 = vpop.f32.mrb[0].mxu0
    %659 = vdwg.mxu0
    %v660 = vpack.c.bf16 %v633, %v630
    %v661 = vpack.c.bf16 %v641, %v638
    %v662 = vpack.c.bf16 %v649, %v646
    %v663 = vpack.c.bf16 %v657, %v654
    %v664 = vld [vmem:[#allocation7] sm:$0xf]
    %v665 = vld [vmem:[#allocation7 + $0x4] sm:$0xf]
    %v666 = vld [vmem:[#allocation7 + $0x8] sm:$0xf]
    %v667 = vld [vmem:[#allocation7 + $0xc] sm:$0xf]
    %v668 = vld [vmem:[#allocation7 + $0x10] sm:$0xf]
    %v669 = vld [vmem:[#allocation7 + $0x14] sm:$0xf]
    %v670 = vld [vmem:[#allocation7 + $0x18] sm:$0xf]
    %v671 = vld [vmem:[#allocation7 + $0x1c] sm:$0x7]
    %v680 = vunpack.c.l.b16 %v664
    %v681 = vunpack.c.l.b16 %v665
    %v682 = vunpack.c.l.b16 %v666
    %v683 = vunpack.c.l.b16 %v667
    %v684 = vunpack.c.l.b16 %v668
    %v685 = vunpack.c.l.b16 %v669
    %v686 = vunpack.c.l.b16 %v670
    %v687 = vunpack.c.l.b16 %v671
    %v688 = vpack.c.b16 %v681, %v680
    %v689 = vpack.c.b16 %v683, %v682
    %v690 = vpack.c.b16 %v685, %v684
    %v691 = vpack.c.b16 %v687, %v686
    %696 = vmatprep.subr.bf16.mxu0 0
    %697 = vmatpush1.bf16.msra.mxu0 %v454
    %698 = vmatprep.subr.bf16.mxu0 0
    %699 = vmatpush1.bf16.msra.mxu0 %v455
    %700 = vmatprep.subr.bf16.mxu0 0
    %701 = vmatpush1.bf16.msra.mxu0 %v456
    %702 = vmatprep.subr.bf16.mxu0 0
    %703 = vmatpush1.bf16.msra.mxu0 %v457
    %704 = vmatprep.subr.bf16.mxu0 0
    %705 = vmatpush1.bf16.msra.mxu0 %v458
    %706 = vmatprep.subr.bf16.mxu0 0
    %707 = vmatpush1.bf16.msra.mxu0 %v459
    %708 = vmatprep.subr.bf16.mxu0 0
    %709 = vmatpush1.bf16.msra.mxu0 %v460
    %710 = vmatprep.subr.bf16.mxu0 0
    %711 = vmatpush1.bf16.msra.mxu0 %v461
    %712 = vmatprep.subr.bf16.mxu0 0
    %713 = vmatpush1.bf16.msra.mxu0 0
    %714 = vmatprep.subr.bf16.mxu0 0
    %715 = vmatpush1.bf16.msra.mxu0 0
    %716 = vmatprep.subr.bf16.mxu0 0
    %717 = vmatpush1.bf16.msra.mxu0 0
    %718 = vmatprep.subr.bf16.mxu0 0
    %719 = vmatpush1.bf16.msra.mxu0 0
    %720 = vmatprep.subr.bf16.mxu0 0
    %721 = vmatpush1.bf16.msra.mxu0 0
    %722 = vmatprep.subr.bf16.mxu0 0
    %723 = vmatpush1.bf16.msra.mxu0 0
    %724 = vmatprep.subr.bf16.mxu0 0
    %725 = vmatpush1.bf16.msra.mxu0 0
    %726 = vmatprep.subr.bf16.mxu0 0
    %727 = vmatpush1.bf16.msra.mxu0 0
    %728 = vmatprep.mubr.bf16.mxu0 0
    %729 = vmatmul.mubr.bf16.gmra.mrb[0].mxu0 %v688
    %v730 = vpop.f32.mrb[0].mxu0
    %v731 = vadd.f32 0.0, %v730
    %v732 = vpop.f32.mrb[0].mxu0
    %v733 = vpop.f32.mrb[0].mxu0
    %v734 = vadd.f32 0.0, %v733
    %v735 = vpop.f32.mrb[0].mxu0
    %736 = vmatprep.mubr.bf16.mxu0 0
    %737 = vmatmul.mubr.bf16.gmra.mrb[0].mxu0 %v689
    %v738 = vpop.f32.mrb[0].mxu0
    %v739 = vadd.f32 0.0, %v738
    %v740 = vpop.f32.mrb[0].mxu0
    %v741 = vpop.f32.mrb[0].mxu0
    %v742 = vadd.f32 0.0, %v741
    %v743 = vpop.f32.mrb[0].mxu0
    %744 = vmatprep.mubr.bf16.mxu0 0
    %745 = vmatmul.mubr.bf16.gmra.mrb[0].mxu0 %v690
    %v746 = vpop.f32.mrb[0].mxu0
    %v747 = vadd.f32 0.0, %v746
    %v748 = vpop.f32.mrb[0].mxu0
    %v749 = vpop.f32.mrb[0].mxu0
    %v750 = vadd.f32 0.0, %v749
    %v751 = vpop.f32.mrb[0].mxu0
    %752 = vmatprep.mubr.bf16.mxu0 0
    %753 = vmatmul.mubr.bf16.gmra.mrb[0].mxu0 %v691
    %v754 = vpop.f32.mrb[0].mxu0
    %v755 = vadd.f32 0.0, %v754
    %v756 = vpop.f32.mrb[0].mxu0
    %v757 = vpop.f32.mrb[0].mxu0
    %v758 = vadd.f32 0.0, %v757
    %v759 = vpop.f32.mrb[0].mxu0
    %760 = vdwg.mxu0
    %v761 = vpack.c.bf16 %v734, %v731
    %v762 = vpack.c.bf16 %v742, %v739
    %v763 = vpack.c.bf16 %v750, %v747
    %v764 = vpack.c.bf16 %v758, %v755
    %v765 = vld [vmem:[#allocation26] sm:$0x3]
    %s766 = scalar_lea.vmem [#allocation26], 2
    %v767 = vld [vmem:[%s766] sm:$0x3]
    %vm768 = vcmask 31744
    %v770 = vsel %vm768, %v660, 0
    %v773 = vsel %vm768, %v661, 0
    %v776 = vsel %vm768, %v662, 0
    %v779 = vsel %vm768, %v663, 0
    %vm781 = vcmask 1041408
    %v783 = vsel %vm781, %v767, 0
    %785 = vmatprep.subr.bf16.mxu0 0
    %786 = vmatpush1.bf16.msra.mxu0 %v783
    %787 = vmatprep.subr.bf16.mxu0 0
    %788 = vmatpush1.bf16.msra.mxu0 0
    %789 = vmatprep.subr.bf16.mxu0 0
    %790 = vmatpush1.bf16.msra.mxu0 0
    %791 = vmatprep.subr.bf16.mxu0 0
    %792 = vmatpush1.bf16.msra.mxu0 0
    %793 = vmatprep.subr.bf16.mxu0 0
    %794 = vmatpush1.bf16.msra.mxu0 0
    %795 = vmatprep.subr.bf16.mxu0 0
    %796 = vmatpush1.bf16.msra.mxu0 0
    %797 = vmatprep.subr.bf16.mxu0 0
    %798 = vmatpush1.bf16.msra.mxu0 0
    %799 = vmatprep.subr.bf16.mxu0 0
    %800 = vmatpush1.bf16.msra.mxu0 0
    %801 = vmatprep.subr.bf16.mxu0 0
    %802 = vmatpush1.bf16.msra.mxu0 0
    %803 = vmatprep.subr.bf16.mxu0 0
    %804 = vmatpush1.bf16.msra.mxu0 0
    %805 = vmatprep.subr.bf16.mxu0 0
    %806 = vmatpush1.bf16.msra.mxu0 0
    %807 = vmatprep.subr.bf16.mxu0 0
    %808 = vmatpush1.bf16.msra.mxu0 0
    %809 = vmatprep.subr.bf16.mxu0 0
    %810 = vmatpush1.bf16.msra.mxu0 0
    %811 = vmatprep.subr.bf16.mxu0 0
    %812 = vmatpush1.bf16.msra.mxu0 0
    %813 = vmatprep.subr.bf16.mxu0 0
    %814 = vmatpush1.bf16.msra.mxu0 0
    %815 = vmatprep.subr.bf16.mxu0 0
    %816 = vmatpush1.bf16.msra.mxu0 0
    %817 = vmatprep.mubr.bf16.mxu0 0
    %818 = vmatmul.mubr.bf16.gmra.mrb[0].mxu0 %v770
    %v819 = vpop.f32.mrb[0].mxu0
    %v820 = vadd.f32 0.0, %v819
    %v821 = vpop.f32.mrb[0].mxu0
    %v822 = vpop.f32.mrb[0].mxu0
    %v823 = vadd.f32 0.0, %v822
    %v824 = vpop.f32.mrb[0].mxu0
    %825 = vmatprep.mubr.bf16.mxu0 0
    %826 = vmatmul.mubr.bf16.gmra.mrb[0].mxu0 %v773
    %v827 = vpop.f32.mrb[0].mxu0
    %v828 = vadd.f32 0.0, %v827
    %v829 = vpop.f32.mrb[0].mxu0
    %v830 = vpop.f32.mrb[0].mxu0
    %v831 = vadd.f32 0.0, %v830
    %v832 = vpop.f32.mrb[0].mxu0
    %833 = vmatprep.mubr.bf16.mxu0 0
    %834 = vmatmul.mubr.bf16.gmra.mrb[0].mxu0 %v776
    %v835 = vpop.f32.mrb[0].mxu0
    %v836 = vadd.f32 0.0, %v835
    %v837 = vpop.f32.mrb[0].mxu0
    %v838 = vpop.f32.mrb[0].mxu0
    %v839 = vadd.f32 0.0, %v838
    %v840 = vpop.f32.mrb[0].mxu0
    %841 = vmatprep.mubr.bf16.mxu0 0
    %842 = vmatmul.mubr.bf16.gmra.mrb[0].mxu0 %v779
    %v843 = vpop.f32.mrb[0].mxu0
    %v844 = vadd.f32 0.0, %v843
    %v845 = vpop.f32.mrb[0].mxu0
    %v846 = vpop.f32.mrb[0].mxu0
    %v847 = vadd.f32 0.0, %v846
    %v848 = vpop.f32.mrb[0].mxu0
    %849 = vdwg.mxu0
    %v851 = vsel %vm768, %v559, 0
    %v854 = vsel %vm768, %v560, 0
    %v857 = vsel %vm768, %v561, 0
    %v860 = vsel %vm768, %v562, 0
    %v863 = vsel %vm781, %v765, 0
    %865 = vmatprep.subr.bf16.mxu0 0
    %866 = vmatpush1.bf16.msra.mxu0 %v863
    %867 = vmatprep.subr.bf16.mxu0 0
    %868 = vmatpush1.bf16.msra.mxu0 0
    %869 = vmatprep.subr.bf16.mxu0 0
    %870 = vmatpush1.bf16.msra.mxu0 0
    %871 = vmatprep.subr.bf16.mxu0 0
    %872 = vmatpush1.bf16.msra.mxu0 0
    %873 = vmatprep.subr.bf16.mxu0 0
    %874 = vmatpush1.bf16.msra.mxu0 0
    %875 = vmatprep.subr.bf16.mxu0 0
    %876 = vmatpush1.bf16.msra.mxu0 0
    %877 = vmatprep.subr.bf16.mxu0 0
    %878 = vmatpush1.bf16.msra.mxu0 0
    %879 = vmatprep.subr.bf16.mxu0 0
    %880 = vmatpush1.bf16.msra.mxu0 0
    %881 = vmatprep.subr.bf16.mxu0 0
    %882 = vmatpush1.bf16.msra.mxu0 0
    %883 = vmatprep.subr.bf16.mxu0 0
    %884 = vmatpush1.bf16.msra.mxu0 0
    %885 = vmatprep.subr.bf16.mxu0 0
    %886 = vmatpush1.bf16.msra.mxu0 0
    %887 = vmatprep.subr.bf16.mxu0 0
    %888 = vmatpush1.bf16.msra.mxu0 0
    %889 = vmatprep.subr.bf16.mxu0 0
    %890 = vmatpush1.bf16.msra.mxu0 0
    %891 = vmatprep.subr.bf16.mxu0 0
    %892 = vmatpush1.bf16.msra.mxu0 0
    %893 = vmatprep.subr.bf16.mxu0 0
    %894 = vmatpush1.bf16.msra.mxu0 0
    %895 = vmatprep.subr.bf16.mxu0 0
    %896 = vmatpush1.bf16.msra.mxu0 0
    %897 = vmatprep.mubr.bf16.mxu0 0
    %898 = vmatmul.mubr.bf16.gmra.mrb[0].mxu0 %v851
    %v899 = vpop.f32.mrb[0].mxu0
    %v900 = vadd.f32 %v820, %v899
    %v901 = vpop.f32.mrb[0].mxu0
    %v902 = vpop.f32.mrb[0].mxu0
    %v903 = vadd.f32 %v823, %v902
    %v904 = vpop.f32.mrb[0].mxu0
    %905 = vmatprep.mubr.bf16.mxu0 0
    %906 = vmatmul.mubr.bf16.gmra.mrb[0].mxu0 %v854
    %v907 = vpop.f32.mrb[0].mxu0
    %v908 = vadd.f32 %v828, %v907
    %v909 = vpop.f32.mrb[0].mxu0
    %v910 = vpop.f32.mrb[0].mxu0
    %v911 = vadd.f32 %v831, %v910
    %v912 = vpop.f32.mrb[0].mxu0
    %913 = vmatprep.mubr.bf16.mxu0 0
    %914 = vmatmul.mubr.bf16.gmra.mrb[0].mxu0 %v857
    %v915 = vpop.f32.mrb[0].mxu0
    %v916 = vadd.f32 %v836, %v915
    %v917 = vpop.f32.mrb[0].mxu0
    %v918 = vpop.f32.mrb[0].mxu0
    %v919 = vadd.f32 %v839, %v918
    %v920 = vpop.f32.mrb[0].mxu0
    %921 = vmatprep.mubr.bf16.mxu0 0
    %922 = vmatmul.mubr.bf16.gmra.mrb[0].mxu0 %v860
    %v923 = vpop.f32.mrb[0].mxu0
    %v924 = vadd.f32 %v844, %v923
    %v925 = vpop.f32.mrb[0].mxu0
    %v926 = vpop.f32.mrb[0].mxu0
    %v927 = vadd.f32 %v847, %v926
    %v928 = vpop.f32.mrb[0].mxu0
    %929 = vdwg.mxu0
    %s930 = scalar_lea.vmem [#allocation26], 4
    %v931 = vld [vmem:[%s930] sm:$0x3]
    %v933 = vsel %vm768, %v761, 0
    %v936 = vsel %vm768, %v762, 0
    %v939 = vsel %vm768, %v763, 0
    %v942 = vsel %vm768, %v764, 0
    %v945 = vsel %vm781, %v931, 0
    %947 = vmatprep.subr.bf16.mxu0 0
    %948 = vmatpush1.bf16.msra.mxu0 %v945
    %949 = vmatprep.subr.bf16.mxu0 0
    %950 = vmatpush1.bf16.msra.mxu0 0
    %951 = vmatprep.subr.bf16.mxu0 0
    %952 = vmatpush1.bf16.msra.mxu0 0
    %953 = vmatprep.subr.bf16.mxu0 0
    %954 = vmatpush1.bf16.msra.mxu0 0
    %955 = vmatprep.subr.bf16.mxu0 0
    %956 = vmatpush1.bf16.msra.mxu0 0
    %957 = vmatprep.subr.bf16.mxu0 0
    %958 = vmatpush1.bf16.msra.mxu0 0
    %959 = vmatprep.subr.bf16.mxu0 0
    %960 = vmatpush1.bf16.msra.mxu0 0
    %961 = vmatprep.subr.bf16.mxu0 0
    %962 = vmatpush1.bf16.msra.mxu0 0
    %963 = vmatprep.subr.bf16.mxu0 0
    %964 = vmatpush1.bf16.msra.mxu0 0
    %965 = vmatprep.subr.bf16.mxu0 0
    %966 = vmatpush1.bf16.msra.mxu0 0
    %967 = vmatprep.subr.bf16.mxu0 0
    %968 = vmatpush1.bf16.msra.mxu0 0
    %969 = vmatprep.subr.bf16.mxu0 0
    %970 = vmatpush1.bf16.msra.mxu0 0
    %971 = vmatprep.subr.bf16.mxu0 0
    %972 = vmatpush1.bf16.msra.mxu0 0
    %973 = vmatprep.subr.bf16.mxu0 0
    %974 = vmatpush1.bf16.msra.mxu0 0
    %975 = vmatprep.subr.bf16.mxu0 0
    %976 = vmatpush1.bf16.msra.mxu0 0
    %977 = vmatprep.subr.bf16.mxu0 0
    %978 = vmatpush1.bf16.msra.mxu0 0
    %979 = vmatprep.mubr.bf16.mxu0 0
    %980 = vmatmul.mubr.bf16.gmra.mrb[0].mxu0 %v933
    %v981 = vpop.f32.mrb[0].mxu0
    %v982 = vadd.f32 0.0, %v981
    %v983 = vpop.f32.mrb[0].mxu0
    %v984 = vpop.f32.mrb[0].mxu0
    %v985 = vadd.f32 0.0, %v984
    %v986 = vpop.f32.mrb[0].mxu0
    %987 = vmatprep.mubr.bf16.mxu0 0
    %988 = vmatmul.mubr.bf16.gmra.mrb[0].mxu0 %v936
    %v989 = vpop.f32.mrb[0].mxu0
    %v990 = vadd.f32 0.0, %v989
    %v991 = vpop.f32.mrb[0].mxu0
    %v992 = vpop.f32.mrb[0].mxu0
    %v993 = vadd.f32 0.0, %v992
    %v994 = vpop.f32.mrb[0].mxu0
    %995 = vmatprep.mubr.bf16.mxu0 0
    %996 = vmatmul.mubr.bf16.gmra.mrb[0].mxu0 %v939
    %v997 = vpop.f32.mrb[0].mxu0
    %v998 = vadd.f32 0.0, %v997
    %v999 = vpop.f32.mrb[0].mxu0
    %v1000 = vpop.f32.mrb[0].mxu0
    %v1001 = vadd.f32 0.0, %v1000
    %v1002 = vpop.f32.mrb[0].mxu0
    %1003 = vmatprep.mubr.bf16.mxu0 0
    %1004 = vmatmul.mubr.bf16.gmra.mrb[0].mxu0 %v942
    %v1005 = vpop.f32.mrb[0].mxu0
    %v1006 = vadd.f32 0.0, %v1005
    %v1007 = vpop.f32.mrb[0].mxu0
    %v1008 = vpop.f32.mrb[0].mxu0
    %v1009 = vadd.f32 0.0, %v1008
    %v1010 = vpop.f32.mrb[0].mxu0
    %1011 = vdwg.mxu0
    %v1012 = vadd.f32 %v900, %v982
    %v1013 = vadd.f32 %v903, %v985
    %v1014 = vadd.f32 %v908, %v990
    %v1015 = vadd.f32 %v911, %v993
    %v1016 = vadd.f32 %v916, %v998
    %v1017 = vadd.f32 %v919, %v1001
    %v1018 = vadd.f32 %v924, %v1006
    %v1019 = vadd.f32 %v927, %v1009
    %v1020 = vld [vmem:[#allocation34] sm:$0x1]
    %v1022 = vlaneseq
    %v1023 = vshrl.u32 %v1022, 7
    %v1024 = vsub.s32 0, %v1023
    %v1025 = vrot.slane %v1020, %v1024
    %v1027 = vadd.f32 %v1012, %v1025
    %v1028 = vadd.f32 %v1013, %v1025
    %v1029 = vadd.f32 %v1014, %v1025
    %v1030 = vadd.f32 %v1015, %v1025
    %v1031 = vadd.f32 %v1016, %v1025
    %v1032 = vadd.f32 %v1017, %v1025
    %v1033 = vadd.f32 %v1018, %v1025
    %v1034 = vadd.f32 %v1019, %v1025
    %v1035 = vmax.f32 %v1027, 0.0
    %v1036 = vmax.f32 %v1028, 0.0
    %v1037 = vmax.f32 %v1029, 0.0
    %v1038 = vmax.f32 %v1030, 0.0
    %v1039 = vmax.f32 %v1031, 0.0
    %v1040 = vmax.f32 %v1032, 0.0
    %v1041 = vmax.f32 %v1033, 0.0
    %v1042 = vmax.f32 %v1034, 0.0
    %v1043 = vpack.c.bf16 %v1036, %v1035
    %v1044 = vpack.c.bf16 %v1038, %v1037
    %v1045 = vpack.c.bf16 %v1040, %v1039
    %v1046 = vpack.c.bf16 %v1042, %v1041
    %v1047 = vld [vmem:[#allocation8] sm:$0xf]
    %v1048 = vld [vmem:[#allocation8 + $0x4] sm:$0xf]
    %v1049 = vld [vmem:[#allocation8 + $0x8] sm:$0xf]
    %v1050 = vld [vmem:[#allocation8 + $0xc] sm:$0x7]
    %v1055 = vunpack.c.l.b16 %v1047
    %v1056 = vunpack.c.l.b16 %v1048
    %v1057 = vunpack.c.l.b16 %v1049
    %v1058 = vunpack.c.l.b16 %v1050
    %v1059 = vpack.c.b16 %v1056, %v1055
    %v1060 = vpack.c.b16 %v1058, %v1057
    %vm1061 = vcmask 506880
    %v1063 = vsel %vm1061, %v1059, 0
    %v1066 = vsel %vm1061, %v1060, 0
    %vm1068 = vcmask 1046528
    %v1070 = vsel %vm1068, %v1046, 0
    %1072 = vmatprep.subr.bf16.mxu0 0
    %1073 = vmatpush1.bf16.msra.mxu0 %v1043
    %1074 = vmatprep.subr.bf16.mxu0 0
    %1075 = vmatpush1.bf16.msra.mxu0 %v1044
    %1076 = vmatprep.subr.bf16.mxu0 0
    %1077 = vmatpush1.bf16.msra.mxu0 %v1045
    %1078 = vmatprep.subr.bf16.mxu0 0
    %1079 = vmatpush1.bf16.msra.mxu0 %v1070
    %1080 = vmatprep.subr.bf16.mxu0 0
    %1081 = vmatpush1.bf16.msra.mxu0 0
    %1082 = vmatprep.subr.bf16.mxu0 0
    %1083 = vmatpush1.bf16.msra.mxu0 0
    %1084 = vmatprep.subr.bf16.mxu0 0
    %1085 = vmatpush1.bf16.msra.mxu0 0
    %1086 = vmatprep.subr.bf16.mxu0 0
    %1087 = vmatpush1.bf16.msra.mxu0 0
    %1088 = vmatprep.subr.bf16.mxu0 0
    %1089 = vmatpush1.bf16.msra.mxu0 0
    %1090 = vmatprep.subr.bf16.mxu0 0
    %1091 = vmatpush1.bf16.msra.mxu0 0
    %1092 = vmatprep.subr.bf16.mxu0 0
    %1093 = vmatpush1.bf16.msra.mxu0 0
    %1094 = vmatprep.subr.bf16.mxu0 0
    %1095 = vmatpush1.bf16.msra.mxu0 0
    %1096 = vmatprep.subr.bf16.mxu0 0
    %1097 = vmatpush1.bf16.msra.mxu0 0
    %1098 = vmatprep.subr.bf16.mxu0 0
    %1099 = vmatpush1.bf16.msra.mxu0 0
    %1100 = vmatprep.subr.bf16.mxu0 0
    %1101 = vmatpush1.bf16.msra.mxu0 0
    %1102 = vmatprep.subr.bf16.mxu0 0
    %1103 = vmatpush1.bf16.msra.mxu0 0
    %1104 = vmatprep.mubr.bf16.mxu0 0
    %1105 = vmatmul.mubr.bf16.gmra.mrb[0].mxu0 %v1063
    %v1106 = vpop.f32.mrb[0].mxu0
    %v1107 = vadd.f32 0.0, %v1106
    %v1108 = vpop.f32.mrb[0].mxu0
    %v1109 = vpop.f32.mrb[0].mxu0
    %v1110 = vadd.f32 0.0, %v1109
    %v1111 = vpop.f32.mrb[0].mxu0
    %1112 = vmatprep.mubr.bf16.mxu0 0
    %1113 = vmatmul.mubr.bf16.gmra.mrb[0].mxu0 %v1066
    %v1114 = vpop.f32.mrb[0].mxu0
    %v1115 = vadd.f32 0.0, %v1114
    %v1116 = vpop.f32.mrb[0].mxu0
    %v1117 = vpop.f32.mrb[0].mxu0
    %v1118 = vadd.f32 0.0, %v1117
    %v1119 = vpop.f32.mrb[0].mxu0
    %1120 = vdwg.mxu0
    %v1121 = vpack.c.bf16 %v1110, %v1107
    %v1122 = vpack.c.bf16 %v1118, %v1115
    %v1123 = vld [vmem:[#allocation10] sm:$0xf]
    %v1124 = vld [vmem:[#allocation10 + $0x4] sm:$0xf]
    %v1125 = vld [vmem:[#allocation10 + $0x8] sm:$0xf]
    %v1126 = vld [vmem:[#allocation10 + $0xc] sm:$0x7]
    %v1131 = vunpack.c.l.b16 %v1123
    %v1132 = vunpack.c.l.b16 %v1124
    %v1133 = vunpack.c.l.b16 %v1125
    %v1134 = vunpack.c.l.b16 %v1126
    %v1135 = vpack.c.b16 %v1132, %v1131
    %v1136 = vpack.c.b16 %v1134, %v1133
    %v1138 = vsel %vm1061, %v1135, 0
    %v1141 = vsel %vm1061, %v1136, 0
    %1143 = vmatprep.subr.bf16.mxu0 0
    %1144 = vmatpush1.bf16.msra.mxu0 %v1043
    %1145 = vmatprep.subr.bf16.mxu0 0
    %1146 = vmatpush1.bf16.msra.mxu0 %v1044
    %1147 = vmatprep.subr.bf16.mxu0 0
    %1148 = vmatpush1.bf16.msra.mxu0 %v1045
    %1149 = vmatprep.subr.bf16.mxu0 0
    %1150 = vmatpush1.bf16.msra.mxu0 %v1070
    %1151 = vmatprep.subr.bf16.mxu0 0
    %1152 = vmatpush1.bf16.msra.mxu0 0
    %1153 = vmatprep.subr.bf16.mxu0 0
    %1154 = vmatpush1.bf16.msra.mxu0 0
    %1155 = vmatprep.subr.bf16.mxu0 0
    %1156 = vmatpush1.bf16.msra.mxu0 0
    %1157 = vmatprep.subr.bf16.mxu0 0
    %1158 = vmatpush1.bf16.msra.mxu0 0
    %1159 = vmatprep.subr.bf16.mxu0 0
    %1160 = vmatpush1.bf16.msra.mxu0 0
    %1161 = vmatprep.subr.bf16.mxu0 0
    %1162 = vmatpush1.bf16.msra.mxu0 0
    %1163 = vmatprep.subr.bf16.mxu0 0
    %1164 = vmatpush1.bf16.msra.mxu0 0
    %1165 = vmatprep.subr.bf16.mxu0 0
    %1166 = vmatpush1.bf16.msra.mxu0 0
    %1167 = vmatprep.subr.bf16.mxu0 0
    %1168 = vmatpush1.bf16.msra.mxu0 0
    %1169 = vmatprep.subr.bf16.mxu0 0
    %1170 = vmatpush1.bf16.msra.mxu0 0
    %1171 = vmatprep.subr.bf16.mxu0 0
    %1172 = vmatpush1.bf16.msra.mxu0 0
    %1173 = vmatprep.subr.bf16.mxu0 0
    %1174 = vmatpush1.bf16.msra.mxu0 0
    %1175 = vmatprep.mubr.bf16.mxu0 0
    %1176 = vmatmul.mubr.bf16.gmra.mrb[0].mxu0 %v1138
    %v1177 = vpop.f32.mrb[0].mxu0
    %v1178 = vadd.f32 0.0, %v1177
    %v1179 = vpop.f32.mrb[0].mxu0
    %v1180 = vpop.f32.mrb[0].mxu0
    %v1181 = vadd.f32 0.0, %v1180
    %v1182 = vpop.f32.mrb[0].mxu0
    %1183 = vmatprep.mubr.bf16.mxu0 0
    %1184 = vmatmul.mubr.bf16.gmra.mrb[0].mxu0 %v1141
    %v1185 = vpop.f32.mrb[0].mxu0
    %v1186 = vadd.f32 0.0, %v1185
    %v1187 = vpop.f32.mrb[0].mxu0
    %v1188 = vpop.f32.mrb[0].mxu0
    %v1189 = vadd.f32 0.0, %v1188
    %v1190 = vpop.f32.mrb[0].mxu0
    %1191 = vdwg.mxu0
    %v1192 = vpack.c.bf16 %v1181, %v1178
    %v1193 = vpack.c.bf16 %v1189, %v1186
    %v1194 = vld [vmem:[#allocation11] sm:$0xf]
    %v1195 = vld [vmem:[#allocation11 + $0x4] sm:$0xf]
    %v1196 = vld [vmem:[#allocation11 + $0x8] sm:$0xf]
    %v1197 = vld [vmem:[#allocation11 + $0xc] sm:$0x7]
    %v1202 = vunpack.c.l.b16 %v1194
    %v1203 = vunpack.c.l.b16 %v1195
    %v1204 = vunpack.c.l.b16 %v1196
    %v1205 = vunpack.c.l.b16 %v1197
    %v1206 = vpack.c.b16 %v1203, %v1202
    %v1207 = vpack.c.b16 %v1205, %v1204
    %v1209 = vsel %vm1061, %v1206, 0
    %v1212 = vsel %vm1061, %v1207, 0
    %1214 = vmatprep.subr.bf16.mxu0 0
    %1215 = vmatpush1.bf16.msra.mxu0 %v1043
    %1216 = vmatprep.subr.bf16.mxu0 0
    %1217 = vmatpush1.bf16.msra.mxu0 %v1044
    %1218 = vmatprep.subr.bf16.mxu0 0
    %1219 = vmatpush1.bf16.msra.mxu0 %v1045
    %1220 = vmatprep.subr.bf16.mxu0 0
    %1221 = vmatpush1.bf16.msra.mxu0 %v1070
    %1222 = vmatprep.subr.bf16.mxu0 0
    %1223 = vmatpush1.bf16.msra.mxu0 0
    %1224 = vmatprep.subr.bf16.mxu0 0
    %1225 = vmatpush1.bf16.msra.mxu0 0
    %1226 = vmatprep.subr.bf16.mxu0 0
    %1227 = vmatpush1.bf16.msra.mxu0 0
    %1228 = vmatprep.subr.bf16.mxu0 0
    %1229 = vmatpush1.bf16.msra.mxu0 0
    %1230 = vmatprep.subr.bf16.mxu0 0
    %1231 = vmatpush1.bf16.msra.mxu0 0
    %1232 = vmatprep.subr.bf16.mxu0 0
    %1233 = vmatpush1.bf16.msra.mxu0 0
    %1234 = vmatprep.subr.bf16.mxu0 0
    %1235 = vmatpush1.bf16.msra.mxu0 0
    %1236 = vmatprep.subr.bf16.mxu0 0
    %1237 = vmatpush1.bf16.msra.mxu0 0
    %1238 = vmatprep.subr.bf16.mxu0 0
    %1239 = vmatpush1.bf16.msra.mxu0 0
    %1240 = vmatprep.subr.bf16.mxu0 0
    %1241 = vmatpush1.bf16.msra.mxu0 0
    %1242 = vmatprep.subr.bf16.mxu0 0
    %1243 = vmatpush1.bf16.msra.mxu0 0
    %1244 = vmatprep.subr.bf16.mxu0 0
    %1245 = vmatpush1.bf16.msra.mxu0 0
    %1246 = vmatprep.mubr.bf16.mxu0 0
    %1247 = vmatmul.mubr.bf16.gmra.mrb[0].mxu0 %v1209
    %v1248 = vpop.f32.mrb[0].mxu0
    %v1249 = vadd.f32 0.0, %v1248
    %v1250 = vpop.f32.mrb[0].mxu0
    %v1251 = vpop.f32.mrb[0].mxu0
    %v1252 = vadd.f32 0.0, %v1251
    %v1253 = vpop.f32.mrb[0].mxu0
    %1254 = vmatprep.mubr.bf16.mxu0 0
    %1255 = vmatmul.mubr.bf16.gmra.mrb[0].mxu0 %v1212
    %v1256 = vpop.f32.mrb[0].mxu0
    %v1257 = vadd.f32 0.0, %v1256
    %v1258 = vpop.f32.mrb[0].mxu0
    %v1259 = vpop.f32.mrb[0].mxu0
    %v1260 = vadd.f32 0.0, %v1259
    %v1261 = vpop.f32.mrb[0].mxu0
    %1262 = vdwg.mxu0
    %v1263 = vpack.c.bf16 %v1252, %v1249
    %v1264 = vpack.c.bf16 %v1260, %v1257
    %v1265 = vld [vmem:[#allocation28] sm:$0xf]
    %v1266 = vld [vmem:[#allocation28 + $0x4] sm:$0xf]
    %v1267 = vld [vmem:[#allocation28 + $0x8] sm:$0xf]
    %v1268 = vld [vmem:[#allocation28 + $0xc] sm:$0xf]
    %v1269 = vld [vmem:[#allocation28 + $0x10] sm:$0xf]
    %v1270 = vld [vmem:[#allocation28 + $0x14] sm:$0xf]
    %v1271 = vld [vmem:[#allocation28 + $0x18] sm:$0xf]
    %v1272 = vld [vmem:[#allocation28 + $0x1c] sm:$0xf]
    %s1273 = scalar_lea.vmem [#allocation28], 32
    %v1274 = vld [vmem:[%s1273] sm:$0xf]
    %v1275 = vld [vmem:[%s1273 + $0x4] sm:$0xf]
    %v1276 = vld [vmem:[%s1273 + $0x8] sm:$0xf]
    %v1277 = vld [vmem:[%s1273 + $0xc] sm:$0xf]
    %v1278 = vld [vmem:[%s1273 + $0x10] sm:$0xf]
    %v1279 = vld [vmem:[%s1273 + $0x14] sm:$0xf]
    %v1280 = vld [vmem:[%s1273 + $0x18] sm:$0xf]
    %v1281 = vld [vmem:[%s1273 + $0x1c] sm:$0xf]
    %v1290 = vunpack.c.l.b16 %v1274
    %v1291 = vunpack.c.l.b16 %v1275
    %v1292 = vunpack.c.l.b16 %v1276
    %v1293 = vunpack.c.l.b16 %v1277
    %v1294 = vunpack.c.l.b16 %v1278
    %v1295 = vunpack.c.l.b16 %v1279
    %v1296 = vunpack.c.l.b16 %v1280
    %v1297 = vunpack.c.l.b16 %v1281
    %v1298 = vpack.c.b16 %v1291, %v1290
    %v1299 = vpack.c.b16 %v1293, %v1292
    %v1300 = vpack.c.b16 %v1295, %v1294
    %v1301 = vpack.c.b16 %v1297, %v1296
    %vm1306 = vcmask 523264
    %v1308 = vsel %vm1306, %v1192, 0
    %v1311 = vsel %vm1306, %v1193, 0
    %1313 = vmatprep.subr.bf16.mxu0 0
    %1314 = vmatpush1.bf16.msra.mxu0 %v1298
    %1315 = vmatprep.subr.bf16.mxu0 0
    %1316 = vmatpush1.bf16.msra.mxu0 %v1299
    %1317 = vmatprep.subr.bf16.mxu0 0
    %1318 = vmatpush1.bf16.msra.mxu0 %v1300
    %1319 = vmatprep.subr.bf16.mxu0 0
    %1320 = vmatpush1.bf16.msra.mxu0 %v1301
    %1321 = vmatprep.subr.bf16.mxu0 0
    %1322 = vmatpush1.bf16.msra.mxu0 0
    %1323 = vmatprep.subr.bf16.mxu0 0
    %1324 = vmatpush1.bf16.msra.mxu0 0
    %1325 = vmatprep.subr.bf16.mxu0 0
    %1326 = vmatpush1.bf16.msra.mxu0 0
    %1327 = vmatprep.subr.bf16.mxu0 0
    %1328 = vmatpush1.bf16.msra.mxu0 0
    %1329 = vmatprep.subr.bf16.mxu0 0
    %1330 = vmatpush1.bf16.msra.mxu0 0
    %1331 = vmatprep.subr.bf16.mxu0 0
    %1332 = vmatpush1.bf16.msra.mxu0 0
    %1333 = vmatprep.subr.bf16.mxu0 0
    %1334 = vmatpush1.bf16.msra.mxu0 0
    %1335 = vmatprep.subr.bf16.mxu0 0
    %1336 = vmatpush1.bf16.msra.mxu0 0
    %1337 = vmatprep.subr.bf16.mxu0 0
    %1338 = vmatpush1.bf16.msra.mxu0 0
    %1339 = vmatprep.subr.bf16.mxu0 0
    %1340 = vmatpush1.bf16.msra.mxu0 0
    %1341 = vmatprep.subr.bf16.mxu0 0
    %1342 = vmatpush1.bf16.msra.mxu0 0
    %1343 = vmatprep.subr.bf16.mxu0 0
    %1344 = vmatpush1.bf16.msra.mxu0 0
    %1345 = vmatprep.mubr.bf16.mxu0 0
    %1346 = vmatmul.mubr.bf16.gmra.mrb[0].mxu0 %v1308
    %v1347 = vpop.f32.mrb[0].mxu0
    %v1348 = vadd.f32 0.0, %v1347
    %v1349 = vpop.f32.mrb[0].mxu0
    %v1350 = vpop.f32.mrb[0].mxu0
    %v1351 = vadd.f32 0.0, %v1350
    %v1352 = vpop.f32.mrb[0].mxu0
    %1353 = vmatprep.mubr.bf16.mxu0 0
    %1354 = vmatmul.mubr.bf16.gmra.mrb[0].mxu0 %v1311
    %v1355 = vpop.f32.mrb[0].mxu0
    %v1356 = vadd.f32 0.0, %v1355
    %v1357 = vpop.f32.mrb[0].mxu0
    %v1358 = vpop.f32.mrb[0].mxu0
    %v1359 = vadd.f32 0.0, %v1358
    %v1360 = vpop.f32.mrb[0].mxu0
    %1361 = vdwg.mxu0
    %v1370 = vunpack.c.l.b16 %v1265
    %v1371 = vunpack.c.l.b16 %v1266
    %v1372 = vunpack.c.l.b16 %v1267
    %v1373 = vunpack.c.l.b16 %v1268
    %v1374 = vunpack.c.l.b16 %v1269
    %v1375 = vunpack.c.l.b16 %v1270
    %v1376 = vunpack.c.l.b16 %v1271
    %v1377 = vunpack.c.l.b16 %v1272
    %v1378 = vpack.c.b16 %v1371, %v1370
    %v1379 = vpack.c.b16 %v1373, %v1372
    %v1380 = vpack.c.b16 %v1375, %v1374
    %v1381 = vpack.c.b16 %v1377, %v1376
    %v1387 = vsel %vm1306, %v1121, 0
    %v1390 = vsel %vm1306, %v1122, 0
    %1392 = vmatprep.subr.bf16.mxu0 0
    %1393 = vmatpush1.bf16.msra.mxu0 %v1378
    %1394 = vmatprep.subr.bf16.mxu0 0
    %1395 = vmatpush1.bf16.msra.mxu0 %v1379
    %1396 = vmatprep.subr.bf16.mxu0 0
    %1397 = vmatpush1.bf16.msra.mxu0 %v1380
    %1398 = vmatprep.subr.bf16.mxu0 0
    %1399 = vmatpush1.bf16.msra.mxu0 %v1381
    %1400 = vmatprep.subr.bf16.mxu0 0
    %1401 = vmatpush1.bf16.msra.mxu0 0
    %1402 = vmatprep.subr.bf16.mxu0 0
    %1403 = vmatpush1.bf16.msra.mxu0 0
    %1404 = vmatprep.subr.bf16.mxu0 0
    %1405 = vmatpush1.bf16.msra.mxu0 0
    %1406 = vmatprep.subr.bf16.mxu0 0
    %1407 = vmatpush1.bf16.msra.mxu0 0
    %1408 = vmatprep.subr.bf16.mxu0 0
    %1409 = vmatpush1.bf16.msra.mxu0 0
    %1410 = vmatprep.subr.bf16.mxu0 0
    %1411 = vmatpush1.bf16.msra.mxu0 0
    %1412 = vmatprep.subr.bf16.mxu0 0
    %1413 = vmatpush1.bf16.msra.mxu0 0
    %1414 = vmatprep.subr.bf16.mxu0 0
    %1415 = vmatpush1.bf16.msra.mxu0 0
    %1416 = vmatprep.subr.bf16.mxu0 0
    %1417 = vmatpush1.bf16.msra.mxu0 0
    %1418 = vmatprep.subr.bf16.mxu0 0
    %1419 = vmatpush1.bf16.msra.mxu0 0
    %1420 = vmatprep.subr.bf16.mxu0 0
    %1421 = vmatpush1.bf16.msra.mxu0 0
    %1422 = vmatprep.subr.bf16.mxu0 0
    %1423 = vmatpush1.bf16.msra.mxu0 0
    %1424 = vmatprep.mubr.bf16.mxu0 0
    %1425 = vmatmul.mubr.bf16.gmra.mrb[0].mxu0 %v1387
    %v1426 = vpop.f32.mrb[0].mxu0
    %v1427 = vadd.f32 %v1348, %v1426
    %v1428 = vpop.f32.mrb[0].mxu0
    %v1429 = vpop.f32.mrb[0].mxu0
    %v1430 = vadd.f32 %v1351, %v1429
    %v1431 = vpop.f32.mrb[0].mxu0
    %1432 = vmatprep.mubr.bf16.mxu0 0
    %1433 = vmatmul.mubr.bf16.gmra.mrb[0].mxu0 %v1390
    %v1434 = vpop.f32.mrb[0].mxu0
    %v1435 = vadd.f32 %v1356, %v1434
    %v1436 = vpop.f32.mrb[0].mxu0
    %v1437 = vpop.f32.mrb[0].mxu0
    %v1438 = vadd.f32 %v1359, %v1437
    %v1439 = vpop.f32.mrb[0].mxu0
    %1440 = vdwg.mxu0
    %s1441 = scalar_lea.vmem [#allocation28], 64
    %v1442 = vld [vmem:[%s1441] sm:$0xf]
    %v1443 = vld [vmem:[%s1441 + $0x4] sm:$0xf]
    %v1444 = vld [vmem:[%s1441 + $0x8] sm:$0xf]
    %v1445 = vld [vmem:[%s1441 + $0xc] sm:$0xf]
    %v1446 = vld [vmem:[%s1441 + $0x10] sm:$0xf]
    %v1447 = vld [vmem:[%s1441 + $0x14] sm:$0xf]
    %v1448 = vld [vmem:[%s1441 + $0x18] sm:$0xf]
    %v1449 = vld [vmem:[%s1441 + $0x1c] sm:$0xf]
    %v1458 = vunpack.c.l.b16 %v1442
    %v1459 = vunpack.c.l.b16 %v1443
    %v1460 = vunpack.c.l.b16 %v1444
    %v1461 = vunpack.c.l.b16 %v1445
    %v1462 = vunpack.c.l.b16 %v1446
    %v1463 = vunpack.c.l.b16 %v1447
    %v1464 = vunpack.c.l.b16 %v1448
    %v1465 = vunpack.c.l.b16 %v1449
    %v1466 = vpack.c.b16 %v1459, %v1458
    %v1467 = vpack.c.b16 %v1461, %v1460
    %v1468 = vpack.c.b16 %v1463, %v1462
    %v1469 = vpack.c.b16 %v1465, %v1464
    %v1475 = vsel %vm1306, %v1263, 0
    %v1478 = vsel %vm1306, %v1264, 0
    %1480 = vmatprep.subr.bf16.mxu0 0
    %1481 = vmatpush1.bf16.msra.mxu0 %v1466
    %1482 = vmatprep.subr.bf16.mxu0 0
    %1483 = vmatpush1.bf16.msra.mxu0 %v1467
    %1484 = vmatprep.subr.bf16.mxu0 0
    %1485 = vmatpush1.bf16.msra.mxu0 %v1468
    %1486 = vmatprep.subr.bf16.mxu0 0
    %1487 = vmatpush1.bf16.msra.mxu0 %v1469
    %1488 = vmatprep.subr.bf16.mxu0 0
    %1489 = vmatpush1.bf16.msra.mxu0 0
    %1490 = vmatprep.subr.bf16.mxu0 0
    %1491 = vmatpush1.bf16.msra.mxu0 0
    %1492 = vmatprep.subr.bf16.mxu0 0
    %1493 = vmatpush1.bf16.msra.mxu0 0
    %1494 = vmatprep.subr.bf16.mxu0 0
    %1495 = vmatpush1.bf16.msra.mxu0 0
    %1496 = vmatprep.subr.bf16.mxu0 0
    %1497 = vmatpush1.bf16.msra.mxu0 0
    %1498 = vmatprep.subr.bf16.mxu0 0
    %1499 = vmatpush1.bf16.msra.mxu0 0
    %1500 = vmatprep.subr.bf16.mxu0 0
    %1501 = vmatpush1.bf16.msra.mxu0 0
    %1502 = vmatprep.subr.bf16.mxu0 0
    %1503 = vmatpush1.bf16.msra.mxu0 0
    %1504 = vmatprep.subr.bf16.mxu0 0
    %1505 = vmatpush1.bf16.msra.mxu0 0
    %1506 = vmatprep.subr.bf16.mxu0 0
    %1507 = vmatpush1.bf16.msra.mxu0 0
    %1508 = vmatprep.subr.bf16.mxu0 0
    %1509 = vmatpush1.bf16.msra.mxu0 0
    %1510 = vmatprep.subr.bf16.mxu0 0
    %1511 = vmatpush1.bf16.msra.mxu0 0
    %1512 = vmatprep.mubr.bf16.mxu0 0
    %1513 = vmatmul.mubr.bf16.gmra.mrb[0].mxu0 %v1475
    %v1514 = vpop.f32.mrb[0].mxu0
    %v1515 = vadd.f32 0.0, %v1514
    %v1516 = vpop.f32.mrb[0].mxu0
    %v1517 = vpop.f32.mrb[0].mxu0
    %v1518 = vadd.f32 0.0, %v1517
    %v1519 = vpop.f32.mrb[0].mxu0
    %1520 = vmatprep.mubr.bf16.mxu0 0
    %1521 = vmatmul.mubr.bf16.gmra.mrb[0].mxu0 %v1478
    %v1522 = vpop.f32.mrb[0].mxu0
    %v1523 = vadd.f32 0.0, %v1522
    %v1524 = vpop.f32.mrb[0].mxu0
    %v1525 = vpop.f32.mrb[0].mxu0
    %v1526 = vadd.f32 0.0, %v1525
    %v1527 = vpop.f32.mrb[0].mxu0
    %1528 = vdwg.mxu0
    %v1529 = vadd.f32 %v1427, %v1515
    %v1530 = vadd.f32 %v1430, %v1518
    %v1531 = vadd.f32 %v1435, %v1523
    %v1532 = vadd.f32 %v1438, %v1526
    %v1533 = vld [vmem:[#allocation35] sm:$0x1]
    %v1535 = vlaneseq
    %v1536 = vshrl.u32 %v1535, 7
    %v1537 = vsub.s32 0, %v1536
    %v1538 = vrot.slane %v1533, %v1537
    %v1540 = vadd.f32 %v1529, %v1538
    %v1541 = vadd.f32 %v1530, %v1538
    %v1542 = vadd.f32 %v1531, %v1538
    %v1543 = vadd.f32 %v1532, %v1538
    %v1548 = vcombine.high %v1540, %v1540
    %v1550 = vunpack.c.l.s4 1966171168
    %v1551 = vunpack.c.0.s8 %v1550
    %v1552 = vlaneseq
    %v1553 = vshrl.u32 %v1552, 7
    %v1554 = vsub.s32 %v1551, %v1553
    %v1555 = vrot.slane %v1540, %v1554
    %v1557 = vunpack.c.l.s4 1966171168
    %v1558 = vunpack.c.0.s8 %v1557
    %v1559 = vlaneseq
    %v1560 = vshrl.u32 %v1559, 7
    %v1561 = vsub.s32 %v1558, %v1560
    %v1562 = vrot.slane %v1548, %v1561
    %v1563 = vcombine.high %v1555, %v1555
    %v1564 = vcombine.high %v1562, %v1562
    %v1566 = vunpack.c.l.s4 1966171168
    %v1567 = vunpack.c.0.s8 %v1566
    %v1568 = vlaneseq
    %v1569 = vshrl.u32 %v1568, 7
    %v1570 = vsub.s32 %v1567, %v1569
    %v1571 = vrot.slane %v1555, %v1570
    %v1573 = vunpack.c.l.s4 1966171168
    %v1574 = vunpack.c.0.s8 %v1573
    %v1575 = vlaneseq
    %v1576 = vshrl.u32 %v1575, 7
    %v1577 = vsub.s32 %v1574, %v1576
    %v1578 = vrot.slane %v1562, %v1577
    %v1580 = vunpack.c.l.s4 1966171168
    %v1581 = vunpack.c.0.s8 %v1580
    %v1582 = vlaneseq
    %v1583 = vshrl.u32 %v1582, 7
    %v1584 = vsub.s32 %v1581, %v1583
    %v1585 = vrot.slane %v1563, %v1584
    %v1587 = vunpack.c.l.s4 1966171168
    %v1588 = vunpack.c.0.s8 %v1587
    %v1589 = vlaneseq
    %v1590 = vshrl.u32 %v1589, 7
    %v1591 = vsub.s32 %v1588, %v1590
    %v1592 = vrot.slane %v1564, %v1591
    %v1593 = vcombine.high %v1571, %v1571
    %v1594 = vcombine.high %v1578, %v1578
    %v1595 = vcombine.high %v1585, %v1585
    %v1596 = vcombine.high %v1592, %v1592
    %v1597 = vcombine.high %v1541, %v1541
    %v1599 = vunpack.c.l.s4 1966171168
    %v1600 = vunpack.c.0.s8 %v1599
    %v1601 = vlaneseq
    %v1602 = vshrl.u32 %v1601, 7
    %v1603 = vsub.s32 %v1600, %v1602
    %v1604 = vrot.slane %v1541, %v1603
    %v1606 = vunpack.c.l.s4 1966171168
    %v1607 = vunpack.c.0.s8 %v1606
    %v1608 = vlaneseq
    %v1609 = vshrl.u32 %v1608, 7
    %v1610 = vsub.s32 %v1607, %v1609
    %v1611 = vrot.slane %v1597, %v1610
    %v1612 = vcombine.high %v1604, %v1604
    %v1613 = vcombine.high %v1611, %v1611
    %v1615 = vunpack.c.l.s4 1966171168
    %v1616 = vunpack.c.0.s8 %v1615
    %v1617 = vlaneseq
    %v1618 = vshrl.u32 %v1617, 7
    %v1619 = vsub.s32 %v1616, %v1618
    %v1620 = vrot.slane %v1604, %v1619
    %v1622 = vunpack.c.l.s4 1966171168
    %v1623 = vunpack.c.0.s8 %v1622
    %v1624 = vlaneseq
    %v1625 = vshrl.u32 %v1624, 7
    %v1626 = vsub.s32 %v1623, %v1625
    %v1627 = vrot.slane %v1611, %v1626
    %v1629 = vunpack.c.l.s4 1966171168
    %v1630 = vunpack.c.0.s8 %v1629
    %v1631 = vlaneseq
    %v1632 = vshrl.u32 %v1631, 7
    %v1633 = vsub.s32 %v1630, %v1632
    %v1634 = vrot.slane %v1612, %v1633
    %v1636 = vunpack.c.l.s4 1966171168
    %v1637 = vunpack.c.0.s8 %v1636
    %v1638 = vlaneseq
    %v1639 = vshrl.u32 %v1638, 7
    %v1640 = vsub.s32 %v1637, %v1639
    %v1641 = vrot.slane %v1613, %v1640
    %v1642 = vcombine.high %v1620, %v1620
    %v1643 = vcombine.high %v1627, %v1627
    %v1644 = vcombine.high %v1634, %v1634
    %v1645 = vcombine.high %v1641, %v1641
    %v1646 = vcombine.high %v1542, %v1542
    %v1648 = vunpack.c.l.s4 1966171168
    %v1649 = vunpack.c.0.s8 %v1648
    %v1650 = vlaneseq
    %v1651 = vshrl.u32 %v1650, 7
    %v1652 = vsub.s32 %v1649, %v1651
    %v1653 = vrot.slane %v1542, %v1652
    %v1655 = vunpack.c.l.s4 1966171168
    %v1656 = vunpack.c.0.s8 %v1655
    %v1657 = vlaneseq
    %v1658 = vshrl.u32 %v1657, 7
    %v1659 = vsub.s32 %v1656, %v1658
    %v1660 = vrot.slane %v1646, %v1659
    %v1661 = vcombine.high %v1653, %v1653
    %v1662 = vcombine.high %v1660, %v1660
    %v1664 = vunpack.c.l.s4 1966171168
    %v1665 = vunpack.c.0.s8 %v1664
    %v1666 = vlaneseq
    %v1667 = vshrl.u32 %v1666, 7
    %v1668 = vsub.s32 %v1665, %v1667
    %v1669 = vrot.slane %v1653, %v1668
    %v1671 = vunpack.c.l.s4 1966171168
    %v1672 = vunpack.c.0.s8 %v1671
    %v1673 = vlaneseq
    %v1674 = vshrl.u32 %v1673, 7
    %v1675 = vsub.s32 %v1672, %v1674
    %v1676 = vrot.slane %v1660, %v1675
    %v1678 = vunpack.c.l.s4 1966171168
    %v1679 = vunpack.c.0.s8 %v1678
    %v1680 = vlaneseq
    %v1681 = vshrl.u32 %v1680, 7
    %v1682 = vsub.s32 %v1679, %v1681
    %v1683 = vrot.slane %v1661, %v1682
    %v1685 = vunpack.c.l.s4 1966171168
    %v1686 = vunpack.c.0.s8 %v1685
    %v1687 = vlaneseq
    %v1688 = vshrl.u32 %v1687, 7
    %v1689 = vsub.s32 %v1686, %v1688
    %v1690 = vrot.slane %v1662, %v1689
    %v1691 = vcombine.high %v1669, %v1669
    %v1692 = vcombine.high %v1676, %v1676
    %v1693 = vcombine.high %v1683, %v1683
    %v1694 = vcombine.high %v1690, %v1690
    %v1695 = vcombine.high %v1543, %v1543
    %v1697 = vunpack.c.l.s4 1966171168
    %v1698 = vunpack.c.0.s8 %v1697
    %v1699 = vlaneseq
    %v1700 = vshrl.u32 %v1699, 7
    %v1701 = vsub.s32 %v1698, %v1700
    %v1702 = vrot.slane %v1543, %v1701
    %v1704 = vunpack.c.l.s4 1966171168
    %v1705 = vunpack.c.0.s8 %v1704
    %v1706 = vlaneseq
    %v1707 = vshrl.u32 %v1706, 7
    %v1708 = vsub.s32 %v1705, %v1707
    %v1709 = vrot.slane %v1695, %v1708
    %v1710 = vcombine.high %v1702, %v1702
    %v1711 = vcombine.high %v1709, %v1709
    %v1713 = vunpack.c.l.s4 1966171168
    %v1714 = vunpack.c.0.s8 %v1713
    %v1715 = vlaneseq
    %v1716 = vshrl.u32 %v1715, 7
    %v1717 = vsub.s32 %v1714, %v1716
    %v1718 = vrot.slane %v1702, %v1717
    %v1720 = vunpack.c.l.s4 1966171168
    %v1721 = vunpack.c.0.s8 %v1720
    %v1722 = vlaneseq
    %v1723 = vshrl.u32 %v1722, 7
    %v1724 = vsub.s32 %v1721, %v1723
    %v1725 = vrot.slane %v1709, %v1724
    %v1727 = vunpack.c.l.s4 1966171168
    %v1728 = vunpack.c.0.s8 %v1727
    %v1729 = vlaneseq
    %v1730 = vshrl.u32 %v1729, 7
    %v1731 = vsub.s32 %v1728, %v1730
    %v1732 = vrot.slane %v1710, %v1731
    %v1734 = vunpack.c.l.s4 1966171168
    %v1735 = vunpack.c.0.s8 %v1734
    %v1736 = vlaneseq
    %v1737 = vshrl.u32 %v1736, 7
    %v1738 = vsub.s32 %v1735, %v1737
    %v1739 = vrot.slane %v1711, %v1738
    %v1740 = vcombine.high %v1718, %v1718
    %v1741 = vcombine.high %v1732, %v1732
    %v1742 = vcombine.low %v1571, %v1585
    %v1743 = vcombine.low %v1593, %v1595
    %v1744 = vcombine.low %v1578, %v1592
    %v1745 = vcombine.low %v1594, %v1596
    %v1747 = vunpack.c.l.s4 1966171168
    %v1748 = vunpack.c.0.s8 %v1747
    %v1749 = vlaneseq
    %v1750 = vshrl.u32 %v1749, 7
    %v1751 = vsub.s32 %v1748, %v1750
    %v1752 = vrot.slane %v1742, %v1751
    %v1754 = vunpack.c.l.s4 1966171168
    %v1755 = vunpack.c.0.s8 %v1754
    %v1756 = vlaneseq
    %v1757 = vshrl.u32 %v1756, 7
    %v1758 = vsub.s32 %v1755, %v1757
    %v1759 = vrot.slane %v1743, %v1758
    %v1761 = vunpack.c.l.s4 1966171168
    %v1762 = vunpack.c.0.s8 %v1761
    %v1763 = vlaneseq
    %v1764 = vshrl.u32 %v1763, 7
    %v1765 = vsub.s32 %v1762, %v1764
    %v1766 = vrot.slane %v1744, %v1765
    %v1768 = vunpack.c.l.s4 1966171168
    %v1769 = vunpack.c.0.s8 %v1768
    %v1770 = vlaneseq
    %v1771 = vshrl.u32 %v1770, 7
    %v1772 = vsub.s32 %v1769, %v1771
    %v1773 = vrot.slane %v1745, %v1772
    %v1774 = vcombine.low %v1752, %v1759
    %v1775 = vcombine.low %v1766, %v1773
    %v1777 = vunpack.c.l.s4 1966171168
    %v1778 = vunpack.c.0.s8 %v1777
    %v1779 = vlaneseq
    %v1780 = vshrl.u32 %v1779, 7
    %v1781 = vsub.s32 %v1778, %v1780
    %v1782 = vrot.slane %v1774, %v1781
    %v1784 = vunpack.c.l.s4 1966171168
    %v1785 = vunpack.c.0.s8 %v1784
    %v1786 = vlaneseq
    %v1787 = vshrl.u32 %v1786, 7
    %v1788 = vsub.s32 %v1785, %v1787
    %v1789 = vrot.slane %v1775, %v1788
    %v1790 = vcombine.low %v1782, %v1789
    %v1791 = vcombine.low %v1620, %v1634
    %v1792 = vcombine.low %v1642, %v1644
    %v1793 = vcombine.low %v1627, %v1641
    %v1795 = vunpack.c.l.s4 1966171168
    %v1796 = vunpack.c.0.s8 %v1795
    %v1797 = vlaneseq
    %v1798 = vshrl.u32 %v1797, 7
    %v1799 = vsub.s32 %v1796, %v1798
    %v1800 = vrot.slane %v1791, %v1799
    %v1802 = vunpack.c.l.s4 1966171168
    %v1803 = vunpack.c.0.s8 %v1802
    %v1804 = vlaneseq
    %v1805 = vshrl.u32 %v1804, 7
    %v1806 = vsub.s32 %v1803, %v1805
    %v1807 = vrot.slane %v1792, %v1806
    %v1809 = vunpack.c.l.s4 1966171168
    %v1810 = vunpack.c.0.s8 %v1809
    %v1811 = vlaneseq
    %v1812 = vshrl.u32 %v1811, 7
    %v1813 = vsub.s32 %v1810, %v1812
    %v1814 = vrot.slane %v1793, %v1813
    %v1816 = vunpack.c.l.s4 1966171168
    %v1817 = vunpack.c.0.s8 %v1816
    %v1818 = vlaneseq
    %v1819 = vshrl.u32 %v1818, 7
    %v1820 = vsub.s32 %v1817, %v1819
    %v1821 = vrot.slane %v1643, %v1820
    %v1822 = vcombine.low %v1800, %v1807
    %v1823 = vcombine.low %v1814, %v1821
    %v1825 = vunpack.c.l.s4 1966171168
    %v1826 = vunpack.c.0.s8 %v1825
    %v1827 = vlaneseq
    %v1828 = vshrl.u32 %v1827, 7
    %v1829 = vsub.s32 %v1826, %v1828
    %v1830 = vrot.slane %v1822, %v1829
    %v1832 = vunpack.c.l.s4 1966171168
    %v1833 = vunpack.c.0.s8 %v1832
    %v1834 = vlaneseq
    %v1835 = vshrl.u32 %v1834, 7
    %v1836 = vsub.s32 %v1833, %v1835
    %v1837 = vrot.slane %v1823, %v1836
    %v1838 = vcombine.low %v1830, %v1837
    %v1839 = vcombine.low %v1645, %v1669
    %v1840 = vcombine.low %v1683, %v1691
    %v1841 = vcombine.low %v1693, %v1676
    %v1842 = vcombine.low %v1690, %v1692
    %v1844 = vunpack.c.l.s4 1966171168
    %v1845 = vunpack.c.0.s8 %v1844
    %v1846 = vlaneseq
    %v1847 = vshrl.u32 %v1846, 7
    %v1848 = vsub.s32 %v1845, %v1847
    %v1849 = vrot.slane %v1839, %v1848
    %v1851 = vunpack.c.l.s4 1966171168
    %v1852 = vunpack.c.0.s8 %v1851
    %v1853 = vlaneseq
    %v1854 = vshrl.u32 %v1853, 7
    %v1855 = vsub.s32 %v1852, %v1854
    %v1856 = vrot.slane %v1840, %v1855
    %v1858 = vunpack.c.l.s4 1966171168
    %v1859 = vunpack.c.0.s8 %v1858
    %v1860 = vlaneseq
    %v1861 = vshrl.u32 %v1860, 7
    %v1862 = vsub.s32 %v1859, %v1861
    %v1863 = vrot.slane %v1841, %v1862
    %v1865 = vunpack.c.l.s4 1966171168
    %v1866 = vunpack.c.0.s8 %v1865
    %v1867 = vlaneseq
    %v1868 = vshrl.u32 %v1867, 7
    %v1869 = vsub.s32 %v1866, %v1868
    %v1870 = vrot.slane %v1842, %v1869
    %v1871 = vcombine.low %v1849, %v1856
    %v1872 = vcombine.low %v1863, %v1870
    %v1874 = vunpack.c.l.s4 1966171168
    %v1875 = vunpack.c.0.s8 %v1874
    %v1876 = vlaneseq
    %v1877 = vshrl.u32 %v1876, 7
    %v1878 = vsub.s32 %v1875, %v1877
    %v1879 = vrot.slane %v1871, %v1878
    %v1881 = vunpack.c.l.s4 1966171168
    %v1882 = vunpack.c.0.s8 %v1881
    %v1883 = vlaneseq
    %v1884 = vshrl.u32 %v1883, 7
    %v1885 = vsub.s32 %v1882, %v1884
    %v1886 = vrot.slane %v1872, %v1885
    %v1887 = vcombine.low %v1879, %v1886
    %v1888 = vcombine.low %v1694, %v1718
    %v1889 = vcombine.low %v1732, %v1740
    %v1890 = vcombine.low %v1741, %v1725
    %v1892 = vunpack.c.l.s4 1966171168
    %v1893 = vunpack.c.0.s8 %v1892
    %v1894 = vlaneseq
    %v1895 = vshrl.u32 %v1894, 7
    %v1896 = vsub.s32 %v1893, %v1895
    %v1897 = vrot.slane %v1888, %v1896
    %v1899 = vunpack.c.l.s4 1966171168
    %v1900 = vunpack.c.0.s8 %v1899
    %v1901 = vlaneseq
    %v1902 = vshrl.u32 %v1901, 7
    %v1903 = vsub.s32 %v1900, %v1902
    %v1904 = vrot.slane %v1889, %v1903
    %v1906 = vunpack.c.l.s4 1966171168
    %v1907 = vunpack.c.0.s8 %v1906
    %v1908 = vlaneseq
    %v1909 = vshrl.u32 %v1908, 7
    %v1910 = vsub.s32 %v1907, %v1909
    %v1911 = vrot.slane %v1890, %v1910
    %v1913 = vunpack.c.l.s4 1966171168
    %v1914 = vunpack.c.0.s8 %v1913
    %v1915 = vlaneseq
    %v1916 = vshrl.u32 %v1915, 7
    %v1917 = vsub.s32 %v1914, %v1916
    %v1918 = vrot.slane %v1739, %v1917
    %v1919 = vcombine.low %v1897, %v1904
    %v1920 = vcombine.low %v1911, %v1918
    %v1922 = vunpack.c.l.s4 1966171168
    %v1923 = vunpack.c.0.s8 %v1922
    %v1924 = vlaneseq
    %v1925 = vshrl.u32 %v1924, 7
    %v1926 = vsub.s32 %v1923, %v1925
    %v1927 = vrot.slane %v1919, %v1926
    %v1929 = vunpack.c.l.s4 1966171168
    %v1930 = vunpack.c.0.s8 %v1929
    %v1931 = vlaneseq
    %v1932 = vshrl.u32 %v1931, 7
    %v1933 = vsub.s32 %v1930, %v1932
    %v1934 = vrot.slane %v1920, %v1933
    %v1935 = vcombine.low %v1927, %v1934
    %1940 = vst [vmem:[%s53] sm:$0xff] %v1790
    %1941 = vst [vmem:[%s53 + $0x8] sm:$0x7f] %v1838
    %1942 = vst [vmem:[%s53 + $0x10] sm:$0xff] %v1887
    %1943 = vst [vmem:[%s53 + $0x18] sm:$0x7f] %v1935
    %v1944 = vpack.c.bf16 %v1541, %v1540
    %v1945 = vpack.c.bf16 %v1543, %v1542
    %v1946 = vld [vmem:[#allocation13] sm:$0xf]
    %v1947 = vld [vmem:[#allocation13 + $0x4] sm:$0x7]
    %v1950 = vunpack.c.l.b16 %v1946
    %v1951 = vunpack.c.l.b16 %v1947
    %v1952 = vpack.c.b16 %v1951, %v1950
    %vm1953 = vcmask 244736
    %v1955 = vsel %vm1953, %v1952, 0
    %v1958 = vsel %vm1068, %v1945, 0
    %1960 = vmatprep.subr.bf16.mxu0 0
    %1961 = vmatpush1.bf16.msra.mxu0 %v1944
    %1962 = vmatprep.subr.bf16.mxu0 0
    %1963 = vmatpush1.bf16.msra.mxu0 %v1958
    %1964 = vmatprep.subr.bf16.mxu0 0
    %1965 = vmatpush1.bf16.msra.mxu0 0
    %1966 = vmatprep.subr.bf16.mxu0 0
    %1967 = vmatpush1.bf16.msra.mxu0 0
    %1968 = vmatprep.subr.bf16.mxu0 0
    %1969 = vmatpush1.bf16.msra.mxu0 0
    %1970 = vmatprep.subr.bf16.mxu0 0
    %1971 = vmatpush1.bf16.msra.mxu0 0
    %1972 = vmatprep.subr.bf16.mxu0 0
    %1973 = vmatpush1.bf16.msra.mxu0 0
    %1974 = vmatprep.subr.bf16.mxu0 0
    %1975 = vmatpush1.bf16.msra.mxu0 0
    %1976 = vmatprep.subr.bf16.mxu0 0
    %1977 = vmatpush1.bf16.msra.mxu0 0
    %1978 = vmatprep.subr.bf16.mxu0 0
    %1979 = vmatpush1.bf16.msra.mxu0 0
    %1980 = vmatprep.subr.bf16.mxu0 0
    %1981 = vmatpush1.bf16.msra.mxu0 0
    %1982 = vmatprep.subr.bf16.mxu0 0
    %1983 = vmatpush1.bf16.msra.mxu0 0
    %1984 = vmatprep.subr.bf16.mxu0 0
    %1985 = vmatpush1.bf16.msra.mxu0 0
    %1986 = vmatprep.subr.bf16.mxu0 0
    %1987 = vmatpush1.bf16.msra.mxu0 0
    %1988 = vmatprep.subr.bf16.mxu0 0
    %1989 = vmatpush1.bf16.msra.mxu0 0
    %1990 = vmatprep.subr.bf16.mxu0 0
    %1991 = vmatpush1.bf16.msra.mxu0 0
    %1992 = vmatprep.mubr.bf16.mxu0 0
    %1993 = vmatmul.mubr.bf16.gmra.mrb[0].mxu0 %v1955
    %v1994 = vpop.f32.mrb[0].mxu0
    %v1995 = vadd.f32 0.0, %v1994
    %v1996 = vpop.f32.mrb[0].mxu0
    %v1997 = vpop.f32.mrb[0].mxu0
    %v1998 = vadd.f32 0.0, %v1997
    %v1999 = vpop.f32.mrb[0].mxu0
    %2000 = vdwg.mxu0
    %v2001 = vpack.c.bf16 %v1998, %v1995
    %v2002 = vld [vmem:[#allocation14] sm:$0xf]
    %v2003 = vld [vmem:[#allocation14 + $0x4] sm:$0x7]
    %v2006 = vunpack.c.l.b16 %v2002
    %v2007 = vunpack.c.l.b16 %v2003
    %v2008 = vpack.c.b16 %v2007, %v2006
    %v2010 = vsel %vm1953, %v2008, 0
    %2012 = vmatprep.subr.bf16.mxu0 0
    %2013 = vmatpush1.bf16.msra.mxu0 %v1944
    %2014 = vmatprep.subr.bf16.mxu0 0
    %2015 = vmatpush1.bf16.msra.mxu0 %v1958
    %2016 = vmatprep.subr.bf16.mxu0 0
    %2017 = vmatpush1.bf16.msra.mxu0 0
    %2018 = vmatprep.subr.bf16.mxu0 0
    %2019 = vmatpush1.bf16.msra.mxu0 0
    %2020 = vmatprep.subr.bf16.mxu0 0
    %2021 = vmatpush1.bf16.msra.mxu0 0
    %2022 = vmatprep.subr.bf16.mxu0 0
    %2023 = vmatpush1.bf16.msra.mxu0 0
    %2024 = vmatprep.subr.bf16.mxu0 0
    %2025 = vmatpush1.bf16.msra.mxu0 0
    %2026 = vmatprep.subr.bf16.mxu0 0
    %2027 = vmatpush1.bf16.msra.mxu0 0
    %2028 = vmatprep.subr.bf16.mxu0 0
    %2029 = vmatpush1.bf16.msra.mxu0 0
    %2030 = vmatprep.subr.bf16.mxu0 0
    %2031 = vmatpush1.bf16.msra.mxu0 0
    %2032 = vmatprep.subr.bf16.mxu0 0
    %2033 = vmatpush1.bf16.msra.mxu0 0
    %2034 = vmatprep.subr.bf16.mxu0 0
    %2035 = vmatpush1.bf16.msra.mxu0 0
    %2036 = vmatprep.subr.bf16.mxu0 0
    %2037 = vmatpush1.bf16.msra.mxu0 0
    %2038 = vmatprep.subr.bf16.mxu0 0
    %2039 = vmatpush1.bf16.msra.mxu0 0
    %2040 = vmatprep.subr.bf16.mxu0 0
    %2041 = vmatpush1.bf16.msra.mxu0 0
    %2042 = vmatprep.subr.bf16.mxu0 0
    %2043 = vmatpush1.bf16.msra.mxu0 0
    %2044 = vmatprep.mubr.bf16.mxu0 0
    %2045 = vmatmul.mubr.bf16.gmra.mrb[0].mxu0 %v2010
    %v2046 = vpop.f32.mrb[0].mxu0
    %v2047 = vadd.f32 0.0, %v2046
    %v2048 = vpop.f32.mrb[0].mxu0
    %v2049 = vpop.f32.mrb[0].mxu0
    %v2050 = vadd.f32 0.0, %v2049
    %v2051 = vpop.f32.mrb[0].mxu0
    %2052 = vdwg.mxu0
    %v2053 = vpack.c.bf16 %v2050, %v2047
    %v2054 = vld [vmem:[#allocation16] sm:$0xf]
    %v2055 = vld [vmem:[#allocation16 + $0x4] sm:$0x7]
    %v2058 = vunpack.c.l.b16 %v2054
    %v2059 = vunpack.c.l.b16 %v2055
    %v2060 = vpack.c.b16 %v2059, %v2058
    %v2062 = vsel %vm1953, %v2060, 0
    %2064 = vmatprep.subr.bf16.mxu0 0
    %2065 = vmatpush1.bf16.msra.mxu0 %v1944
    %2066 = vmatprep.subr.bf16.mxu0 0
    %2067 = vmatpush1.bf16.msra.mxu0 %v1958
    %2068 = vmatprep.subr.bf16.mxu0 0
    %2069 = vmatpush1.bf16.msra.mxu0 0
    %2070 = vmatprep.subr.bf16.mxu0 0
    %2071 = vmatpush1.bf16.msra.mxu0 0
    %2072 = vmatprep.subr.bf16.mxu0 0
    %2073 = vmatpush1.bf16.msra.mxu0 0
    %2074 = vmatprep.subr.bf16.mxu0 0
    %2075 = vmatpush1.bf16.msra.mxu0 0
    %2076 = vmatprep.subr.bf16.mxu0 0
    %2077 = vmatpush1.bf16.msra.mxu0 0
    %2078 = vmatprep.subr.bf16.mxu0 0
    %2079 = vmatpush1.bf16.msra.mxu0 0
    %2080 = vmatprep.subr.bf16.mxu0 0
    %2081 = vmatpush1.bf16.msra.mxu0 0
    %2082 = vmatprep.subr.bf16.mxu0 0
    %2083 = vmatpush1.bf16.msra.mxu0 0
    %2084 = vmatprep.subr.bf16.mxu0 0
    %2085 = vmatpush1.bf16.msra.mxu0 0
    %2086 = vmatprep.subr.bf16.mxu0 0
    %2087 = vmatpush1.bf16.msra.mxu0 0
    %2088 = vmatprep.subr.bf16.mxu0 0
    %2089 = vmatpush1.bf16.msra.mxu0 0
    %2090 = vmatprep.subr.bf16.mxu0 0
    %2091 = vmatpush1.bf16.msra.mxu0 0
    %2092 = vmatprep.subr.bf16.mxu0 0
    %2093 = vmatpush1.bf16.msra.mxu0 0
    %2094 = vmatprep.subr.bf16.mxu0 0
    %2095 = vmatpush1.bf16.msra.mxu0 0
    %2096 = vmatprep.mubr.bf16.mxu0 0
    %2097 = vmatmul.mubr.bf16.gmra.mrb[0].mxu0 %v2062
    %v2098 = vpop.f32.mrb[0].mxu0
    %v2099 = vadd.f32 0.0, %v2098
    %v2100 = vpop.f32.mrb[0].mxu0
    %v2101 = vpop.f32.mrb[0].mxu0
    %v2102 = vadd.f32 0.0, %v2101
    %v2103 = vpop.f32.mrb[0].mxu0
    %2104 = vdwg.mxu0
    %v2105 = vpack.c.bf16 %v2102, %v2099
    %v2106 = vld [vmem:[#allocation29] sm:$0xff]
    %v2107 = vld [vmem:[#allocation29 + $0x8] sm:$0xff]
    %v2108 = vld [vmem:[#allocation29 + $0x10] sm:$0xff]
    %v2109 = vld [vmem:[#allocation29 + $0x18] sm:$0xff]
    %v2110 = vld [vmem:[#allocation29 + $0x20] sm:$0xff]
    %v2111 = vld [vmem:[#allocation29 + $0x28] sm:$0xff]
    %v2112 = vld [vmem:[#allocation29 + $0x30] sm:$0xff]
    %v2113 = vld [vmem:[#allocation29 + $0x38] sm:$0xff]
    %v2114 = vld [vmem:[#allocation29 + $0x40] sm:$0xff]
    %v2115 = vld [vmem:[#allocation29 + $0x48] sm:$0xff]
    %v2116 = vld [vmem:[#allocation29 + $0x50] sm:$0xff]
    %v2117 = vld [vmem:[#allocation29 + $0x58] sm:$0xff]
    %v2118 = vld [vmem:[#allocation29 + $0x60] sm:$0xff]
    %v2119 = vld [vmem:[#allocation29 + $0x68] sm:$0xff]
    %v2120 = vld [vmem:[#allocation29 + $0x70] sm:$0xff]
    %v2121 = vld [vmem:[#allocation29 + $0x78] sm:$0xff]
    %v2122 = vld [vmem:[#allocation29 + $0x80] sm:$0xff]
    %v2123 = vld [vmem:[#allocation29 + $0x88] sm:$0xff]
    %v2124 = vld [vmem:[#allocation29 + $0x90] sm:$0xff]
    %v2125 = vld [vmem:[#allocation29 + $0x98] sm:$0xff]
    %v2126 = vld [vmem:[#allocation29 + $0xa0] sm:$0xff]
    %v2127 = vld [vmem:[#allocation29 + $0xa8] sm:$0xff]
    %v2128 = vld [vmem:[#allocation29 + $0xb0] sm:$0xff]
    %v2129 = vld [vmem:[#allocation29 + $0xb8] sm:$0xff]
    %v2130 = vld [vmem:[#allocation29 + $0xc0] sm:$0xff]
    %v2131 = vld [vmem:[#allocation29 + $0xc8] sm:$0xff]
    %v2132 = vld [vmem:[#allocation29 + $0xd0] sm:$0xff]
    %v2133 = vld [vmem:[#allocation29 + $0xd8] sm:$0xff]
    %v2134 = vld [vmem:[#allocation29 + $0xe0] sm:$0xff]
    %v2135 = vld [vmem:[#allocation29 + $0xe8] sm:$0xff]
    %v2136 = vld [vmem:[#allocation29 + $0xf0] sm:$0xff]
    %v2137 = vld [vmem:[#allocation29 + $0xf8] sm:$0xff]
    %v2138 = vld [vmem:[#allocation29 + $0x100] sm:$0xff]
    %v2139 = vld [vmem:[#allocation29 + $0x108] sm:$0xff]
    %v2140 = vld [vmem:[#allocation29 + $0x110] sm:$0xff]
    %v2141 = vld [vmem:[#allocation29 + $0x118] sm:$0xff]
    %v2142 = vld [vmem:[#allocation29 + $0x120] sm:$0xff]
    %v2143 = vld [vmem:[#allocation29 + $0x128] sm:$0xff]
    %v2144 = vld [vmem:[#allocation29 + $0x130] sm:$0xff]
    %v2145 = vld [vmem:[#allocation29 + $0x138] sm:$0xff]
    %v2146 = vld [vmem:[#allocation29 + $0x140] sm:$0xff]
    %v2147 = vld [vmem:[#allocation29 + $0x148] sm:$0xff]
    %v2148 = vld [vmem:[#allocation29 + $0x150] sm:$0xff]
    %v2149 = vld [vmem:[#allocation29 + $0x158] sm:$0xff]
    %v2150 = vld [vmem:[#allocation29 + $0x160] sm:$0xff]
    %v2151 = vld [vmem:[#allocation29 + $0x168] sm:$0xff]
    %v2152 = vld [vmem:[#allocation29 + $0x170] sm:$0xff]
    %v2153 = vld [vmem:[#allocation29 + $0x178] sm:$0xff]
    %v2154 = vld [vmem:[#allocation37] sm:$0x3]
    %v2156 = vlaneseq
    %v2157 = vshrl.u32 %v2156, 7
    %v2158 = vsub.s32 0, %v2157
    %v2159 = vrot.slane %v2154, %v2158
    %v2160 = vlaneseq
    %v2161 = vshrl.u32 %v2160, 7
    %v2162 = vsub.s32 1, %v2161
    %v2163 = vrot.slane %v2154, %v2162
    %v2214 = vunpack.c.l.b16 %v2106
    %v2215 = vunpack.c.h.b16 %v2106
    %v2216 = vunpack.c.l.b16 %v2107
    %v2217 = vunpack.c.h.b16 %v2107
    %v2218 = vunpack.c.l.b16 %v2108
    %v2219 = vunpack.c.h.b16 %v2108
    %v2220 = vunpack.c.l.b16 %v2109
    %v2221 = vunpack.c.h.b16 %v2109
    %v2222 = vunpack.c.l.b16 %v2110
    %v2223 = vunpack.c.h.b16 %v2110
    %v2224 = vunpack.c.l.b16 %v2111
    %v2225 = vunpack.c.h.b16 %v2111
    %v2226 = vunpack.c.l.b16 %v2112
    %v2227 = vunpack.c.h.b16 %v2112
    %v2228 = vunpack.c.l.b16 %v2113
    %v2229 = vunpack.c.h.b16 %v2113
    %v2230 = vunpack.c.l.b16 %v2114
    %v2231 = vunpack.c.h.b16 %v2114
    %v2232 = vunpack.c.l.b16 %v2115
    %v2233 = vunpack.c.h.b16 %v2115
    %v2234 = vunpack.c.l.b16 %v2116
    %v2235 = vunpack.c.h.b16 %v2116
    %v2236 = vunpack.c.l.b16 %v2117
    %v2237 = vunpack.c.h.b16 %v2117
    %v2238 = vunpack.c.l.b16 %v2118
    %v2239 = vunpack.c.h.b16 %v2118
    %v2240 = vunpack.c.l.b16 %v2119
    %v2241 = vunpack.c.h.b16 %v2119
    %v2242 = vunpack.c.l.b16 %v2120
    %v2243 = vunpack.c.h.b16 %v2120
    %v2244 = vunpack.c.l.b16 %v2121
    %v2245 = vunpack.c.h.b16 %v2121
    %v2246 = vunpack.c.l.b16 %v2122
    %v2247 = vunpack.c.h.b16 %v2122
    %v2248 = vunpack.c.l.b16 %v2123
    %v2249 = vunpack.c.h.b16 %v2123
    %v2250 = vunpack.c.l.b16 %v2124
    %v2251 = vunpack.c.h.b16 %v2124
    %v2252 = vunpack.c.l.b16 %v2125
    %v2253 = vunpack.c.h.b16 %v2125
    %v2254 = vunpack.c.l.b16 %v2126
    %v2255 = vunpack.c.h.b16 %v2126
    %v2256 = vunpack.c.l.b16 %v2127
    %v2257 = vunpack.c.h.b16 %v2127
    %v2258 = vunpack.c.l.b16 %v2128
    %v2259 = vunpack.c.h.b16 %v2128
    %v2260 = vunpack.c.l.b16 %v2129
    %v2261 = vunpack.c.h.b16 %v2129
    %v2262 = vunpack.c.l.b16 %v2130
    %v2263 = vunpack.c.h.b16 %v2130
    %v2264 = vunpack.c.l.b16 %v2131
    %v2265 = vunpack.c.h.b16 %v2131
    %v2266 = vunpack.c.l.b16 %v2132
    %v2267 = vunpack.c.h.b16 %v2132
    %v2268 = vunpack.c.l.b16 %v2133
    %v2269 = vunpack.c.h.b16 %v2133
    %v2270 = vunpack.c.l.b16 %v2134
    %v2271 = vunpack.c.h.b16 %v2134
    %v2272 = vunpack.c.l.b16 %v2135
    %v2273 = vunpack.c.h.b16 %v2135
    %v2274 = vunpack.c.l.b16 %v2136
    %v2275 = vunpack.c.h.b16 %v2136
    %v2276 = vunpack.c.l.b16 %v2137
    %v2277 = vunpack.c.h.b16 %v2137
    %v2278 = vunpack.c.l.b16 %v2138
    %v2279 = vunpack.c.h.b16 %v2138
    %v2280 = vunpack.c.l.b16 %v2139
    %v2281 = vunpack.c.h.b16 %v2139
    %v2282 = vunpack.c.l.b16 %v2140
    %v2283 = vunpack.c.h.b16 %v2140
    %v2284 = vunpack.c.l.b16 %v2141
    %v2285 = vunpack.c.h.b16 %v2141
    %v2286 = vunpack.c.l.b16 %v2142
    %v2287 = vunpack.c.h.b16 %v2142
    %v2288 = vunpack.c.l.b16 %v2143
    %v2289 = vunpack.c.h.b16 %v2143
    %v2290 = vunpack.c.l.b16 %v2144
    %v2291 = vunpack.c.h.b16 %v2144
    %v2292 = vunpack.c.l.b16 %v2145
    %v2293 = vunpack.c.h.b16 %v2145
    %v2294 = vunpack.c.l.b16 %v2146
    %v2295 = vunpack.c.h.b16 %v2146
    %v2296 = vunpack.c.l.b16 %v2147
    %v2297 = vunpack.c.h.b16 %v2147
    %v2298 = vunpack.c.l.b16 %v2148
    %v2299 = vunpack.c.h.b16 %v2148
    %v2300 = vunpack.c.l.b16 %v2149
    %v2301 = vunpack.c.h.b16 %v2149
    %v2302 = vunpack.c.l.b16 %v2150
    %v2303 = vunpack.c.h.b16 %v2150
    %v2304 = vunpack.c.l.b16 %v2151
    %v2305 = vunpack.c.h.b16 %v2151
    %v2306 = vunpack.c.l.b16 %v2152
    %v2307 = vunpack.c.h.b16 %v2152
    %v2308 = vunpack.c.l.b16 %v2153
    %v2309 = vunpack.c.h.b16 %v2153
    %v2310 = vpack.c.b16 %v2216, %v2214
    %v2311 = vpack.c.b16 %v2217, %v2215
    %v2312 = vpack.c.b16 %v2220, %v2218
    %v2313 = vpack.c.b16 %v2221, %v2219
    %v2314 = vpack.c.b16 %v2224, %v2222
    %v2315 = vpack.c.b16 %v2225, %v2223
    %v2316 = vpack.c.b16 %v2228, %v2226
    %v2317 = vpack.c.b16 %v2229, %v2227
    %v2318 = vpack.c.b16 %v2232, %v2230
    %v2319 = vpack.c.b16 %v2233, %v2231
    %v2320 = vpack.c.b16 %v2236, %v2234
    %v2321 = vpack.c.b16 %v2237, %v2235
    %v2322 = vpack.c.b16 %v2240, %v2238
    %v2323 = vpack.c.b16 %v2241, %v2239
    %v2324 = vpack.c.b16 %v2244, %v2242
    %v2325 = vpack.c.b16 %v2245, %v2243
    %v2326 = vpack.c.b16 %v2248, %v2246
    %v2327 = vpack.c.b16 %v2249, %v2247
    %v2328 = vpack.c.b16 %v2252, %v2250
    %v2329 = vpack.c.b16 %v2253, %v2251
    %v2330 = vpack.c.b16 %v2256, %v2254
    %v2331 = vpack.c.b16 %v2257, %v2255
    %v2332 = vpack.c.b16 %v2260, %v2258
    %v2333 = vpack.c.b16 %v2261, %v2259
    %v2334 = vpack.c.b16 %v2264, %v2262
    %v2335 = vpack.c.b16 %v2265, %v2263
    %v2336 = vpack.c.b16 %v2268, %v2266
    %v2337 = vpack.c.b16 %v2269, %v2267
    %v2338 = vpack.c.b16 %v2272, %v2270
    %v2339 = vpack.c.b16 %v2273, %v2271
    %v2340 = vpack.c.b16 %v2276, %v2274
    %v2341 = vpack.c.b16 %v2277, %v2275
    %v2342 = vpack.c.b16 %v2280, %v2278
    %v2343 = vpack.c.b16 %v2281, %v2279
    %v2344 = vpack.c.b16 %v2284, %v2282
    %v2345 = vpack.c.b16 %v2285, %v2283
    %v2346 = vpack.c.b16 %v2288, %v2286
    %v2347 = vpack.c.b16 %v2289, %v2287
    %v2348 = vpack.c.b16 %v2292, %v2290
    %v2349 = vpack.c.b16 %v2293, %v2291
    %v2350 = vpack.c.b16 %v2296, %v2294
    %v2351 = vpack.c.b16 %v2297, %v2295
    %v2352 = vpack.c.b16 %v2300, %v2298
    %v2353 = vpack.c.b16 %v2301, %v2299
    %v2354 = vpack.c.b16 %v2304, %v2302
    %v2355 = vpack.c.b16 %v2305, %v2303
    %v2356 = vpack.c.b16 %v2308, %v2306
    %v2357 = vpack.c.b16 %v2309, %v2307
    %2406 = vmatprep.subr.bf16.mxu0 %v2311
    %2407 = vmatpush1.bf16.msra.mxu0 %v2310
    %2408 = vmatprep.subr.bf16.mxu0 %v2313
    %2409 = vmatpush1.bf16.msra.mxu0 %v2312
    %2410 = vmatprep.subr.bf16.mxu0 %v2315
    %2411 = vmatpush1.bf16.msra.mxu0 %v2314
    %2412 = vmatprep.subr.bf16.mxu0 %v2317
    %2413 = vmatpush1.bf16.msra.mxu0 %v2316
    %2414 = vmatprep.subr.bf16.mxu0 %v2319
    %2415 = vmatpush1.bf16.msra.mxu0 %v2318
    %2416 = vmatprep.subr.bf16.mxu0 %v2321
    %2417 = vmatpush1.bf16.msra.mxu0 %v2320
    %2418 = vmatprep.subr.bf16.mxu0 %v2323
    %2419 = vmatpush1.bf16.msra.mxu0 %v2322
    %2420 = vmatprep.subr.bf16.mxu0 %v2325
    %2421 = vmatpush1.bf16.msra.mxu0 %v2324
    %2422 = vmatprep.subr.bf16.mxu0 %v2327
    %2423 = vmatpush1.bf16.msra.mxu0 %v2326
    %2424 = vmatprep.subr.bf16.mxu0 %v2329
    %2425 = vmatpush1.bf16.msra.mxu0 %v2328
    %2426 = vmatprep.subr.bf16.mxu0 %v2331
    %2427 = vmatpush1.bf16.msra.mxu0 %v2330
    %2428 = vmatprep.subr.bf16.mxu0 %v2333
    %2429 = vmatpush1.bf16.msra.mxu0 %v2332
    %2430 = vmatprep.subr.bf16.mxu0 %v2335
    %2431 = vmatpush1.bf16.msra.mxu0 %v2334
    %2432 = vmatprep.subr.bf16.mxu0 %v2337
    %2433 = vmatpush1.bf16.msra.mxu0 %v2336
    %2434 = vmatprep.subr.bf16.mxu0 %v2339
    %2435 = vmatpush1.bf16.msra.mxu0 %v2338
    %2436 = vmatprep.subr.bf16.mxu0 %v2341
    %2437 = vmatpush1.bf16.msra.mxu0 %v2340
    %2438 = vmatprep.mubr.bf16.mxu0 %v2053
    %2439 = vmatmul.mubr.bf16.gmra.mrb[0].mxu0 %v2001
    %v2440 = vpop.f32.mrb[0].mxu0
    %v2441 = vadd.f32 %v2159, %v2440
    %v2442 = vpop.f32.mrb[0].mxu0
    %v2443 = vadd.f32 %v2163, %v2442
    %v2444 = vpop.f32.mrb[0].mxu0
    %v2445 = vadd.f32 %v2159, %v2444
    %v2446 = vpop.f32.mrb[0].mxu0
    %v2447 = vadd.f32 %v2163, %v2446
    %2448 = vdwg.mxu0
    %2449 = vmatprep.subr.bf16.mxu0 %v2343
    %2450 = vmatpush1.bf16.msra.mxu0 %v2342
    %2451 = vmatprep.subr.bf16.mxu0 %v2345
    %2452 = vmatpush1.bf16.msra.mxu0 %v2344
    %2453 = vmatprep.subr.bf16.mxu0 %v2347
    %2454 = vmatpush1.bf16.msra.mxu0 %v2346
    %2455 = vmatprep.subr.bf16.mxu0 %v2349
    %2456 = vmatpush1.bf16.msra.mxu0 %v2348
    %2457 = vmatprep.subr.bf16.mxu0 %v2351
    %2458 = vmatpush1.bf16.msra.mxu0 %v2350
    %2459 = vmatprep.subr.bf16.mxu0 %v2353
    %2460 = vmatpush1.bf16.msra.mxu0 %v2352
    %2461 = vmatprep.subr.bf16.mxu0 %v2355
    %2462 = vmatpush1.bf16.msra.mxu0 %v2354
    %2463 = vmatprep.subr.bf16.mxu0 %v2357
    %2464 = vmatpush1.bf16.msra.mxu0 %v2356
    %2465 = vmatprep.subr.bf16.mxu0 0
    %2466 = vmatpush1.bf16.msra.mxu0 0
    %2467 = vmatprep.subr.bf16.mxu0 0
    %2468 = vmatpush1.bf16.msra.mxu0 0
    %2469 = vmatprep.subr.bf16.mxu0 0
    %2470 = vmatpush1.bf16.msra.mxu0 0
    %2471 = vmatprep.subr.bf16.mxu0 0
    %2472 = vmatpush1.bf16.msra.mxu0 0
    %2473 = vmatprep.subr.bf16.mxu0 0
    %2474 = vmatpush1.bf16.msra.mxu0 0
    %2475 = vmatprep.subr.bf16.mxu0 0
    %2476 = vmatpush1.bf16.msra.mxu0 0
    %2477 = vmatprep.subr.bf16.mxu0 0
    %2478 = vmatpush1.bf16.msra.mxu0 0
    %2479 = vmatprep.subr.bf16.mxu0 0
    %2480 = vmatpush1.bf16.msra.mxu0 0
    %2481 = vmatprep.mubr.bf16.mxu0 0
    %2482 = vmatmul.mubr.bf16.gmra.mrb[0].mxu0 %v2105
    %v2483 = vpop.f32.mrb[0].mxu0
    %v2484 = vadd.f32 %v2441, %v2483
    %v2485 = vpop.f32.mrb[0].mxu0
    %v2486 = vadd.f32 %v2443, %v2485
    %v2487 = vpop.f32.mrb[0].mxu0
    %v2488 = vadd.f32 %v2445, %v2487
    %v2489 = vpop.f32.mrb[0].mxu0
    %v2490 = vadd.f32 %v2447, %v2489
    %2491 = vdwg.mxu0
    %v2496 = vcombine.low %v2484, %v2486
    %v2497 = vcombine.high %v2484, %v2486
    %v2499 = vunpack.c.l.s4 1966171168
    %v2500 = vunpack.c.0.s8 %v2499
    %v2501 = vlaneseq
    %v2502 = vshrl.u32 %v2501, 7
    %v2503 = vsub.s32 %v2500, %v2502
    %v2504 = vrot.slane %v2496, %v2503
    %v2506 = vunpack.c.l.s4 1966171168
    %v2507 = vunpack.c.0.s8 %v2506
    %v2508 = vlaneseq
    %v2509 = vshrl.u32 %v2508, 7
    %v2510 = vsub.s32 %v2507, %v2509
    %v2511 = vrot.slane %v2497, %v2510
    %v2512 = vcombine.high %v2504, %v2504
    %v2513 = vcombine.high %v2511, %v2511
    %v2515 = vunpack.c.l.s4 1966171168
    %v2516 = vunpack.c.0.s8 %v2515
    %v2517 = vlaneseq
    %v2518 = vshrl.u32 %v2517, 7
    %v2519 = vsub.s32 %v2516, %v2518
    %v2520 = vrot.slane %v2504, %v2519
    %v2522 = vunpack.c.l.s4 1966171168
    %v2523 = vunpack.c.0.s8 %v2522
    %v2524 = vlaneseq
    %v2525 = vshrl.u32 %v2524, 7
    %v2526 = vsub.s32 %v2523, %v2525
    %v2527 = vrot.slane %v2511, %v2526
    %v2529 = vunpack.c.l.s4 1966171168
    %v2530 = vunpack.c.0.s8 %v2529
    %v2531 = vlaneseq
    %v2532 = vshrl.u32 %v2531, 7
    %v2533 = vsub.s32 %v2530, %v2532
    %v2534 = vrot.slane %v2512, %v2533
    %v2536 = vunpack.c.l.s4 1966171168
    %v2537 = vunpack.c.0.s8 %v2536
    %v2538 = vlaneseq
    %v2539 = vshrl.u32 %v2538, 7
    %v2540 = vsub.s32 %v2537, %v2539
    %v2541 = vrot.slane %v2513, %v2540
    %v2542 = vcombine.high %v2520, %v2520
    %v2543 = vcombine.high %v2527, %v2527
    %v2544 = vcombine.high %v2534, %v2534
    %v2545 = vcombine.high %v2541, %v2541
    %v2546 = vcombine.low %v2488, %v2490
    %v2547 = vcombine.high %v2488, %v2490
    %v2549 = vunpack.c.l.s4 1966171168
    %v2550 = vunpack.c.0.s8 %v2549
    %v2551 = vlaneseq
    %v2552 = vshrl.u32 %v2551, 7
    %v2553 = vsub.s32 %v2550, %v2552
    %v2554 = vrot.slane %v2546, %v2553
    %v2556 = vunpack.c.l.s4 1966171168
    %v2557 = vunpack.c.0.s8 %v2556
    %v2558 = vlaneseq
    %v2559 = vshrl.u32 %v2558, 7
    %v2560 = vsub.s32 %v2557, %v2559
    %v2561 = vrot.slane %v2547, %v2560
    %v2562 = vcombine.high %v2554, %v2554
    %v2563 = vcombine.high %v2561, %v2561
    %v2565 = vunpack.c.l.s4 1966171168
    %v2566 = vunpack.c.0.s8 %v2565
    %v2567 = vlaneseq
    %v2568 = vshrl.u32 %v2567, 7
    %v2569 = vsub.s32 %v2566, %v2568
    %v2570 = vrot.slane %v2554, %v2569
    %v2572 = vunpack.c.l.s4 1966171168
    %v2573 = vunpack.c.0.s8 %v2572
    %v2574 = vlaneseq
    %v2575 = vshrl.u32 %v2574, 7
    %v2576 = vsub.s32 %v2573, %v2575
    %v2577 = vrot.slane %v2561, %v2576
    %v2579 = vunpack.c.l.s4 1966171168
    %v2580 = vunpack.c.0.s8 %v2579
    %v2581 = vlaneseq
    %v2582 = vshrl.u32 %v2581, 7
    %v2583 = vsub.s32 %v2580, %v2582
    %v2584 = vrot.slane %v2562, %v2583
    %v2586 = vunpack.c.l.s4 1966171168
    %v2587 = vunpack.c.0.s8 %v2586
    %v2588 = vlaneseq
    %v2589 = vshrl.u32 %v2588, 7
    %v2590 = vsub.s32 %v2587, %v2589
    %v2591 = vrot.slane %v2563, %v2590
    %v2592 = vcombine.high %v2570, %v2570
    %v2593 = vcombine.high %v2584, %v2584
    %v2594 = vcombine.low %v2520, %v2534
    %v2595 = vcombine.low %v2542, %v2544
    %v2596 = vcombine.low %v2527, %v2541
    %v2598 = vunpack.c.l.s4 1966171168
    %v2599 = vunpack.c.0.s8 %v2598
    %v2600 = vlaneseq
    %v2601 = vshrl.u32 %v2600, 7
    %v2602 = vsub.s32 %v2599, %v2601
    %v2603 = vrot.slane %v2594, %v2602
    %v2605 = vunpack.c.l.s4 1966171168
    %v2606 = vunpack.c.0.s8 %v2605
    %v2607 = vlaneseq
    %v2608 = vshrl.u32 %v2607, 7
    %v2609 = vsub.s32 %v2606, %v2608
    %v2610 = vrot.slane %v2595, %v2609
    %v2612 = vunpack.c.l.s4 1966171168
    %v2613 = vunpack.c.0.s8 %v2612
    %v2614 = vlaneseq
    %v2615 = vshrl.u32 %v2614, 7
    %v2616 = vsub.s32 %v2613, %v2615
    %v2617 = vrot.slane %v2596, %v2616
    %v2619 = vunpack.c.l.s4 1966171168
    %v2620 = vunpack.c.0.s8 %v2619
    %v2621 = vlaneseq
    %v2622 = vshrl.u32 %v2621, 7
    %v2623 = vsub.s32 %v2620, %v2622
    %v2624 = vrot.slane %v2543, %v2623
    %v2625 = vcombine.low %v2603, %v2610
    %v2626 = vcombine.high %v2603, %v2610
    %v2627 = vcombine.low %v2617, %v2624
    %v2628 = vcombine.high %v2617, %v2624
    %v2630 = vunpack.c.l.s4 1966171168
    %v2631 = vunpack.c.0.s8 %v2630
    %v2632 = vlaneseq
    %v2633 = vshrl.u32 %v2632, 7
    %v2634 = vsub.s32 %v2631, %v2633
    %v2635 = vrot.slane %v2625, %v2634
    %v2637 = vunpack.c.l.s4 1966171168
    %v2638 = vunpack.c.0.s8 %v2637
    %v2639 = vlaneseq
    %v2640 = vshrl.u32 %v2639, 7
    %v2641 = vsub.s32 %v2638, %v2640
    %v2642 = vrot.slane %v2626, %v2641
    %v2644 = vunpack.c.l.s4 1966171168
    %v2645 = vunpack.c.0.s8 %v2644
    %v2646 = vlaneseq
    %v2647 = vshrl.u32 %v2646, 7
    %v2648 = vsub.s32 %v2645, %v2647
    %v2649 = vrot.slane %v2627, %v2648
    %v2651 = vunpack.c.l.s4 1966171168
    %v2652 = vunpack.c.0.s8 %v2651
    %v2653 = vlaneseq
    %v2654 = vshrl.u32 %v2653, 7
    %v2655 = vsub.s32 %v2652, %v2654
    %v2656 = vrot.slane %v2628, %v2655
    %v2657 = vcombine.low %v2635, %v2649
    %v2658 = vcombine.low %v2642, %v2656
    %v2659 = vcombine.low %v2545, %v2570
    %v2660 = vcombine.low %v2584, %v2592
    %v2661 = vcombine.low %v2593, %v2577
    %v2663 = vunpack.c.l.s4 1966171168
    %v2664 = vunpack.c.0.s8 %v2663
    %v2665 = vlaneseq
    %v2666 = vshrl.u32 %v2665, 7
    %v2667 = vsub.s32 %v2664, %v2666
    %v2668 = vrot.slane %v2659, %v2667
    %v2670 = vunpack.c.l.s4 1966171168
    %v2671 = vunpack.c.0.s8 %v2670
    %v2672 = vlaneseq
    %v2673 = vshrl.u32 %v2672, 7
    %v2674 = vsub.s32 %v2671, %v2673
    %v2675 = vrot.slane %v2660, %v2674
    %v2677 = vunpack.c.l.s4 1966171168
    %v2678 = vunpack.c.0.s8 %v2677
    %v2679 = vlaneseq
    %v2680 = vshrl.u32 %v2679, 7
    %v2681 = vsub.s32 %v2678, %v2680
    %v2682 = vrot.slane %v2661, %v2681
    %v2684 = vunpack.c.l.s4 1966171168
    %v2685 = vunpack.c.0.s8 %v2684
    %v2686 = vlaneseq
    %v2687 = vshrl.u32 %v2686, 7
    %v2688 = vsub.s32 %v2685, %v2687
    %v2689 = vrot.slane %v2591, %v2688
    %v2690 = vcombine.low %v2668, %v2675
    %v2691 = vcombine.high %v2668, %v2675
    %v2692 = vcombine.low %v2682, %v2689
    %v2693 = vcombine.high %v2682, %v2689
    %v2695 = vunpack.c.l.s4 1966171168
    %v2696 = vunpack.c.0.s8 %v2695
    %v2697 = vlaneseq
    %v2698 = vshrl.u32 %v2697, 7
    %v2699 = vsub.s32 %v2696, %v2698
    %v2700 = vrot.slane %v2690, %v2699
    %v2702 = vunpack.c.l.s4 1966171168
    %v2703 = vunpack.c.0.s8 %v2702
    %v2704 = vlaneseq
    %v2705 = vshrl.u32 %v2704, 7
    %v2706 = vsub.s32 %v2703, %v2705
    %v2707 = vrot.slane %v2691, %v2706
    %v2709 = vunpack.c.l.s4 1966171168
    %v2710 = vunpack.c.0.s8 %v2709
    %v2711 = vlaneseq
    %v2712 = vshrl.u32 %v2711, 7
    %v2713 = vsub.s32 %v2710, %v2712
    %v2714 = vrot.slane %v2692, %v2713
    %v2716 = vunpack.c.l.s4 1966171168
    %v2717 = vunpack.c.0.s8 %v2716
    %v2718 = vlaneseq
    %v2719 = vshrl.u32 %v2718, 7
    %v2720 = vsub.s32 %v2717, %v2719
    %v2721 = vrot.slane %v2693, %v2720
    %v2722 = vcombine.low %v2700, %v2714
    %v2723 = vcombine.low %v2707, %v2721
    %2728 = vst [vmem:[%s55] sm:$0x7f] %v2657
    %2729 = vst [vmem:[%s55 + $0x8] sm:$0x7f] %v2658
    %2730 = vst [vmem:[%s55 + $0x10] sm:$0x7f] %v2722
    %2731 = vst [vmem:[%s55 + $0x18] sm:$0x7f] %v2723
    %v2732 = vpack.c.bf16 %v2488, %v2484
    %v2733 = vpack.c.bf16 %v2490, %v2486
    %v2734 = vld [vmem:[#allocation17] sm:$0x7]
    %vm2735 = vcmask 113664
    %v2737 = vsel %vm2735, %v2734, 0
    %v2740 = vsel %vm1068, %v2732, 0
    %v2743 = vsel %vm1068, %v2733, 0
    %2745 = vmatprep.subr.bf16.mxu0 %v2743
    %2746 = vmatpush1.bf16.msra.mxu0 %v2740
    %2747 = vmatprep.subr.bf16.mxu0 0
    %2748 = vmatpush1.bf16.msra.mxu0 0
    %2749 = vmatprep.subr.bf16.mxu0 0
    %2750 = vmatpush1.bf16.msra.mxu0 0
    %2751 = vmatprep.subr.bf16.mxu0 0
    %2752 = vmatpush1.bf16.msra.mxu0 0
    %2753 = vmatprep.subr.bf16.mxu0 0
    %2754 = vmatpush1.bf16.msra.mxu0 0
    %2755 = vmatprep.subr.bf16.mxu0 0
    %2756 = vmatpush1.bf16.msra.mxu0 0
    %2757 = vmatprep.subr.bf16.mxu0 0
    %2758 = vmatpush1.bf16.msra.mxu0 0
    %2759 = vmatprep.subr.bf16.mxu0 0
    %2760 = vmatpush1.bf16.msra.mxu0 0
    %2761 = vmatprep.subr.bf16.mxu0 0
    %2762 = vmatpush1.bf16.msra.mxu0 0
    %2763 = vmatprep.subr.bf16.mxu0 0
    %2764 = vmatpush1.bf16.msra.mxu0 0
    %2765 = vmatprep.subr.bf16.mxu0 0
    %2766 = vmatpush1.bf16.msra.mxu0 0
    %2767 = vmatprep.subr.bf16.mxu0 0
    %2768 = vmatpush1.bf16.msra.mxu0 0
    %2769 = vmatprep.subr.bf16.mxu0 0
    %2770 = vmatpush1.bf16.msra.mxu0 0
    %2771 = vmatprep.subr.bf16.mxu0 0
    %2772 = vmatpush1.bf16.msra.mxu0 0
    %2773 = vmatprep.subr.bf16.mxu0 0
    %2774 = vmatpush1.bf16.msra.mxu0 0
    %2775 = vmatprep.subr.bf16.mxu0 0
    %2776 = vmatpush1.bf16.msra.mxu0 0
    %2777 = vmatprep.mubr.bf16.mxu0 0
    %2778 = vmatmul.mubr.bf16.gmra.mrb[0].mxu0 %v2737
    %v2779 = vpop.f32.mrb[0].mxu0
    %v2780 = vadd.f32 0.0, %v2779
    %v2781 = vpop.f32.mrb[0].mxu0
    %v2782 = vadd.f32 0.0, %v2781
    %v2783 = vpop.f32.mrb[0].mxu0
    %v2784 = vpop.f32.mrb[0].mxu0
    %2785 = vdwg.mxu0
    %v2786 = vpack.c.bf16 %v2780, %v2780
    %v2787 = vpack.c.bf16 %v2782, %v2782
    %v2788 = vld [vmem:[#allocation19] sm:$0x7]
    %v2790 = vsel %vm2735, %v2788, 0
    %2792 = vmatprep.subr.bf16.mxu0 %v2743
    %2793 = vmatpush1.bf16.msra.mxu0 %v2740
    %2794 = vmatprep.subr.bf16.mxu0 0
    %2795 = vmatpush1.bf16.msra.mxu0 0
    %2796 = vmatprep.subr.bf16.mxu0 0
    %2797 = vmatpush1.bf16.msra.mxu0 0
    %2798 = vmatprep.subr.bf16.mxu0 0
    %2799 = vmatpush1.bf16.msra.mxu0 0
    %2800 = vmatprep.subr.bf16.mxu0 0
    %2801 = vmatpush1.bf16.msra.mxu0 0
    %2802 = vmatprep.subr.bf16.mxu0 0
    %2803 = vmatpush1.bf16.msra.mxu0 0
    %2804 = vmatprep.subr.bf16.mxu0 0
    %2805 = vmatpush1.bf16.msra.mxu0 0
    %2806 = vmatprep.subr.bf16.mxu0 0
    %2807 = vmatpush1.bf16.msra.mxu0 0
    %2808 = vmatprep.subr.bf16.mxu0 0
    %2809 = vmatpush1.bf16.msra.mxu0 0
    %2810 = vmatprep.subr.bf16.mxu0 0
    %2811 = vmatpush1.bf16.msra.mxu0 0
    %2812 = vmatprep.subr.bf16.mxu0 0
    %2813 = vmatpush1.bf16.msra.mxu0 0
    %2814 = vmatprep.subr.bf16.mxu0 0
    %2815 = vmatpush1.bf16.msra.mxu0 0
    %2816 = vmatprep.subr.bf16.mxu0 0
    %2817 = vmatpush1.bf16.msra.mxu0 0
    %2818 = vmatprep.subr.bf16.mxu0 0
    %2819 = vmatpush1.bf16.msra.mxu0 0
    %2820 = vmatprep.subr.bf16.mxu0 0
    %2821 = vmatpush1.bf16.msra.mxu0 0
    %2822 = vmatprep.subr.bf16.mxu0 0
    %2823 = vmatpush1.bf16.msra.mxu0 0
    %2824 = vmatprep.mubr.bf16.mxu0 0
    %2825 = vmatmul.mubr.bf16.gmra.mrb[0].mxu0 %v2790
    %v2826 = vpop.f32.mrb[0].mxu0
    %v2827 = vadd.f32 0.0, %v2826
    %v2828 = vpop.f32.mrb[0].mxu0
    %v2829 = vadd.f32 0.0, %v2828
    %v2830 = vpop.f32.mrb[0].mxu0
    %v2831 = vpop.f32.mrb[0].mxu0
    %2832 = vdwg.mxu0
    %v2833 = vpack.c.bf16 %v2827, %v2827
    %v2834 = vpack.c.bf16 %v2829, %v2829
    %v2835 = vld [vmem:[#allocation20] sm:$0x7]
    %v2837 = vsel %vm2735, %v2835, 0
    %2839 = vmatprep.subr.bf16.mxu0 %v2743
    %2840 = vmatpush1.bf16.msra.mxu0 %v2740
    %2841 = vmatprep.subr.bf16.mxu0 0
    %2842 = vmatpush1.bf16.msra.mxu0 0
    %2843 = vmatprep.subr.bf16.mxu0 0
    %2844 = vmatpush1.bf16.msra.mxu0 0
    %2845 = vmatprep.subr.bf16.mxu0 0
    %2846 = vmatpush1.bf16.msra.mxu0 0
    %2847 = vmatprep.subr.bf16.mxu0 0
    %2848 = vmatpush1.bf16.msra.mxu0 0
    %2849 = vmatprep.subr.bf16.mxu0 0
    %2850 = vmatpush1.bf16.msra.mxu0 0
    %2851 = vmatprep.subr.bf16.mxu0 0
    %2852 = vmatpush1.bf16.msra.mxu0 0
    %2853 = vmatprep.subr.bf16.mxu0 0
    %2854 = vmatpush1.bf16.msra.mxu0 0
    %2855 = vmatprep.subr.bf16.mxu0 0
    %2856 = vmatpush1.bf16.msra.mxu0 0
    %2857 = vmatprep.subr.bf16.mxu0 0
    %2858 = vmatpush1.bf16.msra.mxu0 0
    %2859 = vmatprep.subr.bf16.mxu0 0
    %2860 = vmatpush1.bf16.msra.mxu0 0
    %2861 = vmatprep.subr.bf16.mxu0 0
    %2862 = vmatpush1.bf16.msra.mxu0 0
    %2863 = vmatprep.subr.bf16.mxu0 0
    %2864 = vmatpush1.bf16.msra.mxu0 0
    %2865 = vmatprep.subr.bf16.mxu0 0
    %2866 = vmatpush1.bf16.msra.mxu0 0
    %2867 = vmatprep.subr.bf16.mxu0 0
    %2868 = vmatpush1.bf16.msra.mxu0 0
    %2869 = vmatprep.subr.bf16.mxu0 0
    %2870 = vmatpush1.bf16.msra.mxu0 0
    %2871 = vmatprep.mubr.bf16.mxu0 0
    %2872 = vmatmul.mubr.bf16.gmra.mrb[0].mxu0 %v2837
    %v2873 = vpop.f32.mrb[0].mxu0
    %v2874 = vadd.f32 0.0, %v2873
    %v2875 = vpop.f32.mrb[0].mxu0
    %v2876 = vadd.f32 0.0, %v2875
    %v2877 = vpop.f32.mrb[0].mxu0
    %v2878 = vpop.f32.mrb[0].mxu0
    %2879 = vdwg.mxu0
    %v2880 = vpack.c.bf16 %v2874, %v2874
    %v2881 = vpack.c.bf16 %v2876, %v2876
    %v2882 = vld [vmem:[#allocation31] sm:$0xff]
    %v2883 = vld [vmem:[#allocation31 + $0x8] sm:$0xff]
    %v2884 = vld [vmem:[#allocation31 + $0x10] sm:$0xff]
    %v2885 = vld [vmem:[#allocation31 + $0x18] sm:$0xff]
    %v2886 = vld [vmem:[#allocation31 + $0x20] sm:$0xff]
    %v2887 = vld [vmem:[#allocation31 + $0x28] sm:$0xff]
    %v2888 = vld [vmem:[#allocation31 + $0x30] sm:$0xff]
    %v2889 = vld [vmem:[#allocation31 + $0x38] sm:$0xff]
    %v2890 = vld [vmem:[#allocation31 + $0x40] sm:$0xff]
    %v2891 = vld [vmem:[#allocation31 + $0x48] sm:$0xff]
    %v2892 = vld [vmem:[#allocation31 + $0x50] sm:$0xff]
    %v2893 = vld [vmem:[#allocation31 + $0x58] sm:$0xff]
    %v2894 = vld [vmem:[#allocation31 + $0x60] sm:$0xff]
    %v2895 = vld [vmem:[#allocation31 + $0x68] sm:$0xff]
    %v2896 = vld [vmem:[#allocation31 + $0x70] sm:$0xff]
    %v2897 = vld [vmem:[#allocation31 + $0x78] sm:$0xff]
    %v2898 = vld [vmem:[#allocation31 + $0x80] sm:$0xff]
    %v2899 = vld [vmem:[#allocation31 + $0x88] sm:$0xff]
    %v2900 = vld [vmem:[#allocation31 + $0x90] sm:$0xff]
    %v2901 = vld [vmem:[#allocation31 + $0x98] sm:$0xff]
    %v2902 = vld [vmem:[#allocation31 + $0xa0] sm:$0xff]
    %v2903 = vld [vmem:[#allocation31 + $0xa8] sm:$0xff]
    %v2904 = vld [vmem:[#allocation31 + $0xb0] sm:$0xff]
    %v2905 = vld [vmem:[#allocation31 + $0xb8] sm:$0xff]
    %v2906 = vld [vmem:[#allocation31 + $0xc0] sm:$0xff]
    %v2907 = vld [vmem:[#allocation31 + $0xc8] sm:$0xff]
    %v2908 = vld [vmem:[#allocation31 + $0xd0] sm:$0xff]
    %v2909 = vld [vmem:[#allocation31 + $0xd8] sm:$0xff]
    %v2910 = vld [vmem:[#allocation31 + $0xe0] sm:$0xff]
    %v2911 = vld [vmem:[#allocation31 + $0xe8] sm:$0xff]
    %v2912 = vld [vmem:[#allocation31 + $0xf0] sm:$0xff]
    %v2913 = vld [vmem:[#allocation31 + $0xf8] sm:$0xff]
    %v2914 = vld [vmem:[#allocation31 + $0x100] sm:$0xff]
    %v2915 = vld [vmem:[#allocation31 + $0x108] sm:$0xff]
    %v2916 = vld [vmem:[#allocation31 + $0x110] sm:$0xff]
    %v2917 = vld [vmem:[#allocation31 + $0x118] sm:$0xff]
    %v2918 = vld [vmem:[#allocation31 + $0x120] sm:$0xff]
    %v2919 = vld [vmem:[#allocation31 + $0x128] sm:$0xff]
    %v2920 = vld [vmem:[#allocation31 + $0x130] sm:$0xff]
    %v2921 = vld [vmem:[#allocation31 + $0x138] sm:$0xff]
    %v2922 = vld [vmem:[#allocation31 + $0x140] sm:$0xff]
    %v2923 = vld [vmem:[#allocation31 + $0x148] sm:$0xff]
    %v2924 = vld [vmem:[#allocation31 + $0x150] sm:$0xff]
    %v2925 = vld [vmem:[#allocation31 + $0x158] sm:$0xff]
    %v2926 = vld [vmem:[#allocation31 + $0x160] sm:$0xff]
    %v2927 = vld [vmem:[#allocation31 + $0x168] sm:$0xff]
    %v2928 = vld [vmem:[#allocation31 + $0x170] sm:$0xff]
    %v2929 = vld [vmem:[#allocation31 + $0x178] sm:$0xff]
    %v2930 = vld [vmem:[#allocation31 + $0x180] sm:$0xff]
    %v2931 = vld [vmem:[#allocation31 + $0x188] sm:$0xff]
    %v2932 = vld [vmem:[#allocation31 + $0x190] sm:$0xff]
    %v2933 = vld [vmem:[#allocation31 + $0x198] sm:$0xff]
    %v2934 = vld [vmem:[#allocation31 + $0x1a0] sm:$0xff]
    %v2935 = vld [vmem:[#allocation31 + $0x1a8] sm:$0xff]
    %v2936 = vld [vmem:[#allocation31 + $0x1b0] sm:$0xff]
    %v2937 = vld [vmem:[#allocation31 + $0x1b8] sm:$0xff]
    %v2938 = vld [vmem:[#allocation31 + $0x1c0] sm:$0xff]
    %v2939 = vld [vmem:[#allocation31 + $0x1c8] sm:$0xff]
    %v2940 = vld [vmem:[#allocation31 + $0x1d0] sm:$0xff]
    %v2941 = vld [vmem:[#allocation31 + $0x1d8] sm:$0xff]
    %v2942 = vld [vmem:[#allocation31 + $0x1e0] sm:$0xff]
    %v2943 = vld [vmem:[#allocation31 + $0x1e8] sm:$0xff]
    %v2944 = vld [vmem:[#allocation31 + $0x1f0] sm:$0xff]
    %v2945 = vld [vmem:[#allocation31 + $0x1f8] sm:$0xff]
    %v2946 = vld [vmem:[#allocation31 + $0x200] sm:$0xff]
    %v2947 = vld [vmem:[#allocation31 + $0x208] sm:$0xff]
    %v2948 = vld [vmem:[#allocation31 + $0x210] sm:$0xff]
    %v2949 = vld [vmem:[#allocation31 + $0x218] sm:$0xff]
    %v2950 = vld [vmem:[#allocation31 + $0x220] sm:$0xff]
    %v2951 = vld [vmem:[#allocation31 + $0x228] sm:$0xff]
    %v2952 = vld [vmem:[#allocation31 + $0x230] sm:$0xff]
    %v2953 = vld [vmem:[#allocation31 + $0x238] sm:$0xff]
    %v2954 = vld [vmem:[#allocation31 + $0x240] sm:$0xff]
    %v2955 = vld [vmem:[#allocation31 + $0x248] sm:$0xff]
    %v2956 = vld [vmem:[#allocation31 + $0x250] sm:$0xff]
    %v2957 = vld [vmem:[#allocation31 + $0x258] sm:$0xff]
    %v2958 = vld [vmem:[#allocation31 + $0x260] sm:$0xff]
    %v2959 = vld [vmem:[#allocation31 + $0x268] sm:$0xff]
    %v2960 = vld [vmem:[#allocation31 + $0x270] sm:$0xff]
    %v2961 = vld [vmem:[#allocation31 + $0x278] sm:$0xff]
    %v2962 = vld [vmem:[#allocation31 + $0x280] sm:$0xff]
    %v2963 = vld [vmem:[#allocation31 + $0x288] sm:$0xff]
    %v2964 = vld [vmem:[#allocation31 + $0x290] sm:$0xff]
    %v2965 = vld [vmem:[#allocation31 + $0x298] sm:$0xff]
    %v2966 = vld [vmem:[#allocation31 + $0x2a0] sm:$0xff]
    %v2967 = vld [vmem:[#allocation31 + $0x2a8] sm:$0xff]
    %v2968 = vld [vmem:[#allocation31 + $0x2b0] sm:$0xff]
    %v2969 = vld [vmem:[#allocation31 + $0x2b8] sm:$0xff]
    %v2970 = vld [vmem:[#allocation31 + $0x2c0] sm:$0xff]
    %v2971 = vld [vmem:[#allocation31 + $0x2c8] sm:$0xff]
    %v2972 = vld [vmem:[#allocation31 + $0x2d0] sm:$0xff]
    %v2973 = vld [vmem:[#allocation31 + $0x2d8] sm:$0xff]
    %v2974 = vld [vmem:[#allocation31 + $0x2e0] sm:$0xff]
    %v2975 = vld [vmem:[#allocation31 + $0x2e8] sm:$0xff]
    %v2976 = vld [vmem:[#allocation31 + $0x2f0] sm:$0xff]
    %v2977 = vld [vmem:[#allocation31 + $0x2f8] sm:$0xff]
    %v2978 = vld [vmem:[#allocation31 + $0x300] sm:$0xff]
    %v2979 = vld [vmem:[#allocation31 + $0x308] sm:$0xff]
    %v2980 = vld [vmem:[#allocation31 + $0x310] sm:$0xff]
    %v2981 = vld [vmem:[#allocation31 + $0x318] sm:$0xff]
    %v2982 = vld [vmem:[#allocation31 + $0x320] sm:$0xff]
    %v2983 = vld [vmem:[#allocation31 + $0x328] sm:$0xff]
    %v2984 = vld [vmem:[#allocation31 + $0x330] sm:$0xff]
    %v2985 = vld [vmem:[#allocation31 + $0x338] sm:$0xff]
    %v2986 = vld [vmem:[#allocation31 + $0x340] sm:$0xff]
    %v2987 = vld [vmem:[#allocation31 + $0x348] sm:$0xff]
    %v2988 = vld [vmem:[#allocation31 + $0x350] sm:$0xff]
    %v2989 = vld [vmem:[#allocation31 + $0x358] sm:$0xff]
    %v2990 = vld [vmem:[#allocation31 + $0x360] sm:$0xff]
    %v2991 = vld [vmem:[#allocation31 + $0x368] sm:$0xff]
    %v2992 = vld [vmem:[#allocation31 + $0x370] sm:$0xff]
    %v2993 = vld [vmem:[#allocation31 + $0x378] sm:$0xff]
    %v2994 = vld [vmem:[#allocation31 + $0x380] sm:$0xff]
    %v2995 = vld [vmem:[#allocation31 + $0x388] sm:$0xff]
    %v2996 = vld [vmem:[#allocation31 + $0x390] sm:$0xff]
    %v2997 = vld [vmem:[#allocation31 + $0x398] sm:$0xff]
    %v2998 = vld [vmem:[#allocation31 + $0x3a0] sm:$0xff]
    %v2999 = vld [vmem:[#allocation31 + $0x3a8] sm:$0xff]
    %v3000 = vld [vmem:[#allocation31 + $0x3b0] sm:$0xff]
    %v3001 = vld [vmem:[#allocation31 + $0x3b8] sm:$0xff]
    %v3002 = vld [vmem:[#allocation31 + $0x3c0] sm:$0xff]
    %v3003 = vld [vmem:[#allocation31 + $0x3c8] sm:$0xff]
    %v3004 = vld [vmem:[#allocation31 + $0x3d0] sm:$0xff]
    %v3005 = vld [vmem:[#allocation31 + $0x3d8] sm:$0xff]
    %v3006 = vld [vmem:[#allocation31 + $0x3e0] sm:$0xff]
    %v3007 = vld [vmem:[#allocation31 + $0x3e8] sm:$0xff]
    %v3008 = vld [vmem:[#allocation31 + $0x3f0] sm:$0xff]
    %v3009 = vld [vmem:[#allocation31 + $0x3f8] sm:$0xff]
    %v3010 = vld [vmem:[#allocation31 + $0x400] sm:$0xff]
    %v3011 = vld [vmem:[#allocation31 + $0x408] sm:$0xff]
    %v3012 = vld [vmem:[#allocation31 + $0x410] sm:$0xff]
    %v3013 = vld [vmem:[#allocation31 + $0x418] sm:$0xff]
    %v3014 = vld [vmem:[#allocation31 + $0x420] sm:$0xff]
    %v3015 = vld [vmem:[#allocation31 + $0x428] sm:$0xff]
    %v3016 = vld [vmem:[#allocation31 + $0x430] sm:$0xff]
    %v3017 = vld [vmem:[#allocation31 + $0x438] sm:$0xff]
    %v3018 = vld [vmem:[#allocation31 + $0x440] sm:$0xff]
    %v3019 = vld [vmem:[#allocation31 + $0x448] sm:$0xff]
    %v3020 = vld [vmem:[#allocation31 + $0x450] sm:$0xff]
    %v3021 = vld [vmem:[#allocation31 + $0x458] sm:$0xff]
    %v3022 = vld [vmem:[#allocation31 + $0x460] sm:$0xff]
    %v3023 = vld [vmem:[#allocation31 + $0x468] sm:$0xff]
    %v3024 = vld [vmem:[#allocation31 + $0x470] sm:$0xff]
    %v3025 = vld [vmem:[#allocation31 + $0x478] sm:$0xff]
    %v3026 = vld [vmem:[#allocation31 + $0x480] sm:$0xff]
    %v3027 = vld [vmem:[#allocation31 + $0x488] sm:$0xff]
    %v3028 = vld [vmem:[#allocation31 + $0x490] sm:$0xff]
    %v3029 = vld [vmem:[#allocation31 + $0x498] sm:$0xff]
    %v3030 = vld [vmem:[#allocation31 + $0x4a0] sm:$0xff]
    %v3031 = vld [vmem:[#allocation31 + $0x4a8] sm:$0xff]
    %v3032 = vld [vmem:[#allocation31 + $0x4b0] sm:$0xff]
    %v3033 = vld [vmem:[#allocation31 + $0x4b8] sm:$0xff]
    %v3034 = vld [vmem:[#allocation31 + $0x4c0] sm:$0xff]
    %v3035 = vld [vmem:[#allocation31 + $0x4c8] sm:$0xff]
    %v3036 = vld [vmem:[#allocation31 + $0x4d0] sm:$0xff]
    %v3037 = vld [vmem:[#allocation31 + $0x4d8] sm:$0xff]
    %v3038 = vld [vmem:[#allocation31 + $0x4e0] sm:$0xff]
    %v3039 = vld [vmem:[#allocation31 + $0x4e8] sm:$0xff]
    %v3040 = vld [vmem:[#allocation31 + $0x4f0] sm:$0xff]
    %v3041 = vld [vmem:[#allocation31 + $0x4f8] sm:$0xff]
    %v3042 = vld [vmem:[#allocation31 + $0x500] sm:$0xff]
    %v3043 = vld [vmem:[#allocation31 + $0x508] sm:$0xff]
    %v3044 = vld [vmem:[#allocation31 + $0x510] sm:$0xff]
    %v3045 = vld [vmem:[#allocation31 + $0x518] sm:$0xff]
    %v3046 = vld [vmem:[#allocation31 + $0x520] sm:$0xff]
    %v3047 = vld [vmem:[#allocation31 + $0x528] sm:$0xff]
    %v3048 = vld [vmem:[#allocation31 + $0x530] sm:$0xff]
    %v3049 = vld [vmem:[#allocation31 + $0x538] sm:$0xff]
    %v3050 = vld [vmem:[#allocation31 + $0x540] sm:$0xff]
    %v3051 = vld [vmem:[#allocation31 + $0x548] sm:$0xff]
    %v3052 = vld [vmem:[#allocation31 + $0x550] sm:$0xff]
    %v3053 = vld [vmem:[#allocation31 + $0x558] sm:$0xff]
    %v3054 = vld [vmem:[#allocation31 + $0x560] sm:$0xff]
    %v3055 = vld [vmem:[#allocation31 + $0x568] sm:$0xff]
    %v3056 = vld [vmem:[#allocation31 + $0x570] sm:$0xff]
    %v3057 = vld [vmem:[#allocation31 + $0x578] sm:$0xff]
    %v3058 = vld [vmem:[#allocation31 + $0x580] sm:$0xff]
    %v3059 = vld [vmem:[#allocation31 + $0x588] sm:$0xff]
    %v3060 = vld [vmem:[#allocation31 + $0x590] sm:$0xff]
    %v3061 = vld [vmem:[#allocation31 + $0x598] sm:$0xff]
    %v3062 = vld [vmem:[#allocation31 + $0x5a0] sm:$0xff]
    %v3063 = vld [vmem:[#allocation31 + $0x5a8] sm:$0xff]
    %v3064 = vld [vmem:[#allocation31 + $0x5b0] sm:$0xff]
    %v3065 = vld [vmem:[#allocation31 + $0x5b8] sm:$0xff]
    %v3066 = vld [vmem:[#allocation31 + $0x5c0] sm:$0xff]
    %v3067 = vld [vmem:[#allocation31 + $0x5c8] sm:$0xff]
    %v3068 = vld [vmem:[#allocation31 + $0x5d0] sm:$0xff]
    %v3069 = vld [vmem:[#allocation31 + $0x5d8] sm:$0xff]
    %v3070 = vld [vmem:[#allocation31 + $0x5e0] sm:$0xff]
    %v3071 = vld [vmem:[#allocation31 + $0x5e8] sm:$0xff]
    %v3072 = vld [vmem:[#allocation31 + $0x5f0] sm:$0xff]
    %v3073 = vld [vmem:[#allocation31 + $0x5f8] sm:$0xff]
    %v3074 = vld [vmem:[#allocation38] sm:$0xf]
    %v3076 = vlaneseq
    %v3077 = vshrl.u32 %v3076, 7
    %v3078 = vsub.s32 0, %v3077
    %v3079 = vrot.slane %v3074, %v3078
    %v3080 = vlaneseq
    %v3081 = vshrl.u32 %v3080, 7
    %v3082 = vsub.s32 1, %v3081
    %v3083 = vrot.slane %v3074, %v3082
    %v3084 = vlaneseq
    %v3085 = vshrl.u32 %v3084, 7
    %v3086 = vsub.s32 2, %v3085
    %v3087 = vrot.slane %v3074, %v3086
    %v3088 = vlaneseq
    %v3089 = vshrl.u32 %v3088, 7
    %v3090 = vsub.s32 3, %v3089
    %v3091 = vrot.slane %v3074, %v3090
    %v3288 = vunpack.c.l.b16 %v2882
    %v3289 = vunpack.c.h.b16 %v2882
    %v3290 = vunpack.c.l.b16 %v2883
    %v3291 = vunpack.c.h.b16 %v2883
    %v3292 = vunpack.c.l.b16 %v2884
    %v3293 = vunpack.c.h.b16 %v2884
    %v3294 = vunpack.c.l.b16 %v2885
    %v3295 = vunpack.c.h.b16 %v2885
    %v3296 = vunpack.c.l.b16 %v2886
    %v3297 = vunpack.c.h.b16 %v2886
    %v3298 = vunpack.c.l.b16 %v2887
    %v3299 = vunpack.c.h.b16 %v2887
    %v3300 = vunpack.c.l.b16 %v2888
    %v3301 = vunpack.c.h.b16 %v2888
    %v3302 = vunpack.c.l.b16 %v2889
    %v3303 = vunpack.c.h.b16 %v2889
    %v3304 = vunpack.c.l.b16 %v2890
    %v3305 = vunpack.c.h.b16 %v2890
    %v3306 = vunpack.c.l.b16 %v2891
    %v3307 = vunpack.c.h.b16 %v2891
    %v3308 = vunpack.c.l.b16 %v2892
    %v3309 = vunpack.c.h.b16 %v2892
    %v3310 = vunpack.c.l.b16 %v2893
    %v3311 = vunpack.c.h.b16 %v2893
    %v3312 = vunpack.c.l.b16 %v2894
    %v3313 = vunpack.c.h.b16 %v2894
    %v3314 = vunpack.c.l.b16 %v2895
    %v3315 = vunpack.c.h.b16 %v2895
    %v3316 = vunpack.c.l.b16 %v2896
    %v3317 = vunpack.c.h.b16 %v2896
    %v3318 = vunpack.c.l.b16 %v2897
    %v3319 = vunpack.c.h.b16 %v2897
    %v3320 = vunpack.c.l.b16 %v2898
    %v3321 = vunpack.c.h.b16 %v2898
    %v3322 = vunpack.c.l.b16 %v2899
    %v3323 = vunpack.c.h.b16 %v2899
    %v3324 = vunpack.c.l.b16 %v2900
    %v3325 = vunpack.c.h.b16 %v2900
    %v3326 = vunpack.c.l.b16 %v2901
    %v3327 = vunpack.c.h.b16 %v2901
    %v3328 = vunpack.c.l.b16 %v2902
    %v3329 = vunpack.c.h.b16 %v2902
    %v3330 = vunpack.c.l.b16 %v2903
    %v3331 = vunpack.c.h.b16 %v2903
    %v3332 = vunpack.c.l.b16 %v2904
    %v3333 = vunpack.c.h.b16 %v2904
    %v3334 = vunpack.c.l.b16 %v2905
    %v3335 = vunpack.c.h.b16 %v2905
    %v3336 = vunpack.c.l.b16 %v2906
    %v3337 = vunpack.c.h.b16 %v2906
    %v3338 = vunpack.c.l.b16 %v2907
    %v3339 = vunpack.c.h.b16 %v2907
    %v3340 = vunpack.c.l.b16 %v2908
    %v3341 = vunpack.c.h.b16 %v2908
    %v3342 = vunpack.c.l.b16 %v2909
    %v3343 = vunpack.c.h.b16 %v2909
    %v3344 = vunpack.c.l.b16 %v2910
    %v3345 = vunpack.c.h.b16 %v2910
    %v3346 = vunpack.c.l.b16 %v2911
    %v3347 = vunpack.c.h.b16 %v2911
    %v3348 = vunpack.c.l.b16 %v2912
    %v3349 = vunpack.c.h.b16 %v2912
    %v3350 = vunpack.c.l.b16 %v2913
    %v3351 = vunpack.c.h.b16 %v2913
    %v3352 = vunpack.c.l.b16 %v2914
    %v3353 = vunpack.c.h.b16 %v2914
    %v3354 = vunpack.c.l.b16 %v2915
    %v3355 = vunpack.c.h.b16 %v2915
    %v3356 = vunpack.c.l.b16 %v2916
    %v3357 = vunpack.c.h.b16 %v2916
    %v3358 = vunpack.c.l.b16 %v2917
    %v3359 = vunpack.c.h.b16 %v2917
    %v3360 = vunpack.c.l.b16 %v2918
    %v3361 = vunpack.c.h.b16 %v2918
    %v3362 = vunpack.c.l.b16 %v2919
    %v3363 = vunpack.c.h.b16 %v2919
    %v3364 = vunpack.c.l.b16 %v2920
    %v3365 = vunpack.c.h.b16 %v2920
    %v3366 = vunpack.c.l.b16 %v2921
    %v3367 = vunpack.c.h.b16 %v2921
    %v3368 = vunpack.c.l.b16 %v2922
    %v3369 = vunpack.c.h.b16 %v2922
    %v3370 = vunpack.c.l.b16 %v2923
    %v3371 = vunpack.c.h.b16 %v2923
    %v3372 = vunpack.c.l.b16 %v2924
    %v3373 = vunpack.c.h.b16 %v2924
    %v3374 = vunpack.c.l.b16 %v2925
    %v3375 = vunpack.c.h.b16 %v2925
    %v3376 = vunpack.c.l.b16 %v2926
    %v3377 = vunpack.c.h.b16 %v2926
    %v3378 = vunpack.c.l.b16 %v2927
    %v3379 = vunpack.c.h.b16 %v2927
    %v3380 = vunpack.c.l.b16 %v2928
    %v3381 = vunpack.c.h.b16 %v2928
    %v3382 = vunpack.c.l.b16 %v2929
    %v3383 = vunpack.c.h.b16 %v2929
    %v3384 = vunpack.c.l.b16 %v2930
    %v3385 = vunpack.c.h.b16 %v2930
    %v3386 = vunpack.c.l.b16 %v2931
    %v3387 = vunpack.c.h.b16 %v2931
    %v3388 = vunpack.c.l.b16 %v2932
    %v3389 = vunpack.c.h.b16 %v2932
    %v3390 = vunpack.c.l.b16 %v2933
    %v3391 = vunpack.c.h.b16 %v2933
    %v3392 = vunpack.c.l.b16 %v2934
    %v3393 = vunpack.c.h.b16 %v2934
    %v3394 = vunpack.c.l.b16 %v2935
    %v3395 = vunpack.c.h.b16 %v2935
    %v3396 = vunpack.c.l.b16 %v2936
    %v3397 = vunpack.c.h.b16 %v2936
    %v3398 = vunpack.c.l.b16 %v2937
    %v3399 = vunpack.c.h.b16 %v2937
    %v3400 = vunpack.c.l.b16 %v2938
    %v3401 = vunpack.c.h.b16 %v2938
    %v3402 = vunpack.c.l.b16 %v2939
    %v3403 = vunpack.c.h.b16 %v2939
    %v3404 = vunpack.c.l.b16 %v2940
    %v3405 = vunpack.c.h.b16 %v2940
    %v3406 = vunpack.c.l.b16 %v2941
    %v3407 = vunpack.c.h.b16 %v2941
    %v3408 = vunpack.c.l.b16 %v2942
    %v3409 = vunpack.c.h.b16 %v2942
    %v3410 = vunpack.c.l.b16 %v2943
    %v3411 = vunpack.c.h.b16 %v2943
    %v3412 = vunpack.c.l.b16 %v2944
    %v3413 = vunpack.c.h.b16 %v2944
    %v3414 = vunpack.c.l.b16 %v2945
    %v3415 = vunpack.c.h.b16 %v2945
    %v3416 = vunpack.c.l.b16 %v2946
    %v3417 = vunpack.c.h.b16 %v2946
    %v3418 = vunpack.c.l.b16 %v2947
    %v3419 = vunpack.c.h.b16 %v2947
    %v3420 = vunpack.c.l.b16 %v2948
    %v3421 = vunpack.c.h.b16 %v2948
    %v3422 = vunpack.c.l.b16 %v2949
    %v3423 = vunpack.c.h.b16 %v2949
    %v3424 = vunpack.c.l.b16 %v2950
    %v3425 = vunpack.c.h.b16 %v2950
    %v3426 = vunpack.c.l.b16 %v2951
    %v3427 = vunpack.c.h.b16 %v2951
    %v3428 = vunpack.c.l.b16 %v2952
    %v3429 = vunpack.c.h.b16 %v2952
    %v3430 = vunpack.c.l.b16 %v2953
    %v3431 = vunpack.c.h.b16 %v2953
    %v3432 = vunpack.c.l.b16 %v2954
    %v3433 = vunpack.c.h.b16 %v2954
    %v3434 = vunpack.c.l.b16 %v2955
    %v3435 = vunpack.c.h.b16 %v2955
    %v3436 = vunpack.c.l.b16 %v2956
    %v3437 = vunpack.c.h.b16 %v2956
    %v3438 = vunpack.c.l.b16 %v2957
    %v3439 = vunpack.c.h.b16 %v2957
    %v3440 = vunpack.c.l.b16 %v2958
    %v3441 = vunpack.c.h.b16 %v2958
    %v3442 = vunpack.c.l.b16 %v2959
    %v3443 = vunpack.c.h.b16 %v2959
    %v3444 = vunpack.c.l.b16 %v2960
    %v3445 = vunpack.c.h.b16 %v2960
    %v3446 = vunpack.c.l.b16 %v2961
    %v3447 = vunpack.c.h.b16 %v2961
    %v3448 = vunpack.c.l.b16 %v2962
    %v3449 = vunpack.c.h.b16 %v2962
    %v3450 = vunpack.c.l.b16 %v2963
    %v3451 = vunpack.c.h.b16 %v2963
    %v3452 = vunpack.c.l.b16 %v2964
    %v3453 = vunpack.c.h.b16 %v2964
    %v3454 = vunpack.c.l.b16 %v2965
    %v3455 = vunpack.c.h.b16 %v2965
    %v3456 = vunpack.c.l.b16 %v2966
    %v3457 = vunpack.c.h.b16 %v2966
    %v3458 = vunpack.c.l.b16 %v2967
    %v3459 = vunpack.c.h.b16 %v2967
    %v3460 = vunpack.c.l.b16 %v2968
    %v3461 = vunpack.c.h.b16 %v2968
    %v3462 = vunpack.c.l.b16 %v2969
    %v3463 = vunpack.c.h.b16 %v2969
    %v3464 = vunpack.c.l.b16 %v2970
    %v3465 = vunpack.c.h.b16 %v2970
    %v3466 = vunpack.c.l.b16 %v2971
    %v3467 = vunpack.c.h.b16 %v2971
    %v3468 = vunpack.c.l.b16 %v2972
    %v3469 = vunpack.c.h.b16 %v2972
    %v3470 = vunpack.c.l.b16 %v2973
    %v3471 = vunpack.c.h.b16 %v2973
    %v3472 = vunpack.c.l.b16 %v2974
    %v3473 = vunpack.c.h.b16 %v2974
    %v3474 = vunpack.c.l.b16 %v2975
    %v3475 = vunpack.c.h.b16 %v2975
    %v3476 = vunpack.c.l.b16 %v2976
    %v3477 = vunpack.c.h.b16 %v2976
    %v3478 = vunpack.c.l.b16 %v2977
    %v3479 = vunpack.c.h.b16 %v2977
    %v3480 = vunpack.c.l.b16 %v2978
    %v3481 = vunpack.c.h.b16 %v2978
    %v3482 = vunpack.c.l.b16 %v2979
    %v3483 = vunpack.c.h.b16 %v2979
    %v3484 = vunpack.c.l.b16 %v2980
    %v3485 = vunpack.c.h.b16 %v2980
    %v3486 = vunpack.c.l.b16 %v2981
    %v3487 = vunpack.c.h.b16 %v2981
    %v3488 = vunpack.c.l.b16 %v2982
    %v3489 = vunpack.c.h.b16 %v2982
    %v3490 = vunpack.c.l.b16 %v2983
    %v3491 = vunpack.c.h.b16 %v2983
    %v3492 = vunpack.c.l.b16 %v2984
    %v3493 = vunpack.c.h.b16 %v2984
    %v3494 = vunpack.c.l.b16 %v2985
    %v3495 = vunpack.c.h.b16 %v2985
    %v3496 = vunpack.c.l.b16 %v2986
    %v3497 = vunpack.c.h.b16 %v2986
    %v3498 = vunpack.c.l.b16 %v2987
    %v3499 = vunpack.c.h.b16 %v2987
    %v3500 = vunpack.c.l.b16 %v2988
    %v3501 = vunpack.c.h.b16 %v2988
    %v3502 = vunpack.c.l.b16 %v2989
    %v3503 = vunpack.c.h.b16 %v2989
    %v3504 = vunpack.c.l.b16 %v2990
    %v3505 = vunpack.c.h.b16 %v2990
    %v3506 = vunpack.c.l.b16 %v2991
    %v3507 = vunpack.c.h.b16 %v2991
    %v3508 = vunpack.c.l.b16 %v2992
    %v3509 = vunpack.c.h.b16 %v2992
    %v3510 = vunpack.c.l.b16 %v2993
    %v3511 = vunpack.c.h.b16 %v2993
    %v3512 = vunpack.c.l.b16 %v2994
    %v3513 = vunpack.c.h.b16 %v2994
    %v3514 = vunpack.c.l.b16 %v2995
    %v3515 = vunpack.c.h.b16 %v2995
    %v3516 = vunpack.c.l.b16 %v2996
    %v3517 = vunpack.c.h.b16 %v2996
    %v3518 = vunpack.c.l.b16 %v2997
    %v3519 = vunpack.c.h.b16 %v2997
    %v3520 = vunpack.c.l.b16 %v2998
    %v3521 = vunpack.c.h.b16 %v2998
    %v3522 = vunpack.c.l.b16 %v2999
    %v3523 = vunpack.c.h.b16 %v2999
    %v3524 = vunpack.c.l.b16 %v3000
    %v3525 = vunpack.c.h.b16 %v3000
    %v3526 = vunpack.c.l.b16 %v3001
    %v3527 = vunpack.c.h.b16 %v3001
    %v3528 = vunpack.c.l.b16 %v3002
    %v3529 = vunpack.c.h.b16 %v3002
    %v3530 = vunpack.c.l.b16 %v3003
    %v3531 = vunpack.c.h.b16 %v3003
    %v3532 = vunpack.c.l.b16 %v3004
    %v3533 = vunpack.c.h.b16 %v3004
    %v3534 = vunpack.c.l.b16 %v3005
    %v3535 = vunpack.c.h.b16 %v3005
    %v3536 = vunpack.c.l.b16 %v3006
    %v3537 = vunpack.c.h.b16 %v3006
    %v3538 = vunpack.c.l.b16 %v3007
    %v3539 = vunpack.c.h.b16 %v3007
    %v3540 = vunpack.c.l.b16 %v3008
    %v3541 = vunpack.c.h.b16 %v3008
    %v3542 = vunpack.c.l.b16 %v3009
    %v3543 = vunpack.c.h.b16 %v3009
    %v3544 = vunpack.c.l.b16 %v3010
    %v3545 = vunpack.c.h.b16 %v3010
    %v3546 = vunpack.c.l.b16 %v3011
    %v3547 = vunpack.c.h.b16 %v3011
    %v3548 = vunpack.c.l.b16 %v3012
    %v3549 = vunpack.c.h.b16 %v3012
    %v3550 = vunpack.c.l.b16 %v3013
    %v3551 = vunpack.c.h.b16 %v3013
    %v3552 = vunpack.c.l.b16 %v3014
    %v3553 = vunpack.c.h.b16 %v3014
    %v3554 = vunpack.c.l.b16 %v3015
    %v3555 = vunpack.c.h.b16 %v3015
    %v3556 = vunpack.c.l.b16 %v3016
    %v3557 = vunpack.c.h.b16 %v3016
    %v3558 = vunpack.c.l.b16 %v3017
    %v3559 = vunpack.c.h.b16 %v3017
    %v3560 = vunpack.c.l.b16 %v3018
    %v3561 = vunpack.c.h.b16 %v3018
    %v3562 = vunpack.c.l.b16 %v3019
    %v3563 = vunpack.c.h.b16 %v3019
    %v3564 = vunpack.c.l.b16 %v3020
    %v3565 = vunpack.c.h.b16 %v3020
    %v3566 = vunpack.c.l.b16 %v3021
    %v3567 = vunpack.c.h.b16 %v3021
    %v3568 = vunpack.c.l.b16 %v3022
    %v3569 = vunpack.c.h.b16 %v3022
    %v3570 = vunpack.c.l.b16 %v3023
    %v3571 = vunpack.c.h.b16 %v3023
    %v3572 = vunpack.c.l.b16 %v3024
    %v3573 = vunpack.c.h.b16 %v3024
    %v3574 = vunpack.c.l.b16 %v3025
    %v3575 = vunpack.c.h.b16 %v3025
    %v3576 = vunpack.c.l.b16 %v3026
    %v3577 = vunpack.c.h.b16 %v3026
    %v3578 = vunpack.c.l.b16 %v3027
    %v3579 = vunpack.c.h.b16 %v3027
    %v3580 = vunpack.c.l.b16 %v3028
    %v3581 = vunpack.c.h.b16 %v3028
    %v3582 = vunpack.c.l.b16 %v3029
    %v3583 = vunpack.c.h.b16 %v3029
    %v3584 = vunpack.c.l.b16 %v3030
    %v3585 = vunpack.c.h.b16 %v3030
    %v3586 = vunpack.c.l.b16 %v3031
    %v3587 = vunpack.c.h.b16 %v3031
    %v3588 = vunpack.c.l.b16 %v3032
    %v3589 = vunpack.c.h.b16 %v3032
    %v3590 = vunpack.c.l.b16 %v3033
    %v3591 = vunpack.c.h.b16 %v3033
    %v3592 = vunpack.c.l.b16 %v3034
    %v3593 = vunpack.c.h.b16 %v3034
    %v3594 = vunpack.c.l.b16 %v3035
    %v3595 = vunpack.c.h.b16 %v3035
    %v3596 = vunpack.c.l.b16 %v3036
    %v3597 = vunpack.c.h.b16 %v3036
    %v3598 = vunpack.c.l.b16 %v3037
    %v3599 = vunpack.c.h.b16 %v3037
    %v3600 = vunpack.c.l.b16 %v3038
    %v3601 = vunpack.c.h.b16 %v3038
    %v3602 = vunpack.c.l.b16 %v3039
    %v3603 = vunpack.c.h.b16 %v3039
    %v3604 = vunpack.c.l.b16 %v3040
    %v3605 = vunpack.c.h.b16 %v3040
    %v3606 = vunpack.c.l.b16 %v3041
    %v3607 = vunpack.c.h.b16 %v3041
    %v3608 = vunpack.c.l.b16 %v3042
    %v3609 = vunpack.c.h.b16 %v3042
    %v3610 = vunpack.c.l.b16 %v3043
    %v3611 = vunpack.c.h.b16 %v3043
    %v3612 = vunpack.c.l.b16 %v3044
    %v3613 = vunpack.c.h.b16 %v3044
    %v3614 = vunpack.c.l.b16 %v3045
    %v3615 = vunpack.c.h.b16 %v3045
    %v3616 = vunpack.c.l.b16 %v3046
    %v3617 = vunpack.c.h.b16 %v3046
    %v3618 = vunpack.c.l.b16 %v3047
    %v3619 = vunpack.c.h.b16 %v3047
    %v3620 = vunpack.c.l.b16 %v3048
    %v3621 = vunpack.c.h.b16 %v3048
    %v3622 = vunpack.c.l.b16 %v3049
    %v3623 = vunpack.c.h.b16 %v3049
    %v3624 = vunpack.c.l.b16 %v3050
    %v3625 = vunpack.c.h.b16 %v3050
    %v3626 = vunpack.c.l.b16 %v3051
    %v3627 = vunpack.c.h.b16 %v3051
    %v3628 = vunpack.c.l.b16 %v3052
    %v3629 = vunpack.c.h.b16 %v3052
    %v3630 = vunpack.c.l.b16 %v3053
    %v3631 = vunpack.c.h.b16 %v3053
    %v3632 = vunpack.c.l.b16 %v3054
    %v3633 = vunpack.c.h.b16 %v3054
    %v3634 = vunpack.c.l.b16 %v3055
    %v3635 = vunpack.c.h.b16 %v3055
    %v3636 = vunpack.c.l.b16 %v3056
    %v3637 = vunpack.c.h.b16 %v3056
    %v3638 = vunpack.c.l.b16 %v3057
    %v3639 = vunpack.c.h.b16 %v3057
    %v3640 = vunpack.c.l.b16 %v3058
    %v3641 = vunpack.c.h.b16 %v3058
    %v3642 = vunpack.c.l.b16 %v3059
    %v3643 = vunpack.c.h.b16 %v3059
    %v3644 = vunpack.c.l.b16 %v3060
    %v3645 = vunpack.c.h.b16 %v3060
    %v3646 = vunpack.c.l.b16 %v3061
    %v3647 = vunpack.c.h.b16 %v3061
    %v3648 = vunpack.c.l.b16 %v3062
    %v3649 = vunpack.c.h.b16 %v3062
    %v3650 = vunpack.c.l.b16 %v3063
    %v3651 = vunpack.c.h.b16 %v3063
    %v3652 = vunpack.c.l.b16 %v3064
    %v3653 = vunpack.c.h.b16 %v3064
    %v3654 = vunpack.c.l.b16 %v3065
    %v3655 = vunpack.c.h.b16 %v3065
    %v3656 = vunpack.c.l.b16 %v3066
    %v3657 = vunpack.c.h.b16 %v3066
    %v3658 = vunpack.c.l.b16 %v3067
    %v3659 = vunpack.c.h.b16 %v3067
    %v3660 = vunpack.c.l.b16 %v3068
    %v3661 = vunpack.c.h.b16 %v3068
    %v3662 = vunpack.c.l.b16 %v3069
    %v3663 = vunpack.c.h.b16 %v3069
    %v3664 = vunpack.c.l.b16 %v3070
    %v3665 = vunpack.c.h.b16 %v3070
    %v3666 = vunpack.c.l.b16 %v3071
    %v3667 = vunpack.c.h.b16 %v3071
    %v3668 = vunpack.c.l.b16 %v3072
    %v3669 = vunpack.c.h.b16 %v3072
    %v3670 = vunpack.c.l.b16 %v3073
    %v3671 = vunpack.c.h.b16 %v3073
    %v3672 = vpack.c.b16 %v3292, %v3288
    %v3673 = vpack.c.b16 %v3293, %v3289
    %v3674 = vpack.c.b16 %v3294, %v3290
    %v3675 = vpack.c.b16 %v3295, %v3291
    %v3676 = vpack.c.b16 %v3300, %v3296
    %v3677 = vpack.c.b16 %v3301, %v3297
    %v3678 = vpack.c.b16 %v3302, %v3298
    %v3679 = vpack.c.b16 %v3303, %v3299
    %v3680 = vpack.c.b16 %v3308, %v3304
    %v3681 = vpack.c.b16 %v3309, %v3305
    %v3682 = vpack.c.b16 %v3310, %v3306
    %v3683 = vpack.c.b16 %v3311, %v3307
    %v3684 = vpack.c.b16 %v3316, %v3312
    %v3685 = vpack.c.b16 %v3317, %v3313
    %v3686 = vpack.c.b16 %v3318, %v3314
    %v3687 = vpack.c.b16 %v3319, %v3315
    %v3688 = vpack.c.b16 %v3324, %v3320
    %v3689 = vpack.c.b16 %v3325, %v3321
    %v3690 = vpack.c.b16 %v3326, %v3322
    %v3691 = vpack.c.b16 %v3327, %v3323
    %v3692 = vpack.c.b16 %v3332, %v3328
    %v3693 = vpack.c.b16 %v3333, %v3329
    %v3694 = vpack.c.b16 %v3334, %v3330
    %v3695 = vpack.c.b16 %v3335, %v3331
    %v3696 = vpack.c.b16 %v3340, %v3336
    %v3697 = vpack.c.b16 %v3341, %v3337
    %v3698 = vpack.c.b16 %v3342, %v3338
    %v3699 = vpack.c.b16 %v3343, %v3339
    %v3700 = vpack.c.b16 %v3348, %v3344
    %v3701 = vpack.c.b16 %v3349, %v3345
    %v3702 = vpack.c.b16 %v3350, %v3346
    %v3703 = vpack.c.b16 %v3351, %v3347
    %v3704 = vpack.c.b16 %v3356, %v3352
    %v3705 = vpack.c.b16 %v3357, %v3353
    %v3706 = vpack.c.b16 %v3358, %v3354
    %v3707 = vpack.c.b16 %v3359, %v3355
    %v3708 = vpack.c.b16 %v3364, %v3360
    %v3709 = vpack.c.b16 %v3365, %v3361
    %v3710 = vpack.c.b16 %v3366, %v3362
    %v3711 = vpack.c.b16 %v3367, %v3363
    %v3712 = vpack.c.b16 %v3372, %v3368
    %v3713 = vpack.c.b16 %v3373, %v3369
    %v3714 = vpack.c.b16 %v3374, %v3370
    %v3715 = vpack.c.b16 %v3375, %v3371
    %v3716 = vpack.c.b16 %v3380, %v3376
    %v3717 = vpack.c.b16 %v3381, %v3377
    %v3718 = vpack.c.b16 %v3382, %v3378
    %v3719 = vpack.c.b16 %v3383, %v3379
    %v3720 = vpack.c.b16 %v3388, %v3384
    %v3721 = vpack.c.b16 %v3389, %v3385
    %v3722 = vpack.c.b16 %v3390, %v3386
    %v3723 = vpack.c.b16 %v3391, %v3387
    %v3724 = vpack.c.b16 %v3396, %v3392
    %v3725 = vpack.c.b16 %v3397, %v3393
    %v3726 = vpack.c.b16 %v3398, %v3394
    %v3727 = vpack.c.b16 %v3399, %v3395
    %v3728 = vpack.c.b16 %v3404, %v3400
    %v3729 = vpack.c.b16 %v3405, %v3401
    %v3730 = vpack.c.b16 %v3406, %v3402
    %v3731 = vpack.c.b16 %v3407, %v3403
    %v3732 = vpack.c.b16 %v3412, %v3408
    %v3733 = vpack.c.b16 %v3413, %v3409
    %v3734 = vpack.c.b16 %v3414, %v3410
    %v3735 = vpack.c.b16 %v3415, %v3411
    %v3736 = vpack.c.b16 %v3420, %v3416
    %v3737 = vpack.c.b16 %v3421, %v3417
    %v3738 = vpack.c.b16 %v3422, %v3418
    %v3739 = vpack.c.b16 %v3423, %v3419
    %v3740 = vpack.c.b16 %v3428, %v3424
    %v3741 = vpack.c.b16 %v3429, %v3425
    %v3742 = vpack.c.b16 %v3430, %v3426
    %v3743 = vpack.c.b16 %v3431, %v3427
    %v3744 = vpack.c.b16 %v3436, %v3432
    %v3745 = vpack.c.b16 %v3437, %v3433
    %v3746 = vpack.c.b16 %v3438, %v3434
    %v3747 = vpack.c.b16 %v3439, %v3435
    %v3748 = vpack.c.b16 %v3444, %v3440
    %v3749 = vpack.c.b16 %v3445, %v3441
    %v3750 = vpack.c.b16 %v3446, %v3442
    %v3751 = vpack.c.b16 %v3447, %v3443
    %v3752 = vpack.c.b16 %v3452, %v3448
    %v3753 = vpack.c.b16 %v3453, %v3449
    %v3754 = vpack.c.b16 %v3454, %v3450
    %v3755 = vpack.c.b16 %v3455, %v3451
    %v3756 = vpack.c.b16 %v3460, %v3456
    %v3757 = vpack.c.b16 %v3461, %v3457
    %v3758 = vpack.c.b16 %v3462, %v3458
    %v3759 = vpack.c.b16 %v3463, %v3459
    %v3760 = vpack.c.b16 %v3468, %v3464
    %v3761 = vpack.c.b16 %v3469, %v3465
    %v3762 = vpack.c.b16 %v3470, %v3466
    %v3763 = vpack.c.b16 %v3471, %v3467
    %v3764 = vpack.c.b16 %v3476, %v3472
    %v3765 = vpack.c.b16 %v3477, %v3473
    %v3766 = vpack.c.b16 %v3478, %v3474
    %v3767 = vpack.c.b16 %v3479, %v3475
    %v3768 = vpack.c.b16 %v3484, %v3480
    %v3769 = vpack.c.b16 %v3485, %v3481
    %v3770 = vpack.c.b16 %v3486, %v3482
    %v3771 = vpack.c.b16 %v3487, %v3483
    %v3772 = vpack.c.b16 %v3492, %v3488
    %v3773 = vpack.c.b16 %v3493, %v3489
    %v3774 = vpack.c.b16 %v3494, %v3490
    %v3775 = vpack.c.b16 %v3495, %v3491
    %v3776 = vpack.c.b16 %v3500, %v3496
    %v3777 = vpack.c.b16 %v3501, %v3497
    %v3778 = vpack.c.b16 %v3502, %v3498
    %v3779 = vpack.c.b16 %v3503, %v3499
    %v3780 = vpack.c.b16 %v3508, %v3504
    %v3781 = vpack.c.b16 %v3509, %v3505
    %v3782 = vpack.c.b16 %v3510, %v3506
    %v3783 = vpack.c.b16 %v3511, %v3507
    %v3784 = vpack.c.b16 %v3516, %v3512
    %v3785 = vpack.c.b16 %v3517, %v3513
    %v3786 = vpack.c.b16 %v3518, %v3514
    %v3787 = vpack.c.b16 %v3519, %v3515
    %v3788 = vpack.c.b16 %v3524, %v3520
    %v3789 = vpack.c.b16 %v3525, %v3521
    %v3790 = vpack.c.b16 %v3526, %v3522
    %v3791 = vpack.c.b16 %v3527, %v3523
    %v3792 = vpack.c.b16 %v3532, %v3528
    %v3793 = vpack.c.b16 %v3533, %v3529
    %v3794 = vpack.c.b16 %v3534, %v3530
    %v3795 = vpack.c.b16 %v3535, %v3531
    %v3796 = vpack.c.b16 %v3540, %v3536
    %v3797 = vpack.c.b16 %v3541, %v3537
    %v3798 = vpack.c.b16 %v3542, %v3538
    %v3799 = vpack.c.b16 %v3543, %v3539
    %v3800 = vpack.c.b16 %v3548, %v3544
    %v3801 = vpack.c.b16 %v3549, %v3545
    %v3802 = vpack.c.b16 %v3550, %v3546
    %v3803 = vpack.c.b16 %v3551, %v3547
    %v3804 = vpack.c.b16 %v3556, %v3552
    %v3805 = vpack.c.b16 %v3557, %v3553
    %v3806 = vpack.c.b16 %v3558, %v3554
    %v3807 = vpack.c.b16 %v3559, %v3555
    %v3808 = vpack.c.b16 %v3564, %v3560
    %v3809 = vpack.c.b16 %v3565, %v3561
    %v3810 = vpack.c.b16 %v3566, %v3562
    %v3811 = vpack.c.b16 %v3567, %v3563
    %v3812 = vpack.c.b16 %v3572, %v3568
    %v3813 = vpack.c.b16 %v3573, %v3569
    %v3814 = vpack.c.b16 %v3574, %v3570
    %v3815 = vpack.c.b16 %v3575, %v3571
    %v3816 = vpack.c.b16 %v3580, %v3576
    %v3817 = vpack.c.b16 %v3581, %v3577
    %v3818 = vpack.c.b16 %v3582, %v3578
    %v3819 = vpack.c.b16 %v3583, %v3579
    %v3820 = vpack.c.b16 %v3588, %v3584
    %v3821 = vpack.c.b16 %v3589, %v3585
    %v3822 = vpack.c.b16 %v3590, %v3586
    %v3823 = vpack.c.b16 %v3591, %v3587
    %v3824 = vpack.c.b16 %v3596, %v3592
    %v3825 = vpack.c.b16 %v3597, %v3593
    %v3826 = vpack.c.b16 %v3598, %v3594
    %v3827 = vpack.c.b16 %v3599, %v3595
    %v3828 = vpack.c.b16 %v3604, %v3600
    %v3829 = vpack.c.b16 %v3605, %v3601
    %v3830 = vpack.c.b16 %v3606, %v3602
    %v3831 = vpack.c.b16 %v3607, %v3603
    %v3832 = vpack.c.b16 %v3612, %v3608
    %v3833 = vpack.c.b16 %v3613, %v3609
    %v3834 = vpack.c.b16 %v3614, %v3610
    %v3835 = vpack.c.b16 %v3615, %v3611
    %v3836 = vpack.c.b16 %v3620, %v3616
    %v3837 = vpack.c.b16 %v3621, %v3617
    %v3838 = vpack.c.b16 %v3622, %v3618
    %v3839 = vpack.c.b16 %v3623, %v3619
    %v3840 = vpack.c.b16 %v3628, %v3624
    %v3841 = vpack.c.b16 %v3629, %v3625
    %v3842 = vpack.c.b16 %v3630, %v3626
    %v3843 = vpack.c.b16 %v3631, %v3627
    %v3844 = vpack.c.b16 %v3636, %v3632
    %v3845 = vpack.c.b16 %v3637, %v3633
    %v3846 = vpack.c.b16 %v3638, %v3634
    %v3847 = vpack.c.b16 %v3639, %v3635
    %v3848 = vpack.c.b16 %v3644, %v3640
    %v3849 = vpack.c.b16 %v3645, %v3641
    %v3850 = vpack.c.b16 %v3646, %v3642
    %v3851 = vpack.c.b16 %v3647, %v3643
    %v3852 = vpack.c.b16 %v3652, %v3648
    %v3853 = vpack.c.b16 %v3653, %v3649
    %v3854 = vpack.c.b16 %v3654, %v3650
    %v3855 = vpack.c.b16 %v3655, %v3651
    %v3856 = vpack.c.b16 %v3660, %v3656
    %v3857 = vpack.c.b16 %v3661, %v3657
    %v3858 = vpack.c.b16 %v3662, %v3658
    %v3859 = vpack.c.b16 %v3663, %v3659
    %v3860 = vpack.c.b16 %v3668, %v3664
    %v3861 = vpack.c.b16 %v3669, %v3665
    %v3862 = vpack.c.b16 %v3670, %v3666
    %v3863 = vpack.c.b16 %v3671, %v3667
    %4056 = vmatprep.subr.bf16.mxu0 %v3673
    %4057 = vmatpush1.bf16.msra.mxu0 %v3672
    %4058 = vmatprep.subr.bf16.mxu0 %v3677
    %4059 = vmatpush1.bf16.msra.mxu0 %v3676
    %4060 = vmatprep.subr.bf16.mxu0 %v3681
    %4061 = vmatpush1.bf16.msra.mxu0 %v3680
    %4062 = vmatprep.subr.bf16.mxu0 %v3685
    %4063 = vmatpush1.bf16.msra.mxu0 %v3684
    %4064 = vmatprep.subr.bf16.mxu0 %v3689
    %4065 = vmatpush1.bf16.msra.mxu0 %v3688
    %4066 = vmatprep.subr.bf16.mxu0 %v3693
    %4067 = vmatpush1.bf16.msra.mxu0 %v3692
    %4068 = vmatprep.subr.bf16.mxu0 %v3697
    %4069 = vmatpush1.bf16.msra.mxu0 %v3696
    %4070 = vmatprep.subr.bf16.mxu0 %v3701
    %4071 = vmatpush1.bf16.msra.mxu0 %v3700
    %4072 = vmatprep.subr.bf16.mxu0 %v3705
    %4073 = vmatpush1.bf16.msra.mxu0 %v3704
    %4074 = vmatprep.subr.bf16.mxu0 %v3709
    %4075 = vmatpush1.bf16.msra.mxu0 %v3708
    %4076 = vmatprep.subr.bf16.mxu0 %v3713
    %4077 = vmatpush1.bf16.msra.mxu0 %v3712
    %4078 = vmatprep.subr.bf16.mxu0 %v3717
    %4079 = vmatpush1.bf16.msra.mxu0 %v3716
    %4080 = vmatprep.subr.bf16.mxu0 %v3721
    %4081 = vmatpush1.bf16.msra.mxu0 %v3720
    %4082 = vmatprep.subr.bf16.mxu0 %v3725
    %4083 = vmatpush1.bf16.msra.mxu0 %v3724
    %4084 = vmatprep.subr.bf16.mxu0 %v3729
    %4085 = vmatpush1.bf16.msra.mxu0 %v3728
    %4086 = vmatprep.subr.bf16.mxu0 %v3733
    %4087 = vmatpush1.bf16.msra.mxu0 %v3732
    %4088 = vmatprep.mubr.bf16.mxu0 %v2787
    %4089 = vmatmul.mubr.bf16.gmra.mrb[0].mxu0 %v2786
    %v4090 = vpop.f32.mrb[0].mxu0
    %v4091 = vadd.f32 %v3079, %v4090
    %v4092 = vpop.f32.mrb[0].mxu0
    %v4093 = vadd.f32 %v3083, %v4092
    %v4094 = vpop.f32.mrb[0].mxu0
    %v4095 = vpop.f32.mrb[0].mxu0
    %4096 = vdwg.mxu0
    %4097 = vmatprep.subr.bf16.mxu0 %v3737
    %4098 = vmatpush1.bf16.msra.mxu0 %v3736
    %4099 = vmatprep.subr.bf16.mxu0 %v3741
    %4100 = vmatpush1.bf16.msra.mxu0 %v3740
    %4101 = vmatprep.subr.bf16.mxu0 %v3745
    %4102 = vmatpush1.bf16.msra.mxu0 %v3744
    %4103 = vmatprep.subr.bf16.mxu0 %v3749
    %4104 = vmatpush1.bf16.msra.mxu0 %v3748
    %4105 = vmatprep.subr.bf16.mxu0 %v3753
    %4106 = vmatpush1.bf16.msra.mxu0 %v3752
    %4107 = vmatprep.subr.bf16.mxu0 %v3757
    %4108 = vmatpush1.bf16.msra.mxu0 %v3756
    %4109 = vmatprep.subr.bf16.mxu0 %v3761
    %4110 = vmatpush1.bf16.msra.mxu0 %v3760
    %4111 = vmatprep.subr.bf16.mxu0 %v3765
    %4112 = vmatpush1.bf16.msra.mxu0 %v3764
    %4113 = vmatprep.subr.bf16.mxu0 %v3769
    %4114 = vmatpush1.bf16.msra.mxu0 %v3768
    %4115 = vmatprep.subr.bf16.mxu0 %v3773
    %4116 = vmatpush1.bf16.msra.mxu0 %v3772
    %4117 = vmatprep.subr.bf16.mxu0 %v3777
    %4118 = vmatpush1.bf16.msra.mxu0 %v3776
    %4119 = vmatprep.subr.bf16.mxu0 %v3781
    %4120 = vmatpush1.bf16.msra.mxu0 %v3780
    %4121 = vmatprep.subr.bf16.mxu0 %v3785
    %4122 = vmatpush1.bf16.msra.mxu0 %v3784
    %4123 = vmatprep.subr.bf16.mxu0 %v3789
    %4124 = vmatpush1.bf16.msra.mxu0 %v3788
    %4125 = vmatprep.subr.bf16.mxu0 %v3793
    %4126 = vmatpush1.bf16.msra.mxu0 %v3792
    %4127 = vmatprep.subr.bf16.mxu0 %v3797
    %4128 = vmatpush1.bf16.msra.mxu0 %v3796
    %4129 = vmatprep.mubr.bf16.mxu0 %v2834
    %4130 = vmatmul.mubr.bf16.gmra.mrb[0].mxu0 %v2833
    %v4131 = vpop.f32.mrb[0].mxu0
    %v4132 = vadd.f32 %v4091, %v4131
    %v4133 = vpop.f32.mrb[0].mxu0
    %v4134 = vadd.f32 %v4093, %v4133
    %v4135 = vpop.f32.mrb[0].mxu0
    %v4136 = vpop.f32.mrb[0].mxu0
    %4137 = vdwg.mxu0
    %4138 = vmatprep.subr.bf16.mxu0 %v3801
    %4139 = vmatpush1.bf16.msra.mxu0 %v3800
    %4140 = vmatprep.subr.bf16.mxu0 %v3805
    %4141 = vmatpush1.bf16.msra.mxu0 %v3804
    %4142 = vmatprep.subr.bf16.mxu0 %v3809
    %4143 = vmatpush1.bf16.msra.mxu0 %v3808
    %4144 = vmatprep.subr.bf16.mxu0 %v3813
    %4145 = vmatpush1.bf16.msra.mxu0 %v3812
    %4146 = vmatprep.subr.bf16.mxu0 %v3817
    %4147 = vmatpush1.bf16.msra.mxu0 %v3816
    %4148 = vmatprep.subr.bf16.mxu0 %v3821
    %4149 = vmatpush1.bf16.msra.mxu0 %v3820
    %4150 = vmatprep.subr.bf16.mxu0 %v3825
    %4151 = vmatpush1.bf16.msra.mxu0 %v3824
    %4152 = vmatprep.subr.bf16.mxu0 %v3829
    %4153 = vmatpush1.bf16.msra.mxu0 %v3828
    %4154 = vmatprep.subr.bf16.mxu0 %v3833
    %4155 = vmatpush1.bf16.msra.mxu0 %v3832
    %4156 = vmatprep.subr.bf16.mxu0 %v3837
    %4157 = vmatpush1.bf16.msra.mxu0 %v3836
    %4158 = vmatprep.subr.bf16.mxu0 %v3841
    %4159 = vmatpush1.bf16.msra.mxu0 %v3840
    %4160 = vmatprep.subr.bf16.mxu0 %v3845
    %4161 = vmatpush1.bf16.msra.mxu0 %v3844
    %4162 = vmatprep.subr.bf16.mxu0 %v3849
    %4163 = vmatpush1.bf16.msra.mxu0 %v3848
    %4164 = vmatprep.subr.bf16.mxu0 %v3853
    %4165 = vmatpush1.bf16.msra.mxu0 %v3852
    %4166 = vmatprep.subr.bf16.mxu0 %v3857
    %4167 = vmatpush1.bf16.msra.mxu0 %v3856
    %4168 = vmatprep.subr.bf16.mxu0 %v3861
    %4169 = vmatpush1.bf16.msra.mxu0 %v3860
    %4170 = vmatprep.mubr.bf16.mxu0 %v2881
    %4171 = vmatmul.mubr.bf16.gmra.mrb[0].mxu0 %v2880
    %v4172 = vpop.f32.mrb[0].mxu0
    %v4173 = vadd.f32 %v4132, %v4172
    %v4174 = vpop.f32.mrb[0].mxu0
    %v4175 = vadd.f32 %v4134, %v4174
    %v4176 = vpop.f32.mrb[0].mxu0
    %v4177 = vpop.f32.mrb[0].mxu0
    %4178 = vdwg.mxu0
    %4179 = vmatprep.subr.bf16.mxu0 %v3675
    %4180 = vmatpush1.bf16.msra.mxu0 %v3674
    %4181 = vmatprep.subr.bf16.mxu0 %v3679
    %4182 = vmatpush1.bf16.msra.mxu0 %v3678
    %4183 = vmatprep.subr.bf16.mxu0 %v3683
    %4184 = vmatpush1.bf16.msra.mxu0 %v3682
    %4185 = vmatprep.subr.bf16.mxu0 %v3687
    %4186 = vmatpush1.bf16.msra.mxu0 %v3686
    %4187 = vmatprep.subr.bf16.mxu0 %v3691
    %4188 = vmatpush1.bf16.msra.mxu0 %v3690
    %4189 = vmatprep.subr.bf16.mxu0 %v3695
    %4190 = vmatpush1.bf16.msra.mxu0 %v3694
    %4191 = vmatprep.subr.bf16.mxu0 %v3699
    %4192 = vmatpush1.bf16.msra.mxu0 %v3698
    %4193 = vmatprep.subr.bf16.mxu0 %v3703
    %4194 = vmatpush1.bf16.msra.mxu0 %v3702
    %4195 = vmatprep.subr.bf16.mxu0 %v3707
    %4196 = vmatpush1.bf16.msra.mxu0 %v3706
    %4197 = vmatprep.subr.bf16.mxu0 %v3711
    %4198 = vmatpush1.bf16.msra.mxu0 %v3710
    %4199 = vmatprep.subr.bf16.mxu0 %v3715
    %4200 = vmatpush1.bf16.msra.mxu0 %v3714
    %4201 = vmatprep.subr.bf16.mxu0 %v3719
    %4202 = vmatpush1.bf16.msra.mxu0 %v3718
    %4203 = vmatprep.subr.bf16.mxu0 %v3723
    %4204 = vmatpush1.bf16.msra.mxu0 %v3722
    %4205 = vmatprep.subr.bf16.mxu0 %v3727
    %4206 = vmatpush1.bf16.msra.mxu0 %v3726
    %4207 = vmatprep.subr.bf16.mxu0 %v3731
    %4208 = vmatpush1.bf16.msra.mxu0 %v3730
    %4209 = vmatprep.subr.bf16.mxu0 %v3735
    %4210 = vmatpush1.bf16.msra.mxu0 %v3734
    %4211 = vmatprep.mubr.bf16.mxu0 %v2787
    %4212 = vmatmul.mubr.bf16.gmra.mrb[0].mxu0 %v2786
    %v4213 = vpop.f32.mrb[0].mxu0
    %v4214 = vadd.f32 %v3087, %v4213
    %v4215 = vpop.f32.mrb[0].mxu0
    %v4216 = vadd.f32 %v3091, %v4215
    %v4217 = vpop.f32.mrb[0].mxu0
    %v4218 = vpop.f32.mrb[0].mxu0
    %4219 = vdwg.mxu0
    %4220 = vmatprep.subr.bf16.mxu0 %v3739
    %4221 = vmatpush1.bf16.msra.mxu0 %v3738
    %4222 = vmatprep.subr.bf16.mxu0 %v3743
    %4223 = vmatpush1.bf16.msra.mxu0 %v3742
    %4224 = vmatprep.subr.bf16.mxu0 %v3747
    %4225 = vmatpush1.bf16.msra.mxu0 %v3746
    %4226 = vmatprep.subr.bf16.mxu0 %v3751
    %4227 = vmatpush1.bf16.msra.mxu0 %v3750
    %4228 = vmatprep.subr.bf16.mxu0 %v3755
    %4229 = vmatpush1.bf16.msra.mxu0 %v3754
    %4230 = vmatprep.subr.bf16.mxu0 %v3759
    %4231 = vmatpush1.bf16.msra.mxu0 %v3758
    %4232 = vmatprep.subr.bf16.mxu0 %v3763
    %4233 = vmatpush1.bf16.msra.mxu0 %v3762
    %4234 = vmatprep.subr.bf16.mxu0 %v3767
    %4235 = vmatpush1.bf16.msra.mxu0 %v3766
    %4236 = vmatprep.subr.bf16.mxu0 %v3771
    %4237 = vmatpush1.bf16.msra.mxu0 %v3770
    %4238 = vmatprep.subr.bf16.mxu0 %v3775
    %4239 = vmatpush1.bf16.msra.mxu0 %v3774
    %4240 = vmatprep.subr.bf16.mxu0 %v3779
    %4241 = vmatpush1.bf16.msra.mxu0 %v3778
    %4242 = vmatprep.subr.bf16.mxu0 %v3783
    %4243 = vmatpush1.bf16.msra.mxu0 %v3782
    %4244 = vmatprep.subr.bf16.mxu0 %v3787
    %4245 = vmatpush1.bf16.msra.mxu0 %v3786
    %4246 = vmatprep.subr.bf16.mxu0 %v3791
    %4247 = vmatpush1.bf16.msra.mxu0 %v3790
    %4248 = vmatprep.subr.bf16.mxu0 %v3795
    %4249 = vmatpush1.bf16.msra.mxu0 %v3794
    %4250 = vmatprep.subr.bf16.mxu0 %v3799
    %4251 = vmatpush1.bf16.msra.mxu0 %v3798
    %4252 = vmatprep.mubr.bf16.mxu0 %v2834
    %4253 = vmatmul.mubr.bf16.gmra.mrb[0].mxu0 %v2833
    %v4254 = vpop.f32.mrb[0].mxu0
    %v4255 = vadd.f32 %v4214, %v4254
    %v4256 = vpop.f32.mrb[0].mxu0
    %v4257 = vadd.f32 %v4216, %v4256
    %v4258 = vpop.f32.mrb[0].mxu0
    %v4259 = vpop.f32.mrb[0].mxu0
    %4260 = vdwg.mxu0
    %4261 = vmatprep.subr.bf16.mxu0 %v3803
    %4262 = vmatpush1.bf16.msra.mxu0 %v3802
    %4263 = vmatprep.subr.bf16.mxu0 %v3807
    %4264 = vmatpush1.bf16.msra.mxu0 %v3806
    %4265 = vmatprep.subr.bf16.mxu0 %v3811
    %4266 = vmatpush1.bf16.msra.mxu0 %v3810
    %4267 = vmatprep.subr.bf16.mxu0 %v3815
    %4268 = vmatpush1.bf16.msra.mxu0 %v3814
    %4269 = vmatprep.subr.bf16.mxu0 %v3819
    %4270 = vmatpush1.bf16.msra.mxu0 %v3818
    %4271 = vmatprep.subr.bf16.mxu0 %v3823
    %4272 = vmatpush1.bf16.msra.mxu0 %v3822
    %4273 = vmatprep.subr.bf16.mxu0 %v3827
    %4274 = vmatpush1.bf16.msra.mxu0 %v3826
    %4275 = vmatprep.subr.bf16.mxu0 %v3831
    %4276 = vmatpush1.bf16.msra.mxu0 %v3830
    %4277 = vmatprep.subr.bf16.mxu0 %v3835
    %4278 = vmatpush1.bf16.msra.mxu0 %v3834
    %4279 = vmatprep.subr.bf16.mxu0 %v3839
    %4280 = vmatpush1.bf16.msra.mxu0 %v3838
    %4281 = vmatprep.subr.bf16.mxu0 %v3843
    %4282 = vmatpush1.bf16.msra.mxu0 %v3842
    %4283 = vmatprep.subr.bf16.mxu0 %v3847
    %4284 = vmatpush1.bf16.msra.mxu0 %v3846
    %4285 = vmatprep.subr.bf16.mxu0 %v3851
    %4286 = vmatpush1.bf16.msra.mxu0 %v3850
    %4287 = vmatprep.subr.bf16.mxu0 %v3855
    %4288 = vmatpush1.bf16.msra.mxu0 %v3854
    %4289 = vmatprep.subr.bf16.mxu0 %v3859
    %4290 = vmatpush1.bf16.msra.mxu0 %v3858
    %4291 = vmatprep.subr.bf16.mxu0 %v3863
    %4292 = vmatpush1.bf16.msra.mxu0 %v3862
    %4293 = vmatprep.mubr.bf16.mxu0 %v2881
    %4294 = vmatmul.mubr.bf16.gmra.mrb[0].mxu0 %v2880
    %v4295 = vpop.f32.mrb[0].mxu0
    %v4296 = vadd.f32 %v4255, %v4295
    %v4297 = vpop.f32.mrb[0].mxu0
    %v4298 = vadd.f32 %v4257, %v4297
    %v4299 = vpop.f32.mrb[0].mxu0
    %v4300 = vpop.f32.mrb[0].mxu0
    %4301 = vdwg.mxu0
    %v4306 = vcombine.low %v4173, %v4175
    %v4307 = vcombine.high %v4173, %v4175
    %v4308 = vcombine.low %v4296, %v4298
    %v4309 = vcombine.high %v4296, %v4298
    %v4311 = vunpack.c.l.s4 1966171168
    %v4312 = vunpack.c.0.s8 %v4311
    %v4313 = vlaneseq
    %v4314 = vshrl.u32 %v4313, 7
    %v4315 = vsub.s32 %v4312, %v4314
    %v4316 = vrot.slane %v4306, %v4315
    %v4318 = vunpack.c.l.s4 1966171168
    %v4319 = vunpack.c.0.s8 %v4318
    %v4320 = vlaneseq
    %v4321 = vshrl.u32 %v4320, 7
    %v4322 = vsub.s32 %v4319, %v4321
    %v4323 = vrot.slane %v4307, %v4322
    %v4325 = vunpack.c.l.s4 1966171168
    %v4326 = vunpack.c.0.s8 %v4325
    %v4327 = vlaneseq
    %v4328 = vshrl.u32 %v4327, 7
    %v4329 = vsub.s32 %v4326, %v4328
    %v4330 = vrot.slane %v4308, %v4329
    %v4332 = vunpack.c.l.s4 1966171168
    %v4333 = vunpack.c.0.s8 %v4332
    %v4334 = vlaneseq
    %v4335 = vshrl.u32 %v4334, 7
    %v4336 = vsub.s32 %v4333, %v4335
    %v4337 = vrot.slane %v4309, %v4336
    %v4338 = vcombine.low %v4316, %v4330
    %v4339 = vcombine.high %v4316, %v4330
    %v4340 = vcombine.low %v4323, %v4337
    %v4341 = vcombine.high %v4323, %v4337
    %v4343 = vunpack.c.l.s4 1966171168
    %v4344 = vunpack.c.0.s8 %v4343
    %v4345 = vlaneseq
    %v4346 = vshrl.u32 %v4345, 7
    %v4347 = vsub.s32 %v4344, %v4346
    %v4348 = vrot.slane %v4338, %v4347
    %v4350 = vunpack.c.l.s4 1966171168
    %v4351 = vunpack.c.0.s8 %v4350
    %v4352 = vlaneseq
    %v4353 = vshrl.u32 %v4352, 7
    %v4354 = vsub.s32 %v4351, %v4353
    %v4355 = vrot.slane %v4340, %v4354
    %v4357 = vunpack.c.l.s4 1966171168
    %v4358 = vunpack.c.0.s8 %v4357
    %v4359 = vlaneseq
    %v4360 = vshrl.u32 %v4359, 7
    %v4361 = vsub.s32 %v4358, %v4360
    %v4362 = vrot.slane %v4339, %v4361
    %v4364 = vunpack.c.l.s4 1966171168
    %v4365 = vunpack.c.0.s8 %v4364
    %v4366 = vlaneseq
    %v4367 = vshrl.u32 %v4366, 7
    %v4368 = vsub.s32 %v4365, %v4367
    %v4369 = vrot.slane %v4341, %v4368
    %v4370 = vcombine.high %v4348, %v4348
    %v4371 = vcombine.high %v4362, %v4362
    %v4372 = vcombine.low %v4348, %v4370
    %v4374 = vunpack.c.l.s4 1935823168
    %v4375 = vunpack.c.0.s8 %v4374
    %v4376 = vlaneseq
    %v4377 = vshrl.u32 %v4376, 7
    %v4378 = vsub.s32 %v4375, %v4377
    %v4379 = vrot.slane %v4372, %v4378
    %v4381 = vunpack.c.l.s4 1935823168
    %v4382 = vunpack.c.0.s8 %v4381
    %v4383 = vlaneseq
    %v4384 = vshrl.u32 %v4383, 7
    %v4385 = vsub.s32 %v4382, %v4384
    %v4386 = vrot.slane %v4362, %v4385
    %v4387 = vcombine.low %v4379, %v4386
    %v4388 = vcombine.high %v4379, %v4386
    %v4390 = vunpack.c.l.s4 1935823168
    %v4391 = vunpack.c.0.s8 %v4390
    %v4392 = vlaneseq
    %v4393 = vshrl.u32 %v4392, 7
    %v4394 = vsub.s32 %v4391, %v4393
    %v4395 = vrot.slane %v4387, %v4394
    %v4397 = vunpack.c.l.s4 1935823168
    %v4398 = vunpack.c.0.s8 %v4397
    %v4399 = vlaneseq
    %v4400 = vshrl.u32 %v4399, 7
    %v4401 = vsub.s32 %v4398, %v4400
    %v4402 = vrot.slane %v4388, %v4401
    %v4403 = vcombine.low %v4371, %v4369
    %v4405 = vunpack.c.l.s4 1935823168
    %v4406 = vunpack.c.0.s8 %v4405
    %v4407 = vlaneseq
    %v4408 = vshrl.u32 %v4407, 7
    %v4409 = vsub.s32 %v4406, %v4408
    %v4410 = vrot.slane %v4403, %v4409
    %v4412 = vunpack.c.l.s4 1935823168
    %v4413 = vunpack.c.0.s8 %v4412
    %v4414 = vlaneseq
    %v4415 = vshrl.u32 %v4414, 7
    %v4416 = vsub.s32 %v4413, %v4415
    %v4417 = vrot.slane %v4355, %v4416
    %v4418 = vcombine.low %v4410, %v4417
    %v4419 = vcombine.high %v4410, %v4417
    %v4421 = vunpack.c.l.s4 1935823168
    %v4422 = vunpack.c.0.s8 %v4421
    %v4423 = vlaneseq
    %v4424 = vshrl.u32 %v4423, 7
    %v4425 = vsub.s32 %v4422, %v4424
    %v4426 = vrot.slane %v4418, %v4425
    %v4428 = vunpack.c.l.s4 1935823168
    %v4429 = vunpack.c.0.s8 %v4428
    %v4430 = vlaneseq
    %v4431 = vshrl.u32 %v4430, 7
    %v4432 = vsub.s32 %v4429, %v4431
    %v4433 = vrot.slane %v4419, %v4432
    %4438 = vst [vmem:[%s57] sm:$0x77] %v4395
    %4439 = vst [vmem:[%s57 + $0x8] sm:$0x77] %v4402
    %4440 = vst [vmem:[%s57 + $0x10] sm:$0x77] %v4426
    %4441 = vst [vmem:[%s57 + $0x18] sm:$0x77] %v4433
    %v4442 = vpack.c.bf16 %v4173, %v4173
    %v4443 = vpack.c.bf16 %v4175, %v4175
    %v4444 = vpack.c.bf16 %v4296, %v4296
    %v4445 = vpack.c.bf16 %v4298, %v4298
    %v4446 = vld [vmem:[#allocation22] sm:$0x1]
    %vm4447 = vcmask 48128
    %v4449 = vsel %vm4447, %v4446, 0
    %vm4451 = vcmask 1042432
    %v4453 = vsel %vm4451, %v4442, 0
    %v4456 = vsel %vm4451, %v4443, 0
    %v4459 = vsel %vm4451, %v4444, 0
    %v4462 = vsel %vm4451, %v4445, 0
    %4464 = vmatprep.subr.bf16.mxu0 %v4456
    %4465 = vmatpush1.bf16.msra.mxu0 %v4453
    %4466 = vmatprep.subr.bf16.mxu0 0
    %4467 = vmatpush1.bf16.msra.mxu0 0
    %4468 = vmatprep.subr.bf16.mxu0 0
    %4469 = vmatpush1.bf16.msra.mxu0 0
    %4470 = vmatprep.subr.bf16.mxu0 0
    %4471 = vmatpush1.bf16.msra.mxu0 0
    %4472 = vmatprep.subr.bf16.mxu0 0
    %4473 = vmatpush1.bf16.msra.mxu0 0
    %4474 = vmatprep.subr.bf16.mxu0 0
    %4475 = vmatpush1.bf16.msra.mxu0 0
    %4476 = vmatprep.subr.bf16.mxu0 0
    %4477 = vmatpush1.bf16.msra.mxu0 0
    %4478 = vmatprep.subr.bf16.mxu0 0
    %4479 = vmatpush1.bf16.msra.mxu0 0
    %4480 = vmatprep.subr.bf16.mxu0 0
    %4481 = vmatpush1.bf16.msra.mxu0 0
    %4482 = vmatprep.subr.bf16.mxu0 0
    %4483 = vmatpush1.bf16.msra.mxu0 0
    %4484 = vmatprep.subr.bf16.mxu0 0
    %4485 = vmatpush1.bf16.msra.mxu0 0
    %4486 = vmatprep.subr.bf16.mxu0 0
    %4487 = vmatpush1.bf16.msra.mxu0 0
    %4488 = vmatprep.subr.bf16.mxu0 0
    %4489 = vmatpush1.bf16.msra.mxu0 0
    %4490 = vmatprep.subr.bf16.mxu0 0
    %4491 = vmatpush1.bf16.msra.mxu0 0
    %4492 = vmatprep.subr.bf16.mxu0 0
    %4493 = vmatpush1.bf16.msra.mxu0 0
    %4494 = vmatprep.subr.bf16.mxu0 0
    %4495 = vmatpush1.bf16.msra.mxu0 0
    %4496 = vmatprep.mubr.bf16.mxu0 0
    %4497 = vmatmul.mubr.bf16.gmra.mrb[0].mxu0 %v4449
    %v4498 = vpop.f32.mrb[0].mxu0
    %v4499 = vadd.f32 0.0, %v4498
    %v4500 = vpop.f32.mrb[0].mxu0
    %v4501 = vadd.f32 0.0, %v4500
    %v4502 = vpop.f32.mrb[0].mxu0
    %v4503 = vpop.f32.mrb[0].mxu0
    %4504 = vdwg.mxu0
    %4505 = vmatprep.subr.bf16.mxu0 %v4462
    %4506 = vmatpush1.bf16.msra.mxu0 %v4459
    %4507 = vmatprep.subr.bf16.mxu0 0
    %4508 = vmatpush1.bf16.msra.mxu0 0
    %4509 = vmatprep.subr.bf16.mxu0 0
    %4510 = vmatpush1.bf16.msra.mxu0 0
    %4511 = vmatprep.subr.bf16.mxu0 0
    %4512 = vmatpush1.bf16.msra.mxu0 0
    %4513 = vmatprep.subr.bf16.mxu0 0
    %4514 = vmatpush1.bf16.msra.mxu0 0
    %4515 = vmatprep.subr.bf16.mxu0 0
    %4516 = vmatpush1.bf16.msra.mxu0 0
    %4517 = vmatprep.subr.bf16.mxu0 0
    %4518 = vmatpush1.bf16.msra.mxu0 0
    %4519 = vmatprep.subr.bf16.mxu0 0
    %4520 = vmatpush1.bf16.msra.mxu0 0
    %4521 = vmatprep.subr.bf16.mxu0 0
    %4522 = vmatpush1.bf16.msra.mxu0 0
    %4523 = vmatprep.subr.bf16.mxu0 0
    %4524 = vmatpush1.bf16.msra.mxu0 0
    %4525 = vmatprep.subr.bf16.mxu0 0
    %4526 = vmatpush1.bf16.msra.mxu0 0
    %4527 = vmatprep.subr.bf16.mxu0 0
    %4528 = vmatpush1.bf16.msra.mxu0 0
    %4529 = vmatprep.subr.bf16.mxu0 0
    %4530 = vmatpush1.bf16.msra.mxu0 0
    %4531 = vmatprep.subr.bf16.mxu0 0
    %4532 = vmatpush1.bf16.msra.mxu0 0
    %4533 = vmatprep.subr.bf16.mxu0 0
    %4534 = vmatpush1.bf16.msra.mxu0 0
    %4535 = vmatprep.subr.bf16.mxu0 0
    %4536 = vmatpush1.bf16.msra.mxu0 0
    %4537 = vmatprep.mubr.bf16.mxu0 0
    %4538 = vmatmul.mubr.bf16.gmra.mrb[0].mxu0 %v4449
    %v4539 = vpop.f32.mrb[0].mxu0
    %v4540 = vadd.f32 0.0, %v4539
    %v4541 = vpop.f32.mrb[0].mxu0
    %v4542 = vadd.f32 0.0, %v4541
    %v4543 = vpop.f32.mrb[0].mxu0
    %v4544 = vpop.f32.mrb[0].mxu0
    %4545 = vdwg.mxu0
    %v4546 = vpack.c.bf16 %v4499, %v4499
    %v4547 = vpack.c.bf16 %v4501, %v4501
    %v4548 = vpack.c.bf16 %v4540, %v4540
    %v4549 = vpack.c.bf16 %v4542, %v4542
    %v4550 = vld [vmem:[#allocation23] sm:$0x1]
    %v4552 = vsel %vm4447, %v4550, 0
    %4554 = vmatprep.subr.bf16.mxu0 %v4456
    %4555 = vmatpush1.bf16.msra.mxu0 %v4453
    %4556 = vmatprep.subr.bf16.mxu0 0
    %4557 = vmatpush1.bf16.msra.mxu0 0
    %4558 = vmatprep.subr.bf16.mxu0 0
    %4559 = vmatpush1.bf16.msra.mxu0 0
    %4560 = vmatprep.subr.bf16.mxu0 0
    %4561 = vmatpush1.bf16.msra.mxu0 0
    %4562 = vmatprep.subr.bf16.mxu0 0
    %4563 = vmatpush1.bf16.msra.mxu0 0
    %4564 = vmatprep.subr.bf16.mxu0 0
    %4565 = vmatpush1.bf16.msra.mxu0 0
    %4566 = vmatprep.subr.bf16.mxu0 0
    %4567 = vmatpush1.bf16.msra.mxu0 0
    %4568 = vmatprep.subr.bf16.mxu0 0
    %4569 = vmatpush1.bf16.msra.mxu0 0
    %4570 = vmatprep.subr.bf16.mxu0 0
    %4571 = vmatpush1.bf16.msra.mxu0 0
    %4572 = vmatprep.subr.bf16.mxu0 0
    %4573 = vmatpush1.bf16.msra.mxu0 0
    %4574 = vmatprep.subr.bf16.mxu0 0
    %4575 = vmatpush1.bf16.msra.mxu0 0
    %4576 = vmatprep.subr.bf16.mxu0 0
    %4577 = vmatpush1.bf16.msra.mxu0 0
    %4578 = vmatprep.subr.bf16.mxu0 0
    %4579 = vmatpush1.bf16.msra.mxu0 0
    %4580 = vmatprep.subr.bf16.mxu0 0
    %4581 = vmatpush1.bf16.msra.mxu0 0
    %4582 = vmatprep.subr.bf16.mxu0 0
    %4583 = vmatpush1.bf16.msra.mxu0 0
    %4584 = vmatprep.subr.bf16.mxu0 0
    %4585 = vmatpush1.bf16.msra.mxu0 0
    %4586 = vmatprep.mubr.bf16.mxu0 0
    %4587 = vmatmul.mubr.bf16.gmra.mrb[0].mxu0 %v4552
    %v4588 = vpop.f32.mrb[0].mxu0
    %v4589 = vadd.f32 0.0, %v4588
    %v4590 = vpop.f32.mrb[0].mxu0
    %v4591 = vadd.f32 0.0, %v4590
    %v4592 = vpop.f32.mrb[0].mxu0
    %v4593 = vpop.f32.mrb[0].mxu0
    %4594 = vdwg.mxu0
    %4595 = vmatprep.subr.bf16.mxu0 %v4462
    %4596 = vmatpush1.bf16.msra.mxu0 %v4459
    %4597 = vmatprep.subr.bf16.mxu0 0
    %4598 = vmatpush1.bf16.msra.mxu0 0
    %4599 = vmatprep.subr.bf16.mxu0 0
    %4600 = vmatpush1.bf16.msra.mxu0 0
    %4601 = vmatprep.subr.bf16.mxu0 0
    %4602 = vmatpush1.bf16.msra.mxu0 0
    %4603 = vmatprep.subr.bf16.mxu0 0
    %4604 = vmatpush1.bf16.msra.mxu0 0
    %4605 = vmatprep.subr.bf16.mxu0 0
    %4606 = vmatpush1.bf16.msra.mxu0 0
    %4607 = vmatprep.subr.bf16.mxu0 0
    %4608 = vmatpush1.bf16.msra.mxu0 0
    %4609 = vmatprep.subr.bf16.mxu0 0
    %4610 = vmatpush1.bf16.msra.mxu0 0
    %4611 = vmatprep.subr.bf16.mxu0 0
    %4612 = vmatpush1.bf16.msra.mxu0 0
    %4613 = vmatprep.subr.bf16.mxu0 0
    %4614 = vmatpush1.bf16.msra.mxu0 0
    %4615 = vmatprep.subr.bf16.mxu0 0
    %4616 = vmatpush1.bf16.msra.mxu0 0
    %4617 = vmatprep.subr.bf16.mxu0 0
    %4618 = vmatpush1.bf16.msra.mxu0 0
    %4619 = vmatprep.subr.bf16.mxu0 0
    %4620 = vmatpush1.bf16.msra.mxu0 0
    %4621 = vmatprep.subr.bf16.mxu0 0
    %4622 = vmatpush1.bf16.msra.mxu0 0
    %4623 = vmatprep.subr.bf16.mxu0 0
    %4624 = vmatpush1.bf16.msra.mxu0 0
    %4625 = vmatprep.subr.bf16.mxu0 0
    %4626 = vmatpush1.bf16.msra.mxu0 0
    %4627 = vmatprep.mubr.bf16.mxu0 0
    %4628 = vmatmul.mubr.bf16.gmra.mrb[0].mxu0 %v4552
    %v4629 = vpop.f32.mrb[0].mxu0
    %v4630 = vadd.f32 0.0, %v4629
    %v4631 = vpop.f32.mrb[0].mxu0
    %v4632 = vadd.f32 0.0, %v4631
    %v4633 = vpop.f32.mrb[0].mxu0
    %v4634 = vpop.f32.mrb[0].mxu0
    %4635 = vdwg.mxu0
    %v4636 = vpack.c.bf16 %v4589, %v4589
    %v4637 = vpack.c.bf16 %v4591, %v4591
    %v4638 = vpack.c.bf16 %v4630, %v4630
    %v4639 = vpack.c.bf16 %v4632, %v4632
    %v4640 = vld [vmem:[#allocation25] sm:$0x1]
    %v4642 = vsel %vm4447, %v4640, 0
    %4644 = vmatprep.subr.bf16.mxu0 %v4456
    %4645 = vmatpush1.bf16.msra.mxu0 %v4453
    %4646 = vmatprep.subr.bf16.mxu0 0
    %4647 = vmatpush1.bf16.msra.mxu0 0
    %4648 = vmatprep.subr.bf16.mxu0 0
    %4649 = vmatpush1.bf16.msra.mxu0 0
    %4650 = vmatprep.subr.bf16.mxu0 0
    %4651 = vmatpush1.bf16.msra.mxu0 0
    %4652 = vmatprep.subr.bf16.mxu0 0
    %4653 = vmatpush1.bf16.msra.mxu0 0
    %4654 = vmatprep.subr.bf16.mxu0 0
    %4655 = vmatpush1.bf16.msra.mxu0 0
    %4656 = vmatprep.subr.bf16.mxu0 0
    %4657 = vmatpush1.bf16.msra.mxu0 0
    %4658 = vmatprep.subr.bf16.mxu0 0
    %4659 = vmatpush1.bf16.msra.mxu0 0
    %4660 = vmatprep.subr.bf16.mxu0 0
    %4661 = vmatpush1.bf16.msra.mxu0 0
    %4662 = vmatprep.subr.bf16.mxu0 0
    %4663 = vmatpush1.bf16.msra.mxu0 0
    %4664 = vmatprep.subr.bf16.mxu0 0
    %4665 = vmatpush1.bf16.msra.mxu0 0
    %4666 = vmatprep.subr.bf16.mxu0 0
    %4667 = vmatpush1.bf16.msra.mxu0 0
    %4668 = vmatprep.subr.bf16.mxu0 0
    %4669 = vmatpush1.bf16.msra.mxu0 0
    %4670 = vmatprep.subr.bf16.mxu0 0
    %4671 = vmatpush1.bf16.msra.mxu0 0
    %4672 = vmatprep.subr.bf16.mxu0 0
    %4673 = vmatpush1.bf16.msra.mxu0 0
    %4674 = vmatprep.subr.bf16.mxu0 0
    %4675 = vmatpush1.bf16.msra.mxu0 0
    %4676 = vmatprep.mubr.bf16.mxu0 0
    %4677 = vmatmul.mubr.bf16.gmra.mrb[0].mxu0 %v4642
    %v4678 = vpop.f32.mrb[0].mxu0
    %v4679 = vadd.f32 0.0, %v4678
    %v4680 = vpop.f32.mrb[0].mxu0
    %v4681 = vadd.f32 0.0, %v4680
    %v4682 = vpop.f32.mrb[0].mxu0
    %v4683 = vpop.f32.mrb[0].mxu0
    %4684 = vdwg.mxu0
    %4685 = vmatprep.subr.bf16.mxu0 %v4462
    %4686 = vmatpush1.bf16.msra.mxu0 %v4459
    %4687 = vmatprep.subr.bf16.mxu0 0
    %4688 = vmatpush1.bf16.msra.mxu0 0
    %4689 = vmatprep.subr.bf16.mxu0 0
    %4690 = vmatpush1.bf16.msra.mxu0 0
    %4691 = vmatprep.subr.bf16.mxu0 0
    %4692 = vmatpush1.bf16.msra.mxu0 0
    %4693 = vmatprep.subr.bf16.mxu0 0
    %4694 = vmatpush1.bf16.msra.mxu0 0
    %4695 = vmatprep.subr.bf16.mxu0 0
    %4696 = vmatpush1.bf16.msra.mxu0 0
    %4697 = vmatprep.subr.bf16.mxu0 0
    %4698 = vmatpush1.bf16.msra.mxu0 0
    %4699 = vmatprep.subr.bf16.mxu0 0
    %4700 = vmatpush1.bf16.msra.mxu0 0
    %4701 = vmatprep.subr.bf16.mxu0 0
    %4702 = vmatpush1.bf16.msra.mxu0 0
    %4703 = vmatprep.subr.bf16.mxu0 0
    %4704 = vmatpush1.bf16.msra.mxu0 0
    %4705 = vmatprep.subr.bf16.mxu0 0
    %4706 = vmatpush1.bf16.msra.mxu0 0
    %4707 = vmatprep.subr.bf16.mxu0 0
    %4708 = vmatpush1.bf16.msra.mxu0 0
    %4709 = vmatprep.subr.bf16.mxu0 0
    %4710 = vmatpush1.bf16.msra.mxu0 0
    %4711 = vmatprep.subr.bf16.mxu0 0
    %4712 = vmatpush1.bf16.msra.mxu0 0
    %4713 = vmatprep.subr.bf16.mxu0 0
    %4714 = vmatpush1.bf16.msra.mxu0 0
    %4715 = vmatprep.subr.bf16.mxu0 0
    %4716 = vmatpush1.bf16.msra.mxu0 0
    %4717 = vmatprep.mubr.bf16.mxu0 0
    %4718 = vmatmul.mubr.bf16.gmra.mrb[0].mxu0 %v4642
    %v4719 = vpop.f32.mrb[0].mxu0
    %v4720 = vadd.f32 0.0, %v4719
    %v4721 = vpop.f32.mrb[0].mxu0
    %v4722 = vadd.f32 0.0, %v4721
    %v4723 = vpop.f32.mrb[0].mxu0
    %v4724 = vpop.f32.mrb[0].mxu0
    %4725 = vdwg.mxu0
    %v4726 = vpack.c.bf16 %v4679, %v4679
    %v4727 = vpack.c.bf16 %v4681, %v4681
    %v4728 = vpack.c.bf16 %v4720, %v4720
    %v4729 = vpack.c.bf16 %v4722, %v4722
    %v4730 = vld [vmem:[#allocation32] sm:$0xff]
    %v4731 = vld [vmem:[#allocation32 + $0x8] sm:$0xff]
    %v4732 = vld [vmem:[#allocation32 + $0x10] sm:$0xff]
    %v4733 = vld [vmem:[#allocation32 + $0x18] sm:$0xff]
    %v4734 = vld [vmem:[#allocation32 + $0x20] sm:$0xff]
    %v4735 = vld [vmem:[#allocation32 + $0x28] sm:$0xff]
    %v4736 = vld [vmem:[#allocation32 + $0x30] sm:$0xff]
    %v4737 = vld [vmem:[#allocation32 + $0x38] sm:$0xff]
    %v4738 = vld [vmem:[#allocation32 + $0x40] sm:$0xff]
    %v4739 = vld [vmem:[#allocation32 + $0x48] sm:$0xff]
    %v4740 = vld [vmem:[#allocation32 + $0x50] sm:$0xff]
    %v4741 = vld [vmem:[#allocation32 + $0x58] sm:$0xff]
    %v4742 = vld [vmem:[#allocation32 + $0x60] sm:$0xff]
    %v4743 = vld [vmem:[#allocation32 + $0x68] sm:$0xff]
    %v4744 = vld [vmem:[#allocation32 + $0x70] sm:$0xff]
    %v4745 = vld [vmem:[#allocation32 + $0x78] sm:$0xff]
    %v4746 = vld [vmem:[#allocation32 + $0x80] sm:$0xff]
    %v4747 = vld [vmem:[#allocation32 + $0x88] sm:$0xff]
    %v4748 = vld [vmem:[#allocation32 + $0x90] sm:$0xff]
    %v4749 = vld [vmem:[#allocation32 + $0x98] sm:$0xff]
    %v4750 = vld [vmem:[#allocation32 + $0xa0] sm:$0xff]
    %v4751 = vld [vmem:[#allocation32 + $0xa8] sm:$0xff]
    %v4752 = vld [vmem:[#allocation32 + $0xb0] sm:$0xff]
    %v4753 = vld [vmem:[#allocation32 + $0xb8] sm:$0xff]
    %v4754 = vld [vmem:[#allocation32 + $0xc0] sm:$0xff]
    %v4755 = vld [vmem:[#allocation32 + $0xc8] sm:$0xff]
    %v4756 = vld [vmem:[#allocation32 + $0xd0] sm:$0xff]
    %v4757 = vld [vmem:[#allocation32 + $0xd8] sm:$0xff]
    %v4758 = vld [vmem:[#allocation32 + $0xe0] sm:$0xff]
    %v4759 = vld [vmem:[#allocation32 + $0xe8] sm:$0xff]
    %v4760 = vld [vmem:[#allocation32 + $0xf0] sm:$0xff]
    %v4761 = vld [vmem:[#allocation32 + $0xf8] sm:$0xff]
    %v4762 = vld [vmem:[#allocation32 + $0x100] sm:$0xff]
    %v4763 = vld [vmem:[#allocation32 + $0x108] sm:$0xff]
    %v4764 = vld [vmem:[#allocation32 + $0x110] sm:$0xff]
    %v4765 = vld [vmem:[#allocation32 + $0x118] sm:$0xff]
    %v4766 = vld [vmem:[#allocation32 + $0x120] sm:$0xff]
    %v4767 = vld [vmem:[#allocation32 + $0x128] sm:$0xff]
    %v4768 = vld [vmem:[#allocation32 + $0x130] sm:$0xff]
    %v4769 = vld [vmem:[#allocation32 + $0x138] sm:$0xff]
    %v4770 = vld [vmem:[#allocation32 + $0x140] sm:$0xff]
    %v4771 = vld [vmem:[#allocation32 + $0x148] sm:$0xff]
    %v4772 = vld [vmem:[#allocation32 + $0x150] sm:$0xff]
    %v4773 = vld [vmem:[#allocation32 + $0x158] sm:$0xff]
    %v4774 = vld [vmem:[#allocation32 + $0x160] sm:$0xff]
    %v4775 = vld [vmem:[#allocation32 + $0x168] sm:$0xff]
    %v4776 = vld [vmem:[#allocation32 + $0x170] sm:$0xff]
    %v4777 = vld [vmem:[#allocation32 + $0x178] sm:$0xff]
    %v4778 = vld [vmem:[#allocation32 + $0x180] sm:$0xff]
    %v4779 = vld [vmem:[#allocation32 + $0x188] sm:$0xff]
    %v4780 = vld [vmem:[#allocation32 + $0x190] sm:$0xff]
    %v4781 = vld [vmem:[#allocation32 + $0x198] sm:$0xff]
    %v4782 = vld [vmem:[#allocation32 + $0x1a0] sm:$0xff]
    %v4783 = vld [vmem:[#allocation32 + $0x1a8] sm:$0xff]
    %v4784 = vld [vmem:[#allocation32 + $0x1b0] sm:$0xff]
    %v4785 = vld [vmem:[#allocation32 + $0x1b8] sm:$0xff]
    %v4786 = vld [vmem:[#allocation32 + $0x1c0] sm:$0xff]
    %v4787 = vld [vmem:[#allocation32 + $0x1c8] sm:$0xff]
    %v4788 = vld [vmem:[#allocation32 + $0x1d0] sm:$0xff]
    %v4789 = vld [vmem:[#allocation32 + $0x1d8] sm:$0xff]
    %v4790 = vld [vmem:[#allocation32 + $0x1e0] sm:$0xff]
    %v4791 = vld [vmem:[#allocation32 + $0x1e8] sm:$0xff]
    %v4792 = vld [vmem:[#allocation32 + $0x1f0] sm:$0xff]
    %v4793 = vld [vmem:[#allocation32 + $0x1f8] sm:$0xff]
    %v4794 = vld [vmem:[#allocation32 + $0x200] sm:$0xff]
    %v4795 = vld [vmem:[#allocation32 + $0x208] sm:$0xff]
    %v4796 = vld [vmem:[#allocation32 + $0x210] sm:$0xff]
    %v4797 = vld [vmem:[#allocation32 + $0x218] sm:$0xff]
    %v4798 = vld [vmem:[#allocation32 + $0x220] sm:$0xff]
    %v4799 = vld [vmem:[#allocation32 + $0x228] sm:$0xff]
    %v4800 = vld [vmem:[#allocation32 + $0x230] sm:$0xff]
    %v4801 = vld [vmem:[#allocation32 + $0x238] sm:$0xff]
    %v4802 = vld [vmem:[#allocation32 + $0x240] sm:$0xff]
    %v4803 = vld [vmem:[#allocation32 + $0x248] sm:$0xff]
    %v4804 = vld [vmem:[#allocation32 + $0x250] sm:$0xff]
    %v4805 = vld [vmem:[#allocation32 + $0x258] sm:$0xff]
    %v4806 = vld [vmem:[#allocation32 + $0x260] sm:$0xff]
    %v4807 = vld [vmem:[#allocation32 + $0x268] sm:$0xff]
    %v4808 = vld [vmem:[#allocation32 + $0x270] sm:$0xff]
    %v4809 = vld [vmem:[#allocation32 + $0x278] sm:$0xff]
    %v4810 = vld [vmem:[#allocation32 + $0x280] sm:$0xff]
    %v4811 = vld [vmem:[#allocation32 + $0x288] sm:$0xff]
    %v4812 = vld [vmem:[#allocation32 + $0x290] sm:$0xff]
    %v4813 = vld [vmem:[#allocation32 + $0x298] sm:$0xff]
    %v4814 = vld [vmem:[#allocation32 + $0x2a0] sm:$0xff]
    %v4815 = vld [vmem:[#allocation32 + $0x2a8] sm:$0xff]
    %v4816 = vld [vmem:[#allocation32 + $0x2b0] sm:$0xff]
    %v4817 = vld [vmem:[#allocation32 + $0x2b8] sm:$0xff]
    %v4818 = vld [vmem:[#allocation32 + $0x2c0] sm:$0xff]
    %v4819 = vld [vmem:[#allocation32 + $0x2c8] sm:$0xff]
    %v4820 = vld [vmem:[#allocation32 + $0x2d0] sm:$0xff]
    %v4821 = vld [vmem:[#allocation32 + $0x2d8] sm:$0xff]
    %v4822 = vld [vmem:[#allocation32 + $0x2e0] sm:$0xff]
    %v4823 = vld [vmem:[#allocation32 + $0x2e8] sm:$0xff]
    %v4824 = vld [vmem:[#allocation32 + $0x2f0] sm:$0xff]
    %v4825 = vld [vmem:[#allocation32 + $0x2f8] sm:$0xff]
    %v4826 = vld [vmem:[#allocation32 + $0x300] sm:$0xff]
    %v4827 = vld [vmem:[#allocation32 + $0x308] sm:$0xff]
    %v4828 = vld [vmem:[#allocation32 + $0x310] sm:$0xff]
    %v4829 = vld [vmem:[#allocation32 + $0x318] sm:$0xff]
    %v4830 = vld [vmem:[#allocation32 + $0x320] sm:$0xff]
    %v4831 = vld [vmem:[#allocation32 + $0x328] sm:$0xff]
    %v4832 = vld [vmem:[#allocation32 + $0x330] sm:$0xff]
    %v4833 = vld [vmem:[#allocation32 + $0x338] sm:$0xff]
    %v4834 = vld [vmem:[#allocation32 + $0x340] sm:$0xff]
    %v4835 = vld [vmem:[#allocation32 + $0x348] sm:$0xff]
    %v4836 = vld [vmem:[#allocation32 + $0x350] sm:$0xff]
    %v4837 = vld [vmem:[#allocation32 + $0x358] sm:$0xff]
    %v4838 = vld [vmem:[#allocation32 + $0x360] sm:$0xff]
    %v4839 = vld [vmem:[#allocation32 + $0x368] sm:$0xff]
    %v4840 = vld [vmem:[#allocation32 + $0x370] sm:$0xff]
    %v4841 = vld [vmem:[#allocation32 + $0x378] sm:$0xff]
    %v4842 = vld [vmem:[#allocation32 + $0x380] sm:$0xff]
    %v4843 = vld [vmem:[#allocation32 + $0x388] sm:$0xff]
    %v4844 = vld [vmem:[#allocation32 + $0x390] sm:$0xff]
    %v4845 = vld [vmem:[#allocation32 + $0x398] sm:$0xff]
    %v4846 = vld [vmem:[#allocation32 + $0x3a0] sm:$0xff]
    %v4847 = vld [vmem:[#allocation32 + $0x3a8] sm:$0xff]
    %v4848 = vld [vmem:[#allocation32 + $0x3b0] sm:$0xff]
    %v4849 = vld [vmem:[#allocation32 + $0x3b8] sm:$0xff]
    %v4850 = vld [vmem:[#allocation32 + $0x3c0] sm:$0xff]
    %v4851 = vld [vmem:[#allocation32 + $0x3c8] sm:$0xff]
    %v4852 = vld [vmem:[#allocation32 + $0x3d0] sm:$0xff]
    %v4853 = vld [vmem:[#allocation32 + $0x3d8] sm:$0xff]
    %v4854 = vld [vmem:[#allocation32 + $0x3e0] sm:$0xff]
    %v4855 = vld [vmem:[#allocation32 + $0x3e8] sm:$0xff]
    %v4856 = vld [vmem:[#allocation32 + $0x3f0] sm:$0xff]
    %v4857 = vld [vmem:[#allocation32 + $0x3f8] sm:$0xff]
    %v4858 = vld [vmem:[#allocation32 + $0x400] sm:$0xff]
    %v4859 = vld [vmem:[#allocation32 + $0x408] sm:$0xff]
    %v4860 = vld [vmem:[#allocation32 + $0x410] sm:$0xff]
    %v4861 = vld [vmem:[#allocation32 + $0x418] sm:$0xff]
    %v4862 = vld [vmem:[#allocation32 + $0x420] sm:$0xff]
    %v4863 = vld [vmem:[#allocation32 + $0x428] sm:$0xff]
    %v4864 = vld [vmem:[#allocation32 + $0x430] sm:$0xff]
    %v4865 = vld [vmem:[#allocation32 + $0x438] sm:$0xff]
    %v4866 = vld [vmem:[#allocation32 + $0x440] sm:$0xff]
    %v4867 = vld [vmem:[#allocation32 + $0x448] sm:$0xff]
    %v4868 = vld [vmem:[#allocation32 + $0x450] sm:$0xff]
    %v4869 = vld [vmem:[#allocation32 + $0x458] sm:$0xff]
    %v4870 = vld [vmem:[#allocation32 + $0x460] sm:$0xff]
    %v4871 = vld [vmem:[#allocation32 + $0x468] sm:$0xff]
    %v4872 = vld [vmem:[#allocation32 + $0x470] sm:$0xff]
    %v4873 = vld [vmem:[#allocation32 + $0x478] sm:$0xff]
    %v4874 = vld [vmem:[#allocation32 + $0x480] sm:$0xff]
    %v4875 = vld [vmem:[#allocation32 + $0x488] sm:$0xff]
    %v4876 = vld [vmem:[#allocation32 + $0x490] sm:$0xff]
    %v4877 = vld [vmem:[#allocation32 + $0x498] sm:$0xff]
    %v4878 = vld [vmem:[#allocation32 + $0x4a0] sm:$0xff]
    %v4879 = vld [vmem:[#allocation32 + $0x4a8] sm:$0xff]
    %v4880 = vld [vmem:[#allocation32 + $0x4b0] sm:$0xff]
    %v4881 = vld [vmem:[#allocation32 + $0x4b8] sm:$0xff]
    %v4882 = vld [vmem:[#allocation32 + $0x4c0] sm:$0xff]
    %v4883 = vld [vmem:[#allocation32 + $0x4c8] sm:$0xff]
    %v4884 = vld [vmem:[#allocation32 + $0x4d0] sm:$0xff]
    %v4885 = vld [vmem:[#allocation32 + $0x4d8] sm:$0xff]
    %v4886 = vld [vmem:[#allocation32 + $0x4e0] sm:$0xff]
    %v4887 = vld [vmem:[#allocation32 + $0x4e8] sm:$0xff]
    %v4888 = vld [vmem:[#allocation32 + $0x4f0] sm:$0xff]
    %v4889 = vld [vmem:[#allocation32 + $0x4f8] sm:$0xff]
    %v4890 = vld [vmem:[#allocation32 + $0x500] sm:$0xff]
    %v4891 = vld [vmem:[#allocation32 + $0x508] sm:$0xff]
    %v4892 = vld [vmem:[#allocation32 + $0x510] sm:$0xff]
    %v4893 = vld [vmem:[#allocation32 + $0x518] sm:$0xff]
    %v4894 = vld [vmem:[#allocation32 + $0x520] sm:$0xff]
    %v4895 = vld [vmem:[#allocation32 + $0x528] sm:$0xff]
    %v4896 = vld [vmem:[#allocation32 + $0x530] sm:$0xff]
    %v4897 = vld [vmem:[#allocation32 + $0x538] sm:$0xff]
    %v4898 = vld [vmem:[#allocation32 + $0x540] sm:$0xff]
    %v4899 = vld [vmem:[#allocation32 + $0x548] sm:$0xff]
    %v4900 = vld [vmem:[#allocation32 + $0x550] sm:$0xff]
    %v4901 = vld [vmem:[#allocation32 + $0x558] sm:$0xff]
    %v4902 = vld [vmem:[#allocation32 + $0x560] sm:$0xff]
    %v4903 = vld [vmem:[#allocation32 + $0x568] sm:$0xff]
    %v4904 = vld [vmem:[#allocation32 + $0x570] sm:$0xff]
    %v4905 = vld [vmem:[#allocation32 + $0x578] sm:$0xff]
    %v4906 = vld [vmem:[#allocation32 + $0x580] sm:$0xff]
    %v4907 = vld [vmem:[#allocation32 + $0x588] sm:$0xff]
    %v4908 = vld [vmem:[#allocation32 + $0x590] sm:$0xff]
    %v4909 = vld [vmem:[#allocation32 + $0x598] sm:$0xff]
    %v4910 = vld [vmem:[#allocation32 + $0x5a0] sm:$0xff]
    %v4911 = vld [vmem:[#allocation32 + $0x5a8] sm:$0xff]
    %v4912 = vld [vmem:[#allocation32 + $0x5b0] sm:$0xff]
    %v4913 = vld [vmem:[#allocation32 + $0x5b8] sm:$0xff]
    %v4914 = vld [vmem:[#allocation32 + $0x5c0] sm:$0xff]
    %v4915 = vld [vmem:[#allocation32 + $0x5c8] sm:$0xff]
    %v4916 = vld [vmem:[#allocation32 + $0x5d0] sm:$0xff]
    %v4917 = vld [vmem:[#allocation32 + $0x5d8] sm:$0xff]
    %v4918 = vld [vmem:[#allocation32 + $0x5e0] sm:$0xff]
    %v4919 = vld [vmem:[#allocation32 + $0x5e8] sm:$0xff]
    %v4920 = vld [vmem:[#allocation32 + $0x5f0] sm:$0xff]
    %v4921 = vld [vmem:[#allocation32 + $0x5f8] sm:$0xff]
    %v4922 = vld [vmem:[#allocation32 + $0x600] sm:$0xff]
    %v4923 = vld [vmem:[#allocation32 + $0x608] sm:$0xff]
    %v4924 = vld [vmem:[#allocation32 + $0x610] sm:$0xff]
    %v4925 = vld [vmem:[#allocation32 + $0x618] sm:$0xff]
    %v4926 = vld [vmem:[#allocation32 + $0x620] sm:$0xff]
    %v4927 = vld [vmem:[#allocation32 + $0x628] sm:$0xff]
    %v4928 = vld [vmem:[#allocation32 + $0x630] sm:$0xff]
    %v4929 = vld [vmem:[#allocation32 + $0x638] sm:$0xff]
    %v4930 = vld [vmem:[#allocation32 + $0x640] sm:$0xff]
    %v4931 = vld [vmem:[#allocation32 + $0x648] sm:$0xff]
    %v4932 = vld [vmem:[#allocation32 + $0x650] sm:$0xff]
    %v4933 = vld [vmem:[#allocation32 + $0x658] sm:$0xff]
    %v4934 = vld [vmem:[#allocation32 + $0x660] sm:$0xff]
    %v4935 = vld [vmem:[#allocation32 + $0x668] sm:$0xff]
    %v4936 = vld [vmem:[#allocation32 + $0x670] sm:$0xff]
    %v4937 = vld [vmem:[#allocation32 + $0x678] sm:$0xff]
    %v4938 = vld [vmem:[#allocation32 + $0x680] sm:$0xff]
    %v4939 = vld [vmem:[#allocation32 + $0x688] sm:$0xff]
    %v4940 = vld [vmem:[#allocation32 + $0x690] sm:$0xff]
    %v4941 = vld [vmem:[#allocation32 + $0x698] sm:$0xff]
    %v4942 = vld [vmem:[#allocation32 + $0x6a0] sm:$0xff]
    %v4943 = vld [vmem:[#allocation32 + $0x6a8] sm:$0xff]
    %v4944 = vld [vmem:[#allocation32 + $0x6b0] sm:$0xff]
    %v4945 = vld [vmem:[#allocation32 + $0x6b8] sm:$0xff]
    %v4946 = vld [vmem:[#allocation32 + $0x6c0] sm:$0xff]
    %v4947 = vld [vmem:[#allocation32 + $0x6c8] sm:$0xff]
    %v4948 = vld [vmem:[#allocation32 + $0x6d0] sm:$0xff]
    %v4949 = vld [vmem:[#allocation32 + $0x6d8] sm:$0xff]
    %v4950 = vld [vmem:[#allocation32 + $0x6e0] sm:$0xff]
    %v4951 = vld [vmem:[#allocation32 + $0x6e8] sm:$0xff]
    %v4952 = vld [vmem:[#allocation32 + $0x6f0] sm:$0xff]
    %v4953 = vld [vmem:[#allocation32 + $0x6f8] sm:$0xff]
    %v4954 = vld [vmem:[#allocation32 + $0x700] sm:$0xff]
    %v4955 = vld [vmem:[#allocation32 + $0x708] sm:$0xff]
    %v4956 = vld [vmem:[#allocation32 + $0x710] sm:$0xff]
    %v4957 = vld [vmem:[#allocation32 + $0x718] sm:$0xff]
    %v4958 = vld [vmem:[#allocation32 + $0x720] sm:$0xff]
    %v4959 = vld [vmem:[#allocation32 + $0x728] sm:$0xff]
    %v4960 = vld [vmem:[#allocation32 + $0x730] sm:$0xff]
    %v4961 = vld [vmem:[#allocation32 + $0x738] sm:$0xff]
    %v4962 = vld [vmem:[#allocation32 + $0x740] sm:$0xff]
    %v4963 = vld [vmem:[#allocation32 + $0x748] sm:$0xff]
    %v4964 = vld [vmem:[#allocation32 + $0x750] sm:$0xff]
    %v4965 = vld [vmem:[#allocation32 + $0x758] sm:$0xff]
    %v4966 = vld [vmem:[#allocation32 + $0x760] sm:$0xff]
    %v4967 = vld [vmem:[#allocation32 + $0x768] sm:$0xff]
    %v4968 = vld [vmem:[#allocation32 + $0x770] sm:$0xff]
    %v4969 = vld [vmem:[#allocation32 + $0x778] sm:$0xff]
    %v4970 = vld [vmem:[#allocation32 + $0x780] sm:$0xff]
    %v4971 = vld [vmem:[#allocation32 + $0x788] sm:$0xff]
    %v4972 = vld [vmem:[#allocation32 + $0x790] sm:$0xff]
    %v4973 = vld [vmem:[#allocation32 + $0x798] sm:$0xff]
    %v4974 = vld [vmem:[#allocation32 + $0x7a0] sm:$0xff]
    %v4975 = vld [vmem:[#allocation32 + $0x7a8] sm:$0xff]
    %v4976 = vld [vmem:[#allocation32 + $0x7b0] sm:$0xff]
    %v4977 = vld [vmem:[#allocation32 + $0x7b8] sm:$0xff]
    %v4978 = vld [vmem:[#allocation32 + $0x7c0] sm:$0xff]
    %v4979 = vld [vmem:[#allocation32 + $0x7c8] sm:$0xff]
    %v4980 = vld [vmem:[#allocation32 + $0x7d0] sm:$0xff]
    %v4981 = vld [vmem:[#allocation32 + $0x7d8] sm:$0xff]
    %v4982 = vld [vmem:[#allocation32 + $0x7e0] sm:$0xff]
    %v4983 = vld [vmem:[#allocation32 + $0x7e8] sm:$0xff]
    %v4984 = vld [vmem:[#allocation32 + $0x7f0] sm:$0xff]
    %v4985 = vld [vmem:[#allocation32 + $0x7f8] sm:$0xff]
    %v4986 = vld [vmem:[#allocation32 + $0x800] sm:$0xff]
    %v4987 = vld [vmem:[#allocation32 + $0x808] sm:$0xff]
    %v4988 = vld [vmem:[#allocation32 + $0x810] sm:$0xff]
    %v4989 = vld [vmem:[#allocation32 + $0x818] sm:$0xff]
    %v4990 = vld [vmem:[#allocation32 + $0x820] sm:$0xff]
    %v4991 = vld [vmem:[#allocation32 + $0x828] sm:$0xff]
    %v4992 = vld [vmem:[#allocation32 + $0x830] sm:$0xff]
    %v4993 = vld [vmem:[#allocation32 + $0x838] sm:$0xff]
    %v4994 = vld [vmem:[#allocation32 + $0x840] sm:$0xff]
    %v4995 = vld [vmem:[#allocation32 + $0x848] sm:$0xff]
    %v4996 = vld [vmem:[#allocation32 + $0x850] sm:$0xff]
    %v4997 = vld [vmem:[#allocation32 + $0x858] sm:$0xff]
    %v4998 = vld [vmem:[#allocation32 + $0x860] sm:$0xff]
    %v4999 = vld [vmem:[#allocation32 + $0x868] sm:$0xff]
    %v5000 = vld [vmem:[#allocation32 + $0x870] sm:$0xff]
    %v5001 = vld [vmem:[#allocation32 + $0x878] sm:$0xff]
    %v5002 = vld [vmem:[#allocation32 + $0x880] sm:$0xff]
    %v5003 = vld [vmem:[#allocation32 + $0x888] sm:$0xff]
    %v5004 = vld [vmem:[#allocation32 + $0x890] sm:$0xff]
    %v5005 = vld [vmem:[#allocation32 + $0x898] sm:$0xff]
    %v5006 = vld [vmem:[#allocation32 + $0x8a0] sm:$0xff]
    %v5007 = vld [vmem:[#allocation32 + $0x8a8] sm:$0xff]
    %v5008 = vld [vmem:[#allocation32 + $0x8b0] sm:$0xff]
    %v5009 = vld [vmem:[#allocation32 + $0x8b8] sm:$0xff]
    %v5010 = vld [vmem:[#allocation32 + $0x8c0] sm:$0xff]
    %v5011 = vld [vmem:[#allocation32 + $0x8c8] sm:$0xff]
    %v5012 = vld [vmem:[#allocation32 + $0x8d0] sm:$0xff]
    %v5013 = vld [vmem:[#allocation32 + $0x8d8] sm:$0xff]
    %v5014 = vld [vmem:[#allocation32 + $0x8e0] sm:$0xff]
    %v5015 = vld [vmem:[#allocation32 + $0x8e8] sm:$0xff]
    %v5016 = vld [vmem:[#allocation32 + $0x8f0] sm:$0xff]
    %v5017 = vld [vmem:[#allocation32 + $0x8f8] sm:$0xff]
    %v5018 = vld [vmem:[#allocation32 + $0x900] sm:$0xff]
    %v5019 = vld [vmem:[#allocation32 + $0x908] sm:$0xff]
    %v5020 = vld [vmem:[#allocation32 + $0x910] sm:$0xff]
    %v5021 = vld [vmem:[#allocation32 + $0x918] sm:$0xff]
    %v5022 = vld [vmem:[#allocation32 + $0x920] sm:$0xff]
    %v5023 = vld [vmem:[#allocation32 + $0x928] sm:$0xff]
    %v5024 = vld [vmem:[#allocation32 + $0x930] sm:$0xff]
    %v5025 = vld [vmem:[#allocation32 + $0x938] sm:$0xff]
    %v5026 = vld [vmem:[#allocation32 + $0x940] sm:$0xff]
    %v5027 = vld [vmem:[#allocation32 + $0x948] sm:$0xff]
    %v5028 = vld [vmem:[#allocation32 + $0x950] sm:$0xff]
    %v5029 = vld [vmem:[#allocation32 + $0x958] sm:$0xff]
    %v5030 = vld [vmem:[#allocation32 + $0x960] sm:$0xff]
    %v5031 = vld [vmem:[#allocation32 + $0x968] sm:$0xff]
    %v5032 = vld [vmem:[#allocation32 + $0x970] sm:$0xff]
    %v5033 = vld [vmem:[#allocation32 + $0x978] sm:$0xff]
    %v5034 = vld [vmem:[#allocation32 + $0x980] sm:$0xff]
    %v5035 = vld [vmem:[#allocation32 + $0x988] sm:$0xff]
    %v5036 = vld [vmem:[#allocation32 + $0x990] sm:$0xff]
    %v5037 = vld [vmem:[#allocation32 + $0x998] sm:$0xff]
    %v5038 = vld [vmem:[#allocation32 + $0x9a0] sm:$0xff]
    %v5039 = vld [vmem:[#allocation32 + $0x9a8] sm:$0xff]
    %v5040 = vld [vmem:[#allocation32 + $0x9b0] sm:$0xff]
    %v5041 = vld [vmem:[#allocation32 + $0x9b8] sm:$0xff]
    %v5042 = vld [vmem:[#allocation32 + $0x9c0] sm:$0xff]
    %v5043 = vld [vmem:[#allocation32 + $0x9c8] sm:$0xff]
    %v5044 = vld [vmem:[#allocation32 + $0x9d0] sm:$0xff]
    %v5045 = vld [vmem:[#allocation32 + $0x9d8] sm:$0xff]
    %v5046 = vld [vmem:[#allocation32 + $0x9e0] sm:$0xff]
    %v5047 = vld [vmem:[#allocation32 + $0x9e8] sm:$0xff]
    %v5048 = vld [vmem:[#allocation32 + $0x9f0] sm:$0xff]
    %v5049 = vld [vmem:[#allocation32 + $0x9f8] sm:$0xff]
    %v5050 = vld [vmem:[#allocation32 + $0xa00] sm:$0xff]
    %v5051 = vld [vmem:[#allocation32 + $0xa08] sm:$0xff]
    %v5052 = vld [vmem:[#allocation32 + $0xa10] sm:$0xff]
    %v5053 = vld [vmem:[#allocation32 + $0xa18] sm:$0xff]
    %v5054 = vld [vmem:[#allocation32 + $0xa20] sm:$0xff]
    %v5055 = vld [vmem:[#allocation32 + $0xa28] sm:$0xff]
    %v5056 = vld [vmem:[#allocation32 + $0xa30] sm:$0xff]
    %v5057 = vld [vmem:[#allocation32 + $0xa38] sm:$0xff]
    %v5058 = vld [vmem:[#allocation32 + $0xa40] sm:$0xff]
    %v5059 = vld [vmem:[#allocation32 + $0xa48] sm:$0xff]
    %v5060 = vld [vmem:[#allocation32 + $0xa50] sm:$0xff]
    %v5061 = vld [vmem:[#allocation32 + $0xa58] sm:$0xff]
    %v5062 = vld [vmem:[#allocation32 + $0xa60] sm:$0xff]
    %v5063 = vld [vmem:[#allocation32 + $0xa68] sm:$0xff]
    %v5064 = vld [vmem:[#allocation32 + $0xa70] sm:$0xff]
    %v5065 = vld [vmem:[#allocation32 + $0xa78] sm:$0xff]
    %v5066 = vld [vmem:[#allocation32 + $0xa80] sm:$0xff]
    %v5067 = vld [vmem:[#allocation32 + $0xa88] sm:$0xff]
    %v5068 = vld [vmem:[#allocation32 + $0xa90] sm:$0xff]
    %v5069 = vld [vmem:[#allocation32 + $0xa98] sm:$0xff]
    %v5070 = vld [vmem:[#allocation32 + $0xaa0] sm:$0xff]
    %v5071 = vld [vmem:[#allocation32 + $0xaa8] sm:$0xff]
    %v5072 = vld [vmem:[#allocation32 + $0xab0] sm:$0xff]
    %v5073 = vld [vmem:[#allocation32 + $0xab8] sm:$0xff]
    %v5074 = vld [vmem:[#allocation32 + $0xac0] sm:$0xff]
    %v5075 = vld [vmem:[#allocation32 + $0xac8] sm:$0xff]
    %v5076 = vld [vmem:[#allocation32 + $0xad0] sm:$0xff]
    %v5077 = vld [vmem:[#allocation32 + $0xad8] sm:$0xff]
    %v5078 = vld [vmem:[#allocation32 + $0xae0] sm:$0xff]
    %v5079 = vld [vmem:[#allocation32 + $0xae8] sm:$0xff]
    %v5080 = vld [vmem:[#allocation32 + $0xaf0] sm:$0xff]
    %v5081 = vld [vmem:[#allocation32 + $0xaf8] sm:$0xff]
    %v5082 = vld [vmem:[#allocation32 + $0xb00] sm:$0xff]
    %v5083 = vld [vmem:[#allocation32 + $0xb08] sm:$0xff]
    %v5084 = vld [vmem:[#allocation32 + $0xb10] sm:$0xff]
    %v5085 = vld [vmem:[#allocation32 + $0xb18] sm:$0xff]
    %v5086 = vld [vmem:[#allocation32 + $0xb20] sm:$0xff]
    %v5087 = vld [vmem:[#allocation32 + $0xb28] sm:$0xff]
    %v5088 = vld [vmem:[#allocation32 + $0xb30] sm:$0xff]
    %v5089 = vld [vmem:[#allocation32 + $0xb38] sm:$0xff]
    %v5090 = vld [vmem:[#allocation32 + $0xb40] sm:$0xff]
    %v5091 = vld [vmem:[#allocation32 + $0xb48] sm:$0xff]
    %v5092 = vld [vmem:[#allocation32 + $0xb50] sm:$0xff]
    %v5093 = vld [vmem:[#allocation32 + $0xb58] sm:$0xff]
    %v5094 = vld [vmem:[#allocation32 + $0xb60] sm:$0xff]
    %v5095 = vld [vmem:[#allocation32 + $0xb68] sm:$0xff]
    %v5096 = vld [vmem:[#allocation32 + $0xb70] sm:$0xff]
    %v5097 = vld [vmem:[#allocation32 + $0xb78] sm:$0xff]
    %v5098 = vld [vmem:[#allocation32 + $0xb80] sm:$0xff]
    %v5099 = vld [vmem:[#allocation32 + $0xb88] sm:$0xff]
    %v5100 = vld [vmem:[#allocation32 + $0xb90] sm:$0xff]
    %v5101 = vld [vmem:[#allocation32 + $0xb98] sm:$0xff]
    %v5102 = vld [vmem:[#allocation32 + $0xba0] sm:$0xff]
    %v5103 = vld [vmem:[#allocation32 + $0xba8] sm:$0xff]
    %v5104 = vld [vmem:[#allocation32 + $0xbb0] sm:$0xff]
    %v5105 = vld [vmem:[#allocation32 + $0xbb8] sm:$0xff]
    %v5106 = vld [vmem:[#allocation32 + $0xbc0] sm:$0xff]
    %v5107 = vld [vmem:[#allocation32 + $0xbc8] sm:$0xff]
    %v5108 = vld [vmem:[#allocation32 + $0xbd0] sm:$0xff]
    %v5109 = vld [vmem:[#allocation32 + $0xbd8] sm:$0xff]
    %v5110 = vld [vmem:[#allocation32 + $0xbe0] sm:$0xff]
    %v5111 = vld [vmem:[#allocation32 + $0xbe8] sm:$0xff]
    %v5112 = vld [vmem:[#allocation32 + $0xbf0] sm:$0xff]
    %v5113 = vld [vmem:[#allocation32 + $0xbf8] sm:$0xff]
    %v5114 = vld [vmem:[#allocation40] sm:$0xf]
    %v5116 = vlaneseq
    %v5117 = vshrl.u32 %v5116, 7
    %v5118 = vsub.s32 0, %v5117
    %v5119 = vrot.slane %v5114, %v5118
    %v5120 = vlaneseq
    %v5121 = vshrl.u32 %v5120, 7
    %v5122 = vsub.s32 1, %v5121
    %v5123 = vrot.slane %v5114, %v5122
    %v5124 = vlaneseq
    %v5125 = vshrl.u32 %v5124, 7
    %v5126 = vsub.s32 2, %v5125
    %v5127 = vrot.slane %v5114, %v5126
    %v5128 = vlaneseq
    %v5129 = vshrl.u32 %v5128, 7
    %v5130 = vsub.s32 3, %v5129
    %v5131 = vrot.slane %v5114, %v5130
    %v5520 = vunpack.c.l.b16 %v4730
    %v5521 = vunpack.c.h.b16 %v4730
    %v5522 = vunpack.c.l.b16 %v4731
    %v5523 = vunpack.c.h.b16 %v4731
    %v5524 = vunpack.c.l.b16 %v4732
    %v5525 = vunpack.c.h.b16 %v4732
    %v5526 = vunpack.c.l.b16 %v4733
    %v5527 = vunpack.c.h.b16 %v4733
    %v5528 = vunpack.c.l.b16 %v4734
    %v5529 = vunpack.c.h.b16 %v4734
    %v5530 = vunpack.c.l.b16 %v4735
    %v5531 = vunpack.c.h.b16 %v4735
    %v5532 = vunpack.c.l.b16 %v4736
    %v5533 = vunpack.c.h.b16 %v4736
    %v5534 = vunpack.c.l.b16 %v4737
    %v5535 = vunpack.c.h.b16 %v4737
    %v5536 = vunpack.c.l.b16 %v4738
    %v5537 = vunpack.c.h.b16 %v4738
    %v5538 = vunpack.c.l.b16 %v4739
    %v5539 = vunpack.c.h.b16 %v4739
    %v5540 = vunpack.c.l.b16 %v4740
    %v5541 = vunpack.c.h.b16 %v4740
    %v5542 = vunpack.c.l.b16 %v4741
    %v5543 = vunpack.c.h.b16 %v4741
    %v5544 = vunpack.c.l.b16 %v4742
    %v5545 = vunpack.c.h.b16 %v4742
    %v5546 = vunpack.c.l.b16 %v4743
    %v5547 = vunpack.c.h.b16 %v4743
    %v5548 = vunpack.c.l.b16 %v4744
    %v5549 = vunpack.c.h.b16 %v4744
    %v5550 = vunpack.c.l.b16 %v4745
    %v5551 = vunpack.c.h.b16 %v4745
    %v5552 = vunpack.c.l.b16 %v4746
    %v5553 = vunpack.c.h.b16 %v4746
    %v5554 = vunpack.c.l.b16 %v4747
    %v5555 = vunpack.c.h.b16 %v4747
    %v5556 = vunpack.c.l.b16 %v4748
    %v5557 = vunpack.c.h.b16 %v4748
    %v5558 = vunpack.c.l.b16 %v4749
    %v5559 = vunpack.c.h.b16 %v4749
    %v5560 = vunpack.c.l.b16 %v4750
    %v5561 = vunpack.c.h.b16 %v4750
    %v5562 = vunpack.c.l.b16 %v4751
    %v5563 = vunpack.c.h.b16 %v4751
    %v5564 = vunpack.c.l.b16 %v4752
    %v5565 = vunpack.c.h.b16 %v4752
    %v5566 = vunpack.c.l.b16 %v4753
    %v5567 = vunpack.c.h.b16 %v4753
    %v5568 = vunpack.c.l.b16 %v4754
    %v5569 = vunpack.c.h.b16 %v4754
    %v5570 = vunpack.c.l.b16 %v4755
    %v5571 = vunpack.c.h.b16 %v4755
    %v5572 = vunpack.c.l.b16 %v4756
    %v5573 = vunpack.c.h.b16 %v4756
    %v5574 = vunpack.c.l.b16 %v4757
    %v5575 = vunpack.c.h.b16 %v4757
    %v5576 = vunpack.c.l.b16 %v4758
    %v5577 = vunpack.c.h.b16 %v4758
    %v5578 = vunpack.c.l.b16 %v4759
    %v5579 = vunpack.c.h.b16 %v4759
    %v5580 = vunpack.c.l.b16 %v4760
    %v5581 = vunpack.c.h.b16 %v4760
    %v5582 = vunpack.c.l.b16 %v4761
    %v5583 = vunpack.c.h.b16 %v4761
    %v5584 = vunpack.c.l.b16 %v4762
    %v5585 = vunpack.c.h.b16 %v4762
    %v5586 = vunpack.c.l.b16 %v4763
    %v5587 = vunpack.c.h.b16 %v4763
    %v5588 = vunpack.c.l.b16 %v4764
    %v5589 = vunpack.c.h.b16 %v4764
    %v5590 = vunpack.c.l.b16 %v4765
    %v5591 = vunpack.c.h.b16 %v4765
    %v5592 = vunpack.c.l.b16 %v4766
    %v5593 = vunpack.c.h.b16 %v4766
    %v5594 = vunpack.c.l.b16 %v4767
    %v5595 = vunpack.c.h.b16 %v4767
    %v5596 = vunpack.c.l.b16 %v4768
    %v5597 = vunpack.c.h.b16 %v4768
    %v5598 = vunpack.c.l.b16 %v4769
    %v5599 = vunpack.c.h.b16 %v4769
    %v5600 = vunpack.c.l.b16 %v4770
    %v5601 = vunpack.c.h.b16 %v4770
    %v5602 = vunpack.c.l.b16 %v4771
    %v5603 = vunpack.c.h.b16 %v4771
    %v5604 = vunpack.c.l.b16 %v4772
    %v5605 = vunpack.c.h.b16 %v4772
    %v5606 = vunpack.c.l.b16 %v4773
    %v5607 = vunpack.c.h.b16 %v4773
    %v5608 = vunpack.c.l.b16 %v4774
    %v5609 = vunpack.c.h.b16 %v4774
    %v5610 = vunpack.c.l.b16 %v4775
    %v5611 = vunpack.c.h.b16 %v4775
    %v5612 = vunpack.c.l.b16 %v4776
    %v5613 = vunpack.c.h.b16 %v4776
    %v5614 = vunpack.c.l.b16 %v4777
    %v5615 = vunpack.c.h.b16 %v4777
    %v5616 = vunpack.c.l.b16 %v4778
    %v5617 = vunpack.c.h.b16 %v4778
    %v5618 = vunpack.c.l.b16 %v4779
    %v5619 = vunpack.c.h.b16 %v4779
    %v5620 = vunpack.c.l.b16 %v4780
    %v5621 = vunpack.c.h.b16 %v4780
    %v5622 = vunpack.c.l.b16 %v4781
    %v5623 = vunpack.c.h.b16 %v4781
    %v5624 = vunpack.c.l.b16 %v4782
    %v5625 = vunpack.c.h.b16 %v4782
    %v5626 = vunpack.c.l.b16 %v4783
    %v5627 = vunpack.c.h.b16 %v4783
    %v5628 = vunpack.c.l.b16 %v4784
    %v5629 = vunpack.c.h.b16 %v4784
    %v5630 = vunpack.c.l.b16 %v4785
    %v5631 = vunpack.c.h.b16 %v4785
    %v5632 = vunpack.c.l.b16 %v4786
    %v5633 = vunpack.c.h.b16 %v4786
    %v5634 = vunpack.c.l.b16 %v4787
    %v5635 = vunpack.c.h.b16 %v4787
    %v5636 = vunpack.c.l.b16 %v4788
    %v5637 = vunpack.c.h.b16 %v4788
    %v5638 = vunpack.c.l.b16 %v4789
    %v5639 = vunpack.c.h.b16 %v4789
    %v5640 = vunpack.c.l.b16 %v4790
    %v5641 = vunpack.c.h.b16 %v4790
    %v5642 = vunpack.c.l.b16 %v4791
    %v5643 = vunpack.c.h.b16 %v4791
    %v5644 = vunpack.c.l.b16 %v4792
    %v5645 = vunpack.c.h.b16 %v4792
    %v5646 = vunpack.c.l.b16 %v4793
    %v5647 = vunpack.c.h.b16 %v4793
    %v5648 = vunpack.c.l.b16 %v4794
    %v5649 = vunpack.c.h.b16 %v4794
    %v5650 = vunpack.c.l.b16 %v4795
    %v5651 = vunpack.c.h.b16 %v4795
    %v5652 = vunpack.c.l.b16 %v4796
    %v5653 = vunpack.c.h.b16 %v4796
    %v5654 = vunpack.c.l.b16 %v4797
    %v5655 = vunpack.c.h.b16 %v4797
    %v5656 = vunpack.c.l.b16 %v4798
    %v5657 = vunpack.c.h.b16 %v4798
    %v5658 = vunpack.c.l.b16 %v4799
    %v5659 = vunpack.c.h.b16 %v4799
    %v5660 = vunpack.c.l.b16 %v4800
    %v5661 = vunpack.c.h.b16 %v4800
    %v5662 = vunpack.c.l.b16 %v4801
    %v5663 = vunpack.c.h.b16 %v4801
    %v5664 = vunpack.c.l.b16 %v4802
    %v5665 = vunpack.c.h.b16 %v4802
    %v5666 = vunpack.c.l.b16 %v4803
    %v5667 = vunpack.c.h.b16 %v4803
    %v5668 = vunpack.c.l.b16 %v4804
    %v5669 = vunpack.c.h.b16 %v4804
    %v5670 = vunpack.c.l.b16 %v4805
    %v5671 = vunpack.c.h.b16 %v4805
    %v5672 = vunpack.c.l.b16 %v4806
    %v5673 = vunpack.c.h.b16 %v4806
    %v5674 = vunpack.c.l.b16 %v4807
    %v5675 = vunpack.c.h.b16 %v4807
    %v5676 = vunpack.c.l.b16 %v4808
    %v5677 = vunpack.c.h.b16 %v4808
    %v5678 = vunpack.c.l.b16 %v4809
    %v5679 = vunpack.c.h.b16 %v4809
    %v5680 = vunpack.c.l.b16 %v4810
    %v5681 = vunpack.c.h.b16 %v4810
    %v5682 = vunpack.c.l.b16 %v4811
    %v5683 = vunpack.c.h.b16 %v4811
    %v5684 = vunpack.c.l.b16 %v4812
    %v5685 = vunpack.c.h.b16 %v4812
    %v5686 = vunpack.c.l.b16 %v4813
    %v5687 = vunpack.c.h.b16 %v4813
    %v5688 = vunpack.c.l.b16 %v4814
    %v5689 = vunpack.c.h.b16 %v4814
    %v5690 = vunpack.c.l.b16 %v4815
    %v5691 = vunpack.c.h.b16 %v4815
    %v5692 = vunpack.c.l.b16 %v4816
    %v5693 = vunpack.c.h.b16 %v4816
    %v5694 = vunpack.c.l.b16 %v4817
    %v5695 = vunpack.c.h.b16 %v4817
    %v5696 = vunpack.c.l.b16 %v4818
    %v5697 = vunpack.c.h.b16 %v4818
    %v5698 = vunpack.c.l.b16 %v4819
    %v5699 = vunpack.c.h.b16 %v4819
    %v5700 = vunpack.c.l.b16 %v4820
    %v5701 = vunpack.c.h.b16 %v4820
    %v5702 = vunpack.c.l.b16 %v4821
    %v5703 = vunpack.c.h.b16 %v4821
    %v5704 = vunpack.c.l.b16 %v4822
    %v5705 = vunpack.c.h.b16 %v4822
    %v5706 = vunpack.c.l.b16 %v4823
    %v5707 = vunpack.c.h.b16 %v4823
    %v5708 = vunpack.c.l.b16 %v4824
    %v5709 = vunpack.c.h.b16 %v4824
    %v5710 = vunpack.c.l.b16 %v4825
    %v5711 = vunpack.c.h.b16 %v4825
    %v5712 = vunpack.c.l.b16 %v4826
    %v5713 = vunpack.c.h.b16 %v4826
    %v5714 = vunpack.c.l.b16 %v4827
    %v5715 = vunpack.c.h.b16 %v4827
    %v5716 = vunpack.c.l.b16 %v4828
    %v5717 = vunpack.c.h.b16 %v4828
    %v5718 = vunpack.c.l.b16 %v4829
    %v5719 = vunpack.c.h.b16 %v4829
    %v5720 = vunpack.c.l.b16 %v4830
    %v5721 = vunpack.c.h.b16 %v4830
    %v5722 = vunpack.c.l.b16 %v4831
    %v5723 = vunpack.c.h.b16 %v4831
    %v5724 = vunpack.c.l.b16 %v4832
    %v5725 = vunpack.c.h.b16 %v4832
    %v5726 = vunpack.c.l.b16 %v4833
    %v5727 = vunpack.c.h.b16 %v4833
    %v5728 = vunpack.c.l.b16 %v4834
    %v5729 = vunpack.c.h.b16 %v4834
    %v5730 = vunpack.c.l.b16 %v4835
    %v5731 = vunpack.c.h.b16 %v4835
    %v5732 = vunpack.c.l.b16 %v4836
    %v5733 = vunpack.c.h.b16 %v4836
    %v5734 = vunpack.c.l.b16 %v4837
    %v5735 = vunpack.c.h.b16 %v4837
    %v5736 = vunpack.c.l.b16 %v4838
    %v5737 = vunpack.c.h.b16 %v4838
    %v5738 = vunpack.c.l.b16 %v4839
    %v5739 = vunpack.c.h.b16 %v4839
    %v5740 = vunpack.c.l.b16 %v4840
    %v5741 = vunpack.c.h.b16 %v4840
    %v5742 = vunpack.c.l.b16 %v4841
    %v5743 = vunpack.c.h.b16 %v4841
    %v5744 = vunpack.c.l.b16 %v4842
    %v5745 = vunpack.c.h.b16 %v4842
    %v5746 = vunpack.c.l.b16 %v4843
    %v5747 = vunpack.c.h.b16 %v4843
    %v5748 = vunpack.c.l.b16 %v4844
    %v5749 = vunpack.c.h.b16 %v4844
    %v5750 = vunpack.c.l.b16 %v4845
    %v5751 = vunpack.c.h.b16 %v4845
    %v5752 = vunpack.c.l.b16 %v4846
    %v5753 = vunpack.c.h.b16 %v4846
    %v5754 = vunpack.c.l.b16 %v4847
    %v5755 = vunpack.c.h.b16 %v4847
    %v5756 = vunpack.c.l.b16 %v4848
    %v5757 = vunpack.c.h.b16 %v4848
    %v5758 = vunpack.c.l.b16 %v4849
    %v5759 = vunpack.c.h.b16 %v4849
    %v5760 = vunpack.c.l.b16 %v4850
    %v5761 = vunpack.c.h.b16 %v4850
    %v5762 = vunpack.c.l.b16 %v4851
    %v5763 = vunpack.c.h.b16 %v4851
    %v5764 = vunpack.c.l.b16 %v4852
    %v5765 = vunpack.c.h.b16 %v4852
    %v5766 = vunpack.c.l.b16 %v4853
    %v5767 = vunpack.c.h.b16 %v4853
    %v5768 = vunpack.c.l.b16 %v4854
    %v5769 = vunpack.c.h.b16 %v4854
    %v5770 = vunpack.c.l.b16 %v4855
    %v5771 = vunpack.c.h.b16 %v4855
    %v5772 = vunpack.c.l.b16 %v4856
    %v5773 = vunpack.c.h.b16 %v4856
    %v5774 = vunpack.c.l.b16 %v4857
    %v5775 = vunpack.c.h.b16 %v4857
    %v5776 = vunpack.c.l.b16 %v4858
    %v5777 = vunpack.c.h.b16 %v4858
    %v5778 = vunpack.c.l.b16 %v4859
    %v5779 = vunpack.c.h.b16 %v4859
    %v5780 = vunpack.c.l.b16 %v4860
    %v5781 = vunpack.c.h.b16 %v4860
    %v5782 = vunpack.c.l.b16 %v4861
    %v5783 = vunpack.c.h.b16 %v4861
    %v5784 = vunpack.c.l.b16 %v4862
    %v5785 = vunpack.c.h.b16 %v4862
    %v5786 = vunpack.c.l.b16 %v4863
    %v5787 = vunpack.c.h.b16 %v4863
    %v5788 = vunpack.c.l.b16 %v4864
    %v5789 = vunpack.c.h.b16 %v4864
    %v5790 = vunpack.c.l.b16 %v4865
    %v5791 = vunpack.c.h.b16 %v4865
    %v5792 = vunpack.c.l.b16 %v4866
    %v5793 = vunpack.c.h.b16 %v4866
    %v5794 = vunpack.c.l.b16 %v4867
    %v5795 = vunpack.c.h.b16 %v4867
    %v5796 = vunpack.c.l.b16 %v4868
    %v5797 = vunpack.c.h.b16 %v4868
    %v5798 = vunpack.c.l.b16 %v4869
    %v5799 = vunpack.c.h.b16 %v4869
    %v5800 = vunpack.c.l.b16 %v4870
    %v5801 = vunpack.c.h.b16 %v4870
    %v5802 = vunpack.c.l.b16 %v4871
    %v5803 = vunpack.c.h.b16 %v4871
    %v5804 = vunpack.c.l.b16 %v4872
    %v5805 = vunpack.c.h.b16 %v4872
    %v5806 = vunpack.c.l.b16 %v4873
    %v5807 = vunpack.c.h.b16 %v4873
    %v5808 = vunpack.c.l.b16 %v4874
    %v5809 = vunpack.c.h.b16 %v4874
    %v5810 = vunpack.c.l.b16 %v4875
    %v5811 = vunpack.c.h.b16 %v4875
    %v5812 = vunpack.c.l.b16 %v4876
    %v5813 = vunpack.c.h.b16 %v4876
    %v5814 = vunpack.c.l.b16 %v4877
    %v5815 = vunpack.c.h.b16 %v4877
    %v5816 = vunpack.c.l.b16 %v4878
    %v5817 = vunpack.c.h.b16 %v4878
    %v5818 = vunpack.c.l.b16 %v4879
    %v5819 = vunpack.c.h.b16 %v4879
    %v5820 = vunpack.c.l.b16 %v4880
    %v5821 = vunpack.c.h.b16 %v4880
    %v5822 = vunpack.c.l.b16 %v4881
    %v5823 = vunpack.c.h.b16 %v4881
    %v5824 = vunpack.c.l.b16 %v4882
    %v5825 = vunpack.c.h.b16 %v4882
    %v5826 = vunpack.c.l.b16 %v4883
    %v5827 = vunpack.c.h.b16 %v4883
    %v5828 = vunpack.c.l.b16 %v4884
    %v5829 = vunpack.c.h.b16 %v4884
    %v5830 = vunpack.c.l.b16 %v4885
    %v5831 = vunpack.c.h.b16 %v4885
    %v5832 = vunpack.c.l.b16 %v4886
    %v5833 = vunpack.c.h.b16 %v4886
    %v5834 = vunpack.c.l.b16 %v4887
    %v5835 = vunpack.c.h.b16 %v4887
    %v5836 = vunpack.c.l.b16 %v4888
    %v5837 = vunpack.c.h.b16 %v4888
    %v5838 = vunpack.c.l.b16 %v4889
    %v5839 = vunpack.c.h.b16 %v4889
    %v5840 = vunpack.c.l.b16 %v4890
    %v5841 = vunpack.c.h.b16 %v4890
    %v5842 = vunpack.c.l.b16 %v4891
    %v5843 = vunpack.c.h.b16 %v4891
    %v5844 = vunpack.c.l.b16 %v4892
    %v5845 = vunpack.c.h.b16 %v4892
    %v5846 = vunpack.c.l.b16 %v4893
    %v5847 = vunpack.c.h.b16 %v4893
    %v5848 = vunpack.c.l.b16 %v4894
    %v5849 = vunpack.c.h.b16 %v4894
    %v5850 = vunpack.c.l.b16 %v4895
    %v5851 = vunpack.c.h.b16 %v4895
    %v5852 = vunpack.c.l.b16 %v4896
    %v5853 = vunpack.c.h.b16 %v4896
    %v5854 = vunpack.c.l.b16 %v4897
    %v5855 = vunpack.c.h.b16 %v4897
    %v5856 = vunpack.c.l.b16 %v4898
    %v5857 = vunpack.c.h.b16 %v4898
    %v5858 = vunpack.c.l.b16 %v4899
    %v5859 = vunpack.c.h.b16 %v4899
    %v5860 = vunpack.c.l.b16 %v4900
    %v5861 = vunpack.c.h.b16 %v4900
    %v5862 = vunpack.c.l.b16 %v4901
    %v5863 = vunpack.c.h.b16 %v4901
    %v5864 = vunpack.c.l.b16 %v4902
    %v5865 = vunpack.c.h.b16 %v4902
    %v5866 = vunpack.c.l.b16 %v4903
    %v5867 = vunpack.c.h.b16 %v4903
    %v5868 = vunpack.c.l.b16 %v4904
    %v5869 = vunpack.c.h.b16 %v4904
    %v5870 = vunpack.c.l.b16 %v4905
    %v5871 = vunpack.c.h.b16 %v4905
    %v5872 = vunpack.c.l.b16 %v4906
    %v5873 = vunpack.c.h.b16 %v4906
    %v5874 = vunpack.c.l.b16 %v4907
    %v5875 = vunpack.c.h.b16 %v4907
    %v5876 = vunpack.c.l.b16 %v4908
    %v5877 = vunpack.c.h.b16 %v4908
    %v5878 = vunpack.c.l.b16 %v4909
    %v5879 = vunpack.c.h.b16 %v4909
    %v5880 = vunpack.c.l.b16 %v4910
    %v5881 = vunpack.c.h.b16 %v4910
    %v5882 = vunpack.c.l.b16 %v4911
    %v5883 = vunpack.c.h.b16 %v4911
    %v5884 = vunpack.c.l.b16 %v4912
    %v5885 = vunpack.c.h.b16 %v4912
    %v5886 = vunpack.c.l.b16 %v4913
    %v5887 = vunpack.c.h.b16 %v4913
    %v5888 = vunpack.c.l.b16 %v4914
    %v5889 = vunpack.c.h.b16 %v4914
    %v5890 = vunpack.c.l.b16 %v4915
    %v5891 = vunpack.c.h.b16 %v4915
    %v5892 = vunpack.c.l.b16 %v4916
    %v5893 = vunpack.c.h.b16 %v4916
    %v5894 = vunpack.c.l.b16 %v4917
    %v5895 = vunpack.c.h.b16 %v4917
    %v5896 = vunpack.c.l.b16 %v4918
    %v5897 = vunpack.c.h.b16 %v4918
    %v5898 = vunpack.c.l.b16 %v4919
    %v5899 = vunpack.c.h.b16 %v4919
    %v5900 = vunpack.c.l.b16 %v4920
    %v5901 = vunpack.c.h.b16 %v4920
    %v5902 = vunpack.c.l.b16 %v4921
    %v5903 = vunpack.c.h.b16 %v4921
    %v5904 = vunpack.c.l.b16 %v4922
    %v5905 = vunpack.c.h.b16 %v4922
    %v5906 = vunpack.c.l.b16 %v4923
    %v5907 = vunpack.c.h.b16 %v4923
    %v5908 = vunpack.c.l.b16 %v4924
    %v5909 = vunpack.c.h.b16 %v4924
    %v5910 = vunpack.c.l.b16 %v4925
    %v5911 = vunpack.c.h.b16 %v4925
    %v5912 = vunpack.c.l.b16 %v4926
    %v5913 = vunpack.c.h.b16 %v4926
    %v5914 = vunpack.c.l.b16 %v4927
    %v5915 = vunpack.c.h.b16 %v4927
    %v5916 = vunpack.c.l.b16 %v4928
    %v5917 = vunpack.c.h.b16 %v4928
    %v5918 = vunpack.c.l.b16 %v4929
    %v5919 = vunpack.c.h.b16 %v4929
    %v5920 = vunpack.c.l.b16 %v4930
    %v5921 = vunpack.c.h.b16 %v4930
    %v5922 = vunpack.c.l.b16 %v4931
    %v5923 = vunpack.c.h.b16 %v4931
    %v5924 = vunpack.c.l.b16 %v4932
    %v5925 = vunpack.c.h.b16 %v4932
    %v5926 = vunpack.c.l.b16 %v4933
    %v5927 = vunpack.c.h.b16 %v4933
    %v5928 = vunpack.c.l.b16 %v4934
    %v5929 = vunpack.c.h.b16 %v4934
    %v5930 = vunpack.c.l.b16 %v4935
    %v5931 = vunpack.c.h.b16 %v4935
    %v5932 = vunpack.c.l.b16 %v4936
    %v5933 = vunpack.c.h.b16 %v4936
    %v5934 = vunpack.c.l.b16 %v4937
    %v5935 = vunpack.c.h.b16 %v4937
    %v5936 = vunpack.c.l.b16 %v4938
    %v5937 = vunpack.c.h.b16 %v4938
    %v5938 = vunpack.c.l.b16 %v4939
    %v5939 = vunpack.c.h.b16 %v4939
    %v5940 = vunpack.c.l.b16 %v4940
    %v5941 = vunpack.c.h.b16 %v4940
    %v5942 = vunpack.c.l.b16 %v4941
    %v5943 = vunpack.c.h.b16 %v4941
    %v5944 = vunpack.c.l.b16 %v4942
    %v5945 = vunpack.c.h.b16 %v4942
    %v5946 = vunpack.c.l.b16 %v4943
    %v5947 = vunpack.c.h.b16 %v4943
    %v5948 = vunpack.c.l.b16 %v4944
    %v5949 = vunpack.c.h.b16 %v4944
    %v5950 = vunpack.c.l.b16 %v4945
    %v5951 = vunpack.c.h.b16 %v4945
    %v5952 = vunpack.c.l.b16 %v4946
    %v5953 = vunpack.c.h.b16 %v4946
    %v5954 = vunpack.c.l.b16 %v4947
    %v5955 = vunpack.c.h.b16 %v4947
    %v5956 = vunpack.c.l.b16 %v4948
    %v5957 = vunpack.c.h.b16 %v4948
    %v5958 = vunpack.c.l.b16 %v4949
    %v5959 = vunpack.c.h.b16 %v4949
    %v5960 = vunpack.c.l.b16 %v4950
    %v5961 = vunpack.c.h.b16 %v4950
    %v5962 = vunpack.c.l.b16 %v4951
    %v5963 = vunpack.c.h.b16 %v4951
    %v5964 = vunpack.c.l.b16 %v4952
    %v5965 = vunpack.c.h.b16 %v4952
    %v5966 = vunpack.c.l.b16 %v4953
    %v5967 = vunpack.c.h.b16 %v4953
    %v5968 = vunpack.c.l.b16 %v4954
    %v5969 = vunpack.c.h.b16 %v4954
    %v5970 = vunpack.c.l.b16 %v4955
    %v5971 = vunpack.c.h.b16 %v4955
    %v5972 = vunpack.c.l.b16 %v4956
    %v5973 = vunpack.c.h.b16 %v4956
    %v5974 = vunpack.c.l.b16 %v4957
    %v5975 = vunpack.c.h.b16 %v4957
    %v5976 = vunpack.c.l.b16 %v4958
    %v5977 = vunpack.c.h.b16 %v4958
    %v5978 = vunpack.c.l.b16 %v4959
    %v5979 = vunpack.c.h.b16 %v4959
    %v5980 = vunpack.c.l.b16 %v4960
    %v5981 = vunpack.c.h.b16 %v4960
    %v5982 = vunpack.c.l.b16 %v4961
    %v5983 = vunpack.c.h.b16 %v4961
    %v5984 = vunpack.c.l.b16 %v4962
    %v5985 = vunpack.c.h.b16 %v4962
    %v5986 = vunpack.c.l.b16 %v4963
    %v5987 = vunpack.c.h.b16 %v4963
    %v5988 = vunpack.c.l.b16 %v4964
    %v5989 = vunpack.c.h.b16 %v4964
    %v5990 = vunpack.c.l.b16 %v4965
    %v5991 = vunpack.c.h.b16 %v4965
    %v5992 = vunpack.c.l.b16 %v4966
    %v5993 = vunpack.c.h.b16 %v4966
    %v5994 = vunpack.c.l.b16 %v4967
    %v5995 = vunpack.c.h.b16 %v4967
    %v5996 = vunpack.c.l.b16 %v4968
    %v5997 = vunpack.c.h.b16 %v4968
    %v5998 = vunpack.c.l.b16 %v4969
    %v5999 = vunpack.c.h.b16 %v4969
    %v6000 = vunpack.c.l.b16 %v4970
    %v6001 = vunpack.c.h.b16 %v4970
    %v6002 = vunpack.c.l.b16 %v4971
    %v6003 = vunpack.c.h.b16 %v4971
    %v6004 = vunpack.c.l.b16 %v4972
    %v6005 = vunpack.c.h.b16 %v4972
    %v6006 = vunpack.c.l.b16 %v4973
    %v6007 = vunpack.c.h.b16 %v4973
    %v6008 = vunpack.c.l.b16 %v4974
    %v6009 = vunpack.c.h.b16 %v4974
    %v6010 = vunpack.c.l.b16 %v4975
    %v6011 = vunpack.c.h.b16 %v4975
    %v6012 = vunpack.c.l.b16 %v4976
    %v6013 = vunpack.c.h.b16 %v4976
    %v6014 = vunpack.c.l.b16 %v4977
    %v6015 = vunpack.c.h.b16 %v4977
    %v6016 = vunpack.c.l.b16 %v4978
    %v6017 = vunpack.c.h.b16 %v4978
    %v6018 = vunpack.c.l.b16 %v4979
    %v6019 = vunpack.c.h.b16 %v4979
    %v6020 = vunpack.c.l.b16 %v4980
    %v6021 = vunpack.c.h.b16 %v4980
    %v6022 = vunpack.c.l.b16 %v4981
    %v6023 = vunpack.c.h.b16 %v4981
    %v6024 = vunpack.c.l.b16 %v4982
    %v6025 = vunpack.c.h.b16 %v4982
    %v6026 = vunpack.c.l.b16 %v4983
    %v6027 = vunpack.c.h.b16 %v4983
    %v6028 = vunpack.c.l.b16 %v4984
    %v6029 = vunpack.c.h.b16 %v4984
    %v6030 = vunpack.c.l.b16 %v4985
    %v6031 = vunpack.c.h.b16 %v4985
    %v6032 = vunpack.c.l.b16 %v4986
    %v6033 = vunpack.c.h.b16 %v4986
    %v6034 = vunpack.c.l.b16 %v4987
    %v6035 = vunpack.c.h.b16 %v4987
    %v6036 = vunpack.c.l.b16 %v4988
    %v6037 = vunpack.c.h.b16 %v4988
    %v6038 = vunpack.c.l.b16 %v4989
    %v6039 = vunpack.c.h.b16 %v4989
    %v6040 = vunpack.c.l.b16 %v4990
    %v6041 = vunpack.c.h.b16 %v4990
    %v6042 = vunpack.c.l.b16 %v4991
    %v6043 = vunpack.c.h.b16 %v4991
    %v6044 = vunpack.c.l.b16 %v4992
    %v6045 = vunpack.c.h.b16 %v4992
    %v6046 = vunpack.c.l.b16 %v4993
    %v6047 = vunpack.c.h.b16 %v4993
    %v6048 = vunpack.c.l.b16 %v4994
    %v6049 = vunpack.c.h.b16 %v4994
    %v6050 = vunpack.c.l.b16 %v4995
    %v6051 = vunpack.c.h.b16 %v4995
    %v6052 = vunpack.c.l.b16 %v4996
    %v6053 = vunpack.c.h.b16 %v4996
    %v6054 = vunpack.c.l.b16 %v4997
    %v6055 = vunpack.c.h.b16 %v4997
    %v6056 = vunpack.c.l.b16 %v4998
    %v6057 = vunpack.c.h.b16 %v4998
    %v6058 = vunpack.c.l.b16 %v4999
    %v6059 = vunpack.c.h.b16 %v4999
    %v6060 = vunpack.c.l.b16 %v5000
    %v6061 = vunpack.c.h.b16 %v5000
    %v6062 = vunpack.c.l.b16 %v5001
    %v6063 = vunpack.c.h.b16 %v5001
    %v6064 = vunpack.c.l.b16 %v5002
    %v6065 = vunpack.c.h.b16 %v5002
    %v6066 = vunpack.c.l.b16 %v5003
    %v6067 = vunpack.c.h.b16 %v5003
    %v6068 = vunpack.c.l.b16 %v5004
    %v6069 = vunpack.c.h.b16 %v5004
    %v6070 = vunpack.c.l.b16 %v5005
    %v6071 = vunpack.c.h.b16 %v5005
    %v6072 = vunpack.c.l.b16 %v5006
    %v6073 = vunpack.c.h.b16 %v5006
    %v6074 = vunpack.c.l.b16 %v5007
    %v6075 = vunpack.c.h.b16 %v5007
    %v6076 = vunpack.c.l.b16 %v5008
    %v6077 = vunpack.c.h.b16 %v5008
    %v6078 = vunpack.c.l.b16 %v5009
    %v6079 = vunpack.c.h.b16 %v5009
    %v6080 = vunpack.c.l.b16 %v5010
    %v6081 = vunpack.c.h.b16 %v5010
    %v6082 = vunpack.c.l.b16 %v5011
    %v6083 = vunpack.c.h.b16 %v5011
    %v6084 = vunpack.c.l.b16 %v5012
    %v6085 = vunpack.c.h.b16 %v5012
    %v6086 = vunpack.c.l.b16 %v5013
    %v6087 = vunpack.c.h.b16 %v5013
    %v6088 = vunpack.c.l.b16 %v5014
    %v6089 = vunpack.c.h.b16 %v5014
    %v6090 = vunpack.c.l.b16 %v5015
    %v6091 = vunpack.c.h.b16 %v5015
    %v6092 = vunpack.c.l.b16 %v5016
    %v6093 = vunpack.c.h.b16 %v5016
    %v6094 = vunpack.c.l.b16 %v5017
    %v6095 = vunpack.c.h.b16 %v5017
    %v6096 = vunpack.c.l.b16 %v5018
    %v6097 = vunpack.c.h.b16 %v5018
    %v6098 = vunpack.c.l.b16 %v5019
    %v6099 = vunpack.c.h.b16 %v5019
    %v6100 = vunpack.c.l.b16 %v5020
    %v6101 = vunpack.c.h.b16 %v5020
    %v6102 = vunpack.c.l.b16 %v5021
    %v6103 = vunpack.c.h.b16 %v5021
    %v6104 = vunpack.c.l.b16 %v5022
    %v6105 = vunpack.c.h.b16 %v5022
    %v6106 = vunpack.c.l.b16 %v5023
    %v6107 = vunpack.c.h.b16 %v5023
    %v6108 = vunpack.c.l.b16 %v5024
    %v6109 = vunpack.c.h.b16 %v5024
    %v6110 = vunpack.c.l.b16 %v5025
    %v6111 = vunpack.c.h.b16 %v5025
    %v6112 = vunpack.c.l.b16 %v5026
    %v6113 = vunpack.c.h.b16 %v5026
    %v6114 = vunpack.c.l.b16 %v5027
    %v6115 = vunpack.c.h.b16 %v5027
    %v6116 = vunpack.c.l.b16 %v5028
    %v6117 = vunpack.c.h.b16 %v5028
    %v6118 = vunpack.c.l.b16 %v5029
    %v6119 = vunpack.c.h.b16 %v5029
    %v6120 = vunpack.c.l.b16 %v5030
    %v6121 = vunpack.c.h.b16 %v5030
    %v6122 = vunpack.c.l.b16 %v5031
    %v6123 = vunpack.c.h.b16 %v5031
    %v6124 = vunpack.c.l.b16 %v5032
    %v6125 = vunpack.c.h.b16 %v5032
    %v6126 = vunpack.c.l.b16 %v5033
    %v6127 = vunpack.c.h.b16 %v5033
    %v6128 = vunpack.c.l.b16 %v5034
    %v6129 = vunpack.c.h.b16 %v5034
    %v6130 = vunpack.c.l.b16 %v5035
    %v6131 = vunpack.c.h.b16 %v5035
    %v6132 = vunpack.c.l.b16 %v5036
    %v6133 = vunpack.c.h.b16 %v5036
    %v6134 = vunpack.c.l.b16 %v5037
    %v6135 = vunpack.c.h.b16 %v5037
    %v6136 = vunpack.c.l.b16 %v5038
    %v6137 = vunpack.c.h.b16 %v5038
    %v6138 = vunpack.c.l.b16 %v5039
    %v6139 = vunpack.c.h.b16 %v5039
    %v6140 = vunpack.c.l.b16 %v5040
    %v6141 = vunpack.c.h.b16 %v5040
    %v6142 = vunpack.c.l.b16 %v5041
    %v6143 = vunpack.c.h.b16 %v5041
    %v6144 = vunpack.c.l.b16 %v5042
    %v6145 = vunpack.c.h.b16 %v5042
    %v6146 = vunpack.c.l.b16 %v5043
    %v6147 = vunpack.c.h.b16 %v5043
    %v6148 = vunpack.c.l.b16 %v5044
    %v6149 = vunpack.c.h.b16 %v5044
    %v6150 = vunpack.c.l.b16 %v5045
    %v6151 = vunpack.c.h.b16 %v5045
    %v6152 = vunpack.c.l.b16 %v5046
    %v6153 = vunpack.c.h.b16 %v5046
    %v6154 = vunpack.c.l.b16 %v5047
    %v6155 = vunpack.c.h.b16 %v5047
    %v6156 = vunpack.c.l.b16 %v5048
    %v6157 = vunpack.c.h.b16 %v5048
    %v6158 = vunpack.c.l.b16 %v5049
    %v6159 = vunpack.c.h.b16 %v5049
    %v6160 = vunpack.c.l.b16 %v5050
    %v6161 = vunpack.c.h.b16 %v5050
    %v6162 = vunpack.c.l.b16 %v5051
    %v6163 = vunpack.c.h.b16 %v5051
    %v6164 = vunpack.c.l.b16 %v5052
    %v6165 = vunpack.c.h.b16 %v5052
    %v6166 = vunpack.c.l.b16 %v5053
    %v6167 = vunpack.c.h.b16 %v5053
    %v6168 = vunpack.c.l.b16 %v5054
    %v6169 = vunpack.c.h.b16 %v5054
    %v6170 = vunpack.c.l.b16 %v5055
    %v6171 = vunpack.c.h.b16 %v5055
    %v6172 = vunpack.c.l.b16 %v5056
    %v6173 = vunpack.c.h.b16 %v5056
    %v6174 = vunpack.c.l.b16 %v5057
    %v6175 = vunpack.c.h.b16 %v5057
    %v6176 = vunpack.c.l.b16 %v5058
    %v6177 = vunpack.c.h.b16 %v5058
    %v6178 = vunpack.c.l.b16 %v5059
    %v6179 = vunpack.c.h.b16 %v5059
    %v6180 = vunpack.c.l.b16 %v5060
    %v6181 = vunpack.c.h.b16 %v5060
    %v6182 = vunpack.c.l.b16 %v5061
    %v6183 = vunpack.c.h.b16 %v5061
    %v6184 = vunpack.c.l.b16 %v5062
    %v6185 = vunpack.c.h.b16 %v5062
    %v6186 = vunpack.c.l.b16 %v5063
    %v6187 = vunpack.c.h.b16 %v5063
    %v6188 = vunpack.c.l.b16 %v5064
    %v6189 = vunpack.c.h.b16 %v5064
    %v6190 = vunpack.c.l.b16 %v5065
    %v6191 = vunpack.c.h.b16 %v5065
    %v6192 = vunpack.c.l.b16 %v5066
    %v6193 = vunpack.c.h.b16 %v5066
    %v6194 = vunpack.c.l.b16 %v5067
    %v6195 = vunpack.c.h.b16 %v5067
    %v6196 = vunpack.c.l.b16 %v5068
    %v6197 = vunpack.c.h.b16 %v5068
    %v6198 = vunpack.c.l.b16 %v5069
    %v6199 = vunpack.c.h.b16 %v5069
    %v6200 = vunpack.c.l.b16 %v5070
    %v6201 = vunpack.c.h.b16 %v5070
    %v6202 = vunpack.c.l.b16 %v5071
    %v6203 = vunpack.c.h.b16 %v5071
    %v6204 = vunpack.c.l.b16 %v5072
    %v6205 = vunpack.c.h.b16 %v5072
    %v6206 = vunpack.c.l.b16 %v5073
    %v6207 = vunpack.c.h.b16 %v5073
    %v6208 = vunpack.c.l.b16 %v5074
    %v6209 = vunpack.c.h.b16 %v5074
    %v6210 = vunpack.c.l.b16 %v5075
    %v6211 = vunpack.c.h.b16 %v5075
    %v6212 = vunpack.c.l.b16 %v5076
    %v6213 = vunpack.c.h.b16 %v5076
    %v6214 = vunpack.c.l.b16 %v5077
    %v6215 = vunpack.c.h.b16 %v5077
    %v6216 = vunpack.c.l.b16 %v5078
    %v6217 = vunpack.c.h.b16 %v5078
    %v6218 = vunpack.c.l.b16 %v5079
    %v6219 = vunpack.c.h.b16 %v5079
    %v6220 = vunpack.c.l.b16 %v5080
    %v6221 = vunpack.c.h.b16 %v5080
    %v6222 = vunpack.c.l.b16 %v5081
    %v6223 = vunpack.c.h.b16 %v5081
    %v6224 = vunpack.c.l.b16 %v5082
    %v6225 = vunpack.c.h.b16 %v5082
    %v6226 = vunpack.c.l.b16 %v5083
    %v6227 = vunpack.c.h.b16 %v5083
    %v6228 = vunpack.c.l.b16 %v5084
    %v6229 = vunpack.c.h.b16 %v5084
    %v6230 = vunpack.c.l.b16 %v5085
    %v6231 = vunpack.c.h.b16 %v5085
    %v6232 = vunpack.c.l.b16 %v5086
    %v6233 = vunpack.c.h.b16 %v5086
    %v6234 = vunpack.c.l.b16 %v5087
    %v6235 = vunpack.c.h.b16 %v5087
    %v6236 = vunpack.c.l.b16 %v5088
    %v6237 = vunpack.c.h.b16 %v5088
    %v6238 = vunpack.c.l.b16 %v5089
    %v6239 = vunpack.c.h.b16 %v5089
    %v6240 = vunpack.c.l.b16 %v5090
    %v6241 = vunpack.c.h.b16 %v5090
    %v6242 = vunpack.c.l.b16 %v5091
    %v6243 = vunpack.c.h.b16 %v5091
    %v6244 = vunpack.c.l.b16 %v5092
    %v6245 = vunpack.c.h.b16 %v5092
    %v6246 = vunpack.c.l.b16 %v5093
    %v6247 = vunpack.c.h.b16 %v5093
    %v6248 = vunpack.c.l.b16 %v5094
    %v6249 = vunpack.c.h.b16 %v5094
    %v6250 = vunpack.c.l.b16 %v5095
    %v6251 = vunpack.c.h.b16 %v5095
    %v6252 = vunpack.c.l.b16 %v5096
    %v6253 = vunpack.c.h.b16 %v5096
    %v6254 = vunpack.c.l.b16 %v5097
    %v6255 = vunpack.c.h.b16 %v5097
    %v6256 = vunpack.c.l.b16 %v5098
    %v6257 = vunpack.c.h.b16 %v5098
    %v6258 = vunpack.c.l.b16 %v5099
    %v6259 = vunpack.c.h.b16 %v5099
    %v6260 = vunpack.c.l.b16 %v5100
    %v6261 = vunpack.c.h.b16 %v5100
    %v6262 = vunpack.c.l.b16 %v5101
    %v6263 = vunpack.c.h.b16 %v5101
    %v6264 = vunpack.c.l.b16 %v5102
    %v6265 = vunpack.c.h.b16 %v5102
    %v6266 = vunpack.c.l.b16 %v5103
    %v6267 = vunpack.c.h.b16 %v5103
    %v6268 = vunpack.c.l.b16 %v5104
    %v6269 = vunpack.c.h.b16 %v5104
    %v6270 = vunpack.c.l.b16 %v5105
    %v6271 = vunpack.c.h.b16 %v5105
    %v6272 = vunpack.c.l.b16 %v5106
    %v6273 = vunpack.c.h.b16 %v5106
    %v6274 = vunpack.c.l.b16 %v5107
    %v6275 = vunpack.c.h.b16 %v5107
    %v6276 = vunpack.c.l.b16 %v5108
    %v6277 = vunpack.c.h.b16 %v5108
    %v6278 = vunpack.c.l.b16 %v5109
    %v6279 = vunpack.c.h.b16 %v5109
    %v6280 = vunpack.c.l.b16 %v5110
    %v6281 = vunpack.c.h.b16 %v5110
    %v6282 = vunpack.c.l.b16 %v5111
    %v6283 = vunpack.c.h.b16 %v5111
    %v6284 = vunpack.c.l.b16 %v5112
    %v6285 = vunpack.c.h.b16 %v5112
    %v6286 = vunpack.c.l.b16 %v5113
    %v6287 = vunpack.c.h.b16 %v5113
    %v6288 = vpack.c.b16 %v5524, %v5520
    %v6289 = vpack.c.b16 %v5525, %v5521
    %v6290 = vpack.c.b16 %v5526, %v5522
    %v6291 = vpack.c.b16 %v5527, %v5523
    %v6292 = vpack.c.b16 %v5532, %v5528
    %v6293 = vpack.c.b16 %v5533, %v5529
    %v6294 = vpack.c.b16 %v5534, %v5530
    %v6295 = vpack.c.b16 %v5535, %v5531
    %v6296 = vpack.c.b16 %v5540, %v5536
    %v6297 = vpack.c.b16 %v5541, %v5537
    %v6298 = vpack.c.b16 %v5542, %v5538
    %v6299 = vpack.c.b16 %v5543, %v5539
    %v6300 = vpack.c.b16 %v5548, %v5544
    %v6301 = vpack.c.b16 %v5549, %v5545
    %v6302 = vpack.c.b16 %v5550, %v5546
    %v6303 = vpack.c.b16 %v5551, %v5547
    %v6304 = vpack.c.b16 %v5556, %v5552
    %v6305 = vpack.c.b16 %v5557, %v5553
    %v6306 = vpack.c.b16 %v5558, %v5554
    %v6307 = vpack.c.b16 %v5559, %v5555
    %v6308 = vpack.c.b16 %v5564, %v5560
    %v6309 = vpack.c.b16 %v5565, %v5561
    %v6310 = vpack.c.b16 %v5566, %v5562
    %v6311 = vpack.c.b16 %v5567, %v5563
    %v6312 = vpack.c.b16 %v5572, %v5568
    %v6313 = vpack.c.b16 %v5573, %v5569
    %v6314 = vpack.c.b16 %v5574, %v5570
    %v6315 = vpack.c.b16 %v5575, %v5571
    %v6316 = vpack.c.b16 %v5580, %v5576
    %v6317 = vpack.c.b16 %v5581, %v5577
    %v6318 = vpack.c.b16 %v5582, %v5578
    %v6319 = vpack.c.b16 %v5583, %v5579
    %v6320 = vpack.c.b16 %v5588, %v5584
    %v6321 = vpack.c.b16 %v5589, %v5585
    %v6322 = vpack.c.b16 %v5590, %v5586
    %v6323 = vpack.c.b16 %v5591, %v5587
    %v6324 = vpack.c.b16 %v5596, %v5592
    %v6325 = vpack.c.b16 %v5597, %v5593
    %v6326 = vpack.c.b16 %v5598, %v5594
    %v6327 = vpack.c.b16 %v5599, %v5595
    %v6328 = vpack.c.b16 %v5604, %v5600
    %v6329 = vpack.c.b16 %v5605, %v5601
    %v6330 = vpack.c.b16 %v5606, %v5602
    %v6331 = vpack.c.b16 %v5607, %v5603
    %v6332 = vpack.c.b16 %v5612, %v5608
    %v6333 = vpack.c.b16 %v5613, %v5609
    %v6334 = vpack.c.b16 %v5614, %v5610
    %v6335 = vpack.c.b16 %v5615, %v5611
    %v6336 = vpack.c.b16 %v5620, %v5616
    %v6337 = vpack.c.b16 %v5621, %v5617
    %v6338 = vpack.c.b16 %v5622, %v5618
    %v6339 = vpack.c.b16 %v5623, %v5619
    %v6340 = vpack.c.b16 %v5628, %v5624
    %v6341 = vpack.c.b16 %v5629, %v5625
    %v6342 = vpack.c.b16 %v5630, %v5626
    %v6343 = vpack.c.b16 %v5631, %v5627
    %v6344 = vpack.c.b16 %v5636, %v5632
    %v6345 = vpack.c.b16 %v5637, %v5633
    %v6346 = vpack.c.b16 %v5638, %v5634
    %v6347 = vpack.c.b16 %v5639, %v5635
    %v6348 = vpack.c.b16 %v5644, %v5640
    %v6349 = vpack.c.b16 %v5645, %v5641
    %v6350 = vpack.c.b16 %v5646, %v5642
    %v6351 = vpack.c.b16 %v5647, %v5643
    %v6352 = vpack.c.b16 %v5652, %v5648
    %v6353 = vpack.c.b16 %v5653, %v5649
    %v6354 = vpack.c.b16 %v5654, %v5650
    %v6355 = vpack.c.b16 %v5655, %v5651
    %v6356 = vpack.c.b16 %v5660, %v5656
    %v6357 = vpack.c.b16 %v5661, %v5657
    %v6358 = vpack.c.b16 %v5662, %v5658
    %v6359 = vpack.c.b16 %v5663, %v5659
    %v6360 = vpack.c.b16 %v5668, %v5664
    %v6361 = vpack.c.b16 %v5669, %v5665
    %v6362 = vpack.c.b16 %v5670, %v5666
    %v6363 = vpack.c.b16 %v5671, %v5667
    %v6364 = vpack.c.b16 %v5676, %v5672
    %v6365 = vpack.c.b16 %v5677, %v5673
    %v6366 = vpack.c.b16 %v5678, %v5674
    %v6367 = vpack.c.b16 %v5679, %v5675
    %v6368 = vpack.c.b16 %v5684, %v5680
    %v6369 = vpack.c.b16 %v5685, %v5681
    %v6370 = vpack.c.b16 %v5686, %v5682
    %v6371 = vpack.c.b16 %v5687, %v5683
    %v6372 = vpack.c.b16 %v5692, %v5688
    %v6373 = vpack.c.b16 %v5693, %v5689
    %v6374 = vpack.c.b16 %v5694, %v5690
    %v6375 = vpack.c.b16 %v5695, %v5691
    %v6376 = vpack.c.b16 %v5700, %v5696
    %v6377 = vpack.c.b16 %v5701, %v5697
    %v6378 = vpack.c.b16 %v5702, %v5698
    %v6379 = vpack.c.b16 %v5703, %v5699
    %v6380 = vpack.c.b16 %v5708, %v5704
    %v6381 = vpack.c.b16 %v5709, %v5705
    %v6382 = vpack.c.b16 %v5710, %v5706
    %v6383 = vpack.c.b16 %v5711, %v5707
    %v6384 = vpack.c.b16 %v5716, %v5712
    %v6385 = vpack.c.b16 %v5717, %v5713
    %v6386 = vpack.c.b16 %v5718, %v5714
    %v6387 = vpack.c.b16 %v5719, %v5715
    %v6388 = vpack.c.b16 %v5724, %v5720
    %v6389 = vpack.c.b16 %v5725, %v5721
    %v6390 = vpack.c.b16 %v5726, %v5722
    %v6391 = vpack.c.b16 %v5727, %v5723
    %v6392 = vpack.c.b16 %v5732, %v5728
    %v6393 = vpack.c.b16 %v5733, %v5729
    %v6394 = vpack.c.b16 %v5734, %v5730
    %v6395 = vpack.c.b16 %v5735, %v5731
    %v6396 = vpack.c.b16 %v5740, %v5736
    %v6397 = vpack.c.b16 %v5741, %v5737
    %v6398 = vpack.c.b16 %v5742, %v5738
    %v6399 = vpack.c.b16 %v5743, %v5739
    %v6400 = vpack.c.b16 %v5748, %v5744
    %v6401 = vpack.c.b16 %v5749, %v5745
    %v6402 = vpack.c.b16 %v5750, %v5746
    %v6403 = vpack.c.b16 %v5751, %v5747
    %v6404 = vpack.c.b16 %v5756, %v5752
    %v6405 = vpack.c.b16 %v5757, %v5753
    %v6406 = vpack.c.b16 %v5758, %v5754
    %v6407 = vpack.c.b16 %v5759, %v5755
    %v6408 = vpack.c.b16 %v5764, %v5760
    %v6409 = vpack.c.b16 %v5765, %v5761
    %v6410 = vpack.c.b16 %v5766, %v5762
    %v6411 = vpack.c.b16 %v5767, %v5763
    %v6412 = vpack.c.b16 %v5772, %v5768
    %v6413 = vpack.c.b16 %v5773, %v5769
    %v6414 = vpack.c.b16 %v5774, %v5770
    %v6415 = vpack.c.b16 %v5775, %v5771
    %v6416 = vpack.c.b16 %v5780, %v5776
    %v6417 = vpack.c.b16 %v5781, %v5777
    %v6418 = vpack.c.b16 %v5782, %v5778
    %v6419 = vpack.c.b16 %v5783, %v5779
    %v6420 = vpack.c.b16 %v5788, %v5784
    %v6421 = vpack.c.b16 %v5789, %v5785
    %v6422 = vpack.c.b16 %v5790, %v5786
    %v6423 = vpack.c.b16 %v5791, %v5787
    %v6424 = vpack.c.b16 %v5796, %v5792
    %v6425 = vpack.c.b16 %v5797, %v5793
    %v6426 = vpack.c.b16 %v5798, %v5794
    %v6427 = vpack.c.b16 %v5799, %v5795
    %v6428 = vpack.c.b16 %v5804, %v5800
    %v6429 = vpack.c.b16 %v5805, %v5801
    %v6430 = vpack.c.b16 %v5806, %v5802
    %v6431 = vpack.c.b16 %v5807, %v5803
    %v6432 = vpack.c.b16 %v5812, %v5808
    %v6433 = vpack.c.b16 %v5813, %v5809
    %v6434 = vpack.c.b16 %v5814, %v5810
    %v6435 = vpack.c.b16 %v5815, %v5811
    %v6436 = vpack.c.b16 %v5820, %v5816
    %v6437 = vpack.c.b16 %v5821, %v5817
    %v6438 = vpack.c.b16 %v5822, %v5818
    %v6439 = vpack.c.b16 %v5823, %v5819
    %v6440 = vpack.c.b16 %v5828, %v5824
    %v6441 = vpack.c.b16 %v5829, %v5825
    %v6442 = vpack.c.b16 %v5830, %v5826
    %v6443 = vpack.c.b16 %v5831, %v5827
    %v6444 = vpack.c.b16 %v5836, %v5832
    %v6445 = vpack.c.b16 %v5837, %v5833
    %v6446 = vpack.c.b16 %v5838, %v5834
    %v6447 = vpack.c.b16 %v5839, %v5835
    %v6448 = vpack.c.b16 %v5844, %v5840
    %v6449 = vpack.c.b16 %v5845, %v5841
    %v6450 = vpack.c.b16 %v5846, %v5842
    %v6451 = vpack.c.b16 %v5847, %v5843
    %v6452 = vpack.c.b16 %v5852, %v5848
    %v6453 = vpack.c.b16 %v5853, %v5849
    %v6454 = vpack.c.b16 %v5854, %v5850
    %v6455 = vpack.c.b16 %v5855, %v5851
    %v6456 = vpack.c.b16 %v5860, %v5856
    %v6457 = vpack.c.b16 %v5861, %v5857
    %v6458 = vpack.c.b16 %v5862, %v5858
    %v6459 = vpack.c.b16 %v5863, %v5859
    %v6460 = vpack.c.b16 %v5868, %v5864
    %v6461 = vpack.c.b16 %v5869, %v5865
    %v6462 = vpack.c.b16 %v5870, %v5866
    %v6463 = vpack.c.b16 %v5871, %v5867
    %v6464 = vpack.c.b16 %v5876, %v5872
    %v6465 = vpack.c.b16 %v5877, %v5873
    %v6466 = vpack.c.b16 %v5878, %v5874
    %v6467 = vpack.c.b16 %v5879, %v5875
    %v6468 = vpack.c.b16 %v5884, %v5880
    %v6469 = vpack.c.b16 %v5885, %v5881
    %v6470 = vpack.c.b16 %v5886, %v5882
    %v6471 = vpack.c.b16 %v5887, %v5883
    %v6472 = vpack.c.b16 %v5892, %v5888
    %v6473 = vpack.c.b16 %v5893, %v5889
    %v6474 = vpack.c.b16 %v5894, %v5890
    %v6475 = vpack.c.b16 %v5895, %v5891
    %v6476 = vpack.c.b16 %v5900, %v5896
    %v6477 = vpack.c.b16 %v5901, %v5897
    %v6478 = vpack.c.b16 %v5902, %v5898
    %v6479 = vpack.c.b16 %v5903, %v5899
    %v6480 = vpack.c.b16 %v5908, %v5904
    %v6481 = vpack.c.b16 %v5909, %v5905
    %v6482 = vpack.c.b16 %v5910, %v5906
    %v6483 = vpack.c.b16 %v5911, %v5907
    %v6484 = vpack.c.b16 %v5916, %v5912
    %v6485 = vpack.c.b16 %v5917, %v5913
    %v6486 = vpack.c.b16 %v5918, %v5914
    %v6487 = vpack.c.b16 %v5919, %v5915
    %v6488 = vpack.c.b16 %v5924, %v5920
    %v6489 = vpack.c.b16 %v5925, %v5921
    %v6490 = vpack.c.b16 %v5926, %v5922
    %v6491 = vpack.c.b16 %v5927, %v5923
    %v6492 = vpack.c.b16 %v5932, %v5928
    %v6493 = vpack.c.b16 %v5933, %v5929
    %v6494 = vpack.c.b16 %v5934, %v5930
    %v6495 = vpack.c.b16 %v5935, %v5931
    %v6496 = vpack.c.b16 %v5940, %v5936
    %v6497 = vpack.c.b16 %v5941, %v5937
    %v6498 = vpack.c.b16 %v5942, %v5938
    %v6499 = vpack.c.b16 %v5943, %v5939
    %v6500 = vpack.c.b16 %v5948, %v5944
    %v6501 = vpack.c.b16 %v5949, %v5945
    %v6502 = vpack.c.b16 %v5950, %v5946
    %v6503 = vpack.c.b16 %v5951, %v5947
    %v6504 = vpack.c.b16 %v5956, %v5952
    %v6505 = vpack.c.b16 %v5957, %v5953
    %v6506 = vpack.c.b16 %v5958, %v5954
    %v6507 = vpack.c.b16 %v5959, %v5955
    %v6508 = vpack.c.b16 %v5964, %v5960
    %v6509 = vpack.c.b16 %v5965, %v5961
    %v6510 = vpack.c.b16 %v5966, %v5962
    %v6511 = vpack.c.b16 %v5967, %v5963
    %v6512 = vpack.c.b16 %v5972, %v5968
    %v6513 = vpack.c.b16 %v5973, %v5969
    %v6514 = vpack.c.b16 %v5974, %v5970
    %v6515 = vpack.c.b16 %v5975, %v5971
    %v6516 = vpack.c.b16 %v5980, %v5976
    %v6517 = vpack.c.b16 %v5981, %v5977
    %v6518 = vpack.c.b16 %v5982, %v5978
    %v6519 = vpack.c.b16 %v5983, %v5979
    %v6520 = vpack.c.b16 %v5988, %v5984
    %v6521 = vpack.c.b16 %v5989, %v5985
    %v6522 = vpack.c.b16 %v5990, %v5986
    %v6523 = vpack.c.b16 %v5991, %v5987
    %v6524 = vpack.c.b16 %v5996, %v5992
    %v6525 = vpack.c.b16 %v5997, %v5993
    %v6526 = vpack.c.b16 %v5998, %v5994
    %v6527 = vpack.c.b16 %v5999, %v5995
    %v6528 = vpack.c.b16 %v6004, %v6000
    %v6529 = vpack.c.b16 %v6005, %v6001
    %v6530 = vpack.c.b16 %v6006, %v6002
    %v6531 = vpack.c.b16 %v6007, %v6003
    %v6532 = vpack.c.b16 %v6012, %v6008
    %v6533 = vpack.c.b16 %v6013, %v6009
    %v6534 = vpack.c.b16 %v6014, %v6010
    %v6535 = vpack.c.b16 %v6015, %v6011
    %v6536 = vpack.c.b16 %v6020, %v6016
    %v6537 = vpack.c.b16 %v6021, %v6017
    %v6538 = vpack.c.b16 %v6022, %v6018
    %v6539 = vpack.c.b16 %v6023, %v6019
    %v6540 = vpack.c.b16 %v6028, %v6024
    %v6541 = vpack.c.b16 %v6029, %v6025
    %v6542 = vpack.c.b16 %v6030, %v6026
    %v6543 = vpack.c.b16 %v6031, %v6027
    %v6544 = vpack.c.b16 %v6036, %v6032
    %v6545 = vpack.c.b16 %v6037, %v6033
    %v6546 = vpack.c.b16 %v6038, %v6034
    %v6547 = vpack.c.b16 %v6039, %v6035
    %v6548 = vpack.c.b16 %v6044, %v6040
    %v6549 = vpack.c.b16 %v6045, %v6041
    %v6550 = vpack.c.b16 %v6046, %v6042
    %v6551 = vpack.c.b16 %v6047, %v6043
    %v6552 = vpack.c.b16 %v6052, %v6048
    %v6553 = vpack.c.b16 %v6053, %v6049
    %v6554 = vpack.c.b16 %v6054, %v6050
    %v6555 = vpack.c.b16 %v6055, %v6051
    %v6556 = vpack.c.b16 %v6060, %v6056
    %v6557 = vpack.c.b16 %v6061, %v6057
    %v6558 = vpack.c.b16 %v6062, %v6058
    %v6559 = vpack.c.b16 %v6063, %v6059
    %v6560 = vpack.c.b16 %v6068, %v6064
    %v6561 = vpack.c.b16 %v6069, %v6065
    %v6562 = vpack.c.b16 %v6070, %v6066
    %v6563 = vpack.c.b16 %v6071, %v6067
    %v6564 = vpack.c.b16 %v6076, %v6072
    %v6565 = vpack.c.b16 %v6077, %v6073
    %v6566 = vpack.c.b16 %v6078, %v6074
    %v6567 = vpack.c.b16 %v6079, %v6075
    %v6568 = vpack.c.b16 %v6084, %v6080
    %v6569 = vpack.c.b16 %v6085, %v6081
    %v6570 = vpack.c.b16 %v6086, %v6082
    %v6571 = vpack.c.b16 %v6087, %v6083
    %v6572 = vpack.c.b16 %v6092, %v6088
    %v6573 = vpack.c.b16 %v6093, %v6089
    %v6574 = vpack.c.b16 %v6094, %v6090
    %v6575 = vpack.c.b16 %v6095, %v6091
    %v6576 = vpack.c.b16 %v6100, %v6096
    %v6577 = vpack.c.b16 %v6101, %v6097
    %v6578 = vpack.c.b16 %v6102, %v6098
    %v6579 = vpack.c.b16 %v6103, %v6099
    %v6580 = vpack.c.b16 %v6108, %v6104
    %v6581 = vpack.c.b16 %v6109, %v6105
    %v6582 = vpack.c.b16 %v6110, %v6106
    %v6583 = vpack.c.b16 %v6111, %v6107
    %v6584 = vpack.c.b16 %v6116, %v6112
    %v6585 = vpack.c.b16 %v6117, %v6113
    %v6586 = vpack.c.b16 %v6118, %v6114
    %v6587 = vpack.c.b16 %v6119, %v6115
    %v6588 = vpack.c.b16 %v6124, %v6120
    %v6589 = vpack.c.b16 %v6125, %v6121
    %v6590 = vpack.c.b16 %v6126, %v6122
    %v6591 = vpack.c.b16 %v6127, %v6123
    %v6592 = vpack.c.b16 %v6132, %v6128
    %v6593 = vpack.c.b16 %v6133, %v6129
    %v6594 = vpack.c.b16 %v6134, %v6130
    %v6595 = vpack.c.b16 %v6135, %v6131
    %v6596 = vpack.c.b16 %v6140, %v6136
    %v6597 = vpack.c.b16 %v6141, %v6137
    %v6598 = vpack.c.b16 %v6142, %v6138
    %v6599 = vpack.c.b16 %v6143, %v6139
    %v6600 = vpack.c.b16 %v6148, %v6144
    %v6601 = vpack.c.b16 %v6149, %v6145
    %v6602 = vpack.c.b16 %v6150, %v6146
    %v6603 = vpack.c.b16 %v6151, %v6147
    %v6604 = vpack.c.b16 %v6156, %v6152
    %v6605 = vpack.c.b16 %v6157, %v6153
    %v6606 = vpack.c.b16 %v6158, %v6154
    %v6607 = vpack.c.b16 %v6159, %v6155
    %v6608 = vpack.c.b16 %v6164, %v6160
    %v6609 = vpack.c.b16 %v6165, %v6161
    %v6610 = vpack.c.b16 %v6166, %v6162
    %v6611 = vpack.c.b16 %v6167, %v6163
    %v6612 = vpack.c.b16 %v6172, %v6168
    %v6613 = vpack.c.b16 %v6173, %v6169
    %v6614 = vpack.c.b16 %v6174, %v6170
    %v6615 = vpack.c.b16 %v6175, %v6171
    %v6616 = vpack.c.b16 %v6180, %v6176
    %v6617 = vpack.c.b16 %v6181, %v6177
    %v6618 = vpack.c.b16 %v6182, %v6178
    %v6619 = vpack.c.b16 %v6183, %v6179
    %v6620 = vpack.c.b16 %v6188, %v6184
    %v6621 = vpack.c.b16 %v6189, %v6185
    %v6622 = vpack.c.b16 %v6190, %v6186
    %v6623 = vpack.c.b16 %v6191, %v6187
    %v6624 = vpack.c.b16 %v6196, %v6192
    %v6625 = vpack.c.b16 %v6197, %v6193
    %v6626 = vpack.c.b16 %v6198, %v6194
    %v6627 = vpack.c.b16 %v6199, %v6195
    %v6628 = vpack.c.b16 %v6204, %v6200
    %v6629 = vpack.c.b16 %v6205, %v6201
    %v6630 = vpack.c.b16 %v6206, %v6202
    %v6631 = vpack.c.b16 %v6207, %v6203
    %v6632 = vpack.c.b16 %v6212, %v6208
    %v6633 = vpack.c.b16 %v6213, %v6209
    %v6634 = vpack.c.b16 %v6214, %v6210
    %v6635 = vpack.c.b16 %v6215, %v6211
    %v6636 = vpack.c.b16 %v6220, %v6216
    %v6637 = vpack.c.b16 %v6221, %v6217
    %v6638 = vpack.c.b16 %v6222, %v6218
    %v6639 = vpack.c.b16 %v6223, %v6219
    %v6640 = vpack.c.b16 %v6228, %v6224
    %v6641 = vpack.c.b16 %v6229, %v6225
    %v6642 = vpack.c.b16 %v6230, %v6226
    %v6643 = vpack.c.b16 %v6231, %v6227
    %v6644 = vpack.c.b16 %v6236, %v6232
    %v6645 = vpack.c.b16 %v6237, %v6233
    %v6646 = vpack.c.b16 %v6238, %v6234
    %v6647 = vpack.c.b16 %v6239, %v6235
    %v6648 = vpack.c.b16 %v6244, %v6240
    %v6649 = vpack.c.b16 %v6245, %v6241
    %v6650 = vpack.c.b16 %v6246, %v6242
    %v6651 = vpack.c.b16 %v6247, %v6243
    %v6652 = vpack.c.b16 %v6252, %v6248
    %v6653 = vpack.c.b16 %v6253, %v6249
    %v6654 = vpack.c.b16 %v6254, %v6250
    %v6655 = vpack.c.b16 %v6255, %v6251
    %v6656 = vpack.c.b16 %v6260, %v6256
    %v6657 = vpack.c.b16 %v6261, %v6257
    %v6658 = vpack.c.b16 %v6262, %v6258
    %v6659 = vpack.c.b16 %v6263, %v6259
    %v6660 = vpack.c.b16 %v6268, %v6264
    %v6661 = vpack.c.b16 %v6269, %v6265
    %v6662 = vpack.c.b16 %v6270, %v6266
    %v6663 = vpack.c.b16 %v6271, %v6267
    %v6664 = vpack.c.b16 %v6276, %v6272
    %v6665 = vpack.c.b16 %v6277, %v6273
    %v6666 = vpack.c.b16 %v6278, %v6274
    %v6667 = vpack.c.b16 %v6279, %v6275
    %v6668 = vpack.c.b16 %v6284, %v6280
    %v6669 = vpack.c.b16 %v6285, %v6281
    %v6670 = vpack.c.b16 %v6286, %v6282
    %v6671 = vpack.c.b16 %v6287, %v6283
    %7056 = vmatprep.subr.bf16.mxu0 %v6289
    %7057 = vmatpush1.bf16.msra.mxu0 %v6288
    %7058 = vmatprep.subr.bf16.mxu0 %v6293
    %7059 = vmatpush1.bf16.msra.mxu0 %v6292
    %7060 = vmatprep.subr.bf16.mxu0 %v6297
    %7061 = vmatpush1.bf16.msra.mxu0 %v6296
    %7062 = vmatprep.subr.bf16.mxu0 %v6301
    %7063 = vmatpush1.bf16.msra.mxu0 %v6300
    %7064 = vmatprep.subr.bf16.mxu0 %v6305
    %7065 = vmatpush1.bf16.msra.mxu0 %v6304
    %7066 = vmatprep.subr.bf16.mxu0 %v6309
    %7067 = vmatpush1.bf16.msra.mxu0 %v6308
    %7068 = vmatprep.subr.bf16.mxu0 %v6313
    %7069 = vmatpush1.bf16.msra.mxu0 %v6312
    %7070 = vmatprep.subr.bf16.mxu0 %v6317
    %7071 = vmatpush1.bf16.msra.mxu0 %v6316
    %7072 = vmatprep.subr.bf16.mxu0 %v6321
    %7073 = vmatpush1.bf16.msra.mxu0 %v6320
    %7074 = vmatprep.subr.bf16.mxu0 %v6325
    %7075 = vmatpush1.bf16.msra.mxu0 %v6324
    %7076 = vmatprep.subr.bf16.mxu0 %v6329
    %7077 = vmatpush1.bf16.msra.mxu0 %v6328
    %7078 = vmatprep.subr.bf16.mxu0 %v6333
    %7079 = vmatpush1.bf16.msra.mxu0 %v6332
    %7080 = vmatprep.subr.bf16.mxu0 %v6337
    %7081 = vmatpush1.bf16.msra.mxu0 %v6336
    %7082 = vmatprep.subr.bf16.mxu0 %v6341
    %7083 = vmatpush1.bf16.msra.mxu0 %v6340
    %7084 = vmatprep.subr.bf16.mxu0 %v6345
    %7085 = vmatpush1.bf16.msra.mxu0 %v6344
    %7086 = vmatprep.subr.bf16.mxu0 %v6349
    %7087 = vmatpush1.bf16.msra.mxu0 %v6348
    %7088 = vmatprep.mubr.bf16.mxu0 %v4547
    %7089 = vmatmul.mubr.bf16.gmra.mrb[0].mxu0 %v4546
    %v7090 = vpop.f32.mrb[0].mxu0
    %v7091 = vadd.f32 %v5119, %v7090
    %v7092 = vpop.f32.mrb[0].mxu0
    %v7093 = vadd.f32 %v5123, %v7092
    %v7094 = vpop.f32.mrb[0].mxu0
    %v7095 = vpop.f32.mrb[0].mxu0
    %7096 = vdwg.mxu0
    %7097 = vmatprep.subr.bf16.mxu0 %v6353
    %7098 = vmatpush1.bf16.msra.mxu0 %v6352
    %7099 = vmatprep.subr.bf16.mxu0 %v6357
    %7100 = vmatpush1.bf16.msra.mxu0 %v6356
    %7101 = vmatprep.subr.bf16.mxu0 %v6361
    %7102 = vmatpush1.bf16.msra.mxu0 %v6360
    %7103 = vmatprep.subr.bf16.mxu0 %v6365
    %7104 = vmatpush1.bf16.msra.mxu0 %v6364
    %7105 = vmatprep.subr.bf16.mxu0 %v6369
    %7106 = vmatpush1.bf16.msra.mxu0 %v6368
    %7107 = vmatprep.subr.bf16.mxu0 %v6373
    %7108 = vmatpush1.bf16.msra.mxu0 %v6372
    %7109 = vmatprep.subr.bf16.mxu0 %v6377
    %7110 = vmatpush1.bf16.msra.mxu0 %v6376
    %7111 = vmatprep.subr.bf16.mxu0 %v6381
    %7112 = vmatpush1.bf16.msra.mxu0 %v6380
    %7113 = vmatprep.subr.bf16.mxu0 %v6385
    %7114 = vmatpush1.bf16.msra.mxu0 %v6384
    %7115 = vmatprep.subr.bf16.mxu0 %v6389
    %7116 = vmatpush1.bf16.msra.mxu0 %v6388
    %7117 = vmatprep.subr.bf16.mxu0 %v6393
    %7118 = vmatpush1.bf16.msra.mxu0 %v6392
    %7119 = vmatprep.subr.bf16.mxu0 %v6397
    %7120 = vmatpush1.bf16.msra.mxu0 %v6396
    %7121 = vmatprep.subr.bf16.mxu0 %v6401
    %7122 = vmatpush1.bf16.msra.mxu0 %v6400
    %7123 = vmatprep.subr.bf16.mxu0 %v6405
    %7124 = vmatpush1.bf16.msra.mxu0 %v6404
    %7125 = vmatprep.subr.bf16.mxu0 %v6409
    %7126 = vmatpush1.bf16.msra.mxu0 %v6408
    %7127 = vmatprep.subr.bf16.mxu0 %v6413
    %7128 = vmatpush1.bf16.msra.mxu0 %v6412
    %7129 = vmatprep.mubr.bf16.mxu0 %v4549
    %7130 = vmatmul.mubr.bf16.gmra.mrb[0].mxu0 %v4548
    %v7131 = vpop.f32.mrb[0].mxu0
    %v7132 = vadd.f32 %v7091, %v7131
    %v7133 = vpop.f32.mrb[0].mxu0
    %v7134 = vadd.f32 %v7093, %v7133
    %v7135 = vpop.f32.mrb[0].mxu0
    %v7136 = vpop.f32.mrb[0].mxu0
    %7137 = vdwg.mxu0
    %7138 = vmatprep.subr.bf16.mxu0 %v6417
    %7139 = vmatpush1.bf16.msra.mxu0 %v6416
    %7140 = vmatprep.subr.bf16.mxu0 %v6421
    %7141 = vmatpush1.bf16.msra.mxu0 %v6420
    %7142 = vmatprep.subr.bf16.mxu0 %v6425
    %7143 = vmatpush1.bf16.msra.mxu0 %v6424
    %7144 = vmatprep.subr.bf16.mxu0 %v6429
    %7145 = vmatpush1.bf16.msra.mxu0 %v6428
    %7146 = vmatprep.subr.bf16.mxu0 %v6433
    %7147 = vmatpush1.bf16.msra.mxu0 %v6432
    %7148 = vmatprep.subr.bf16.mxu0 %v6437
    %7149 = vmatpush1.bf16.msra.mxu0 %v6436
    %7150 = vmatprep.subr.bf16.mxu0 %v6441
    %7151 = vmatpush1.bf16.msra.mxu0 %v6440
    %7152 = vmatprep.subr.bf16.mxu0 %v6445
    %7153 = vmatpush1.bf16.msra.mxu0 %v6444
    %7154 = vmatprep.subr.bf16.mxu0 %v6449
    %7155 = vmatpush1.bf16.msra.mxu0 %v6448
    %7156 = vmatprep.subr.bf16.mxu0 %v6453
    %7157 = vmatpush1.bf16.msra.mxu0 %v6452
    %7158 = vmatprep.subr.bf16.mxu0 %v6457
    %7159 = vmatpush1.bf16.msra.mxu0 %v6456
    %7160 = vmatprep.subr.bf16.mxu0 %v6461
    %7161 = vmatpush1.bf16.msra.mxu0 %v6460
    %7162 = vmatprep.subr.bf16.mxu0 %v6465
    %7163 = vmatpush1.bf16.msra.mxu0 %v6464
    %7164 = vmatprep.subr.bf16.mxu0 %v6469
    %7165 = vmatpush1.bf16.msra.mxu0 %v6468
    %7166 = vmatprep.subr.bf16.mxu0 %v6473
    %7167 = vmatpush1.bf16.msra.mxu0 %v6472
    %7168 = vmatprep.subr.bf16.mxu0 %v6477
    %7169 = vmatpush1.bf16.msra.mxu0 %v6476
    %7170 = vmatprep.mubr.bf16.mxu0 %v4637
    %7171 = vmatmul.mubr.bf16.gmra.mrb[0].mxu0 %v4636
    %v7172 = vpop.f32.mrb[0].mxu0
    %v7173 = vadd.f32 %v7132, %v7172
    %v7174 = vpop.f32.mrb[0].mxu0
    %v7175 = vadd.f32 %v7134, %v7174
    %v7176 = vpop.f32.mrb[0].mxu0
    %v7177 = vpop.f32.mrb[0].mxu0
    %7178 = vdwg.mxu0
    %7179 = vmatprep.subr.bf16.mxu0 %v6481
    %7180 = vmatpush1.bf16.msra.mxu0 %v6480
    %7181 = vmatprep.subr.bf16.mxu0 %v6485
    %7182 = vmatpush1.bf16.msra.mxu0 %v6484
    %7183 = vmatprep.subr.bf16.mxu0 %v6489
    %7184 = vmatpush1.bf16.msra.mxu0 %v6488
    %7185 = vmatprep.subr.bf16.mxu0 %v6493
    %7186 = vmatpush1.bf16.msra.mxu0 %v6492
    %7187 = vmatprep.subr.bf16.mxu0 %v6497
    %7188 = vmatpush1.bf16.msra.mxu0 %v6496
    %7189 = vmatprep.subr.bf16.mxu0 %v6501
    %7190 = vmatpush1.bf16.msra.mxu0 %v6500
    %7191 = vmatprep.subr.bf16.mxu0 %v6505
    %7192 = vmatpush1.bf16.msra.mxu0 %v6504
    %7193 = vmatprep.subr.bf16.mxu0 %v6509
    %7194 = vmatpush1.bf16.msra.mxu0 %v6508
    %7195 = vmatprep.subr.bf16.mxu0 %v6513
    %7196 = vmatpush1.bf16.msra.mxu0 %v6512
    %7197 = vmatprep.subr.bf16.mxu0 %v6517
    %7198 = vmatpush1.bf16.msra.mxu0 %v6516
    %7199 = vmatprep.subr.bf16.mxu0 %v6521
    %7200 = vmatpush1.bf16.msra.mxu0 %v6520
    %7201 = vmatprep.subr.bf16.mxu0 %v6525
    %7202 = vmatpush1.bf16.msra.mxu0 %v6524
    %7203 = vmatprep.subr.bf16.mxu0 %v6529
    %7204 = vmatpush1.bf16.msra.mxu0 %v6528
    %7205 = vmatprep.subr.bf16.mxu0 %v6533
    %7206 = vmatpush1.bf16.msra.mxu0 %v6532
    %7207 = vmatprep.subr.bf16.mxu0 %v6537
    %7208 = vmatpush1.bf16.msra.mxu0 %v6536
    %7209 = vmatprep.subr.bf16.mxu0 %v6541
    %7210 = vmatpush1.bf16.msra.mxu0 %v6540
    %7211 = vmatprep.mubr.bf16.mxu0 %v4639
    %7212 = vmatmul.mubr.bf16.gmra.mrb[0].mxu0 %v4638
    %v7213 = vpop.f32.mrb[0].mxu0
    %v7214 = vadd.f32 %v7173, %v7213
    %v7215 = vpop.f32.mrb[0].mxu0
    %v7216 = vadd.f32 %v7175, %v7215
    %v7217 = vpop.f32.mrb[0].mxu0
    %v7218 = vpop.f32.mrb[0].mxu0
    %7219 = vdwg.mxu0
    %7220 = vmatprep.subr.bf16.mxu0 %v6545
    %7221 = vmatpush1.bf16.msra.mxu0 %v6544
    %7222 = vmatprep.subr.bf16.mxu0 %v6549
    %7223 = vmatpush1.bf16.msra.mxu0 %v6548
    %7224 = vmatprep.subr.bf16.mxu0 %v6553
    %7225 = vmatpush1.bf16.msra.mxu0 %v6552
    %7226 = vmatprep.subr.bf16.mxu0 %v6557
    %7227 = vmatpush1.bf16.msra.mxu0 %v6556
    %7228 = vmatprep.subr.bf16.mxu0 %v6561
    %7229 = vmatpush1.bf16.msra.mxu0 %v6560
    %7230 = vmatprep.subr.bf16.mxu0 %v6565
    %7231 = vmatpush1.bf16.msra.mxu0 %v6564
    %7232 = vmatprep.subr.bf16.mxu0 %v6569
    %7233 = vmatpush1.bf16.msra.mxu0 %v6568
    %7234 = vmatprep.subr.bf16.mxu0 %v6573
    %7235 = vmatpush1.bf16.msra.mxu0 %v6572
    %7236 = vmatprep.subr.bf16.mxu0 %v6577
    %7237 = vmatpush1.bf16.msra.mxu0 %v6576
    %7238 = vmatprep.subr.bf16.mxu0 %v6581
    %7239 = vmatpush1.bf16.msra.mxu0 %v6580
    %7240 = vmatprep.subr.bf16.mxu0 %v6585
    %7241 = vmatpush1.bf16.msra.mxu0 %v6584
    %7242 = vmatprep.subr.bf16.mxu0 %v6589
    %7243 = vmatpush1.bf16.msra.mxu0 %v6588
    %7244 = vmatprep.subr.bf16.mxu0 %v6593
    %7245 = vmatpush1.bf16.msra.mxu0 %v6592
    %7246 = vmatprep.subr.bf16.mxu0 %v6597
    %7247 = vmatpush1.bf16.msra.mxu0 %v6596
    %7248 = vmatprep.subr.bf16.mxu0 %v6601
    %7249 = vmatpush1.bf16.msra.mxu0 %v6600
    %7250 = vmatprep.subr.bf16.mxu0 %v6605
    %7251 = vmatpush1.bf16.msra.mxu0 %v6604
    %7252 = vmatprep.mubr.bf16.mxu0 %v4727
    %7253 = vmatmul.mubr.bf16.gmra.mrb[0].mxu0 %v4726
    %v7254 = vpop.f32.mrb[0].mxu0
    %v7255 = vadd.f32 %v7214, %v7254
    %v7256 = vpop.f32.mrb[0].mxu0
    %v7257 = vadd.f32 %v7216, %v7256
    %v7258 = vpop.f32.mrb[0].mxu0
    %v7259 = vpop.f32.mrb[0].mxu0
    %7260 = vdwg.mxu0
    %7261 = vmatprep.subr.bf16.mxu0 %v6609
    %7262 = vmatpush1.bf16.msra.mxu0 %v6608
    %7263 = vmatprep.subr.bf16.mxu0 %v6613
    %7264 = vmatpush1.bf16.msra.mxu0 %v6612
    %7265 = vmatprep.subr.bf16.mxu0 %v6617
    %7266 = vmatpush1.bf16.msra.mxu0 %v6616
    %7267 = vmatprep.subr.bf16.mxu0 %v6621
    %7268 = vmatpush1.bf16.msra.mxu0 %v6620
    %7269 = vmatprep.subr.bf16.mxu0 %v6625
    %7270 = vmatpush1.bf16.msra.mxu0 %v6624
    %7271 = vmatprep.subr.bf16.mxu0 %v6629
    %7272 = vmatpush1.bf16.msra.mxu0 %v6628
    %7273 = vmatprep.subr.bf16.mxu0 %v6633
    %7274 = vmatpush1.bf16.msra.mxu0 %v6632
    %7275 = vmatprep.subr.bf16.mxu0 %v6637
    %7276 = vmatpush1.bf16.msra.mxu0 %v6636
    %7277 = vmatprep.subr.bf16.mxu0 %v6641
    %7278 = vmatpush1.bf16.msra.mxu0 %v6640
    %7279 = vmatprep.subr.bf16.mxu0 %v6645
    %7280 = vmatpush1.bf16.msra.mxu0 %v6644
    %7281 = vmatprep.subr.bf16.mxu0 %v6649
    %7282 = vmatpush1.bf16.msra.mxu0 %v6648
    %7283 = vmatprep.subr.bf16.mxu0 %v6653
    %7284 = vmatpush1.bf16.msra.mxu0 %v6652
    %7285 = vmatprep.subr.bf16.mxu0 %v6657
    %7286 = vmatpush1.bf16.msra.mxu0 %v6656
    %7287 = vmatprep.subr.bf16.mxu0 %v6661
    %7288 = vmatpush1.bf16.msra.mxu0 %v6660
    %7289 = vmatprep.subr.bf16.mxu0 %v6665
    %7290 = vmatpush1.bf16.msra.mxu0 %v6664
    %7291 = vmatprep.subr.bf16.mxu0 %v6669
    %7292 = vmatpush1.bf16.msra.mxu0 %v6668
    %7293 = vmatprep.mubr.bf16.mxu0 %v4729
    %7294 = vmatmul.mubr.bf16.gmra.mrb[0].mxu0 %v4728
    %v7295 = vpop.f32.mrb[0].mxu0
    %v7296 = vadd.f32 %v7255, %v7295
    %v7297 = vpop.f32.mrb[0].mxu0
    %v7298 = vadd.f32 %v7257, %v7297
    %v7299 = vpop.f32.mrb[0].mxu0
    %v7300 = vpop.f32.mrb[0].mxu0
    %7301 = vdwg.mxu0
    %7302 = vmatprep.subr.bf16.mxu0 %v6291
    %7303 = vmatpush1.bf16.msra.mxu0 %v6290
    %7304 = vmatprep.subr.bf16.mxu0 %v6295
    %7305 = vmatpush1.bf16.msra.mxu0 %v6294
    %7306 = vmatprep.subr.bf16.mxu0 %v6299
    %7307 = vmatpush1.bf16.msra.mxu0 %v6298
    %7308 = vmatprep.subr.bf16.mxu0 %v6303
    %7309 = vmatpush1.bf16.msra.mxu0 %v6302
    %7310 = vmatprep.subr.bf16.mxu0 %v6307
    %7311 = vmatpush1.bf16.msra.mxu0 %v6306
    %7312 = vmatprep.subr.bf16.mxu0 %v6311
    %7313 = vmatpush1.bf16.msra.mxu0 %v6310
    %7314 = vmatprep.subr.bf16.mxu0 %v6315
    %7315 = vmatpush1.bf16.msra.mxu0 %v6314
    %7316 = vmatprep.subr.bf16.mxu0 %v6319
    %7317 = vmatpush1.bf16.msra.mxu0 %v6318
    %7318 = vmatprep.subr.bf16.mxu0 %v6323
    %7319 = vmatpush1.bf16.msra.mxu0 %v6322
    %7320 = vmatprep.subr.bf16.mxu0 %v6327
    %7321 = vmatpush1.bf16.msra.mxu0 %v6326
    %7322 = vmatprep.subr.bf16.mxu0 %v6331
    %7323 = vmatpush1.bf16.msra.mxu0 %v6330
    %7324 = vmatprep.subr.bf16.mxu0 %v6335
    %7325 = vmatpush1.bf16.msra.mxu0 %v6334
    %7326 = vmatprep.subr.bf16.mxu0 %v6339
    %7327 = vmatpush1.bf16.msra.mxu0 %v6338
    %7328 = vmatprep.subr.bf16.mxu0 %v6343
    %7329 = vmatpush1.bf16.msra.mxu0 %v6342
    %7330 = vmatprep.subr.bf16.mxu0 %v6347
    %7331 = vmatpush1.bf16.msra.mxu0 %v6346
    %7332 = vmatprep.subr.bf16.mxu0 %v6351
    %7333 = vmatpush1.bf16.msra.mxu0 %v6350
    %7334 = vmatprep.mubr.bf16.mxu0 %v4547
    %7335 = vmatmul.mubr.bf16.gmra.mrb[0].mxu0 %v4546
    %v7336 = vpop.f32.mrb[0].mxu0
    %v7337 = vadd.f32 %v5127, %v7336
    %v7338 = vpop.f32.mrb[0].mxu0
    %v7339 = vadd.f32 %v5131, %v7338
    %v7340 = vpop.f32.mrb[0].mxu0
    %v7341 = vpop.f32.mrb[0].mxu0
    %7342 = vdwg.mxu0
    %7343 = vmatprep.subr.bf16.mxu0 %v6355
    %7344 = vmatpush1.bf16.msra.mxu0 %v6354
    %7345 = vmatprep.subr.bf16.mxu0 %v6359
    %7346 = vmatpush1.bf16.msra.mxu0 %v6358
    %7347 = vmatprep.subr.bf16.mxu0 %v6363
    %7348 = vmatpush1.bf16.msra.mxu0 %v6362
    %7349 = vmatprep.subr.bf16.mxu0 %v6367
    %7350 = vmatpush1.bf16.msra.mxu0 %v6366
    %7351 = vmatprep.subr.bf16.mxu0 %v6371
    %7352 = vmatpush1.bf16.msra.mxu0 %v6370
    %7353 = vmatprep.subr.bf16.mxu0 %v6375
    %7354 = vmatpush1.bf16.msra.mxu0 %v6374
    %7355 = vmatprep.subr.bf16.mxu0 %v6379
    %7356 = vmatpush1.bf16.msra.mxu0 %v6378
    %7357 = vmatprep.subr.bf16.mxu0 %v6383
    %7358 = vmatpush1.bf16.msra.mxu0 %v6382
    %7359 = vmatprep.subr.bf16.mxu0 %v6387
    %7360 = vmatpush1.bf16.msra.mxu0 %v6386
    %7361 = vmatprep.subr.bf16.mxu0 %v6391
    %7362 = vmatpush1.bf16.msra.mxu0 %v6390
    %7363 = vmatprep.subr.bf16.mxu0 %v6395
    %7364 = vmatpush1.bf16.msra.mxu0 %v6394
    %7365 = vmatprep.subr.bf16.mxu0 %v6399
    %7366 = vmatpush1.bf16.msra.mxu0 %v6398
    %7367 = vmatprep.subr.bf16.mxu0 %v6403
    %7368 = vmatpush1.bf16.msra.mxu0 %v6402
    %7369 = vmatprep.subr.bf16.mxu0 %v6407
    %7370 = vmatpush1.bf16.msra.mxu0 %v6406
    %7371 = vmatprep.subr.bf16.mxu0 %v6411
    %7372 = vmatpush1.bf16.msra.mxu0 %v6410
    %7373 = vmatprep.subr.bf16.mxu0 %v6415
    %7374 = vmatpush1.bf16.msra.mxu0 %v6414
    %7375 = vmatprep.mubr.bf16.mxu0 %v4549
    %7376 = vmatmul.mubr.bf16.gmra.mrb[0].mxu0 %v4548
    %v7377 = vpop.f32.mrb[0].mxu0
    %v7378 = vadd.f32 %v7337, %v7377
    %v7379 = vpop.f32.mrb[0].mxu0
    %v7380 = vadd.f32 %v7339, %v7379
    %v7381 = vpop.f32.mrb[0].mxu0
    %v7382 = vpop.f32.mrb[0].mxu0
    %7383 = vdwg.mxu0
    %7384 = vmatprep.subr.bf16.mxu0 %v6419
    %7385 = vmatpush1.bf16.msra.mxu0 %v6418
    %7386 = vmatprep.subr.bf16.mxu0 %v6423
    %7387 = vmatpush1.bf16.msra.mxu0 %v6422
    %7388 = vmatprep.subr.bf16.mxu0 %v6427
    %7389 = vmatpush1.bf16.msra.mxu0 %v6426
    %7390 = vmatprep.subr.bf16.mxu0 %v6431
    %7391 = vmatpush1.bf16.msra.mxu0 %v6430
    %7392 = vmatprep.subr.bf16.mxu0 %v6435
    %7393 = vmatpush1.bf16.msra.mxu0 %v6434
    %7394 = vmatprep.subr.bf16.mxu0 %v6439
    %7395 = vmatpush1.bf16.msra.mxu0 %v6438
    %7396 = vmatprep.subr.bf16.mxu0 %v6443
    %7397 = vmatpush1.bf16.msra.mxu0 %v6442
    %7398 = vmatprep.subr.bf16.mxu0 %v6447
    %7399 = vmatpush1.bf16.msra.mxu0 %v6446
    %7400 = vmatprep.subr.bf16.mxu0 %v6451
    %7401 = vmatpush1.bf16.msra.mxu0 %v6450
    %7402 = vmatprep.subr.bf16.mxu0 %v6455
    %7403 = vmatpush1.bf16.msra.mxu0 %v6454
    %7404 = vmatprep.subr.bf16.mxu0 %v6459
    %7405 = vmatpush1.bf16.msra.mxu0 %v6458
    %7406 = vmatprep.subr.bf16.mxu0 %v6463
    %7407 = vmatpush1.bf16.msra.mxu0 %v6462
    %7408 = vmatprep.subr.bf16.mxu0 %v6467
    %7409 = vmatpush1.bf16.msra.mxu0 %v6466
    %7410 = vmatprep.subr.bf16.mxu0 %v6471
    %7411 = vmatpush1.bf16.msra.mxu0 %v6470
    %7412 = vmatprep.subr.bf16.mxu0 %v6475
    %7413 = vmatpush1.bf16.msra.mxu0 %v6474
    %7414 = vmatprep.subr.bf16.mxu0 %v6479
    %7415 = vmatpush1.bf16.msra.mxu0 %v6478
    %7416 = vmatprep.mubr.bf16.mxu0 %v4637
    %7417 = vmatmul.mubr.bf16.gmra.mrb[0].mxu0 %v4636
    %v7418 = vpop.f32.mrb[0].mxu0
    %v7419 = vadd.f32 %v7378, %v7418
    %v7420 = vpop.f32.mrb[0].mxu0
    %v7421 = vadd.f32 %v7380, %v7420
    %v7422 = vpop.f32.mrb[0].mxu0
    %v7423 = vpop.f32.mrb[0].mxu0
    %7424 = vdwg.mxu0
    %7425 = vmatprep.subr.bf16.mxu0 %v6483
    %7426 = vmatpush1.bf16.msra.mxu0 %v6482
    %7427 = vmatprep.subr.bf16.mxu0 %v6487
    %7428 = vmatpush1.bf16.msra.mxu0 %v6486
    %7429 = vmatprep.subr.bf16.mxu0 %v6491
    %7430 = vmatpush1.bf16.msra.mxu0 %v6490
    %7431 = vmatprep.subr.bf16.mxu0 %v6495
    %7432 = vmatpush1.bf16.msra.mxu0 %v6494
    %7433 = vmatprep.subr.bf16.mxu0 %v6499
    %7434 = vmatpush1.bf16.msra.mxu0 %v6498
    %7435 = vmatprep.subr.bf16.mxu0 %v6503
    %7436 = vmatpush1.bf16.msra.mxu0 %v6502
    %7437 = vmatprep.subr.bf16.mxu0 %v6507
    %7438 = vmatpush1.bf16.msra.mxu0 %v6506
    %7439 = vmatprep.subr.bf16.mxu0 %v6511
    %7440 = vmatpush1.bf16.msra.mxu0 %v6510
    %7441 = vmatprep.subr.bf16.mxu0 %v6515
    %7442 = vmatpush1.bf16.msra.mxu0 %v6514
    %7443 = vmatprep.subr.bf16.mxu0 %v6519
    %7444 = vmatpush1.bf16.msra.mxu0 %v6518
    %7445 = vmatprep.subr.bf16.mxu0 %v6523
    %7446 = vmatpush1.bf16.msra.mxu0 %v6522
    %7447 = vmatprep.subr.bf16.mxu0 %v6527
    %7448 = vmatpush1.bf16.msra.mxu0 %v6526
    %7449 = vmatprep.subr.bf16.mxu0 %v6531
    %7450 = vmatpush1.bf16.msra.mxu0 %v6530
    %7451 = vmatprep.subr.bf16.mxu0 %v6535
    %7452 = vmatpush1.bf16.msra.mxu0 %v6534
    %7453 = vmatprep.subr.bf16.mxu0 %v6539
    %7454 = vmatpush1.bf16.msra.mxu0 %v6538
    %7455 = vmatprep.subr.bf16.mxu0 %v6543
    %7456 = vmatpush1.bf16.msra.mxu0 %v6542
    %7457 = vmatprep.mubr.bf16.mxu0 %v4639
    %7458 = vmatmul.mubr.bf16.gmra.mrb[0].mxu0 %v4638
    %v7459 = vpop.f32.mrb[0].mxu0
    %v7460 = vadd.f32 %v7419, %v7459
    %v7461 = vpop.f32.mrb[0].mxu0
    %v7462 = vadd.f32 %v7421, %v7461
    %v7463 = vpop.f32.mrb[0].mxu0
    %v7464 = vpop.f32.mrb[0].mxu0
    %7465 = vdwg.mxu0
    %7466 = vmatprep.subr.bf16.mxu0 %v6547
    %7467 = vmatpush1.bf16.msra.mxu0 %v6546
    %7468 = vmatprep.subr.bf16.mxu0 %v6551
    %7469 = vmatpush1.bf16.msra.mxu0 %v6550
    %7470 = vmatprep.subr.bf16.mxu0 %v6555
    %7471 = vmatpush1.bf16.msra.mxu0 %v6554
    %7472 = vmatprep.subr.bf16.mxu0 %v6559
    %7473 = vmatpush1.bf16.msra.mxu0 %v6558
    %7474 = vmatprep.subr.bf16.mxu0 %v6563
    %7475 = vmatpush1.bf16.msra.mxu0 %v6562
    %7476 = vmatprep.subr.bf16.mxu0 %v6567
    %7477 = vmatpush1.bf16.msra.mxu0 %v6566
    %7478 = vmatprep.subr.bf16.mxu0 %v6571
    %7479 = vmatpush1.bf16.msra.mxu0 %v6570
    %7480 = vmatprep.subr.bf16.mxu0 %v6575
    %7481 = vmatpush1.bf16.msra.mxu0 %v6574
    %7482 = vmatprep.subr.bf16.mxu0 %v6579
    %7483 = vmatpush1.bf16.msra.mxu0 %v6578
    %7484 = vmatprep.subr.bf16.mxu0 %v6583
    %7485 = vmatpush1.bf16.msra.mxu0 %v6582
    %7486 = vmatprep.subr.bf16.mxu0 %v6587
    %7487 = vmatpush1.bf16.msra.mxu0 %v6586
    %7488 = vmatprep.subr.bf16.mxu0 %v6591
    %7489 = vmatpush1.bf16.msra.mxu0 %v6590
    %7490 = vmatprep.subr.bf16.mxu0 %v6595
    %7491 = vmatpush1.bf16.msra.mxu0 %v6594
    %7492 = vmatprep.subr.bf16.mxu0 %v6599
    %7493 = vmatpush1.bf16.msra.mxu0 %v6598
    %7494 = vmatprep.subr.bf16.mxu0 %v6603
    %7495 = vmatpush1.bf16.msra.mxu0 %v6602
    %7496 = vmatprep.subr.bf16.mxu0 %v6607
    %7497 = vmatpush1.bf16.msra.mxu0 %v6606
    %7498 = vmatprep.mubr.bf16.mxu0 %v4727
    %7499 = vmatmul.mubr.bf16.gmra.mrb[0].mxu0 %v4726
    %v7500 = vpop.f32.mrb[0].mxu0
    %v7501 = vadd.f32 %v7460, %v7500
    %v7502 = vpop.f32.mrb[0].mxu0
    %v7503 = vadd.f32 %v7462, %v7502
    %v7504 = vpop.f32.mrb[0].mxu0
    %v7505 = vpop.f32.mrb[0].mxu0
    %7506 = vdwg.mxu0
    %7507 = vmatprep.subr.bf16.mxu0 %v6611
    %7508 = vmatpush1.bf16.msra.mxu0 %v6610
    %7509 = vmatprep.subr.bf16.mxu0 %v6615
    %7510 = vmatpush1.bf16.msra.mxu0 %v6614
    %7511 = vmatprep.subr.bf16.mxu0 %v6619
    %7512 = vmatpush1.bf16.msra.mxu0 %v6618
    %7513 = vmatprep.subr.bf16.mxu0 %v6623
    %7514 = vmatpush1.bf16.msra.mxu0 %v6622
    %7515 = vmatprep.subr.bf16.mxu0 %v6627
    %7516 = vmatpush1.bf16.msra.mxu0 %v6626
    %7517 = vmatprep.subr.bf16.mxu0 %v6631
    %7518 = vmatpush1.bf16.msra.mxu0 %v6630
    %7519 = vmatprep.subr.bf16.mxu0 %v6635
    %7520 = vmatpush1.bf16.msra.mxu0 %v6634
    %7521 = vmatprep.subr.bf16.mxu0 %v6639
    %7522 = vmatpush1.bf16.msra.mxu0 %v6638
    %7523 = vmatprep.subr.bf16.mxu0 %v6643
    %7524 = vmatpush1.bf16.msra.mxu0 %v6642
    %7525 = vmatprep.subr.bf16.mxu0 %v6647
    %7526 = vmatpush1.bf16.msra.mxu0 %v6646
    %7527 = vmatprep.subr.bf16.mxu0 %v6651
    %7528 = vmatpush1.bf16.msra.mxu0 %v6650
    %7529 = vmatprep.subr.bf16.mxu0 %v6655
    %7530 = vmatpush1.bf16.msra.mxu0 %v6654
    %7531 = vmatprep.subr.bf16.mxu0 %v6659
    %7532 = vmatpush1.bf16.msra.mxu0 %v6658
    %7533 = vmatprep.subr.bf16.mxu0 %v6663
    %7534 = vmatpush1.bf16.msra.mxu0 %v6662
    %7535 = vmatprep.subr.bf16.mxu0 %v6667
    %7536 = vmatpush1.bf16.msra.mxu0 %v6666
    %7537 = vmatprep.subr.bf16.mxu0 %v6671
    %7538 = vmatpush1.bf16.msra.mxu0 %v6670
    %7539 = vmatprep.mubr.bf16.mxu0 %v4729
    %7540 = vmatmul.mubr.bf16.gmra.mrb[0].mxu0 %v4728
    %v7541 = vpop.f32.mrb[0].mxu0
    %v7542 = vadd.f32 %v7501, %v7541
    %v7543 = vpop.f32.mrb[0].mxu0
    %v7544 = vadd.f32 %v7503, %v7543
    %v7545 = vpop.f32.mrb[0].mxu0
    %v7546 = vpop.f32.mrb[0].mxu0
    %7547 = vdwg.mxu0
    %v7552 = vcombine.low %v7296, %v7298
    %v7553 = vcombine.low %v7542, %v7544
    %v7555 = vunpack.c.l.s4 1966171168
    %v7556 = vunpack.c.0.s8 %v7555
    %v7557 = vlaneseq
    %v7558 = vshrl.u32 %v7557, 7
    %v7559 = vsub.s32 %v7556, %v7558
    %v7560 = vrot.slane %v7552, %v7559
    %v7562 = vunpack.c.l.s4 1966171168
    %v7563 = vunpack.c.0.s8 %v7562
    %v7564 = vlaneseq
    %v7565 = vshrl.u32 %v7564, 7
    %v7566 = vsub.s32 %v7563, %v7565
    %v7567 = vrot.slane %v7553, %v7566
    %v7568 = vcombine.low %v7560, %v7567
    %v7569 = vcombine.high %v7560, %v7567
    %v7571 = vunpack.c.l.s4 1966171168
    %v7572 = vunpack.c.0.s8 %v7571
    %v7573 = vlaneseq
    %v7574 = vshrl.u32 %v7573, 7
    %v7575 = vsub.s32 %v7572, %v7574
    %v7576 = vrot.slane %v7568, %v7575
    %v7578 = vunpack.c.l.s4 1966171168
    %v7579 = vunpack.c.0.s8 %v7578
    %v7580 = vlaneseq
    %v7581 = vshrl.u32 %v7580, 7
    %v7582 = vsub.s32 %v7579, %v7581
    %v7583 = vrot.slane %v7569, %v7582
    %v7586 = vlaneseq
    %vm7587 = vcmp.ge.s32.totalorder %v7586, 0
    %vm7588 = vcmp.lt.s32.totalorder %v7586, 512
    %vm7589 = vmand %vm7587, %vm7588
    %7590 = vst.msk [vmem:[#allocation41] sm:$0xf] %vm7589, %v7576
    %7591 = vst.msk [vmem:[#allocation41 + $0x4] sm:$0xf] %vm7589, %v7583
    %v7592 = vadd.f32 %v7296, 0.0
    %v7593 = vadd.f32 %v7298, 0.0
    %v7594 = vadd.f32 %v7542, 0.0
    %v7595 = vadd.f32 %v7544, 0.0
    %v7600 = vcombine.low %v7592, %v7593
    %v7601 = vcombine.low %v7594, %v7595
    %v7603 = vunpack.c.l.s4 1983009808
    %v7604 = vunpack.c.0.s8 %v7603
    %v7605 = vlaneseq
    %v7606 = vshrl.u32 %v7605, 7
    %v7607 = vsub.s32 %v7604, %v7606
    %v7608 = vrot.slane %v7600, %v7607
    %v7610 = vunpack.c.l.s4 1983009808
    %v7611 = vunpack.c.0.s8 %v7610
    %v7612 = vlaneseq
    %v7613 = vshrl.u32 %v7612, 7
    %v7614 = vsub.s32 %v7611, %v7613
    %v7615 = vrot.slane %v7601, %v7614
    %v7616 = vcombine.low %v7608, %v7615
    %7618 = vst [vmem:[#allocation42] sm:$0xff] %v7616
    // Predicated region
    $region206: #{resnet_forward.1} parent=1 // pred_check
      _
    $region207: #{resnet_forward.1} parent=1 // pred_check_branch
      %7620 = sbr.rel (0) target = $region209
    $region208: #{resnet_forward.1} parent=1 // pred_region
      _
    $region209: #{resnet_forward.1} parent=1 // pred_fallthru
      _
    // Predicated region
    $region210: #{resnet_forward.1} parent=1 // pred_check
      _
    $region211: #{resnet_forward.1} parent=1 // pred_check_branch
      %7622 = sbr.rel (0) target = $region213
    $region212: #{resnet_forward.1} parent=1 // pred_region
      _
    $region213: #{resnet_forward.1} parent=1 // pred_fallthru
      _
    // Predicated region
    $region214: #{resnet_forward.1} parent=1 // pred_check
      _
    $region215: #{resnet_forward.1} parent=1 // pred_check_branch
      %7624 = sbr.rel (0) target = $region217
    $region216: #{resnet_forward.1} parent=1 // pred_region
      _
    $region217: #{resnet_forward.1} parent=1 // pred_fallthru
      _
    // Predicated region
    $region218: #{resnet_forward.1} parent=1 // pred_check
      _
    $region219: #{resnet_forward.1} parent=1 // pred_check_branch
      %7626 = sbr.rel (0) target = $region221
    $region220: #{resnet_forward.1} parent=1 // pred_region
      %s7628 = ssub.s32 128, 128
      %7629 = vsyncadd [#allocation4], %s7628
      %s7630 = sshll.u32 [#allocation41], 4
      %s7631 = int_to_ptr.vmem [resolvable:$true] %s7630
      %7636 = dma.vmem_to_hbm [thread:$0]  %s7631, 128, %s59, [#allocation4], 64, 64, 4
    $region221: #{resnet_forward.1} parent=1 // pred_fallthru
      _
    // Predicated region
    $region222: #{resnet_forward.1} parent=1 // pred_check
      _
    $region223: #{resnet_forward.1} parent=1 // pred_check_branch
      %7638 = sbr.rel (0) target = $region225
    $region224: #{resnet_forward.1} parent=1 // pred_region
      %s7640 = ssub.s32 128, 128
      %7641 = vsyncadd [#allocation43], %s7640
      %s7643 = sshll.u32 [#allocation42], 4
      %s7644 = int_to_ptr.vmem [resolvable:$true] %s7643
      %7646 = dma.vmem_to_hbm [thread:$0]  %s7644, 128, %s61, [#allocation43]
    $region225: #{resnet_forward.1} parent=1 // pred_fallthru
      _
    // Predicated region
    $region226: #{resnet_forward.1} parent=1 // pred_check
      _
    $region227: #{resnet_forward.1} parent=1 // pred_check_branch
      %7648 = sbr.rel (0) target = $region229
    $region228: #{resnet_forward.1} parent=1 // pred_region
      _
    $region229: #{resnet_forward.1} parent=1 // pred_fallthru
      _
    // Predicated region
    $region230: #{resnet_forward.1} parent=1 // pred_check
      _
    $region231: #{resnet_forward.1} parent=1 // pred_check_branch
      %7650 = sbr.rel (0) target = $region233
    $region232: #{resnet_forward.1} parent=1 // pred_region
      _
    $region233: #{resnet_forward.1} parent=1 // pred_fallthru
      _
    // Predicated region
    $region234: #{resnet_forward.1} parent=1 // pred_check
      _
    $region235: #{resnet_forward.1} parent=1 // pred_check_branch
      %7652 = sbr.rel (0) target = $region237
    $region236: #{resnet_forward.1} parent=1 // pred_region
      _
    $region237: #{resnet_forward.1} parent=1 // pred_fallthru
      _
    // Predicated region
    $region238: #{resnet_forward.1} parent=1 // pred_check
      _
    $region239: #{resnet_forward.1} parent=1 // pred_check_branch
      %7654 = sbr.rel (0) target = $region241
    $region240: #{resnet_forward.1} parent=1 // pred_region
      %7655 = dma.done [#allocation4], 128
    $region241: #{resnet_forward.1} parent=1 // pred_fallthru
      _
    // Predicated region
    $region242: #{resnet_forward.1} parent=1 // pred_check
      _
    $region243: #{resnet_forward.1} parent=1 // pred_check_branch
      %7657 = sbr.rel (0) target = $region245
    $region244: #{resnet_forward.1} parent=1 // pred_region
      %7658 = dma.done [#allocation43], 128
    $region245: #{resnet_forward.1} parent=1 // pred_fallthru
      _
    %7659 = vsyncpa [#allocation3], 1
    %7660 = vsyncpa [#allocation6], 1
    %7661 = vsyncpa [#allocation9], 1
    %7662 = vsyncpa [#allocation12], 1
    %7663 = vsyncpa [#allocation15], 1
    %7664 = vsyncpa [#allocation18], 1
    %7665 = vsyncpa [#allocation21], 1
    %7666 = vsyncpa [#allocation24], 1
    %7667 = vsyncpa [#allocation27], 1
    %7668 = vsyncpa [#allocation30], 1
    %7669 = vsyncpa [#allocation33], 1
    %7670 = vsyncpa [#allocation36], 1
    %7671 = vsyncpa [#allocation39], 1
    %7672 = vsyncpa [#allocation4], 1
    %7673 = vsyncpa [#allocation43], 1

</llo_original>
